<compile_context>
chip_gen: v7x
topology: tpu7x:2x2x1
jax: 0.10.0
libtpu: 0.0.40
codegen_flags: <defaults>
</compile_context>

<pallas_src>
import jax
import jax.numpy as jnp
from jax.experimental import pallas as pl
from jax.experimental.pallas import tpu as pltpu

LRELU_SLOPE = 0.2
BN_EPS = 1e-5


def _default_vmem_limit():
    try:
        cap = int(pltpu.get_tpu_info().vmem_capacity_bytes)
        return max(32 << 20, min(cap - (16 << 20), 96 << 20))
    except Exception:
        return 32 << 20


_VMEM_LIMIT = _default_vmem_limit()


def _compiler_params(semantics):
    return pltpu.CompilerParams(dimension_semantics=semantics,
                                vmem_limit_bytes=_VMEM_LIMIT)


def _leaky_relu(x):
    return jnp.where(x >= 0, x, LRELU_SLOPE * x)


def _divisors(n):
    return [d for d in range(1, n + 1) if n % d == 0]


def _pick_batch_tile(B, rows_per_image, bytes_per_image, target_rows=256,
                     budget_bytes=6 << 20):
    """Smallest divisor of B whose fused matmul M reaches target_rows, VMEM-capped."""
    fits = [d for d in _divisors(B) if d * bytes_per_image <= budget_bytes] or [1]
    for d in fits:
        if d * rows_per_image >= target_rows:
            return d
    return fits[-1]


def _pick_batch_tile_mem(B, bytes_per_image, budget_bytes=4 << 20):
    """Largest divisor of B fitting the VMEM budget (for elementwise kernels)."""
    fits = [d for d in _divisors(B) if d * bytes_per_image <= budget_bytes] or [1]
    return fits[-1]


# ------------------------------ Pallas kernels ------------------------------
#
# In-kernel im2col: x_ref holds a batch tile of the zero-padded input viewed
# (free host-side reshape) as (Bt, Hp/2, 2, Wp/2, 2*Cin) with
#   x_ref[b, u, s, v, t*Cin + c] == x_pad[b, 2u+s, 2v+t, c].
# A stride-2 4x4 conv output pixel (i, j) needs x_pad[2i+kh, 2j+kw, :]; with
# kh = 2*u0+s and kw = 2*v0+t this is exactly 8 CONTIGUOUS slices
# x_ref[:, u0:u0+Ho, s, v0:v0+Wo, :] whose lane order matches a weight stored
# in natural (kh, kw, cin) x Cout order.

def _conv_block(x_ref, w_ref, Bt, Ho, Wo):
    """Fused im2col + MXU matmul; returns raw conv output f32 (Bt*Ho*Wo, Cout)."""
    Cin2 = x_ref.shape[4]          # 2 * Cin
    Cout = w_ref.shape[1]
    M = Bt * Ho * Wo
    taps = []
    for kh in range(4):
        u0, s = divmod(kh, 2)      # kh = 2*u0 + s
        for v0 in range(2):        # kw = 2*v0 + t  (t lives in the lane axis)
            taps.append((u0, s, v0))
    if Cin2 >= 128:
        # Wide-channel layers: 8 accumulating dots (K = 2*Cin each) — keeps the
        # MXU fed with zero lane-axis relayout.
        acc = jnp.zeros((M, Cout), jnp.float32)
        for idx, (u0, s, v0) in enumerate(taps):
            piece = x_ref[:, u0:u0 + Ho, s, v0:v0 + Wo, :].reshape(M, Cin2)
            acc = acc + jnp.dot(piece, w_ref[idx * Cin2:(idx + 1) * Cin2, :],
                                preferred_element_type=jnp.float32)
        return acc
    # Narrow-channel layers: assemble the (M, 16*Cin) patch matrix, single dot.
    pieces = [x_ref[:, u0:u0 + Ho, s, v0:v0 + Wo, :] for (u0, s, v0) in taps]
    patches = jnp.concatenate(pieces, axis=-1).reshape(M, 8 * Cin2)
    return jnp.dot(patches, w_ref[...], preferred_element_type=jnp.float32)


def conv1_pad_kernel(x_ref, w_ref, o_ref):
    """conv1: im2col conv + LeakyReLU, written as conv2's zero-padded input."""
    Bt, Hop, Wop, Cout = o_ref.shape
    Ho, Wo = Hop - 2, Wop - 2
    acc = _conv_block(x_ref, w_ref, Bt, Ho, Wo)
    a = _leaky_relu(acc).reshape(Bt, Ho, Wo, Cout).astype(o_ref.dtype)
    o_ref[...] = jnp.zeros(o_ref.shape, o_ref.dtype)            # zero border
    o_ref[:, 1:Ho + 1, 1:Wo + 1, :] = a


def conv_stats_kernel(x_ref, w_ref, y_ref, s_ref):
    """conv2/3/4 pass 1: im2col conv -> bf16 y + f32 (sum, sum^2) BN partials."""
    Bt, Ho, Wo, Cout = y_ref.shape
    acc = _conv_block(x_ref, w_ref, Bt, Ho, Wo)                  # (M, Cout) f32
    ssum = jnp.sum(acc, axis=0, keepdims=True)
    ssq = jnp.sum(acc * acc, axis=0, keepdims=True)
    s_ref[0] = jnp.concatenate([ssum, ssq], axis=0)              # one (2, Cout) store
    y_ref[...] = acc.reshape(Bt, Ho, Wo, Cout).astype(y_ref.dtype)


def bn_lrelu_pad_kernel(y_ref, sc_ref, sh_ref, o_ref):
    """BN (precomputed scale/shift) + LeakyReLU, written zero-padded for next conv."""
    Bt, Ho, Wo, C = y_ref.shape
    z = y_ref[...].astype(jnp.float32) * sc_ref[...] + sh_ref[...]
    a = _leaky_relu(z).astype(o_ref.dtype)
    o_ref[...] = jnp.zeros(o_ref.shape, o_ref.dtype)
    o_ref[:, 1:Ho + 1, 1:Wo + 1, :] = a


def head_kernel(y_ref, sc_ref, sh_ref, wfc_ref, bias_ref, o_ref):
    """conv4 pass 2: BN + LeakyReLU + MaxPool2d(2) + Flatten + Linear + Sigmoid.

    y_ref is the raw conv4 output viewed (free host reshape) as
    (B, Hp, 2, Wp, 2*C): the 2x2 pool window is the s-axis + the two lane halves.
    """
    _, Hp, _, Wp, C2 = y_ref.shape
    C = C2 // 2
    scale = sc_ref[...]
    shift = sh_ref[...]
    pooled = None
    for s in range(2):
        for t in range(2):
            z = y_ref[:, :, s, :, t * C:(t + 1) * C].astype(jnp.float32)
            z = _leaky_relu(z * scale + shift)
            pooled = z if pooled is None else jnp.maximum(pooled, z)
    # FC as a VPU/XLU reduction (F is tiny); wfc is stored in the pooled NHWC
    # (h, w, c) flatten order so no activation transpose is needed.
    prod = pooled * wfc_ref[...]                                 # (B, Hp, Wp, C)
    logit = jnp.sum(prod, axis=(1, 2))                           # (B, C)
    logit = jnp.sum(logit, axis=1, keepdims=True)                # (B, 1)
    o_ref[...] = jax.nn.sigmoid(logit + bias_ref[0])


# ------------------------------ kernel wrappers ------------------------------

def conv1_lrelu_pad(x_nhwc, w):
    """conv1 + LeakyReLU; output is already zero-padded (pad=1) for conv2."""
    B, H, W, Cin = x_nhwc.shape
    Ho, Wo = H // 2, W // 2
    Cout = w.shape[1]
    xp = jnp.pad(x_nhwc.astype(jnp.bfloat16), ((0, 0), (1, 1), (1, 1), (0, 0)))
    xr = xp.reshape(B, (H + 2) // 2, 2, (W + 2) // 2, 2 * Cin)   # free view
    in_bytes = (H + 2) * (W + 2) * Cin * 2
    out_bytes = (Ho + 2) * (Wo + 2) * Cout * 2
    work_bytes = Ho * Wo * (16 * Cin * 2 + Cout * 4)             # patches + f32 acc
    Bt = _pick_batch_tile(B, Ho * Wo, 2 * (in_bytes + out_bytes) + work_bytes)
    G = B // Bt
    return pl.pallas_call(
        conv1_pad_kernel,
        out_shape=jax.ShapeDtypeStruct((B, Ho + 2, Wo + 2, Cout), jnp.bfloat16),
        grid=(G,),
        in_specs=[pl.BlockSpec((Bt,) + xr.shape[1:], lambda b: (b, 0, 0, 0, 0)),
                  pl.BlockSpec(w.shape, lambda b: (0, 0))],      # resident weight
        out_specs=pl.BlockSpec((Bt, Ho + 2, Wo + 2, Cout), lambda b: (b, 0, 0, 0)),
        compiler_params=_compiler_params(("parallel",)),
    )(xr, w.astype(jnp.bfloat16))


def conv_bn_stats(a_pad, w):
    """conv (stride 2; padding baked into a_pad) -> bf16 y + per-tile BN partials."""
    B, Hp, Wp, Cin = a_pad.shape                                 # zero-padded input
    Ho, Wo = (Hp - 2) // 2, (Wp - 2) // 2
    Cout = w.shape[1]
    xr = a_pad.reshape(B, Hp // 2, 2, Wp // 2, 2 * Cin)          # free view
    in_bytes = Hp * Wp * Cin * 2
    y_bytes = Ho * Wo * Cout * 2
    work_bytes = Ho * Wo * (16 * Cin * 2 + Cout * 4)
    Bt = _pick_batch_tile(B, Ho * Wo, 2 * (in_bytes + y_bytes) + work_bytes)
    G = B // Bt
    return pl.pallas_call(
        conv_stats_kernel,
        out_shape=(jax.ShapeDtypeStruct((B, Ho, Wo, Cout), jnp.bfloat16),
                   jax.ShapeDtypeStruct((G, 2, Cout), jnp.float32)),
        grid=(G,),
        in_specs=[pl.BlockSpec((Bt,) + xr.shape[1:], lambda b: (b, 0, 0, 0, 0)),
                  pl.BlockSpec(w.shape, lambda b: (0, 0))],
        out_specs=(pl.BlockSpec((Bt, Ho, Wo, Cout), lambda b: (b, 0, 0, 0)),
                   pl.BlockSpec((1, 2, Cout), lambda b: (b, 0, 0))),
        compiler_params=_compiler_params(("parallel",)),
    )(xr, w.astype(jnp.bfloat16))


def _bn_scale_shift(partials, gamma, beta, m_total):
    """Finalize full-batch train-mode BN (biased variance) -> (1, C) scale/shift."""
    s = jnp.sum(partials.astype(jnp.float32), axis=0)            # (2, C)
    mean = s[0] / m_total
    var = jnp.maximum(s[1] / m_total - mean * mean, 0.0)
    scale = gamma.astype(jnp.float32) * jax.lax.rsqrt(var + BN_EPS)
    shift = beta.astype(jnp.float32) - mean * scale
    return scale.reshape(1, -1), shift.reshape(1, -1)


def bn_lrelu_pad(y, scale, shift):
    B, Ho, Wo, C = y.shape
    per_img = 2 * (Ho * Wo * C * 2 + (Ho + 2) * (Wo + 2) * C * 2)
    Bt = _pick_batch_tile_mem(B, per_img)
    G = B // Bt
    return pl.pallas_call(
        bn_lrelu_pad_kernel,
        out_shape=jax.ShapeDtypeStruct((B, Ho + 2, Wo + 2, C), jnp.bfloat16),
        grid=(G,),
        in_specs=[pl.BlockSpec((Bt, Ho, Wo, C), lambda b: (b, 0, 0, 0)),
                  pl.BlockSpec((1, C), lambda b: (0, 0)),
                  pl.BlockSpec((1, C), lambda b: (0, 0))],
        out_specs=pl.BlockSpec((Bt, Ho + 2, Wo + 2, C), lambda b: (b, 0, 0, 0)),
        compiler_params=_compiler_params(("parallel",)),
    )(y, scale, shift)


def head(y4, scale, shift, wfc, bias):
    """BN4 + LeakyReLU + MaxPool2d(2) + Flatten + Linear + Sigmoid (whole batch)."""
    B, Ho, Wo, C = y4.shape
    Hp, Wp = Ho // 2, Wo // 2
    yr = y4.reshape(B, Hp, 2, Wp, 2 * C)                         # free view
    return pl.pallas_call(
        head_kernel,
        out_shape=jax.ShapeDtypeStruct((B, 1), jnp.float32),
        grid=(1,),
        in_specs=[pl.BlockSpec((B, Hp, 2, Wp, 2 * C), lambda i: (0, 0, 0, 0, 0)),
                  pl.BlockSpec((1, C), lambda i: (0, 0)),
                  pl.BlockSpec((1, C), lambda i: (0, 0)),
                  pl.BlockSpec((Hp, Wp, C), lambda i: (0, 0, 0)),
                  pl.BlockSpec(memory_space=pltpu.MemorySpace.SMEM)],
        out_specs=pl.BlockSpec((B, 1), lambda i: (0, 0)),
        compiler_params=_compiler_params(("arbitrary",)),
    )(yr, scale, shift, wfc.astype(jnp.float32), bias.astype(jnp.float32))


# ---------------------------------- model ----------------------------------

def init_params(key, input_height, ndf):
    assert input_height % 32 == 0, "architecture requires input_height % 32 == 0"
    ks = jax.random.split(key, 6)
    scale = 0.05
    hp = input_height // 32                      # pooled spatial size
    return {
        # Conv weights stored in im2col (kh, kw, cin) x Cout order.  A PyTorch
        # (Cout, Cin, 4, 4) weight maps via w.permute(2, 3, 1, 0).reshape(16*Cin, Cout).
        "w1": scale * jax.random.normal(ks[0], (4 * 4 * 3, ndf), jnp.float32),
        "w2": scale * jax.random.normal(ks[1], (4 * 4 * ndf, ndf * 2), jnp.float32),
        "w3": scale * jax.random.normal(ks[2], (4 * 4 * ndf * 2, ndf * 4), jnp.float32),
        "w4": scale * jax.random.normal(ks[3], (4 * 4 * ndf * 4, ndf * 8), jnp.float32),
        # BatchNorm affine params at nn.BatchNorm2d defaults (gamma=1, beta=0).
        "g2": jnp.ones((ndf * 2,), jnp.float32), "b2": jnp.zeros((ndf * 2,), jnp.float32),
        "g3": jnp.ones((ndf * 4,), jnp.float32), "b3": jnp.zeros((ndf * 4,), jnp.float32),
        "g4": jnp.ones((ndf * 8,), jnp.float32), "b4": jnp.zeros((ndf * 8,), jnp.float32),
        # FC weight pre-permuted to pooled NHWC (h, w, c) flatten order: a PyTorch
        # Linear weight (1, C*hp*hp) maps via .reshape(C, hp, hp).transpose(1, 2, 0).
        "wfc": scale * jax.random.normal(ks[4], (hp, hp, ndf * 8), jnp.float32),
        "bfc": scale * jax.random.normal(ks[5], (1,), jnp.float32),
    }


@jax.jit
def discriminator_forward(x_nchw, params):
    x = jnp.transpose(x_nchw, (0, 2, 3, 1))                      # NCHW -> NHWC
    B = x.shape[0]

    # conv1 + LeakyReLU (output already zero-padded for conv2)
    a1p = conv1_lrelu_pad(x, params["w1"])

    # conv2 / conv3: conv -> (finalize BN stats once) -> BN + LeakyReLU + re-pad
    y2, p2 = conv_bn_stats(a1p, params["w2"])
    sc2, sh2 = _bn_scale_shift(p2, params["g2"], params["b2"],
                               float(B * y2.shape[1] * y2.shape[2]))
    a2p = bn_lrelu_pad(y2, sc2, sh2)

    y3, p3 = conv_bn_stats(a2p, params["w3"])
    sc3, sh3 = _bn_scale_shift(p3, params["g3"], params["b3"],
                               float(B * y3.shape[1] * y3.shape[2]))
    a3p = bn_lrelu_pad(y3, sc3, sh3)

    # conv4 -> fused BN + LeakyReLU + MaxPool2d(2) + Flatten + Linear + Sigmoid
    y4, p4 = conv_bn_stats(a3p, params["w4"])
    sc4, sh4 = _bn_scale_shift(p4, params["g4"], params["b4"],
                               float(B * y4.shape[1] * y4.shape[2]))
    return head(y4, sc4, sh4, params["wfc"], params["bfc"])


# ------------------------------ pure-JAX reference ------------------------------

def reference_forward(x_nchw, params):
    """f32 reference mirroring the PyTorch module (train-mode BatchNorm)."""
    x = jnp.transpose(x_nchw, (0, 2, 3, 1)).astype(jnp.float32)

    def conv(h, w_flat):
        cin = h.shape[-1]
        w = w_flat.reshape(4, 4, cin, -1)                        # HWIO
        return jax.lax.conv_general_dilated(
            h, w, window_strides=(2, 2), padding=((1, 1), (1, 1)),
            dimension_numbers=("NHWC", "HWIO", "NHWC"))

    def bn_lrelu(y, g, b):
        mean = jnp.mean(y, axis=(0, 1, 2))
        var = jnp.mean(jnp.square(y - mean), axis=(0, 1, 2))     # biased, as in PyTorch fwd
        z = (y - mean) * jax.lax.rsqrt(var + BN_EPS) * g + b
        return jnp.where(z >= 0, z, LRELU_SLOPE * z)

    y1 = conv(x, params["w1"])
    a1 = jnp.where(y1 >= 0, y1, LRELU_SLOPE * y1)
    a2 = bn_lrelu(conv(a1, params["w2"]), params["g2"], params["b2"])
    a3 = bn_lrelu(conv(a2, params["w3"]), params["g3"], params["b3"])
    a4 = bn_lrelu(conv(a3, params["w4"]), params["g4"], params["b4"])
    pooled = jax.lax.reduce_window(a4, -jnp.inf, jax.lax.max,
                                   (1, 2, 2, 1), (1, 2, 2, 1), "VALID")
    logit = jnp.sum(pooled * params["wfc"][None], axis=(1, 2, 3)) + params["bfc"][0]
    return jax.nn.sigmoid(logit)[:, None]


if __name__ == "__main__":
    input_height = 32     # must be a multiple of 32 for this architecture
    ndf = 8
    batch = 2

    key = jax.random.PRNGKey(0)
    k_x, k_p = jax.random.split(key)
    x = jax.random.normal(k_x, (batch, 3, input_height, input_height), jnp.float32)
    params = init_params(k_p, input_height, ndf)

    out = jax.block_until_ready(discriminator_forward(x, params))
    assert out.shape == (batch, 1)
    assert bool(jnp.all(jnp.isfinite(out)))

    ref = reference_forward(x, params)
    err = float(jnp.max(jnp.abs(out - ref)))
    assert err < 5e-2, f"mismatch vs reference: {err}"
    print("KERNEL_OK")
</pallas_src>

<mosaic_0001>
module attributes {stable_mosaic.version = 11 : i64} {
  func.func @conv1_pad_kernel(%arg0: i32, %arg1: memref<1x17x2x17x6xbf16, #tpu.memory_space<vmem>>, %arg2: memref<48x8xbf16, #tpu.memory_space<vmem>>, %arg3: memref<1x18x18x8xbf16, #tpu.memory_space<vmem>>) attributes {dimension_semantics = [#tpu.dimension_semantics<parallel>], iteration_bounds = array<i64: 2>, scalar_prefetch = 0 : i64, scratch_operands = 0 : i64, tpu.core_type = #tpu.core_type<tc>, window_params = [{transform_indices = @transform_0, window_bounds = array<i64: 1, 17, 2, 17, 6>}, {pipeline_mode = #tpu.pipeline_mode<synchronous>, transform_indices = @transform_1, window_bounds = array<i64: 48, 8>}, {transform_indices = @transform_2, window_bounds = array<i64: 1, 18, 18, 8>}]} {
    %c0 = arith.constant 0 : index
    %c0_0 = arith.constant 0 : index
    %c0_1 = arith.constant 0 : index
    %c0_2 = arith.constant 0 : index
    %c0_3 = arith.constant 0 : index
    %0 = vector.load %arg1[%c0, %c0_0, %c0_1, %c0_2, %c0_3] : memref<1x17x2x17x6xbf16, #tpu.memory_space<vmem>>, vector<1x16x1x16x6xbf16>
    %1 = vector.shape_cast %0 : vector<1x16x1x16x6xbf16> to vector<1x16x16x6xbf16>
    %c0_4 = arith.constant 0 : index
    %c0_5 = arith.constant 0 : index
    %c0_6 = arith.constant 0 : index
    %c1 = arith.constant 1 : index
    %c0_7 = arith.constant 0 : index
    %2 = vector.load %arg1[%c0_4, %c0_5, %c0_6, %c1, %c0_7] : memref<1x17x2x17x6xbf16, #tpu.memory_space<vmem>>, vector<1x16x1x16x6xbf16>
    %3 = vector.shape_cast %2 : vector<1x16x1x16x6xbf16> to vector<1x16x16x6xbf16>
    %c0_8 = arith.constant 0 : index
    %c0_9 = arith.constant 0 : index
    %c1_10 = arith.constant 1 : index
    %c0_11 = arith.constant 0 : index
    %c0_12 = arith.constant 0 : index
    %4 = vector.load %arg1[%c0_8, %c0_9, %c1_10, %c0_11, %c0_12] : memref<1x17x2x17x6xbf16, #tpu.memory_space<vmem>>, vector<1x16x1x16x6xbf16>
    %5 = vector.shape_cast %4 : vector<1x16x1x16x6xbf16> to vector<1x16x16x6xbf16>
    %c0_13 = arith.constant 0 : index
    %c0_14 = arith.constant 0 : index
    %c1_15 = arith.constant 1 : index
    %c1_16 = arith.constant 1 : index
    %c0_17 = arith.constant 0 : index
    %6 = vector.load %arg1[%c0_13, %c0_14, %c1_15, %c1_16, %c0_17] : memref<1x17x2x17x6xbf16, #tpu.memory_space<vmem>>, vector<1x16x1x16x6xbf16>
    %7 = vector.shape_cast %6 : vector<1x16x1x16x6xbf16> to vector<1x16x16x6xbf16>
    %c0_18 = arith.constant 0 : index
    %c1_19 = arith.constant 1 : index
    %c0_20 = arith.constant 0 : index
    %c0_21 = arith.constant 0 : index
    %c0_22 = arith.constant 0 : index
    %8 = vector.load %arg1[%c0_18, %c1_19, %c0_20, %c0_21, %c0_22] : memref<1x17x2x17x6xbf16, #tpu.memory_space<vmem>>, vector<1x16x1x16x6xbf16>
    %9 = vector.shape_cast %8 : vector<1x16x1x16x6xbf16> to vector<1x16x16x6xbf16>
    %c0_23 = arith.constant 0 : index
    %c1_24 = arith.constant 1 : index
    %c0_25 = arith.constant 0 : index
    %c1_26 = arith.constant 1 : index
    %c0_27 = arith.constant 0 : index
    %10 = vector.load %arg1[%c0_23, %c1_24, %c0_25, %c1_26, %c0_27] : memref<1x17x2x17x6xbf16, #tpu.memory_space<vmem>>, vector<1x16x1x16x6xbf16>
    %11 = vector.shape_cast %10 : vector<1x16x1x16x6xbf16> to vector<1x16x16x6xbf16>
    %c0_28 = arith.constant 0 : index
    %c1_29 = arith.constant 1 : index
    %c1_30 = arith.constant 1 : index
    %c0_31 = arith.constant 0 : index
    %c0_32 = arith.constant 0 : index
    %12 = vector.load %arg1[%c0_28, %c1_29, %c1_30, %c0_31, %c0_32] : memref<1x17x2x17x6xbf16, #tpu.memory_space<vmem>>, vector<1x16x1x16x6xbf16>
    %13 = vector.shape_cast %12 : vector<1x16x1x16x6xbf16> to vector<1x16x16x6xbf16>
    %c0_33 = arith.constant 0 : index
    %c1_34 = arith.constant 1 : index
    %c1_35 = arith.constant 1 : index
    %c1_36 = arith.constant 1 : index
    %c0_37 = arith.constant 0 : index
    %14 = vector.load %arg1[%c0_33, %c1_34, %c1_35, %c1_36, %c0_37] : memref<1x17x2x17x6xbf16, #tpu.memory_space<vmem>>, vector<1x16x1x16x6xbf16>
    %15 = vector.shape_cast %14 : vector<1x16x1x16x6xbf16> to vector<1x16x16x6xbf16>
    %16 = tpu.concatenate %1, %3, %5, %7, %9, %11, %13, %15 in 3 : vector<1x16x16x6xbf16>, vector<1x16x16x6xbf16>, vector<1x16x16x6xbf16>, vector<1x16x16x6xbf16>, vector<1x16x16x6xbf16>, vector<1x16x16x6xbf16>, vector<1x16x16x6xbf16>, vector<1x16x16x6xbf16> -> vector<1x16x16x48xbf16>
    %17 = vector.shape_cast %16 : vector<1x16x16x48xbf16> to vector<256x48xbf16>
    %c0_38 = arith.constant 0 : index
    %c0_39 = arith.constant 0 : index
    %18 = vector.load %arg2[%c0_38, %c0_39] : memref<48x8xbf16, #tpu.memory_space<vmem>>, vector<48x8xbf16>
    %cst = arith.constant dense<0.000000e+00> : vector<256x8xf32>
    %19 = tpu.matmul %17, %18, %cst {dimension_numbers = #tpu.dot_dimension_numbers<[1], [0], [0], [1], [0, 0, 1, 1], [], []>} : vector<256x48xbf16>, vector<48x8xbf16>, vector<256x8xf32> -> vector<256x8xf32>
    %cst_40 = arith.constant 0.000000e+00 : f32
    %20 = vector.broadcast %cst_40 : f32 to vector<256x8xf32>
    %21 = arith.cmpf oge, %19, %20 : vector<256x8xf32>
    %cst_41 = arith.constant 2.000000e-01 : f32
    %22 = vector.broadcast %cst_41 : f32 to vector<256x8xf32>
    %23 = arith.mulf %22, %19 : vector<256x8xf32>
    %24 = arith.select %21, %19, %23 : vector<256x8xi1>, vector<256x8xf32>
    %25 = vector.shape_cast %24 : vector<256x8xf32> to vector<1x16x16x8xf32>
    %26 = arith.truncf %25 : vector<1x16x16x8xf32> to vector<1x16x16x8xbf16>
    %cst_42 = arith.constant 0.000000e+00 : bf16
    %27 = vector.broadcast %cst_42 : bf16 to vector<1x18x18x8xbf16>
    %c0_43 = arith.constant 0 : index
    %c0_44 = arith.constant 0 : index
    %c0_45 = arith.constant 0 : index
    %c0_46 = arith.constant 0 : index
    %28 = vector.load %arg3[%c0_43, %c0_44, %c0_45, %c0_46] : memref<1x18x18x8xbf16, #tpu.memory_space<vmem>>, vector<1x18x18x8xbf16>
    tpu.vector_store %arg3[%c0_43, %c0_44, %c0_45, %c0_46], %27 {strides = array<i32>} : memref<1x18x18x8xbf16, #tpu.memory_space<vmem>>, vector<1x18x18x8xbf16>,
    %c0_47 = arith.constant 0 : index
    %c1_48 = arith.constant 1 : index
    %c1_49 = arith.constant 1 : index
    %c0_50 = arith.constant 0 : index
    %29 = vector.load %arg3[%c0_47, %c1_48, %c1_49, %c0_50] : memref<1x18x18x8xbf16, #tpu.memory_space<vmem>>, vector<1x16x16x8xbf16>
    tpu.vector_store %arg3[%c0_47, %c1_48, %c1_49, %c0_50], %26 {strides = array<i32>} : memref<1x18x18x8xbf16, #tpu.memory_space<vmem>>, vector<1x16x16x8xbf16>,
    return
  }
  func.func @transform_0(%arg0: i32) -> (i32, i32, i32, i32, i32) {
    %c0_i32 = arith.constant 0 : i32
    %c0_i32_0 = arith.constant 0 : i32
    %c0_i32_1 = arith.constant 0 : i32
    %c0_i32_2 = arith.constant 0 : i32
    %c0_i32_3 = arith.constant 0 : i32
    return %arg0, %c0_i32, %c0_i32_0, %c0_i32_1, %c0_i32_2 : i32, i32, i32, i32, i32
  }
  func.func @transform_1(%arg0: i32) -> (i32, i32) {
    %c0_i32 = arith.constant 0 : i32
    %c0_i32_0 = arith.constant 0 : i32
    %c0_i32_1 = arith.constant 0 : i32
    return %c0_i32, %c0_i32_0 : i32, i32
  }
  func.func @transform_2(%arg0: i32) -> (i32, i32, i32, i32) {
    %c0_i32 = arith.constant 0 : i32
    %c0_i32_0 = arith.constant 0 : i32
    %c0_i32_1 = arith.constant 0 : i32
    %c0_i32_2 = arith.constant 0 : i32
    return %arg0, %c0_i32, %c0_i32_0, %c0_i32_1 : i32, i32, i32, i32
  }
}

module attributes {stable_mosaic.version = 11 : i64} {
  func.func @conv_stats_kernel(%arg0: i32, %arg1: memref<2x9x2x9x16xbf16, #tpu.memory_space<vmem>>, %arg2: memref<128x16xbf16, #tpu.memory_space<vmem>>, %arg3: memref<2x8x8x16xbf16, #tpu.memory_space<vmem>>, %arg4: memref<1x2x16xf32, #tpu.memory_space<vmem>>) attributes {dimension_semantics = [#tpu.dimension_semantics<parallel>], iteration_bounds = array<i64: 1>, scalar_prefetch = 0 : i64, scratch_operands = 0 : i64, tpu.core_type = #tpu.core_type<tc>, window_params = [{transform_indices = @transform_0, window_bounds = array<i64: 2, 9, 2, 9, 16>}, {pipeline_mode = #tpu.pipeline_mode<synchronous>, transform_indices = @transform_1, window_bounds = array<i64: 128, 16>}, {transform_indices = @transform_2, window_bounds = array<i64: 2, 8, 8, 16>}, {transform_indices = @transform_3, window_bounds = array<i64: 1, 2, 16>}]} {
    %c0 = arith.constant 0 : index
    %c0_0 = arith.constant 0 : index
    %c0_1 = arith.constant 0 : index
    %c0_2 = arith.constant 0 : index
    %c0_3 = arith.constant 0 : index
    %0 = vector.load %arg1[%c0, %c0_0, %c0_1, %c0_2, %c0_3] : memref<2x9x2x9x16xbf16, #tpu.memory_space<vmem>>, vector<2x8x1x8x16xbf16>
    %1 = vector.shape_cast %0 : vector<2x8x1x8x16xbf16> to vector<2x8x8x16xbf16>
    %c0_4 = arith.constant 0 : index
    %c0_5 = arith.constant 0 : index
    %c0_6 = arith.constant 0 : index
    %c1 = arith.constant 1 : index
    %c0_7 = arith.constant 0 : index
    %2 = vector.load %arg1[%c0_4, %c0_5, %c0_6, %c1, %c0_7] : memref<2x9x2x9x16xbf16, #tpu.memory_space<vmem>>, vector<2x8x1x8x16xbf16>
    %3 = vector.shape_cast %2 : vector<2x8x1x8x16xbf16> to vector<2x8x8x16xbf16>
    %c0_8 = arith.constant 0 : index
    %c0_9 = arith.constant 0 : index
    %c1_10 = arith.constant 1 : index
    %c0_11 = arith.constant 0 : index
    %c0_12 = arith.constant 0 : index
    %4 = vector.load %arg1[%c0_8, %c0_9, %c1_10, %c0_11, %c0_12] : memref<2x9x2x9x16xbf16, #tpu.memory_space<vmem>>, vector<2x8x1x8x16xbf16>
    %5 = vector.shape_cast %4 : vector<2x8x1x8x16xbf16> to vector<2x8x8x16xbf16>
    %c0_13 = arith.constant 0 : index
    %c0_14 = arith.constant 0 : index
    %c1_15 = arith.constant 1 : index
    %c1_16 = arith.constant 1 : index
    %c0_17 = arith.constant 0 : index
    %6 = vector.load %arg1[%c0_13, %c0_14, %c1_15, %c1_16, %c0_17] : memref<2x9x2x9x16xbf16, #tpu.memory_space<vmem>>, vector<2x8x1x8x16xbf16>
    %7 = vector.shape_cast %6 : vector<2x8x1x8x16xbf16> to vector<2x8x8x16xbf16>
    %c0_18 = arith.constant 0 : index
    %c1_19 = arith.constant 1 : index
    %c0_20 = arith.constant 0 : index
    %c0_21 = arith.constant 0 : index
    %c0_22 = arith.constant 0 : index
    %8 = vector.load %arg1[%c0_18, %c1_19, %c0_20, %c0_21, %c0_22] : memref<2x9x2x9x16xbf16, #tpu.memory_space<vmem>>, vector<2x8x1x8x16xbf16>
    %9 = vector.shape_cast %8 : vector<2x8x1x8x16xbf16> to vector<2x8x8x16xbf16>
    %c0_23 = arith.constant 0 : index
    %c1_24 = arith.constant 1 : index
    %c0_25 = arith.constant 0 : index
    %c1_26 = arith.constant 1 : index
    %c0_27 = arith.constant 0 : index
    %10 = vector.load %arg1[%c0_23, %c1_24, %c0_25, %c1_26, %c0_27] : memref<2x9x2x9x16xbf16, #tpu.memory_space<vmem>>, vector<2x8x1x8x16xbf16>
    %11 = vector.shape_cast %10 : vector<2x8x1x8x16xbf16> to vector<2x8x8x16xbf16>
    %c0_28 = arith.constant 0 : index
    %c1_29 = arith.constant 1 : index
    %c1_30 = arith.constant 1 : index
    %c0_31 = arith.constant 0 : index
    %c0_32 = arith.constant 0 : index
    %12 = vector.load %arg1[%c0_28, %c1_29, %c1_30, %c0_31, %c0_32] : memref<2x9x2x9x16xbf16, #tpu.memory_space<vmem>>, vector<2x8x1x8x16xbf16>
    %13 = vector.shape_cast %12 : vector<2x8x1x8x16xbf16> to vector<2x8x8x16xbf16>
    %c0_33 = arith.constant 0 : index
    %c1_34 = arith.constant 1 : index
    %c1_35 = arith.constant 1 : index
    %c1_36 = arith.constant 1 : index
    %c0_37 = arith.constant 0 : index
    %14 = vector.load %arg1[%c0_33, %c1_34, %c1_35, %c1_36, %c0_37] : memref<2x9x2x9x16xbf16, #tpu.memory_space<vmem>>, vector<2x8x1x8x16xbf16>
    %15 = vector.shape_cast %14 : vector<2x8x1x8x16xbf16> to vector<2x8x8x16xbf16>
    %16 = tpu.concatenate %1, %3, %5, %7, %9, %11, %13, %15 in 3 : vector<2x8x8x16xbf16>, vector<2x8x8x16xbf16>, vector<2x8x8x16xbf16>, vector<2x8x8x16xbf16>, vector<2x8x8x16xbf16>, vector<2x8x8x16xbf16>, vector<2x8x8x16xbf16>, vector<2x8x8x16xbf16> -> vector<2x8x8x128xbf16>
    %17 = vector.shape_cast %16 : vector<2x8x8x128xbf16> to vector<128x128xbf16>
    %c0_38 = arith.constant 0 : index
    %c0_39 = arith.constant 0 : index
    %18 = vector.load %arg2[%c0_38, %c0_39] : memref<128x16xbf16, #tpu.memory_space<vmem>>, vector<128x16xbf16>
    %cst = arith.constant dense<0.000000e+00> : vector<128x16xf32>
    %19 = tpu.matmul %17, %18, %cst {dimension_numbers = #tpu.dot_dimension_numbers<[1], [0], [0], [1], [0, 0, 1, 1], [], []>} : vector<128x128xbf16>, vector<128x16xbf16>, vector<128x16xf32> -> vector<128x16xf32>
    %cst_40 = arith.constant dense<0.000000e+00> : vector<16xf32>
    %20 = vector.multi_reduction <add>, %19, %cst_40 [0] : vector<128x16xf32> to vector<16xf32>
    %21 = vector.shape_cast %20 : vector<16xf32> to vector<1x16xf32>
    %22 = arith.mulf %19, %19 : vector<128x16xf32>
    %cst_41 = arith.constant dense<0.000000e+00> : vector<16xf32>
    %23 = vector.multi_reduction <add>, %22, %cst_41 [0] : vector<128x16xf32> to vector<16xf32>
    %24 = vector.shape_cast %23 : vector<16xf32> to vector<1x16xf32>
    %25 = tpu.concatenate %21, %24 in 0 : vector<1x16xf32>, vector<1x16xf32> -> vector<2x16xf32>
    %c0_42 = arith.constant 0 : index
    %c0_43 = arith.constant 0 : index
    %c0_44 = arith.constant 0 : index
    %26 = vector.load %arg4[%c0_42, %c0_43, %c0_44] : memref<1x2x16xf32, #tpu.memory_space<vmem>>, vector<1x2x16xf32>
    %27 = vector.shape_cast %26 : vector<1x2x16xf32> to vector<2x16xf32>
    %28 = vector.shape_cast %25 : vector<2x16xf32> to vector<1x2x16xf32>
    tpu.vector_store %arg4[%c0_42, %c0_43, %c0_44], %28 {strides = array<i32>} : memref<1x2x16xf32, #tpu.memory_space<vmem>>, vector<1x2x16xf32>,
    %29 = vector.shape_cast %19 : vector<128x16xf32> to vector<2x8x8x16xf32>
    %30 = arith.truncf %29 : vector<2x8x8x16xf32> to vector<2x8x8x16xbf16>
    %c0_45 = arith.constant 0 : index
    %c0_46 = arith.constant 0 : index
    %c0_47 = arith.constant 0 : index
    %c0_48 = arith.constant 0 : index
    %31 = vector.load %arg3[%c0_45, %c0_46, %c0_47, %c0_48] : memref<2x8x8x16xbf16, #tpu.memory_space<vmem>>, vector<2x8x8x16xbf16>
    tpu.vector_store %arg3[%c0_45, %c0_46, %c0_47, %c0_48], %30 {strides = array<i32>} : memref<2x8x8x16xbf16, #tpu.memory_space<vmem>>, vector<2x8x8x16xbf16>,
    return
  }
  func.func @transform_0(%arg0: i32) -> (i32, i32, i32, i32, i32) {
    %c0_i32 = arith.constant 0 : i32
    %c0_i32_0 = arith.constant 0 : i32
    %c0_i32_1 = arith.constant 0 : i32
    %c0_i32_2 = arith.constant 0 : i32
    %c0_i32_3 = arith.constant 0 : i32
    return %arg0, %c0_i32, %c0_i32_0, %c0_i32_1, %c0_i32_2 : i32, i32, i32, i32, i32
  }
  func.func @transform_1(%arg0: i32) -> (i32, i32) {
    %c0_i32 = arith.constant 0 : i32
    %c0_i32_0 = arith.constant 0 : i32
    %c0_i32_1 = arith.constant 0 : i32
    return %c0_i32, %c0_i32_0 : i32, i32
  }
  func.func @transform_2(%arg0: i32) -> (i32, i32, i32, i32) {
    %c0_i32 = arith.constant 0 : i32
    %c0_i32_0 = arith.constant 0 : i32
    %c0_i32_1 = arith.constant 0 : i32
    %c0_i32_2 = arith.constant 0 : i32
    return %arg0, %c0_i32, %c0_i32_0, %c0_i32_1 : i32, i32, i32, i32
  }
  func.func @transform_3(%arg0: i32) -> (i32, i32, i32) {
    %c0_i32 = arith.constant 0 : i32
    %c0_i32_0 = arith.constant 0 : i32
    %c0_i32_1 = arith.constant 0 : i32
    return %arg0, %c0_i32, %c0_i32_0 : i32, i32, i32
  }
}

module attributes {stable_mosaic.version = 11 : i64} {
  func.func @bn_lrelu_pad_kernel(%arg0: i32, %arg1: memref<2x8x8x16xbf16, #tpu.memory_space<vmem>>, %arg2: memref<1x16xf32, #tpu.memory_space<vmem>>, %arg3: memref<1x16xf32, #tpu.memory_space<vmem>>, %arg4: memref<2x10x10x16xbf16, #tpu.memory_space<vmem>>) attributes {dimension_semantics = [#tpu.dimension_semantics<parallel>], iteration_bounds = array<i64: 1>, scalar_prefetch = 0 : i64, scratch_operands = 0 : i64, tpu.core_type = #tpu.core_type<tc>, window_params = [{transform_indices = @transform_0, window_bounds = array<i64: 2, 8, 8, 16>}, {pipeline_mode = #tpu.pipeline_mode<synchronous>, transform_indices = @transform_1, window_bounds = array<i64: 1, 16>}, {pipeline_mode = #tpu.pipeline_mode<synchronous>, transform_indices = @transform_2, window_bounds = array<i64: 1, 16>}, {transform_indices = @transform_3, window_bounds = array<i64: 2, 10, 10, 16>}]} {
    %c0 = arith.constant 0 : index
    %c0_0 = arith.constant 0 : index
    %c0_1 = arith.constant 0 : index
    %c0_2 = arith.constant 0 : index
    %0 = vector.load %arg1[%c0, %c0_0, %c0_1, %c0_2] : memref<2x8x8x16xbf16, #tpu.memory_space<vmem>>, vector<2x8x8x16xbf16>
    %1 = arith.extf %0 : vector<2x8x8x16xbf16> to vector<2x8x8x16xf32>
    %c0_3 = arith.constant 0 : index
    %c0_4 = arith.constant 0 : index
    %2 = vector.load %arg2[%c0_3, %c0_4] : memref<1x16xf32, #tpu.memory_space<vmem>>, vector<1x16xf32>
    %3 = vector.shape_cast %2 : vector<1x16xf32> to vector<1x1x1x16xf32>
    %4 = vector.broadcast %3 : vector<1x1x1x16xf32> to vector<2x8x8x16xf32>
    %5 = arith.mulf %1, %4 : vector<2x8x8x16xf32>
    %c0_5 = arith.constant 0 : index
    %c0_6 = arith.constant 0 : index
    %6 = vector.load %arg3[%c0_5, %c0_6] : memref<1x16xf32, #tpu.memory_space<vmem>>, vector<1x16xf32>
    %7 = vector.shape_cast %6 : vector<1x16xf32> to vector<1x1x1x16xf32>
    %8 = vector.broadcast %7 : vector<1x1x1x16xf32> to vector<2x8x8x16xf32>
    %9 = arith.addf %5, %8 : vector<2x8x8x16xf32>
    %cst = arith.constant 0.000000e+00 : f32
    %10 = vector.broadcast %cst : f32 to vector<2x8x8x16xf32>
    %11 = arith.cmpf oge, %9, %10 : vector<2x8x8x16xf32>
    %cst_7 = arith.constant 2.000000e-01 : f32
    %12 = vector.broadcast %cst_7 : f32 to vector<2x8x8x16xf32>
    %13 = arith.mulf %12, %9 : vector<2x8x8x16xf32>
    %14 = arith.select %11, %9, %13 : vector<2x8x8x16xi1>, vector<2x8x8x16xf32>
    %15 = arith.truncf %14 : vector<2x8x8x16xf32> to vector<2x8x8x16xbf16>
    %cst_8 = arith.constant 0.000000e+00 : bf16
    %16 = vector.broadcast %cst_8 : bf16 to vector<2x10x10x16xbf16>
    %c0_9 = arith.constant 0 : index
    %c0_10 = arith.constant 0 : index
    %c0_11 = arith.constant 0 : index
    %c0_12 = arith.constant 0 : index
    %17 = vector.load %arg4[%c0_9, %c0_10, %c0_11, %c0_12] : memref<2x10x10x16xbf16, #tpu.memory_space<vmem>>, vector<2x10x10x16xbf16>
    tpu.vector_store %arg4[%c0_9, %c0_10, %c0_11, %c0_12], %16 {strides = array<i32>} : memref<2x10x10x16xbf16, #tpu.memory_space<vmem>>, vector<2x10x10x16xbf16>,
    %c0_13 = arith.constant 0 : index
    %c1 = arith.constant 1 : index
    %c1_14 = arith.constant 1 : index
    %c0_15 = arith.constant 0 : index
    %18 = vector.load %arg4[%c0_13, %c1, %c1_14, %c0_15] : memref<2x10x10x16xbf16, #tpu.memory_space<vmem>>, vector<2x8x8x16xbf16>
    tpu.vector_store %arg4[%c0_13, %c1, %c1_14, %c0_15], %15 {strides = array<i32>} : memref<2x10x10x16xbf16, #tpu.memory_space<vmem>>, vector<2x8x8x16xbf16>,
    return
  }
  func.func @transform_0(%arg0: i32) -> (i32, i32, i32, i32) {
    %c0_i32 = arith.constant 0 : i32
    %c0_i32_0 = arith.constant 0 : i32
    %c0_i32_1 = arith.constant 0 : i32
    %c0_i32_2 = arith.constant 0 : i32
    return %arg0, %c0_i32, %c0_i32_0, %c0_i32_1 : i32, i32, i32, i32
  }
  func.func @transform_1(%arg0: i32) -> (i32, i32) {
    %c0_i32 = arith.constant 0 : i32
    %c0_i32_0 = arith.constant 0 : i32
    %c0_i32_1 = arith.constant 0 : i32
    return %c0_i32, %c0_i32_0 : i32, i32
  }
  func.func @transform_2(%arg0: i32) -> (i32, i32) {
    %c0_i32 = arith.constant 0 : i32
    %c0_i32_0 = arith.constant 0 : i32
    %c0_i32_1 = arith.constant 0 : i32
    return %c0_i32, %c0_i32_0 : i32, i32
  }
  func.func @transform_3(%arg0: i32) -> (i32, i32, i32, i32) {
    %c0_i32 = arith.constant 0 : i32
    %c0_i32_0 = arith.constant 0 : i32
    %c0_i32_1 = arith.constant 0 : i32
    %c0_i32_2 = arith.constant 0 : i32
    return %arg0, %c0_i32, %c0_i32_0, %c0_i32_1 : i32, i32, i32, i32
  }
}

module attributes {stable_mosaic.version = 11 : i64} {
  func.func @conv_stats_kernel(%arg0: i32, %arg1: memref<2x5x2x5x32xbf16, #tpu.memory_space<vmem>>, %arg2: memref<256x32xbf16, #tpu.memory_space<vmem>>, %arg3: memref<2x4x4x32xbf16, #tpu.memory_space<vmem>>, %arg4: memref<1x2x32xf32, #tpu.memory_space<vmem>>) attributes {dimension_semantics = [#tpu.dimension_semantics<parallel>], iteration_bounds = array<i64: 1>, scalar_prefetch = 0 : i64, scratch_operands = 0 : i64, tpu.core_type = #tpu.core_type<tc>, window_params = [{transform_indices = @transform_0, window_bounds = array<i64: 2, 5, 2, 5, 32>}, {pipeline_mode = #tpu.pipeline_mode<synchronous>, transform_indices = @transform_1, window_bounds = array<i64: 256, 32>}, {transform_indices = @transform_2, window_bounds = array<i64: 2, 4, 4, 32>}, {transform_indices = @transform_3, window_bounds = array<i64: 1, 2, 32>}]} {
    %c0 = arith.constant 0 : index
    %c0_0 = arith.constant 0 : index
    %c0_1 = arith.constant 0 : index
    %c0_2 = arith.constant 0 : index
    %c0_3 = arith.constant 0 : index
    %0 = vector.load %arg1[%c0, %c0_0, %c0_1, %c0_2, %c0_3] : memref<2x5x2x5x32xbf16, #tpu.memory_space<vmem>>, vector<2x4x1x4x32xbf16>
    %1 = vector.shape_cast %0 : vector<2x4x1x4x32xbf16> to vector<2x4x4x32xbf16>
    %c0_4 = arith.constant 0 : index
    %c0_5 = arith.constant 0 : index
    %c0_6 = arith.constant 0 : index
    %c1 = arith.constant 1 : index
    %c0_7 = arith.constant 0 : index
    %2 = vector.load %arg1[%c0_4, %c0_5, %c0_6, %c1, %c0_7] : memref<2x5x2x5x32xbf16, #tpu.memory_space<vmem>>, vector<2x4x1x4x32xbf16>
    %3 = vector.shape_cast %2 : vector<2x4x1x4x32xbf16> to vector<2x4x4x32xbf16>
    %c0_8 = arith.constant 0 : index
    %c0_9 = arith.constant 0 : index
    %c1_10 = arith.constant 1 : index
    %c0_11 = arith.constant 0 : index
    %c0_12 = arith.constant 0 : index
    %4 = vector.load %arg1[%c0_8, %c0_9, %c1_10, %c0_11, %c0_12] : memref<2x5x2x5x32xbf16, #tpu.memory_space<vmem>>, vector<2x4x1x4x32xbf16>
    %5 = vector.shape_cast %4 : vector<2x4x1x4x32xbf16> to vector<2x4x4x32xbf16>
    %c0_13 = arith.constant 0 : index
    %c0_14 = arith.constant 0 : index
    %c1_15 = arith.constant 1 : index
    %c1_16 = arith.constant 1 : index
    %c0_17 = arith.constant 0 : index
    %6 = vector.load %arg1[%c0_13, %c0_14, %c1_15, %c1_16, %c0_17] : memref<2x5x2x5x32xbf16, #tpu.memory_space<vmem>>, vector<2x4x1x4x32xbf16>
    %7 = vector.shape_cast %6 : vector<2x4x1x4x32xbf16> to vector<2x4x4x32xbf16>
    %c0_18 = arith.constant 0 : index
    %c1_19 = arith.constant 1 : index
    %c0_20 = arith.constant 0 : index
    %c0_21 = arith.constant 0 : index
    %c0_22 = arith.constant 0 : index
    %8 = vector.load %arg1[%c0_18, %c1_19, %c0_20, %c0_21, %c0_22] : memref<2x5x2x5x32xbf16, #tpu.memory_space<vmem>>, vector<2x4x1x4x32xbf16>
    %9 = vector.shape_cast %8 : vector<2x4x1x4x32xbf16> to vector<2x4x4x32xbf16>
    %c0_23 = arith.constant 0 : index
    %c1_24 = arith.constant 1 : index
    %c0_25 = arith.constant 0 : index
    %c1_26 = arith.constant 1 : index
    %c0_27 = arith.constant 0 : index
    %10 = vector.load %arg1[%c0_23, %c1_24, %c0_25, %c1_26, %c0_27] : memref<2x5x2x5x32xbf16, #tpu.memory_space<vmem>>, vector<2x4x1x4x32xbf16>
    %11 = vector.shape_cast %10 : vector<2x4x1x4x32xbf16> to vector<2x4x4x32xbf16>
    %c0_28 = arith.constant 0 : index
    %c1_29 = arith.constant 1 : index
    %c1_30 = arith.constant 1 : index
    %c0_31 = arith.constant 0 : index
    %c0_32 = arith.constant 0 : index
    %12 = vector.load %arg1[%c0_28, %c1_29, %c1_30, %c0_31, %c0_32] : memref<2x5x2x5x32xbf16, #tpu.memory_space<vmem>>, vector<2x4x1x4x32xbf16>
    %13 = vector.shape_cast %12 : vector<2x4x1x4x32xbf16> to vector<2x4x4x32xbf16>
    %c0_33 = arith.constant 0 : index
    %c1_34 = arith.constant 1 : index
    %c1_35 = arith.constant 1 : index
    %c1_36 = arith.constant 1 : index
    %c0_37 = arith.constant 0 : index
    %14 = vector.load %arg1[%c0_33, %c1_34, %c1_35, %c1_36, %c0_37] : memref<2x5x2x5x32xbf16, #tpu.memory_space<vmem>>, vector<2x4x1x4x32xbf16>
    %15 = vector.shape_cast %14 : vector<2x4x1x4x32xbf16> to vector<2x4x4x32xbf16>
    %16 = tpu.concatenate %1, %3, %5, %7, %9, %11, %13, %15 in 3 : vector<2x4x4x32xbf16>, vector<2x4x4x32xbf16>, vector<2x4x4x32xbf16>, vector<2x4x4x32xbf16>, vector<2x4x4x32xbf16>, vector<2x4x4x32xbf16>, vector<2x4x4x32xbf16>, vector<2x4x4x32xbf16> -> vector<2x4x4x256xbf16>
    %17 = vector.shape_cast %16 : vector<2x4x4x256xbf16> to vector<32x256xbf16>
    %c0_38 = arith.constant 0 : index
    %c0_39 = arith.constant 0 : index
    %18 = vector.load %arg2[%c0_38, %c0_39] : memref<256x32xbf16, #tpu.memory_space<vmem>>, vector<256x32xbf16>
    %cst = arith.constant dense<0.000000e+00> : vector<32x32xf32>
    %19 = tpu.matmul %17, %18, %cst {dimension_numbers = #tpu.dot_dimension_numbers<[1], [0], [0], [1], [0, 0, 1, 1], [], []>} : vector<32x256xbf16>, vector<256x32xbf16>, vector<32x32xf32> -> vector<32x32xf32>
    %cst_40 = arith.constant dense<0.000000e+00> : vector<32xf32>
    %20 = vector.multi_reduction <add>, %19, %cst_40 [0] : vector<32x32xf32> to vector<32xf32>
    %21 = vector.shape_cast %20 : vector<32xf32> to vector<1x32xf32>
    %22 = arith.mulf %19, %19 : vector<32x32xf32>
    %cst_41 = arith.constant dense<0.000000e+00> : vector<32xf32>
    %23 = vector.multi_reduction <add>, %22, %cst_41 [0] : vector<32x32xf32> to vector<32xf32>
    %24 = vector.shape_cast %23 : vector<32xf32> to vector<1x32xf32>
    %25 = tpu.concatenate %21, %24 in 0 : vector<1x32xf32>, vector<1x32xf32> -> vector<2x32xf32>
    %c0_42 = arith.constant 0 : index
    %c0_43 = arith.constant 0 : index
    %c0_44 = arith.constant 0 : index
    %26 = vector.load %arg4[%c0_42, %c0_43, %c0_44] : memref<1x2x32xf32, #tpu.memory_space<vmem>>, vector<1x2x32xf32>
    %27 = vector.shape_cast %26 : vector<1x2x32xf32> to vector<2x32xf32>
    %28 = vector.shape_cast %25 : vector<2x32xf32> to vector<1x2x32xf32>
    tpu.vector_store %arg4[%c0_42, %c0_43, %c0_44], %28 {strides = array<i32>} : memref<1x2x32xf32, #tpu.memory_space<vmem>>, vector<1x2x32xf32>,
    %29 = vector.shape_cast %19 : vector<32x32xf32> to vector<2x4x4x32xf32>
    %30 = arith.truncf %29 : vector<2x4x4x32xf32> to vector<2x4x4x32xbf16>
    %c0_45 = arith.constant 0 : index
    %c0_46 = arith.constant 0 : index
    %c0_47 = arith.constant 0 : index
    %c0_48 = arith.constant 0 : index
    %31 = vector.load %arg3[%c0_45, %c0_46, %c0_47, %c0_48] : memref<2x4x4x32xbf16, #tpu.memory_space<vmem>>, vector<2x4x4x32xbf16>
    tpu.vector_store %arg3[%c0_45, %c0_46, %c0_47, %c0_48], %30 {strides = array<i32>} : memref<2x4x4x32xbf16, #tpu.memory_space<vmem>>, vector<2x4x4x32xbf16>,
    return
  }
  func.func @transform_0(%arg0: i32) -> (i32, i32, i32, i32, i32) {
    %c0_i32 = arith.constant 0 : i32
    %c0_i32_0 = arith.constant 0 : i32
    %c0_i32_1 = arith.constant 0 : i32
    %c0_i32_2 = arith.constant 0 : i32
    %c0_i32_3 = arith.constant 0 : i32
    return %arg0, %c0_i32, %c0_i32_0, %c0_i32_1, %c0_i32_2 : i32, i32, i32, i32, i32
  }
  func.func @transform_1(%arg0: i32) -> (i32, i32) {
    %c0_i32 = arith.constant 0 : i32
    %c0_i32_0 = arith.constant 0 : i32
    %c0_i32_1 = arith.constant 0 : i32
    return %c0_i32, %c0_i32_0 : i32, i32
  }
  func.func @transform_2(%arg0: i32) -> (i32, i32, i32, i32) {
    %c0_i32 = arith.constant 0 : i32
    %c0_i32_0 = arith.constant 0 : i32
    %c0_i32_1 = arith.constant 0 : i32
    %c0_i32_2 = arith.constant 0 : i32
    return %arg0, %c0_i32, %c0_i32_0, %c0_i32_1 : i32, i32, i32, i32
  }
  func.func @transform_3(%arg0: i32) -> (i32, i32, i32) {
    %c0_i32 = arith.constant 0 : i32
    %c0_i32_0 = arith.constant 0 : i32
    %c0_i32_1 = arith.constant 0 : i32
    return %arg0, %c0_i32, %c0_i32_0 : i32, i32, i32
  }
}

module attributes {stable_mosaic.version = 11 : i64} {
  func.func @bn_lrelu_pad_kernel(%arg0: i32, %arg1: memref<2x4x4x32xbf16, #tpu.memory_space<vmem>>, %arg2: memref<1x32xf32, #tpu.memory_space<vmem>>, %arg3: memref<1x32xf32, #tpu.memory_space<vmem>>, %arg4: memref<2x6x6x32xbf16, #tpu.memory_space<vmem>>) attributes {dimension_semantics = [#tpu.dimension_semantics<parallel>], iteration_bounds = array<i64: 1>, scalar_prefetch = 0 : i64, scratch_operands = 0 : i64, tpu.core_type = #tpu.core_type<tc>, window_params = [{transform_indices = @transform_0, window_bounds = array<i64: 2, 4, 4, 32>}, {pipeline_mode = #tpu.pipeline_mode<synchronous>, transform_indices = @transform_1, window_bounds = array<i64: 1, 32>}, {pipeline_mode = #tpu.pipeline_mode<synchronous>, transform_indices = @transform_2, window_bounds = array<i64: 1, 32>}, {transform_indices = @transform_3, window_bounds = array<i64: 2, 6, 6, 32>}]} {
    %c0 = arith.constant 0 : index
    %c0_0 = arith.constant 0 : index
    %c0_1 = arith.constant 0 : index
    %c0_2 = arith.constant 0 : index
    %0 = vector.load %arg1[%c0, %c0_0, %c0_1, %c0_2] : memref<2x4x4x32xbf16, #tpu.memory_space<vmem>>, vector<2x4x4x32xbf16>
    %1 = arith.extf %0 : vector<2x4x4x32xbf16> to vector<2x4x4x32xf32>
    %c0_3 = arith.constant 0 : index
    %c0_4 = arith.constant 0 : index
    %2 = vector.load %arg2[%c0_3, %c0_4] : memref<1x32xf32, #tpu.memory_space<vmem>>, vector<1x32xf32>
    %3 = vector.shape_cast %2 : vector<1x32xf32> to vector<1x1x1x32xf32>
    %4 = vector.broadcast %3 : vector<1x1x1x32xf32> to vector<2x4x4x32xf32>
    %5 = arith.mulf %1, %4 : vector<2x4x4x32xf32>
    %c0_5 = arith.constant 0 : index
    %c0_6 = arith.constant 0 : index
    %6 = vector.load %arg3[%c0_5, %c0_6] : memref<1x32xf32, #tpu.memory_space<vmem>>, vector<1x32xf32>
    %7 = vector.shape_cast %6 : vector<1x32xf32> to vector<1x1x1x32xf32>
    %8 = vector.broadcast %7 : vector<1x1x1x32xf32> to vector<2x4x4x32xf32>
    %9 = arith.addf %5, %8 : vector<2x4x4x32xf32>
    %cst = arith.constant 0.000000e+00 : f32
    %10 = vector.broadcast %cst : f32 to vector<2x4x4x32xf32>
    %11 = arith.cmpf oge, %9, %10 : vector<2x4x4x32xf32>
    %cst_7 = arith.constant 2.000000e-01 : f32
    %12 = vector.broadcast %cst_7 : f32 to vector<2x4x4x32xf32>
    %13 = arith.mulf %12, %9 : vector<2x4x4x32xf32>
    %14 = arith.select %11, %9, %13 : vector<2x4x4x32xi1>, vector<2x4x4x32xf32>
    %15 = arith.truncf %14 : vector<2x4x4x32xf32> to vector<2x4x4x32xbf16>
    %cst_8 = arith.constant 0.000000e+00 : bf16
    %16 = vector.broadcast %cst_8 : bf16 to vector<2x6x6x32xbf16>
    %c0_9 = arith.constant 0 : index
    %c0_10 = arith.constant 0 : index
    %c0_11 = arith.constant 0 : index
    %c0_12 = arith.constant 0 : index
    %17 = vector.load %arg4[%c0_9, %c0_10, %c0_11, %c0_12] : memref<2x6x6x32xbf16, #tpu.memory_space<vmem>>, vector<2x6x6x32xbf16>
    tpu.vector_store %arg4[%c0_9, %c0_10, %c0_11, %c0_12], %16 {strides = array<i32>} : memref<2x6x6x32xbf16, #tpu.memory_space<vmem>>, vector<2x6x6x32xbf16>,
    %c0_13 = arith.constant 0 : index
    %c1 = arith.constant 1 : index
    %c1_14 = arith.constant 1 : index
    %c0_15 = arith.constant 0 : index
    %18 = vector.load %arg4[%c0_13, %c1, %c1_14, %c0_15] : memref<2x6x6x32xbf16, #tpu.memory_space<vmem>>, vector<2x4x4x32xbf16>
    tpu.vector_store %arg4[%c0_13, %c1, %c1_14, %c0_15], %15 {strides = array<i32>} : memref<2x6x6x32xbf16, #tpu.memory_space<vmem>>, vector<2x4x4x32xbf16>,
    return
  }
  func.func @transform_0(%arg0: i32) -> (i32, i32, i32, i32) {
    %c0_i32 = arith.constant 0 : i32
    %c0_i32_0 = arith.constant 0 : i32
    %c0_i32_1 = arith.constant 0 : i32
    %c0_i32_2 = arith.constant 0 : i32
    return %arg0, %c0_i32, %c0_i32_0, %c0_i32_1 : i32, i32, i32, i32
  }
  func.func @transform_1(%arg0: i32) -> (i32, i32) {
    %c0_i32 = arith.constant 0 : i32
    %c0_i32_0 = arith.constant 0 : i32
    %c0_i32_1 = arith.constant 0 : i32
    return %c0_i32, %c0_i32_0 : i32, i32
  }
  func.func @transform_2(%arg0: i32) -> (i32, i32) {
    %c0_i32 = arith.constant 0 : i32
    %c0_i32_0 = arith.constant 0 : i32
    %c0_i32_1 = arith.constant 0 : i32
    return %c0_i32, %c0_i32_0 : i32, i32
  }
  func.func @transform_3(%arg0: i32) -> (i32, i32, i32, i32) {
    %c0_i32 = arith.constant 0 : i32
    %c0_i32_0 = arith.constant 0 : i32
    %c0_i32_1 = arith.constant 0 : i32
    %c0_i32_2 = arith.constant 0 : i32
    return %arg0, %c0_i32, %c0_i32_0, %c0_i32_1 : i32, i32, i32, i32
  }
}

module attributes {stable_mosaic.version = 11 : i64} {
  func.func @head_kernel(%arg0: i32, %arg1: memref<2x1x2x1x128xbf16, #tpu.memory_space<vmem>>, %arg2: memref<1x64xf32, #tpu.memory_space<vmem>>, %arg3: memref<1x64xf32, #tpu.memory_space<vmem>>, %arg4: memref<1x1x64xf32, #tpu.memory_space<vmem>>, %arg5: memref<1xf32, #tpu.memory_space<smem>>, %arg6: memref<2x1xf32, #tpu.memory_space<vmem>>) attributes {dimension_semantics = [#tpu.dimension_semantics<arbitrary>], iteration_bounds = array<i64: 1>, scalar_prefetch = 0 : i64, scratch_operands = 0 : i64, tpu.core_type = #tpu.core_type<tc>, window_params = [{pipeline_mode = #tpu.pipeline_mode<synchronous>, transform_indices = @transform_0, window_bounds = array<i64: 2, 1, 2, 1, 128>}, {pipeline_mode = #tpu.pipeline_mode<synchronous>, transform_indices = @transform_1, window_bounds = array<i64: 1, 64>}, {pipeline_mode = #tpu.pipeline_mode<synchronous>, transform_indices = @transform_2, window_bounds = array<i64: 1, 64>}, {pipeline_mode = #tpu.pipeline_mode<synchronous>, transform_indices = @transform_3, window_bounds = array<i64: 1, 1, 64>}, {transform_indices = @transform_4, window_bounds = array<i64: 1>}, {pipeline_mode = #tpu.pipeline_mode<synchronous>, transform_indices = @transform_5, window_bounds = array<i64: 2, 1>}]} {
    %c0 = arith.constant 0 : index
    %c0_0 = arith.constant 0 : index
    %0 = vector.load %arg2[%c0, %c0_0] : memref<1x64xf32, #tpu.memory_space<vmem>>, vector<1x64xf32>
    %c0_1 = arith.constant 0 : index
    %c0_2 = arith.constant 0 : index
    %1 = vector.load %arg3[%c0_1, %c0_2] : memref<1x64xf32, #tpu.memory_space<vmem>>, vector<1x64xf32>
    %c0_3 = arith.constant 0 : index
    %c0_4 = arith.constant 0 : index
    %c0_5 = arith.constant 0 : index
    %c0_6 = arith.constant 0 : index
    %c0_7 = arith.constant 0 : index
    %2 = vector.load %arg1[%c0_3, %c0_4, %c0_5, %c0_6, %c0_7] : memref<2x1x2x1x128xbf16, #tpu.memory_space<vmem>>, vector<2x1x1x1x64xbf16>
    %3 = vector.shape_cast %2 : vector<2x1x1x1x64xbf16> to vector<2x1x1x64xbf16>
    %4 = arith.extf %3 : vector<2x1x1x64xbf16> to vector<2x1x1x64xf32>
    %5 = vector.shape_cast %0 : vector<1x64xf32> to vector<1x1x1x64xf32>
    %6 = vector.broadcast %5 : vector<1x1x1x64xf32> to vector<2x1x1x64xf32>
    %7 = arith.mulf %4, %6 : vector<2x1x1x64xf32>
    %8 = vector.shape_cast %1 : vector<1x64xf32> to vector<1x1x1x64xf32>
    %9 = vector.broadcast %8 : vector<1x1x1x64xf32> to vector<2x1x1x64xf32>
    %10 = arith.addf %7, %9 : vector<2x1x1x64xf32>
    %cst = arith.constant 0.000000e+00 : f32
    %11 = vector.broadcast %cst : f32 to vector<2x1x1x64xf32>
    %12 = arith.cmpf oge, %10, %11 : vector<2x1x1x64xf32>
    %cst_8 = arith.constant 2.000000e-01 : f32
    %13 = vector.broadcast %cst_8 : f32 to vector<2x1x1x64xf32>
    %14 = arith.mulf %13, %10 : vector<2x1x1x64xf32>
    %15 = arith.select %12, %10, %14 : vector<2x1x1x64xi1>, vector<2x1x1x64xf32>
    %c0_9 = arith.constant 0 : index
    %c0_10 = arith.constant 0 : index
    %c0_11 = arith.constant 0 : index
    %c0_12 = arith.constant 0 : index
    %c64 = arith.constant 64 : index
    %16 = vector.load %arg1[%c0_9, %c0_10, %c0_11, %c0_12, %c64] : memref<2x1x2x1x128xbf16, #tpu.memory_space<vmem>>, vector<2x1x1x1x64xbf16>
    %17 = vector.shape_cast %16 : vector<2x1x1x1x64xbf16> to vector<2x1x1x64xbf16>
    %18 = arith.extf %17 : vector<2x1x1x64xbf16> to vector<2x1x1x64xf32>
    %19 = vector.shape_cast %0 : vector<1x64xf32> to vector<1x1x1x64xf32>
    %20 = vector.broadcast %19 : vector<1x1x1x64xf32> to vector<2x1x1x64xf32>
    %21 = arith.mulf %18, %20 : vector<2x1x1x64xf32>
    %22 = vector.shape_cast %1 : vector<1x64xf32> to vector<1x1x1x64xf32>
    %23 = vector.broadcast %22 : vector<1x1x1x64xf32> to vector<2x1x1x64xf32>
    %24 = arith.addf %21, %23 : vector<2x1x1x64xf32>
    %cst_13 = arith.constant 0.000000e+00 : f32
    %25 = vector.broadcast %cst_13 : f32 to vector<2x1x1x64xf32>
    %26 = arith.cmpf oge, %24, %25 : vector<2x1x1x64xf32>
    %cst_14 = arith.constant 2.000000e-01 : f32
    %27 = vector.broadcast %cst_14 : f32 to vector<2x1x1x64xf32>
    %28 = arith.mulf %27, %24 : vector<2x1x1x64xf32>
    %29 = arith.select %26, %24, %28 : vector<2x1x1x64xi1>, vector<2x1x1x64xf32>
    %30 = arith.maximumf %15, %29 : vector<2x1x1x64xf32>
    %c0_15 = arith.constant 0 : index
    %c0_16 = arith.constant 0 : index
    %c1 = arith.constant 1 : index
    %c0_17 = arith.constant 0 : index
    %c0_18 = arith.constant 0 : index
    %31 = vector.load %arg1[%c0_15, %c0_16, %c1, %c0_17, %c0_18] : memref<2x1x2x1x128xbf16, #tpu.memory_space<vmem>>, vector<2x1x1x1x64xbf16>
    %32 = vector.shape_cast %31 : vector<2x1x1x1x64xbf16> to vector<2x1x1x64xbf16>
    %33 = arith.extf %32 : vector<2x1x1x64xbf16> to vector<2x1x1x64xf32>
    %34 = vector.shape_cast %0 : vector<1x64xf32> to vector<1x1x1x64xf32>
    %35 = vector.broadcast %34 : vector<1x1x1x64xf32> to vector<2x1x1x64xf32>
    %36 = arith.mulf %33, %35 : vector<2x1x1x64xf32>
    %37 = vector.shape_cast %1 : vector<1x64xf32> to vector<1x1x1x64xf32>
    %38 = vector.broadcast %37 : vector<1x1x1x64xf32> to vector<2x1x1x64xf32>
    %39 = arith.addf %36, %38 : vector<2x1x1x64xf32>
    %cst_19 = arith.constant 0.000000e+00 : f32
    %40 = vector.broadcast %cst_19 : f32 to vector<2x1x1x64xf32>
    %41 = arith.cmpf oge, %39, %40 : vector<2x1x1x64xf32>
    %cst_20 = arith.constant 2.000000e-01 : f32
    %42 = vector.broadcast %cst_20 : f32 to vector<2x1x1x64xf32>
    %43 = arith.mulf %42, %39 : vector<2x1x1x64xf32>
    %44 = arith.select %41, %39, %43 : vector<2x1x1x64xi1>, vector<2x1x1x64xf32>
    %45 = arith.maximumf %30, %44 : vector<2x1x1x64xf32>
    %c0_21 = arith.constant 0 : index
    %c0_22 = arith.constant 0 : index
    %c1_23 = arith.constant 1 : index
    %c0_24 = arith.constant 0 : index
    %c64_25 = arith.constant 64 : index
    %46 = vector.load %arg1[%c0_21, %c0_22, %c1_23, %c0_24, %c64_25] : memref<2x1x2x1x128xbf16, #tpu.memory_space<vmem>>, vector<2x1x1x1x64xbf16>
    %47 = vector.shape_cast %46 : vector<2x1x1x1x64xbf16> to vector<2x1x1x64xbf16>
    %48 = arith.extf %47 : vector<2x1x1x64xbf16> to vector<2x1x1x64xf32>
    %49 = vector.shape_cast %0 : vector<1x64xf32> to vector<1x1x1x64xf32>
    %50 = vector.broadcast %49 : vector<1x1x1x64xf32> to vector<2x1x1x64xf32>
    %51 = arith.mulf %48, %50 : vector<2x1x1x64xf32>
    %52 = vector.shape_cast %1 : vector<1x64xf32> to vector<1x1x1x64xf32>
    %53 = vector.broadcast %52 : vector<1x1x1x64xf32> to vector<2x1x1x64xf32>
    %54 = arith.addf %51, %53 : vector<2x1x1x64xf32>
    %cst_26 = arith.constant 0.000000e+00 : f32
    %55 = vector.broadcast %cst_26 : f32 to vector<2x1x1x64xf32>
    %56 = arith.cmpf oge, %54, %55 : vector<2x1x1x64xf32>
    %cst_27 = arith.constant 2.000000e-01 : f32
    %57 = vector.broadcast %cst_27 : f32 to vector<2x1x1x64xf32>
    %58 = arith.mulf %57, %54 : vector<2x1x1x64xf32>
    %59 = arith.select %56, %54, %58 : vector<2x1x1x64xi1>, vector<2x1x1x64xf32>
    %60 = arith.maximumf %45, %59 : vector<2x1x1x64xf32>
    %c0_28 = arith.constant 0 : index
    %c0_29 = arith.constant 0 : index
    %c0_30 = arith.constant 0 : index
    %61 = vector.load %arg4[%c0_28, %c0_29, %c0_30] : memref<1x1x64xf32, #tpu.memory_space<vmem>>, vector<1x1x64xf32>
    %62 = vector.shape_cast %61 : vector<1x1x64xf32> to vector<1x1x1x64xf32>
    %63 = vector.broadcast %62 : vector<1x1x1x64xf32> to vector<2x1x1x64xf32>
    %64 = arith.mulf %60, %63 : vector<2x1x1x64xf32>
    %cst_31 = arith.constant dense<0.000000e+00> : vector<2x64xf32>
    %65 = vector.multi_reduction <add>, %64, %cst_31 [1, 2] : vector<2x1x1x64xf32> to vector<2x64xf32>
    %cst_32 = arith.constant dense<0.000000e+00> : vector<2xf32>
    %66 = vector.multi_reduction <add>, %65, %cst_32 [1] : vector<2x64xf32> to vector<2xf32>
    %67 = vector.shape_cast %66 : vector<2xf32> to vector<2x1xf32>
    %c0_33 = arith.constant 0 : index
    %68 = memref.load %arg5[%c0_33] : memref<1xf32, #tpu.memory_space<smem>>
    %69 = vector.broadcast %68 : f32 to vector<2x1xf32>
    %70 = arith.addf %67, %69 : vector<2x1xf32>
    %71 = arith.negf %70 : vector<2x1xf32>
    %72 = math.exp %71 : vector<2x1xf32>
    %cst_34 = arith.constant 1.000000e+00 : f32
    %73 = vector.broadcast %cst_34 : f32 to vector<2x1xf32>
    %74 = arith.addf %73, %72 : vector<2x1xf32>
    %75 = arith.divf %73, %74 : vector<2x1xf32>
    %c0_35 = arith.constant 0 : index
    %c0_36 = arith.constant 0 : index
    %76 = vector.load %arg6[%c0_35, %c0_36] : memref<2x1xf32, #tpu.memory_space<vmem>>, vector<2x1xf32>
    tpu.vector_store %arg6[%c0_35, %c0_36], %75 {strides = array<i32>} : memref<2x1xf32, #tpu.memory_space<vmem>>, vector<2x1xf32>,
    return
  }
  func.func @transform_0(%arg0: i32) -> (i32, i32, i32, i32, i32) {
    %c0_i32 = arith.constant 0 : i32
    %c0_i32_0 = arith.constant 0 : i32
    %c0_i32_1 = arith.constant 0 : i32
    %c0_i32_2 = arith.constant 0 : i32
    %c0_i32_3 = arith.constant 0 : i32
    %c0_i32_4 = arith.constant 0 : i32
    return %c0_i32, %c0_i32_0, %c0_i32_1, %c0_i32_2, %c0_i32_3 : i32, i32, i32, i32, i32
  }
  func.func @transform_1(%arg0: i32) -> (i32, i32) {
    %c0_i32 = arith.constant 0 : i32
    %c0_i32_0 = arith.constant 0 : i32
    %c0_i32_1 = arith.constant 0 : i32
    return %c0_i32, %c0_i32_0 : i32, i32
  }
  func.func @transform_2(%arg0: i32) -> (i32, i32) {
    %c0_i32 = arith.constant 0 : i32
    %c0_i32_0 = arith.constant 0 : i32
    %c0_i32_1 = arith.constant 0 : i32
    return %c0_i32, %c0_i32_0 : i32, i32
  }
  func.func @transform_3(%arg0: i32) -> (i32, i32, i32) {
    %c0_i32 = arith.constant 0 : i32
    %c0_i32_0 = arith.constant 0 : i32
    %c0_i32_1 = arith.constant 0 : i32
    %c0_i32_2 = arith.constant 0 : i32
    return %c0_i32, %c0_i32_0, %c0_i32_1 : i32, i32, i32
  }
  func.func @transform_4(%arg0: i32) -> i32 {
    %c0_i32 = arith.constant 0 : i32
    %c0_i32_0 = arith.constant 0 : i32
    return %c0_i32 : i32
  }
  func.func @transform_5(%arg0: i32) -> (i32, i32) {
    %c0_i32 = arith.constant 0 : i32
    %c0_i32_0 = arith.constant 0 : i32
    %c0_i32_1 = arith.constant 0 : i32
    return %c0_i32, %c0_i32_0 : i32, i32
  }
}

module attributes {stable_mosaic.version = 11 : i64} {
  func.func @conv_stats_kernel(%arg0: i32, %arg1: memref<2x3x2x3x64xbf16, #tpu.memory_space<vmem>>, %arg2: memref<512x64xbf16, #tpu.memory_space<vmem>>, %arg3: memref<2x2x2x64xbf16, #tpu.memory_space<vmem>>, %arg4: memref<1x2x64xf32, #tpu.memory_space<vmem>>) attributes {dimension_semantics = [#tpu.dimension_semantics<parallel>], iteration_bounds = array<i64: 1>, scalar_prefetch = 0 : i64, scratch_operands = 0 : i64, tpu.core_type = #tpu.core_type<tc>, window_params = [{transform_indices = @transform_0, window_bounds = array<i64: 2, 3, 2, 3, 64>}, {pipeline_mode = #tpu.pipeline_mode<synchronous>, transform_indices = @transform_1, window_bounds = array<i64: 512, 64>}, {transform_indices = @transform_2, window_bounds = array<i64: 2, 2, 2, 64>}, {transform_indices = @transform_3, window_bounds = array<i64: 1, 2, 64>}]} {
    %c0 = arith.constant 0 : index
    %c0_0 = arith.constant 0 : index
    %c0_1 = arith.constant 0 : index
    %c0_2 = arith.constant 0 : index
    %c0_3 = arith.constant 0 : index
    %0 = vector.load %arg1[%c0, %c0_0, %c0_1, %c0_2, %c0_3] : memref<2x3x2x3x64xbf16, #tpu.memory_space<vmem>>, vector<2x2x1x2x64xbf16>
    %1 = vector.shape_cast %0 : vector<2x2x1x2x64xbf16> to vector<2x2x2x64xbf16>
    %c0_4 = arith.constant 0 : index
    %c0_5 = arith.constant 0 : index
    %c0_6 = arith.constant 0 : index
    %c1 = arith.constant 1 : index
    %c0_7 = arith.constant 0 : index
    %2 = vector.load %arg1[%c0_4, %c0_5, %c0_6, %c1, %c0_7] : memref<2x3x2x3x64xbf16, #tpu.memory_space<vmem>>, vector<2x2x1x2x64xbf16>
    %3 = vector.shape_cast %2 : vector<2x2x1x2x64xbf16> to vector<2x2x2x64xbf16>
    %c0_8 = arith.constant 0 : index
    %c0_9 = arith.constant 0 : index
    %c1_10 = arith.constant 1 : index
    %c0_11 = arith.constant 0 : index
    %c0_12 = arith.constant 0 : index
    %4 = vector.load %arg1[%c0_8, %c0_9, %c1_10, %c0_11, %c0_12] : memref<2x3x2x3x64xbf16, #tpu.memory_space<vmem>>, vector<2x2x1x2x64xbf16>
    %5 = vector.shape_cast %4 : vector<2x2x1x2x64xbf16> to vector<2x2x2x64xbf16>
    %c0_13 = arith.constant 0 : index
    %c0_14 = arith.constant 0 : index
    %c1_15 = arith.constant 1 : index
    %c1_16 = arith.constant 1 : index
    %c0_17 = arith.constant 0 : index
    %6 = vector.load %arg1[%c0_13, %c0_14, %c1_15, %c1_16, %c0_17] : memref<2x3x2x3x64xbf16, #tpu.memory_space<vmem>>, vector<2x2x1x2x64xbf16>
    %7 = vector.shape_cast %6 : vector<2x2x1x2x64xbf16> to vector<2x2x2x64xbf16>
    %c0_18 = arith.constant 0 : index
    %c1_19 = arith.constant 1 : index
    %c0_20 = arith.constant 0 : index
    %c0_21 = arith.constant 0 : index
    %c0_22 = arith.constant 0 : index
    %8 = vector.load %arg1[%c0_18, %c1_19, %c0_20, %c0_21, %c0_22] : memref<2x3x2x3x64xbf16, #tpu.memory_space<vmem>>, vector<2x2x1x2x64xbf16>
    %9 = vector.shape_cast %8 : vector<2x2x1x2x64xbf16> to vector<2x2x2x64xbf16>
    %c0_23 = arith.constant 0 : index
    %c1_24 = arith.constant 1 : index
    %c0_25 = arith.constant 0 : index
    %c1_26 = arith.constant 1 : index
    %c0_27 = arith.constant 0 : index
    %10 = vector.load %arg1[%c0_23, %c1_24, %c0_25, %c1_26, %c0_27] : memref<2x3x2x3x64xbf16, #tpu.memory_space<vmem>>, vector<2x2x1x2x64xbf16>
    %11 = vector.shape_cast %10 : vector<2x2x1x2x64xbf16> to vector<2x2x2x64xbf16>
    %c0_28 = arith.constant 0 : index
    %c1_29 = arith.constant 1 : index
    %c1_30 = arith.constant 1 : index
    %c0_31 = arith.constant 0 : index
    %c0_32 = arith.constant 0 : index
    %12 = vector.load %arg1[%c0_28, %c1_29, %c1_30, %c0_31, %c0_32] : memref<2x3x2x3x64xbf16, #tpu.memory_space<vmem>>, vector<2x2x1x2x64xbf16>
    %13 = vector.shape_cast %12 : vector<2x2x1x2x64xbf16> to vector<2x2x2x64xbf16>
    %c0_33 = arith.constant 0 : index
    %c1_34 = arith.constant 1 : index
    %c1_35 = arith.constant 1 : index
    %c1_36 = arith.constant 1 : index
    %c0_37 = arith.constant 0 : index
    %14 = vector.load %arg1[%c0_33, %c1_34, %c1_35, %c1_36, %c0_37] : memref<2x3x2x3x64xbf16, #tpu.memory_space<vmem>>, vector<2x2x1x2x64xbf16>
    %15 = vector.shape_cast %14 : vector<2x2x1x2x64xbf16> to vector<2x2x2x64xbf16>
    %16 = tpu.concatenate %1, %3, %5, %7, %9, %11, %13, %15 in 3 : vector<2x2x2x64xbf16>, vector<2x2x2x64xbf16>, vector<2x2x2x64xbf16>, vector<2x2x2x64xbf16>, vector<2x2x2x64xbf16>, vector<2x2x2x64xbf16>, vector<2x2x2x64xbf16>, vector<2x2x2x64xbf16> -> vector<2x2x2x512xbf16>
    %17 = vector.shape_cast %16 : vector<2x2x2x512xbf16> to vector<8x512xbf16>
    %c0_38 = arith.constant 0 : index
    %c0_39 = arith.constant 0 : index
    %18 = vector.load %arg2[%c0_38, %c0_39] : memref<512x64xbf16, #tpu.memory_space<vmem>>, vector<512x64xbf16>
    %cst = arith.constant dense<0.000000e+00> : vector<8x64xf32>
    %19 = tpu.matmul %17, %18, %cst {dimension_numbers = #tpu.dot_dimension_numbers<[1], [0], [0], [1], [0, 0, 1, 1], [], []>} : vector<8x512xbf16>, vector<512x64xbf16>, vector<8x64xf32> -> vector<8x64xf32>
    %cst_40 = arith.constant dense<0.000000e+00> : vector<64xf32>
    %20 = vector.multi_reduction <add>, %19, %cst_40 [0] : vector<8x64xf32> to vector<64xf32>
    %21 = vector.shape_cast %20 : vector<64xf32> to vector<1x64xf32>
    %22 = arith.mulf %19, %19 : vector<8x64xf32>
    %cst_41 = arith.constant dense<0.000000e+00> : vector<64xf32>
    %23 = vector.multi_reduction <add>, %22, %cst_41 [0] : vector<8x64xf32> to vector<64xf32>
    %24 = vector.shape_cast %23 : vector<64xf32> to vector<1x64xf32>
    %25 = tpu.concatenate %21, %24 in 0 : vector<1x64xf32>, vector<1x64xf32> -> vector<2x64xf32>
    %c0_42 = arith.constant 0 : index
    %c0_43 = arith.constant 0 : index
    %c0_44 = arith.constant 0 : index
    %26 = vector.load %arg4[%c0_42, %c0_43, %c0_44] : memref<1x2x64xf32, #tpu.memory_space<vmem>>, vector<1x2x64xf32>
    %27 = vector.shape_cast %26 : vector<1x2x64xf32> to vector<2x64xf32>
    %28 = vector.shape_cast %25 : vector<2x64xf32> to vector<1x2x64xf32>
    tpu.vector_store %arg4[%c0_42, %c0_43, %c0_44], %28 {strides = array<i32>} : memref<1x2x64xf32, #tpu.memory_space<vmem>>, vector<1x2x64xf32>,
    %29 = vector.shape_cast %19 : vector<8x64xf32> to vector<2x2x2x64xf32>
    %30 = arith.truncf %29 : vector<2x2x2x64xf32> to vector<2x2x2x64xbf16>
    %c0_45 = arith.constant 0 : index
    %c0_46 = arith.constant 0 : index
    %c0_47 = arith.constant 0 : index
    %c0_48 = arith.constant 0 : index
    %31 = vector.load %arg3[%c0_45, %c0_46, %c0_47, %c0_48] : memref<2x2x2x64xbf16, #tpu.memory_space<vmem>>, vector<2x2x2x64xbf16>
    tpu.vector_store %arg3[%c0_45, %c0_46, %c0_47, %c0_48], %30 {strides = array<i32>} : memref<2x2x2x64xbf16, #tpu.memory_space<vmem>>, vector<2x2x2x64xbf16>,
    return
  }
  func.func @transform_0(%arg0: i32) -> (i32, i32, i32, i32, i32) {
    %c0_i32 = arith.constant 0 : i32
    %c0_i32_0 = arith.constant 0 : i32
    %c0_i32_1 = arith.constant 0 : i32
    %c0_i32_2 = arith.constant 0 : i32
    %c0_i32_3 = arith.constant 0 : i32
    return %arg0, %c0_i32, %c0_i32_0, %c0_i32_1, %c0_i32_2 : i32, i32, i32, i32, i32
  }
  func.func @transform_1(%arg0: i32) -> (i32, i32) {
    %c0_i32 = arith.constant 0 : i32
    %c0_i32_0 = arith.constant 0 : i32
    %c0_i32_1 = arith.constant 0 : i32
    return %c0_i32, %c0_i32_0 : i32, i32
  }
  func.func @transform_2(%arg0: i32) -> (i32, i32, i32, i32) {
    %c0_i32 = arith.constant 0 : i32
    %c0_i32_0 = arith.constant 0 : i32
    %c0_i32_1 = arith.constant 0 : i32
    %c0_i32_2 = arith.constant 0 : i32
    return %arg0, %c0_i32, %c0_i32_0, %c0_i32_1 : i32, i32, i32, i32
  }
  func.func @transform_3(%arg0: i32) -> (i32, i32, i32) {
    %c0_i32 = arith.constant 0 : i32
    %c0_i32_0 = arith.constant 0 : i32
    %c0_i32_1 = arith.constant 0 : i32
    return %arg0, %c0_i32, %c0_i32_0 : i32, i32, i32
  }
}

</mosaic_0001>

<llo_original>
// kernel: discriminator_forward.7
$region0: #{discriminator_forward.7}
  #allocation0 [shape = 'u32[]', space=smem, size = 0x4, offset = 0x4, fixed_abs, tag = 'smem constant byte address 0x4 - core index']
  #allocation1 [shape = 'u32[144,128]{1,0:T(1,128)}', space=vmem, size = 0x12000, scoped, tag = 'internal scratch']
  %s0 = inlined_call_operand.vmem [shape: bf16[2,17,2,17,6], index: 0, kind: input, shape index: {}]
  %s1 = inlined_call_operand.vmem [shape: bf16[48,8], index: 1, kind: input, shape index: {}]
  %s2 = inlined_call_operand.vmem [shape: bf16[2,18,18,8], index: 2, kind: output, shape index: {}]
  %s3 = sld [smem:[#allocation0]]
  $region41: #{discriminator_forward.7} parent=0
    _
  %s5 = ssub.s32 1, %s3
  %s6 = scalar_select 0, %s5, %s3
  loop: start=0, step=1, limit=4
  $region2: #{discriminator_forward.7} parent=0 // loop_pre_header
    _
  $region3: #{discriminator_forward.7} parent=0 // loop_header
    %s8 = sphi 0, %s12
    %p9 = scmp.ge.s32.totalorder %s8, 4
    %s18 = sphi 0, %s20
    %s21 = sphi 0, %s18
    %s22 = sphi 0, %s21
    %s38 = sphi 0, %s22
    %s42 = sphi 0, %s42
    %s44 = sphi 0, %s42
    %s45 = sphi 0, %s44
    %s59 = sphi 0, %s45
    %s65 = sphi 0, %s67
    %s68 = sphi 0, %s65
    %s69 = sphi 0, %s68
    %s85 = sphi 0, %s69
  $region4: #{discriminator_forward.7} parent=0 // loop_header_branch
    %11 = sbr.rel (%p9) target = $region8
  $region5: #{discriminator_forward.7} parent=0 // loop_body
    %s13 = ssub.s32 %s8, 1
    %s14 = ssub.s32 %s8, 2
    %s15 = sadd.s32 %s8, 1
    %s16 = ssub.s32 %s8, %s15
    %p17 = scmp.eq.s32.totalorder %s16, 0
    %s19 = sadd.s32 %s18, 1
    %s20 = scalar_select %p17, %s18, %s19
    %p23 = pneg %p17
    %p24 = scmp.eq.s32.totalorder %s8, 1
    %p25 = por %p23, %p24
    %p26 = scmp.ne.s32.totalorder %s18, %s21
    %p27 = scmp.eq.s32.totalorder %s8, 0
    %p28 = por %p26, %p27
    %p29 = scmp.ne.s32.totalorder %s18, %s21
    %p30 = scmp.eq.s32.totalorder %s13, 1
    %p31 = por %p29, %p30
    %p32 = scmp.ne.s32.totalorder %s21, %s22
    %p33 = scmp.eq.s32.totalorder %s13, 0
    %p34 = por %p32, %p33
    %p35 = scmp.ne.s32.totalorder %s21, %s22
    %p36 = scmp.eq.s32.totalorder %s14, 1
    %p37 = por %p35, %p36
    %p39 = scmp.ne.s32.totalorder %s22, %s38
    %p40 = scmp.eq.s32.totalorder %s14, 0
    %p41 = por %p39, %p40
    %s43 = sadd.s32 %s42, 1
    %p46 = scmp.eq.s32.totalorder %s8, 1
    %p47 = scmp.ne.s32.totalorder %s42, %s44
    %p48 = scmp.eq.s32.totalorder %s8, 0
    %p49 = por %p47, %p48
    %p50 = scmp.ne.s32.totalorder %s42, %s44
    %p51 = scmp.eq.s32.totalorder %s13, 1
    %p52 = por %p50, %p51
    %p53 = scmp.ne.s32.totalorder %s44, %s45
    %p54 = scmp.eq.s32.totalorder %s13, 0
    %p55 = por %p53, %p54
    %p56 = scmp.ne.s32.totalorder %s44, %s45
    %p57 = scmp.eq.s32.totalorder %s14, 1
    %p58 = por %p56, %p57
    %p60 = scmp.ne.s32.totalorder %s45, %s59
    %p61 = scmp.eq.s32.totalorder %s14, 0
    %p62 = por %p60, %p61
    %s63 = ssub.s32 %s8, %s15
    %p64 = scmp.eq.s32.totalorder %s63, 0
    %s66 = sadd.s32 %s65, 1
    %s67 = scalar_select %p64, %s65, %s66
    %p70 = pneg %p64
    %p71 = scmp.eq.s32.totalorder %s8, 1
    %p72 = por %p70, %p71
    %p73 = scmp.ne.s32.totalorder %s65, %s68
    %p74 = scmp.eq.s32.totalorder %s8, 0
    %p75 = por %p73, %p74
    %p76 = scmp.ne.s32.totalorder %s65, %s68
    %p77 = scmp.eq.s32.totalorder %s13, 1
    %p78 = por %p76, %p77
    %p79 = scmp.ne.s32.totalorder %s68, %s69
    %p80 = scmp.eq.s32.totalorder %s13, 0
    %p81 = por %p79, %p80
    %p82 = scmp.ne.s32.totalorder %s68, %s69
    %p83 = scmp.eq.s32.totalorder %s14, 1
    %p84 = por %p82, %p83
    %p86 = scmp.ne.s32.totalorder %s69, %s85
    %p87 = scmp.eq.s32.totalorder %s14, 0
    %p88 = por %p86, %p87
    %p89 = scmp.le.s32.totalorder 1, %s8
    %p90 = scmp.lt.s32.totalorder %s8, 3
    %p91 = pnand %p89, %p90
    %p92 = pneg %p91
    // Predicated region
    $region9: #{discriminator_forward.7} parent=5 // pred_check
      _
    $region10: #{discriminator_forward.7} parent=5 // pred_check_branch
      %94 = sbr.rel (%p91) target = $region12
    $region11: #{discriminator_forward.7} parent=5 // pred_region
      %s95 = ssub.s32 %s8, 1
      // Predicated region
      $region13: #{discriminator_forward.7} parent=11 // pred_check
        %p96 = pneg %p55
      $region14: #{discriminator_forward.7} parent=11 // pred_check_branch
        %98 = sbr.rel (%p96) target = $region16
      $region15: #{discriminator_forward.7} parent=11 // pred_region
        _
      $region16: #{discriminator_forward.7} parent=11 // pred_fallthru
        _
    $region12: #{discriminator_forward.7} parent=5 // pred_fallthru
      _
    %p99 = scmp.lt.s32.totalorder %s8, 2
    // Predicated region
    $region17: #{discriminator_forward.7} parent=5 // pred_check
      %p100 = pneg %p99
    $region18: #{discriminator_forward.7} parent=5 // pred_check_branch
      %102 = sbr.rel (%p100) target = $region20
    $region19: #{discriminator_forward.7} parent=5 // pred_region
      // Predicated region
      $region21: #{discriminator_forward.7} parent=19 // pred_check
        %p103 = pneg %p28
      $region22: #{discriminator_forward.7} parent=19 // pred_check_branch
        %105 = sbr.rel (%p103) target = $region24
      $region23: #{discriminator_forward.7} parent=19 // pred_region
        %p106 = scmp.lt.s32.totalorder %s8, 1
        %s107 = scalar_select %p106, %s8, 1
        %s108 = smul.addr %s107, 102
        %s109 = smul.addr %s108, 4
        %s110 = scalar_lea.vmem %s0, %s109
      $region24: #{discriminator_forward.7} parent=19 // pred_fallthru
        _
    $region20: #{discriminator_forward.7} parent=5 // pred_fallthru
      _
    %p111 = scmp.le.s32.totalorder 1, %s8
    %p112 = scmp.lt.s32.totalorder %s8, 3
    %p113 = pnand %p111, %p112
    %p114 = pneg %p113
    // Predicated region
    $region25: #{discriminator_forward.7} parent=5 // pred_check
      _
    $region26: #{discriminator_forward.7} parent=5 // pred_check_branch
      %116 = sbr.rel (%p113) target = $region28
    $region27: #{discriminator_forward.7} parent=5 // pred_region
      %s117 = ssub.s32 %s8, 1
      %p118 = scmp.lt.s32.totalorder %s13, 1
      %s119 = scalar_select %p118, %s13, 1
      %s120 = smul.addr %s119, 102
      %s121 = smul.addr %s120, 4
      %s122 = scalar_lea.vmem %s0, %s121
      %p123 = pneg %p34
      %p124 = pneg %p31
      %p125 = pneg %p55
      %p126 = pneg %p52
      %p127 = pneg %p81
      %p128 = pneg %p78
      %p129 = scmp.lt.s32.totalorder %s13, 1
      %s130 = scalar_select %p129, %s13, 1
      %s131 = smul.addr %s130, 54
      %s132 = smul.addr %s131, 4
      %s133 = scalar_lea.vmem %s2, %s132
      %p134 = scmp.lt.s32.totalorder %s13, 1
      %s135 = scalar_select %p134, %s13, 1
      %s136 = smul.addr %s135, 102
      %s137 = smul.addr %s136, 4
      %s138 = scalar_lea.vmem %s0, %s137
      %p139 = scmp.lt.s32.totalorder %s13, 1
      %s140 = scalar_select %p139, %s13, 1
      %s141 = smul.addr %s140, 54
      %s142 = smul.addr %s141, 4
      %s143 = scalar_lea.vmem %s2, %s142
      %v145 = vld [vmem:[%s138] sm:$0xf]
      %v146 = vld [vmem:[%s138 + $0x4] sm:$0xf]
      %v147 = vld [vmem:[%s138 + $0x18] sm:$0xf]
      %v148 = vld [vmem:[%s138 + $0x1c] sm:$0xf]
      %v149 = vld [vmem:[%s138 + $0x30] sm:$0xf]
      %v150 = vld [vmem:[%s138 + $0x34] sm:$0xf]
      %v151 = vld [vmem:[%s138 + $0x48] sm:$0xf]
      %v152 = vld [vmem:[%s138 + $0x4c] sm:$0xf]
      %v153 = vld [vmem:[%s138 + $0x60] sm:$0xf]
      %v154 = vld [vmem:[%s138 + $0x64] sm:$0xf]
      %v155 = vld [vmem:[%s138 + $0x78] sm:$0xf]
      %v156 = vld [vmem:[%s138 + $0x7c] sm:$0xf]
      %v157 = vld [vmem:[%s138 + $0x90] sm:$0xf]
      %v158 = vld [vmem:[%s138 + $0x94] sm:$0xf]
      %v159 = vld [vmem:[%s138 + $0xa8] sm:$0xf]
      %v160 = vld [vmem:[%s138 + $0xac] sm:$0xf]
      %v161 = vld [vmem:[%s138 + $0xc0] sm:$0xf]
      %v162 = vld [vmem:[%s138 + $0xc4] sm:$0xf]
      %v163 = vld [vmem:[%s138 + $0xd8] sm:$0xf]
      %v164 = vld [vmem:[%s138 + $0xdc] sm:$0xf]
      %v165 = vld [vmem:[%s138 + $0xf0] sm:$0xf]
      %v166 = vld [vmem:[%s138 + $0xf4] sm:$0xf]
      %v167 = vld [vmem:[%s138 + $0x108] sm:$0xf]
      %v168 = vld [vmem:[%s138 + $0x10c] sm:$0xf]
      %v169 = vld [vmem:[%s138 + $0x120] sm:$0xf]
      %v170 = vld [vmem:[%s138 + $0x124] sm:$0xf]
      %v171 = vld [vmem:[%s138 + $0x138] sm:$0xf]
      %v172 = vld [vmem:[%s138 + $0x13c] sm:$0xf]
      %v173 = vld [vmem:[%s138 + $0x150] sm:$0xf]
      %v174 = vld [vmem:[%s138 + $0x154] sm:$0xf]
      %v175 = vld [vmem:[%s138 + $0x168] sm:$0xf]
      %v176 = vld [vmem:[%s138 + $0x16c] sm:$0xf]
      %v177 = vld [vmem:[%s138 + $0x8] sm:$0x1]
      %v178 = vld [vmem:[%s138 + $0x20] sm:$0x1]
      %v179 = vld [vmem:[%s138 + $0x38] sm:$0x1]
      %v180 = vld [vmem:[%s138 + $0x50] sm:$0x1]
      %v181 = vld [vmem:[%s138 + $0x68] sm:$0x1]
      %v182 = vld [vmem:[%s138 + $0x80] sm:$0x1]
      %v183 = vld [vmem:[%s138 + $0x98] sm:$0x1]
      %v184 = vld [vmem:[%s138 + $0xb0] sm:$0x1]
      %v185 = vld [vmem:[%s138 + $0xc8] sm:$0x1]
      %v186 = vld [vmem:[%s138 + $0xe0] sm:$0x1]
      %v187 = vld [vmem:[%s138 + $0xf8] sm:$0x1]
      %v188 = vld [vmem:[%s138 + $0x110] sm:$0x1]
      %v189 = vld [vmem:[%s138 + $0x128] sm:$0x1]
      %v190 = vld [vmem:[%s138 + $0x140] sm:$0x1]
      %v191 = vld [vmem:[%s138 + $0x158] sm:$0x1]
      %v192 = vld [vmem:[%s138 + $0x170] sm:$0x1]
      %s193 = scalar_lea.vmem %s138, 12
      %v194 = vld [vmem:[%s193] sm:$0xf]
      %v195 = vld [vmem:[%s193 + $0x4] sm:$0xf]
      %v196 = vld [vmem:[%s193 + $0x18] sm:$0xf]
      %v197 = vld [vmem:[%s193 + $0x1c] sm:$0xf]
      %v198 = vld [vmem:[%s193 + $0x30] sm:$0xf]
      %v199 = vld [vmem:[%s193 + $0x34] sm:$0xf]
      %v200 = vld [vmem:[%s193 + $0x48] sm:$0xf]
      %v201 = vld [vmem:[%s193 + $0x4c] sm:$0xf]
      %v202 = vld [vmem:[%s193 + $0x60] sm:$0xf]
      %v203 = vld [vmem:[%s193 + $0x64] sm:$0xf]
      %v204 = vld [vmem:[%s193 + $0x78] sm:$0xf]
      %v205 = vld [vmem:[%s193 + $0x7c] sm:$0xf]
      %v206 = vld [vmem:[%s193 + $0x90] sm:$0xf]
      %v207 = vld [vmem:[%s193 + $0x94] sm:$0xf]
      %v208 = vld [vmem:[%s193 + $0xa8] sm:$0xf]
      %v209 = vld [vmem:[%s193 + $0xac] sm:$0xf]
      %v210 = vld [vmem:[%s193 + $0xc0] sm:$0xf]
      %v211 = vld [vmem:[%s193 + $0xc4] sm:$0xf]
      %v212 = vld [vmem:[%s193 + $0xd8] sm:$0xf]
      %v213 = vld [vmem:[%s193 + $0xdc] sm:$0xf]
      %v214 = vld [vmem:[%s193 + $0xf0] sm:$0xf]
      %v215 = vld [vmem:[%s193 + $0xf4] sm:$0xf]
      %v216 = vld [vmem:[%s193 + $0x108] sm:$0xf]
      %v217 = vld [vmem:[%s193 + $0x10c] sm:$0xf]
      %v218 = vld [vmem:[%s193 + $0x120] sm:$0xf]
      %v219 = vld [vmem:[%s193 + $0x124] sm:$0xf]
      %v220 = vld [vmem:[%s193 + $0x138] sm:$0xf]
      %v221 = vld [vmem:[%s193 + $0x13c] sm:$0xf]
      %v222 = vld [vmem:[%s193 + $0x150] sm:$0xf]
      %v223 = vld [vmem:[%s193 + $0x154] sm:$0xf]
      %v224 = vld [vmem:[%s193 + $0x168] sm:$0xf]
      %v225 = vld [vmem:[%s193 + $0x16c] sm:$0xf]
      %v226 = vld [vmem:[%s193 + $0x8] sm:$0x1]
      %v227 = vld [vmem:[%s193 + $0x20] sm:$0x1]
      %v228 = vld [vmem:[%s193 + $0x38] sm:$0x1]
      %v229 = vld [vmem:[%s193 + $0x50] sm:$0x1]
      %v230 = vld [vmem:[%s193 + $0x68] sm:$0x1]
      %v231 = vld [vmem:[%s193 + $0x80] sm:$0x1]
      %v232 = vld [vmem:[%s193 + $0x98] sm:$0x1]
      %v233 = vld [vmem:[%s193 + $0xb0] sm:$0x1]
      %v234 = vld [vmem:[%s193 + $0xc8] sm:$0x1]
      %v235 = vld [vmem:[%s193 + $0xe0] sm:$0x1]
      %v236 = vld [vmem:[%s193 + $0xf8] sm:$0x1]
      %v237 = vld [vmem:[%s193 + $0x110] sm:$0x1]
      %v238 = vld [vmem:[%s193 + $0x128] sm:$0x1]
      %v239 = vld [vmem:[%s193 + $0x140] sm:$0x1]
      %v240 = vld [vmem:[%s193 + $0x158] sm:$0x1]
      %v241 = vld [vmem:[%s193 + $0x170] sm:$0x1]
      %s242 = scalar_lea.vmem %s138, 24
      %v243 = vld [vmem:[%s242] sm:$0xf]
      %v244 = vld [vmem:[%s242 + $0x4] sm:$0xf]
      %v245 = vld [vmem:[%s242 + $0x18] sm:$0xf]
      %v246 = vld [vmem:[%s242 + $0x1c] sm:$0xf]
      %v247 = vld [vmem:[%s242 + $0x30] sm:$0xf]
      %v248 = vld [vmem:[%s242 + $0x34] sm:$0xf]
      %v249 = vld [vmem:[%s242 + $0x48] sm:$0xf]
      %v250 = vld [vmem:[%s242 + $0x4c] sm:$0xf]
      %v251 = vld [vmem:[%s242 + $0x60] sm:$0xf]
      %v252 = vld [vmem:[%s242 + $0x64] sm:$0xf]
      %v253 = vld [vmem:[%s242 + $0x78] sm:$0xf]
      %v254 = vld [vmem:[%s242 + $0x7c] sm:$0xf]
      %v255 = vld [vmem:[%s242 + $0x90] sm:$0xf]
      %v256 = vld [vmem:[%s242 + $0x94] sm:$0xf]
      %v257 = vld [vmem:[%s242 + $0xa8] sm:$0xf]
      %v258 = vld [vmem:[%s242 + $0xac] sm:$0xf]
      %v259 = vld [vmem:[%s242 + $0xc0] sm:$0xf]
      %v260 = vld [vmem:[%s242 + $0xc4] sm:$0xf]
      %v261 = vld [vmem:[%s242 + $0xd8] sm:$0xf]
      %v262 = vld [vmem:[%s242 + $0xdc] sm:$0xf]
      %v263 = vld [vmem:[%s242 + $0xf0] sm:$0xf]
      %v264 = vld [vmem:[%s242 + $0xf4] sm:$0xf]
      %v265 = vld [vmem:[%s242 + $0x108] sm:$0xf]
      %v266 = vld [vmem:[%s242 + $0x10c] sm:$0xf]
      %v267 = vld [vmem:[%s242 + $0x120] sm:$0xf]
      %v268 = vld [vmem:[%s242 + $0x124] sm:$0xf]
      %v269 = vld [vmem:[%s242 + $0x138] sm:$0xf]
      %v270 = vld [vmem:[%s242 + $0x13c] sm:$0xf]
      %v271 = vld [vmem:[%s242 + $0x150] sm:$0xf]
      %v272 = vld [vmem:[%s242 + $0x154] sm:$0xf]
      %v273 = vld [vmem:[%s242 + $0x168] sm:$0xf]
      %v274 = vld [vmem:[%s242 + $0x16c] sm:$0xf]
      %v275 = vld [vmem:[%s242 + $0x8] sm:$0x1]
      %v276 = vld [vmem:[%s242 + $0x20] sm:$0x1]
      %v277 = vld [vmem:[%s242 + $0x38] sm:$0x1]
      %v278 = vld [vmem:[%s242 + $0x50] sm:$0x1]
      %v279 = vld [vmem:[%s242 + $0x68] sm:$0x1]
      %v280 = vld [vmem:[%s242 + $0x80] sm:$0x1]
      %v281 = vld [vmem:[%s242 + $0x98] sm:$0x1]
      %v282 = vld [vmem:[%s242 + $0xb0] sm:$0x1]
      %v283 = vld [vmem:[%s242 + $0xc8] sm:$0x1]
      %v284 = vld [vmem:[%s242 + $0xe0] sm:$0x1]
      %v285 = vld [vmem:[%s242 + $0xf8] sm:$0x1]
      %v286 = vld [vmem:[%s242 + $0x110] sm:$0x1]
      %v287 = vld [vmem:[%s242 + $0x128] sm:$0x1]
      %v288 = vld [vmem:[%s242 + $0x140] sm:$0x1]
      %v289 = vld [vmem:[%s242 + $0x158] sm:$0x1]
      %v290 = vld [vmem:[%s242 + $0x170] sm:$0x1]
      %s291 = scalar_lea.vmem %s138, 36
      %v292 = vld [vmem:[%s291] sm:$0xf]
      %v293 = vld [vmem:[%s291 + $0x4] sm:$0xf]
      %v294 = vld [vmem:[%s291 + $0x18] sm:$0xf]
      %v295 = vld [vmem:[%s291 + $0x1c] sm:$0xf]
      %v296 = vld [vmem:[%s291 + $0x30] sm:$0xf]
      %v297 = vld [vmem:[%s291 + $0x34] sm:$0xf]
      %v298 = vld [vmem:[%s291 + $0x48] sm:$0xf]
      %v299 = vld [vmem:[%s291 + $0x4c] sm:$0xf]
      %v300 = vld [vmem:[%s291 + $0x60] sm:$0xf]
      %v301 = vld [vmem:[%s291 + $0x64] sm:$0xf]
      %v302 = vld [vmem:[%s291 + $0x78] sm:$0xf]
      %v303 = vld [vmem:[%s291 + $0x7c] sm:$0xf]
      %v304 = vld [vmem:[%s291 + $0x90] sm:$0xf]
      %v305 = vld [vmem:[%s291 + $0x94] sm:$0xf]
      %v306 = vld [vmem:[%s291 + $0xa8] sm:$0xf]
      %v307 = vld [vmem:[%s291 + $0xac] sm:$0xf]
      %v308 = vld [vmem:[%s291 + $0xc0] sm:$0xf]
      %v309 = vld [vmem:[%s291 + $0xc4] sm:$0xf]
      %v310 = vld [vmem:[%s291 + $0xd8] sm:$0xf]
      %v311 = vld [vmem:[%s291 + $0xdc] sm:$0xf]
      %v312 = vld [vmem:[%s291 + $0xf0] sm:$0xf]
      %v313 = vld [vmem:[%s291 + $0xf4] sm:$0xf]
      %v314 = vld [vmem:[%s291 + $0x108] sm:$0xf]
      %v315 = vld [vmem:[%s291 + $0x10c] sm:$0xf]
      %v316 = vld [vmem:[%s291 + $0x120] sm:$0xf]
      %v317 = vld [vmem:[%s291 + $0x124] sm:$0xf]
      %v318 = vld [vmem:[%s291 + $0x138] sm:$0xf]
      %v319 = vld [vmem:[%s291 + $0x13c] sm:$0xf]
      %v320 = vld [vmem:[%s291 + $0x150] sm:$0xf]
      %v321 = vld [vmem:[%s291 + $0x154] sm:$0xf]
      %v322 = vld [vmem:[%s291 + $0x168] sm:$0xf]
      %v323 = vld [vmem:[%s291 + $0x16c] sm:$0xf]
      %v324 = vld [vmem:[%s291 + $0x8] sm:$0x1]
      %v325 = vld [vmem:[%s291 + $0x20] sm:$0x1]
      %v326 = vld [vmem:[%s291 + $0x38] sm:$0x1]
      %v327 = vld [vmem:[%s291 + $0x50] sm:$0x1]
      %v328 = vld [vmem:[%s291 + $0x68] sm:$0x1]
      %v329 = vld [vmem:[%s291 + $0x80] sm:$0x1]
      %v330 = vld [vmem:[%s291 + $0x98] sm:$0x1]
      %v331 = vld [vmem:[%s291 + $0xb0] sm:$0x1]
      %v332 = vld [vmem:[%s291 + $0xc8] sm:$0x1]
      %v333 = vld [vmem:[%s291 + $0xe0] sm:$0x1]
      %v334 = vld [vmem:[%s291 + $0xf8] sm:$0x1]
      %v335 = vld [vmem:[%s291 + $0x110] sm:$0x1]
      %v336 = vld [vmem:[%s291 + $0x128] sm:$0x1]
      %v337 = vld [vmem:[%s291 + $0x140] sm:$0x1]
      %v338 = vld [vmem:[%s291 + $0x158] sm:$0x1]
      %v339 = vld [vmem:[%s291 + $0x170] sm:$0x1]
      %v372 = vunpack.c.l.b16 %v145
      %v373 = vunpack.c.l.b16 %v146
      %v374 = vunpack.c.l.b16 %v147
      %v375 = vunpack.c.l.b16 %v148
      %v376 = vunpack.c.l.b16 %v149
      %v377 = vunpack.c.l.b16 %v150
      %v378 = vunpack.c.l.b16 %v151
      %v379 = vunpack.c.l.b16 %v152
      %v380 = vunpack.c.l.b16 %v153
      %v381 = vunpack.c.l.b16 %v154
      %v382 = vunpack.c.l.b16 %v155
      %v383 = vunpack.c.l.b16 %v156
      %v384 = vunpack.c.l.b16 %v157
      %v385 = vunpack.c.l.b16 %v158
      %v386 = vunpack.c.l.b16 %v159
      %v387 = vunpack.c.l.b16 %v160
      %v388 = vunpack.c.l.b16 %v161
      %v389 = vunpack.c.l.b16 %v162
      %v390 = vunpack.c.l.b16 %v163
      %v391 = vunpack.c.l.b16 %v164
      %v392 = vunpack.c.l.b16 %v165
      %v393 = vunpack.c.l.b16 %v166
      %v394 = vunpack.c.l.b16 %v167
      %v395 = vunpack.c.l.b16 %v168
      %v396 = vunpack.c.l.b16 %v169
      %v397 = vunpack.c.l.b16 %v170
      %v398 = vunpack.c.l.b16 %v171
      %v399 = vunpack.c.l.b16 %v172
      %v400 = vunpack.c.l.b16 %v173
      %v401 = vunpack.c.l.b16 %v174
      %v402 = vunpack.c.l.b16 %v175
      %v403 = vunpack.c.l.b16 %v176
      %v404 = vpack.c.b16 %v373, %v372
      %v405 = vpack.c.b16 %v375, %v374
      %v406 = vpack.c.b16 %v377, %v376
      %v407 = vpack.c.b16 %v379, %v378
      %v408 = vpack.c.b16 %v381, %v380
      %v409 = vpack.c.b16 %v383, %v382
      %v410 = vpack.c.b16 %v385, %v384
      %v411 = vpack.c.b16 %v387, %v386
      %v412 = vpack.c.b16 %v389, %v388
      %v413 = vpack.c.b16 %v391, %v390
      %v414 = vpack.c.b16 %v393, %v392
      %v415 = vpack.c.b16 %v395, %v394
      %v416 = vpack.c.b16 %v397, %v396
      %v417 = vpack.c.b16 %v399, %v398
      %v418 = vpack.c.b16 %v401, %v400
      %v419 = vpack.c.b16 %v403, %v402
      %v436 = vunpack.c.l.b16 %v177
      %v437 = vunpack.c.l.b16 %v178
      %v438 = vunpack.c.l.b16 %v179
      %v439 = vunpack.c.l.b16 %v180
      %v440 = vunpack.c.l.b16 %v181
      %v441 = vunpack.c.l.b16 %v182
      %v442 = vunpack.c.l.b16 %v183
      %v443 = vunpack.c.l.b16 %v184
      %v444 = vunpack.c.l.b16 %v185
      %v445 = vunpack.c.l.b16 %v186
      %v446 = vunpack.c.l.b16 %v187
      %v447 = vunpack.c.l.b16 %v188
      %v448 = vunpack.c.l.b16 %v189
      %v449 = vunpack.c.l.b16 %v190
      %v450 = vunpack.c.l.b16 %v191
      %v451 = vunpack.c.l.b16 %v192
      %v452 = vpack.c.b16 %v436, %v436
      %v453 = vpack.c.b16 %v437, %v437
      %v454 = vpack.c.b16 %v438, %v438
      %v455 = vpack.c.b16 %v439, %v439
      %v456 = vpack.c.b16 %v440, %v440
      %v457 = vpack.c.b16 %v441, %v441
      %v458 = vpack.c.b16 %v442, %v442
      %v459 = vpack.c.b16 %v443, %v443
      %v460 = vpack.c.b16 %v444, %v444
      %v461 = vpack.c.b16 %v445, %v445
      %v462 = vpack.c.b16 %v446, %v446
      %v463 = vpack.c.b16 %v447, %v447
      %v464 = vpack.c.b16 %v448, %v448
      %v465 = vpack.c.b16 %v449, %v449
      %v466 = vpack.c.b16 %v450, %v450
      %v467 = vpack.c.b16 %v451, %v451
      %vm468 = vsmask.f32 7424
      %v470 = vshrl.u32 %v404, 16
      %v472 = vshll.u32 %v404, 16
      %v474 = vrot.slane %v472, 1
      %v475 = vor.u32 %v470, %v474
      %v477 = vshll.u32 %v452, 16
      %v479 = vrot.slane %v477, 1
      %v480 = vsel %vm468, %v475, %v479
      %v482 = vshrl.u32 %v405, 16
      %v484 = vshll.u32 %v405, 16
      %v486 = vrot.slane %v484, 1
      %v487 = vor.u32 %v482, %v486
      %v489 = vshll.u32 %v453, 16
      %v491 = vrot.slane %v489, 1
      %v492 = vsel %vm468, %v487, %v491
      %v494 = vshrl.u32 %v406, 16
      %v496 = vshll.u32 %v406, 16
      %v498 = vrot.slane %v496, 1
      %v499 = vor.u32 %v494, %v498
      %v501 = vshll.u32 %v454, 16
      %v503 = vrot.slane %v501, 1
      %v504 = vsel %vm468, %v499, %v503
      %v506 = vshrl.u32 %v407, 16
      %v508 = vshll.u32 %v407, 16
      %v510 = vrot.slane %v508, 1
      %v511 = vor.u32 %v506, %v510
      %v513 = vshll.u32 %v455, 16
      %v515 = vrot.slane %v513, 1
      %v516 = vsel %vm468, %v511, %v515
      %v518 = vshrl.u32 %v408, 16
      %v520 = vshll.u32 %v408, 16
      %v522 = vrot.slane %v520, 1
      %v523 = vor.u32 %v518, %v522
      %v525 = vshll.u32 %v456, 16
      %v527 = vrot.slane %v525, 1
      %v528 = vsel %vm468, %v523, %v527
      %v530 = vshrl.u32 %v409, 16
      %v532 = vshll.u32 %v409, 16
      %v534 = vrot.slane %v532, 1
      %v535 = vor.u32 %v530, %v534
      %v537 = vshll.u32 %v457, 16
      %v539 = vrot.slane %v537, 1
      %v540 = vsel %vm468, %v535, %v539
      %v542 = vshrl.u32 %v410, 16
      %v544 = vshll.u32 %v410, 16
      %v546 = vrot.slane %v544, 1
      %v547 = vor.u32 %v542, %v546
      %v549 = vshll.u32 %v458, 16
      %v551 = vrot.slane %v549, 1
      %v552 = vsel %vm468, %v547, %v551
      %v554 = vshrl.u32 %v411, 16
      %v556 = vshll.u32 %v411, 16
      %v558 = vrot.slane %v556, 1
      %v559 = vor.u32 %v554, %v558
      %v561 = vshll.u32 %v459, 16
      %v563 = vrot.slane %v561, 1
      %v564 = vsel %vm468, %v559, %v563
      %v566 = vshrl.u32 %v412, 16
      %v568 = vshll.u32 %v412, 16
      %v570 = vrot.slane %v568, 1
      %v571 = vor.u32 %v566, %v570
      %v573 = vshll.u32 %v460, 16
      %v575 = vrot.slane %v573, 1
      %v576 = vsel %vm468, %v571, %v575
      %v578 = vshrl.u32 %v413, 16
      %v580 = vshll.u32 %v413, 16
      %v582 = vrot.slane %v580, 1
      %v583 = vor.u32 %v578, %v582
      %v585 = vshll.u32 %v461, 16
      %v587 = vrot.slane %v585, 1
      %v588 = vsel %vm468, %v583, %v587
      %v590 = vshrl.u32 %v414, 16
      %v592 = vshll.u32 %v414, 16
      %v594 = vrot.slane %v592, 1
      %v595 = vor.u32 %v590, %v594
      %v597 = vshll.u32 %v462, 16
      %v599 = vrot.slane %v597, 1
      %v600 = vsel %vm468, %v595, %v599
      %v602 = vshrl.u32 %v415, 16
      %v604 = vshll.u32 %v415, 16
      %v606 = vrot.slane %v604, 1
      %v607 = vor.u32 %v602, %v606
      %v609 = vshll.u32 %v463, 16
      %v611 = vrot.slane %v609, 1
      %v612 = vsel %vm468, %v607, %v611
      %v614 = vshrl.u32 %v416, 16
      %v616 = vshll.u32 %v416, 16
      %v618 = vrot.slane %v616, 1
      %v619 = vor.u32 %v614, %v618
      %v621 = vshll.u32 %v464, 16
      %v623 = vrot.slane %v621, 1
      %v624 = vsel %vm468, %v619, %v623
      %v626 = vshrl.u32 %v417, 16
      %v628 = vshll.u32 %v417, 16
      %v630 = vrot.slane %v628, 1
      %v631 = vor.u32 %v626, %v630
      %v633 = vshll.u32 %v465, 16
      %v635 = vrot.slane %v633, 1
      %v636 = vsel %vm468, %v631, %v635
      %v638 = vshrl.u32 %v418, 16
      %v640 = vshll.u32 %v418, 16
      %v642 = vrot.slane %v640, 1
      %v643 = vor.u32 %v638, %v642
      %v645 = vshll.u32 %v466, 16
      %v647 = vrot.slane %v645, 1
      %v648 = vsel %vm468, %v643, %v647
      %v650 = vshrl.u32 %v419, 16
      %v652 = vshll.u32 %v419, 16
      %v654 = vrot.slane %v652, 1
      %v655 = vor.u32 %v650, %v654
      %v657 = vshll.u32 %v467, 16
      %v659 = vrot.slane %v657, 1
      %v660 = vsel %vm468, %v655, %v659
      %661 = vrot.lane.b32.xlu0 %v480, 6
      %v662 = vpop.permute.xlu0 %661
      %663 = vrot.lane.b32.xlu0 %v492, 6
      %v664 = vpop.permute.xlu0 %663
      %665 = vrot.lane.b32.xlu0 %v504, 6
      %v666 = vpop.permute.xlu0 %665
      %667 = vrot.lane.b32.xlu0 %v516, 6
      %v668 = vpop.permute.xlu0 %667
      %669 = vrot.lane.b32.xlu0 %v528, 6
      %v670 = vpop.permute.xlu0 %669
      %671 = vrot.lane.b32.xlu0 %v540, 6
      %v672 = vpop.permute.xlu0 %671
      %673 = vrot.lane.b32.xlu0 %v552, 6
      %v674 = vpop.permute.xlu0 %673
      %675 = vrot.lane.b32.xlu0 %v564, 6
      %v676 = vpop.permute.xlu0 %675
      %677 = vrot.lane.b32.xlu0 %v576, 6
      %v678 = vpop.permute.xlu0 %677
      %679 = vrot.lane.b32.xlu0 %v588, 6
      %v680 = vpop.permute.xlu0 %679
      %681 = vrot.lane.b32.xlu0 %v600, 6
      %v682 = vpop.permute.xlu0 %681
      %683 = vrot.lane.b32.xlu0 %v612, 6
      %v684 = vpop.permute.xlu0 %683
      %685 = vrot.lane.b32.xlu0 %v624, 6
      %v686 = vpop.permute.xlu0 %685
      %687 = vrot.lane.b32.xlu0 %v636, 6
      %v688 = vpop.permute.xlu0 %687
      %689 = vrot.lane.b32.xlu0 %v648, 6
      %v690 = vpop.permute.xlu0 %689
      %691 = vrot.lane.b32.xlu0 %v660, 6
      %v692 = vpop.permute.xlu0 %691
      %v725 = vunpack.c.l.b16 %v194
      %v726 = vunpack.c.l.b16 %v195
      %v727 = vunpack.c.l.b16 %v196
      %v728 = vunpack.c.l.b16 %v197
      %v729 = vunpack.c.l.b16 %v198
      %v730 = vunpack.c.l.b16 %v199
      %v731 = vunpack.c.l.b16 %v200
      %v732 = vunpack.c.l.b16 %v201
      %v733 = vunpack.c.l.b16 %v202
      %v734 = vunpack.c.l.b16 %v203
      %v735 = vunpack.c.l.b16 %v204
      %v736 = vunpack.c.l.b16 %v205
      %v737 = vunpack.c.l.b16 %v206
      %v738 = vunpack.c.l.b16 %v207
      %v739 = vunpack.c.l.b16 %v208
      %v740 = vunpack.c.l.b16 %v209
      %v741 = vunpack.c.l.b16 %v210
      %v742 = vunpack.c.l.b16 %v211
      %v743 = vunpack.c.l.b16 %v212
      %v744 = vunpack.c.l.b16 %v213
      %v745 = vunpack.c.l.b16 %v214
      %v746 = vunpack.c.l.b16 %v215
      %v747 = vunpack.c.l.b16 %v216
      %v748 = vunpack.c.l.b16 %v217
      %v749 = vunpack.c.l.b16 %v218
      %v750 = vunpack.c.l.b16 %v219
      %v751 = vunpack.c.l.b16 %v220
      %v752 = vunpack.c.l.b16 %v221
      %v753 = vunpack.c.l.b16 %v222
      %v754 = vunpack.c.l.b16 %v223
      %v755 = vunpack.c.l.b16 %v224
      %v756 = vunpack.c.l.b16 %v225
      %v757 = vpack.c.b16 %v726, %v725
      %v758 = vpack.c.b16 %v728, %v727
      %v759 = vpack.c.b16 %v730, %v729
      %v760 = vpack.c.b16 %v732, %v731
      %v761 = vpack.c.b16 %v734, %v733
      %v762 = vpack.c.b16 %v736, %v735
      %v763 = vpack.c.b16 %v738, %v737
      %v764 = vpack.c.b16 %v740, %v739
      %v765 = vpack.c.b16 %v742, %v741
      %v766 = vpack.c.b16 %v744, %v743
      %v767 = vpack.c.b16 %v746, %v745
      %v768 = vpack.c.b16 %v748, %v747
      %v769 = vpack.c.b16 %v750, %v749
      %v770 = vpack.c.b16 %v752, %v751
      %v771 = vpack.c.b16 %v754, %v753
      %v772 = vpack.c.b16 %v756, %v755
      %773 = vrot.lane.b32.xlu0 %v757, 12
      %v774 = vpop.permute.xlu0 %773
      %775 = vrot.lane.b32.xlu0 %v758, 12
      %v776 = vpop.permute.xlu0 %775
      %777 = vrot.lane.b32.xlu0 %v759, 12
      %v778 = vpop.permute.xlu0 %777
      %779 = vrot.lane.b32.xlu0 %v760, 12
      %v780 = vpop.permute.xlu0 %779
      %781 = vrot.lane.b32.xlu0 %v761, 12
      %v782 = vpop.permute.xlu0 %781
      %783 = vrot.lane.b32.xlu0 %v762, 12
      %v784 = vpop.permute.xlu0 %783
      %785 = vrot.lane.b32.xlu0 %v763, 12
      %v786 = vpop.permute.xlu0 %785
      %787 = vrot.lane.b32.xlu0 %v764, 12
      %v788 = vpop.permute.xlu0 %787
      %789 = vrot.lane.b32.xlu0 %v765, 12
      %v790 = vpop.permute.xlu0 %789
      %791 = vrot.lane.b32.xlu0 %v766, 12
      %v792 = vpop.permute.xlu0 %791
      %793 = vrot.lane.b32.xlu0 %v767, 12
      %v794 = vpop.permute.xlu0 %793
      %795 = vrot.lane.b32.xlu0 %v768, 12
      %v796 = vpop.permute.xlu0 %795
      %797 = vrot.lane.b32.xlu0 %v769, 12
      %v798 = vpop.permute.xlu0 %797
      %799 = vrot.lane.b32.xlu0 %v770, 12
      %v800 = vpop.permute.xlu0 %799
      %801 = vrot.lane.b32.xlu0 %v771, 12
      %v802 = vpop.permute.xlu0 %801
      %803 = vrot.lane.b32.xlu0 %v772, 12
      %v804 = vpop.permute.xlu0 %803
      %v821 = vunpack.c.l.b16 %v226
      %v822 = vunpack.c.l.b16 %v227
      %v823 = vunpack.c.l.b16 %v228
      %v824 = vunpack.c.l.b16 %v229
      %v825 = vunpack.c.l.b16 %v230
      %v826 = vunpack.c.l.b16 %v231
      %v827 = vunpack.c.l.b16 %v232
      %v828 = vunpack.c.l.b16 %v233
      %v829 = vunpack.c.l.b16 %v234
      %v830 = vunpack.c.l.b16 %v235
      %v831 = vunpack.c.l.b16 %v236
      %v832 = vunpack.c.l.b16 %v237
      %v833 = vunpack.c.l.b16 %v238
      %v834 = vunpack.c.l.b16 %v239
      %v835 = vunpack.c.l.b16 %v240
      %v836 = vunpack.c.l.b16 %v241
      %v837 = vpack.c.b16 %v821, %v821
      %v838 = vpack.c.b16 %v822, %v822
      %v839 = vpack.c.b16 %v823, %v823
      %v840 = vpack.c.b16 %v824, %v824
      %v841 = vpack.c.b16 %v825, %v825
      %v842 = vpack.c.b16 %v826, %v826
      %v843 = vpack.c.b16 %v827, %v827
      %v844 = vpack.c.b16 %v828, %v828
      %v845 = vpack.c.b16 %v829, %v829
      %v846 = vpack.c.b16 %v830, %v830
      %v847 = vpack.c.b16 %v831, %v831
      %v848 = vpack.c.b16 %v832, %v832
      %v849 = vpack.c.b16 %v833, %v833
      %v850 = vpack.c.b16 %v834, %v834
      %v851 = vpack.c.b16 %v835, %v835
      %v852 = vpack.c.b16 %v836, %v836
      %v854 = vshrl.u32 %v757, 16
      %v856 = vshll.u32 %v757, 16
      %v858 = vrot.slane %v856, 1
      %v859 = vor.u32 %v854, %v858
      %v861 = vshll.u32 %v837, 16
      %v863 = vrot.slane %v861, 1
      %v864 = vsel %vm468, %v859, %v863
      %v866 = vshrl.u32 %v758, 16
      %v868 = vshll.u32 %v758, 16
      %v870 = vrot.slane %v868, 1
      %v871 = vor.u32 %v866, %v870
      %v873 = vshll.u32 %v838, 16
      %v875 = vrot.slane %v873, 1
      %v876 = vsel %vm468, %v871, %v875
      %v878 = vshrl.u32 %v759, 16
      %v880 = vshll.u32 %v759, 16
      %v882 = vrot.slane %v880, 1
      %v883 = vor.u32 %v878, %v882
      %v885 = vshll.u32 %v839, 16
      %v887 = vrot.slane %v885, 1
      %v888 = vsel %vm468, %v883, %v887
      %v890 = vshrl.u32 %v760, 16
      %v892 = vshll.u32 %v760, 16
      %v894 = vrot.slane %v892, 1
      %v895 = vor.u32 %v890, %v894
      %v897 = vshll.u32 %v840, 16
      %v899 = vrot.slane %v897, 1
      %v900 = vsel %vm468, %v895, %v899
      %v902 = vshrl.u32 %v761, 16
      %v904 = vshll.u32 %v761, 16
      %v906 = vrot.slane %v904, 1
      %v907 = vor.u32 %v902, %v906
      %v909 = vshll.u32 %v841, 16
      %v911 = vrot.slane %v909, 1
      %v912 = vsel %vm468, %v907, %v911
      %v914 = vshrl.u32 %v762, 16
      %v916 = vshll.u32 %v762, 16
      %v918 = vrot.slane %v916, 1
      %v919 = vor.u32 %v914, %v918
      %v921 = vshll.u32 %v842, 16
      %v923 = vrot.slane %v921, 1
      %v924 = vsel %vm468, %v919, %v923
      %v926 = vshrl.u32 %v763, 16
      %v928 = vshll.u32 %v763, 16
      %v930 = vrot.slane %v928, 1
      %v931 = vor.u32 %v926, %v930
      %v933 = vshll.u32 %v843, 16
      %v935 = vrot.slane %v933, 1
      %v936 = vsel %vm468, %v931, %v935
      %v938 = vshrl.u32 %v764, 16
      %v940 = vshll.u32 %v764, 16
      %v942 = vrot.slane %v940, 1
      %v943 = vor.u32 %v938, %v942
      %v945 = vshll.u32 %v844, 16
      %v947 = vrot.slane %v945, 1
      %v948 = vsel %vm468, %v943, %v947
      %v950 = vshrl.u32 %v765, 16
      %v952 = vshll.u32 %v765, 16
      %v954 = vrot.slane %v952, 1
      %v955 = vor.u32 %v950, %v954
      %v957 = vshll.u32 %v845, 16
      %v959 = vrot.slane %v957, 1
      %v960 = vsel %vm468, %v955, %v959
      %v962 = vshrl.u32 %v766, 16
      %v964 = vshll.u32 %v766, 16
      %v966 = vrot.slane %v964, 1
      %v967 = vor.u32 %v962, %v966
      %v969 = vshll.u32 %v846, 16
      %v971 = vrot.slane %v969, 1
      %v972 = vsel %vm468, %v967, %v971
      %v974 = vshrl.u32 %v767, 16
      %v976 = vshll.u32 %v767, 16
      %v978 = vrot.slane %v976, 1
      %v979 = vor.u32 %v974, %v978
      %v981 = vshll.u32 %v847, 16
      %v983 = vrot.slane %v981, 1
      %v984 = vsel %vm468, %v979, %v983
      %v986 = vshrl.u32 %v768, 16
      %v988 = vshll.u32 %v768, 16
      %v990 = vrot.slane %v988, 1
      %v991 = vor.u32 %v986, %v990
      %v993 = vshll.u32 %v848, 16
      %v995 = vrot.slane %v993, 1
      %v996 = vsel %vm468, %v991, %v995
      %v998 = vshrl.u32 %v769, 16
      %v1000 = vshll.u32 %v769, 16
      %v1002 = vrot.slane %v1000, 1
      %v1003 = vor.u32 %v998, %v1002
      %v1005 = vshll.u32 %v849, 16
      %v1007 = vrot.slane %v1005, 1
      %v1008 = vsel %vm468, %v1003, %v1007
      %v1010 = vshrl.u32 %v770, 16
      %v1012 = vshll.u32 %v770, 16
      %v1014 = vrot.slane %v1012, 1
      %v1015 = vor.u32 %v1010, %v1014
      %v1017 = vshll.u32 %v850, 16
      %v1019 = vrot.slane %v1017, 1
      %v1020 = vsel %vm468, %v1015, %v1019
      %v1022 = vshrl.u32 %v771, 16
      %v1024 = vshll.u32 %v771, 16
      %v1026 = vrot.slane %v1024, 1
      %v1027 = vor.u32 %v1022, %v1026
      %v1029 = vshll.u32 %v851, 16
      %v1031 = vrot.slane %v1029, 1
      %v1032 = vsel %vm468, %v1027, %v1031
      %v1034 = vshrl.u32 %v772, 16
      %v1036 = vshll.u32 %v772, 16
      %v1038 = vrot.slane %v1036, 1
      %v1039 = vor.u32 %v1034, %v1038
      %v1041 = vshll.u32 %v852, 16
      %v1043 = vrot.slane %v1041, 1
      %v1044 = vsel %vm468, %v1039, %v1043
      %1045 = vrot.lane.b32.xlu0 %v864, 18
      %v1046 = vpop.permute.xlu0 %1045
      %1047 = vrot.lane.b32.xlu0 %v876, 18
      %v1048 = vpop.permute.xlu0 %1047
      %1049 = vrot.lane.b32.xlu0 %v888, 18
      %v1050 = vpop.permute.xlu0 %1049
      %1051 = vrot.lane.b32.xlu0 %v900, 18
      %v1052 = vpop.permute.xlu0 %1051
      %1053 = vrot.lane.b32.xlu0 %v912, 18
      %v1054 = vpop.permute.xlu0 %1053
      %1055 = vrot.lane.b32.xlu0 %v924, 18
      %v1056 = vpop.permute.xlu0 %1055
      %1057 = vrot.lane.b32.xlu0 %v936, 18
      %v1058 = vpop.permute.xlu0 %1057
      %1059 = vrot.lane.b32.xlu0 %v948, 18
      %v1060 = vpop.permute.xlu0 %1059
      %1061 = vrot.lane.b32.xlu0 %v960, 18
      %v1062 = vpop.permute.xlu0 %1061
      %1063 = vrot.lane.b32.xlu0 %v972, 18
      %v1064 = vpop.permute.xlu0 %1063
      %1065 = vrot.lane.b32.xlu0 %v984, 18
      %v1066 = vpop.permute.xlu0 %1065
      %1067 = vrot.lane.b32.xlu0 %v996, 18
      %v1068 = vpop.permute.xlu0 %1067
      %1069 = vrot.lane.b32.xlu0 %v1008, 18
      %v1070 = vpop.permute.xlu0 %1069
      %1071 = vrot.lane.b32.xlu0 %v1020, 18
      %v1072 = vpop.permute.xlu0 %1071
      %1073 = vrot.lane.b32.xlu0 %v1032, 18
      %v1074 = vpop.permute.xlu0 %1073
      %1075 = vrot.lane.b32.xlu0 %v1044, 18
      %v1076 = vpop.permute.xlu0 %1075
      %v1109 = vunpack.c.l.b16 %v243
      %v1110 = vunpack.c.l.b16 %v244
      %v1111 = vunpack.c.l.b16 %v245
      %v1112 = vunpack.c.l.b16 %v246
      %v1113 = vunpack.c.l.b16 %v247
      %v1114 = vunpack.c.l.b16 %v248
      %v1115 = vunpack.c.l.b16 %v249
      %v1116 = vunpack.c.l.b16 %v250
      %v1117 = vunpack.c.l.b16 %v251
      %v1118 = vunpack.c.l.b16 %v252
      %v1119 = vunpack.c.l.b16 %v253
      %v1120 = vunpack.c.l.b16 %v254
      %v1121 = vunpack.c.l.b16 %v255
      %v1122 = vunpack.c.l.b16 %v256
      %v1123 = vunpack.c.l.b16 %v257
      %v1124 = vunpack.c.l.b16 %v258
      %v1125 = vunpack.c.l.b16 %v259
      %v1126 = vunpack.c.l.b16 %v260
      %v1127 = vunpack.c.l.b16 %v261
      %v1128 = vunpack.c.l.b16 %v262
      %v1129 = vunpack.c.l.b16 %v263
      %v1130 = vunpack.c.l.b16 %v264
      %v1131 = vunpack.c.l.b16 %v265
      %v1132 = vunpack.c.l.b16 %v266
      %v1133 = vunpack.c.l.b16 %v267
      %v1134 = vunpack.c.l.b16 %v268
      %v1135 = vunpack.c.l.b16 %v269
      %v1136 = vunpack.c.l.b16 %v270
      %v1137 = vunpack.c.l.b16 %v271
      %v1138 = vunpack.c.l.b16 %v272
      %v1139 = vunpack.c.l.b16 %v273
      %v1140 = vunpack.c.l.b16 %v274
      %v1141 = vpack.c.b16 %v1110, %v1109
      %v1142 = vpack.c.b16 %v1112, %v1111
      %v1143 = vpack.c.b16 %v1114, %v1113
      %v1144 = vpack.c.b16 %v1116, %v1115
      %v1145 = vpack.c.b16 %v1118, %v1117
      %v1146 = vpack.c.b16 %v1120, %v1119
      %v1147 = vpack.c.b16 %v1122, %v1121
      %v1148 = vpack.c.b16 %v1124, %v1123
      %v1149 = vpack.c.b16 %v1126, %v1125
      %v1150 = vpack.c.b16 %v1128, %v1127
      %v1151 = vpack.c.b16 %v1130, %v1129
      %v1152 = vpack.c.b16 %v1132, %v1131
      %v1153 = vpack.c.b16 %v1134, %v1133
      %v1154 = vpack.c.b16 %v1136, %v1135
      %v1155 = vpack.c.b16 %v1138, %v1137
      %v1156 = vpack.c.b16 %v1140, %v1139
      %1157 = vrot.lane.b32.xlu0 %v1141, 24
      %v1158 = vpop.permute.xlu0 %1157
      %1159 = vrot.lane.b32.xlu0 %v1142, 24
      %v1160 = vpop.permute.xlu0 %1159
      %1161 = vrot.lane.b32.xlu0 %v1143, 24
      %v1162 = vpop.permute.xlu0 %1161
      %1163 = vrot.lane.b32.xlu0 %v1144, 24
      %v1164 = vpop.permute.xlu0 %1163
      %1165 = vrot.lane.b32.xlu0 %v1145, 24
      %v1166 = vpop.permute.xlu0 %1165
      %1167 = vrot.lane.b32.xlu0 %v1146, 24
      %v1168 = vpop.permute.xlu0 %1167
      %1169 = vrot.lane.b32.xlu0 %v1147, 24
      %v1170 = vpop.permute.xlu0 %1169
      %1171 = vrot.lane.b32.xlu0 %v1148, 24
      %v1172 = vpop.permute.xlu0 %1171
      %1173 = vrot.lane.b32.xlu0 %v1149, 24
      %v1174 = vpop.permute.xlu0 %1173
      %1175 = vrot.lane.b32.xlu0 %v1150, 24
      %v1176 = vpop.permute.xlu0 %1175
      %1177 = vrot.lane.b32.xlu0 %v1151, 24
      %v1178 = vpop.permute.xlu0 %1177
      %1179 = vrot.lane.b32.xlu0 %v1152, 24
      %v1180 = vpop.permute.xlu0 %1179
      %1181 = vrot.lane.b32.xlu0 %v1153, 24
      %v1182 = vpop.permute.xlu0 %1181
      %1183 = vrot.lane.b32.xlu0 %v1154, 24
      %v1184 = vpop.permute.xlu0 %1183
      %1185 = vrot.lane.b32.xlu0 %v1155, 24
      %v1186 = vpop.permute.xlu0 %1185
      %1187 = vrot.lane.b32.xlu0 %v1156, 24
      %v1188 = vpop.permute.xlu0 %1187
      %v1205 = vunpack.c.l.b16 %v275
      %v1206 = vunpack.c.l.b16 %v276
      %v1207 = vunpack.c.l.b16 %v277
      %v1208 = vunpack.c.l.b16 %v278
      %v1209 = vunpack.c.l.b16 %v279
      %v1210 = vunpack.c.l.b16 %v280
      %v1211 = vunpack.c.l.b16 %v281
      %v1212 = vunpack.c.l.b16 %v282
      %v1213 = vunpack.c.l.b16 %v283
      %v1214 = vunpack.c.l.b16 %v284
      %v1215 = vunpack.c.l.b16 %v285
      %v1216 = vunpack.c.l.b16 %v286
      %v1217 = vunpack.c.l.b16 %v287
      %v1218 = vunpack.c.l.b16 %v288
      %v1219 = vunpack.c.l.b16 %v289
      %v1220 = vunpack.c.l.b16 %v290
      %v1221 = vpack.c.b16 %v1205, %v1205
      %v1222 = vpack.c.b16 %v1206, %v1206
      %v1223 = vpack.c.b16 %v1207, %v1207
      %v1224 = vpack.c.b16 %v1208, %v1208
      %v1225 = vpack.c.b16 %v1209, %v1209
      %v1226 = vpack.c.b16 %v1210, %v1210
      %v1227 = vpack.c.b16 %v1211, %v1211
      %v1228 = vpack.c.b16 %v1212, %v1212
      %v1229 = vpack.c.b16 %v1213, %v1213
      %v1230 = vpack.c.b16 %v1214, %v1214
      %v1231 = vpack.c.b16 %v1215, %v1215
      %v1232 = vpack.c.b16 %v1216, %v1216
      %v1233 = vpack.c.b16 %v1217, %v1217
      %v1234 = vpack.c.b16 %v1218, %v1218
      %v1235 = vpack.c.b16 %v1219, %v1219
      %v1236 = vpack.c.b16 %v1220, %v1220
      %v1238 = vshrl.u32 %v1141, 16
      %v1240 = vshll.u32 %v1141, 16
      %v1242 = vrot.slane %v1240, 1
      %v1243 = vor.u32 %v1238, %v1242
      %v1245 = vshll.u32 %v1221, 16
      %v1247 = vrot.slane %v1245, 1
      %v1248 = vsel %vm468, %v1243, %v1247
      %v1250 = vshrl.u32 %v1142, 16
      %v1252 = vshll.u32 %v1142, 16
      %v1254 = vrot.slane %v1252, 1
      %v1255 = vor.u32 %v1250, %v1254
      %v1257 = vshll.u32 %v1222, 16
      %v1259 = vrot.slane %v1257, 1
      %v1260 = vsel %vm468, %v1255, %v1259
      %v1262 = vshrl.u32 %v1143, 16
      %v1264 = vshll.u32 %v1143, 16
      %v1266 = vrot.slane %v1264, 1
      %v1267 = vor.u32 %v1262, %v1266
      %v1269 = vshll.u32 %v1223, 16
      %v1271 = vrot.slane %v1269, 1
      %v1272 = vsel %vm468, %v1267, %v1271
      %v1274 = vshrl.u32 %v1144, 16
      %v1276 = vshll.u32 %v1144, 16
      %v1278 = vrot.slane %v1276, 1
      %v1279 = vor.u32 %v1274, %v1278
      %v1281 = vshll.u32 %v1224, 16
      %v1283 = vrot.slane %v1281, 1
      %v1284 = vsel %vm468, %v1279, %v1283
      %v1286 = vshrl.u32 %v1145, 16
      %v1288 = vshll.u32 %v1145, 16
      %v1290 = vrot.slane %v1288, 1
      %v1291 = vor.u32 %v1286, %v1290
      %v1293 = vshll.u32 %v1225, 16
      %v1295 = vrot.slane %v1293, 1
      %v1296 = vsel %vm468, %v1291, %v1295
      %v1298 = vshrl.u32 %v1146, 16
      %v1300 = vshll.u32 %v1146, 16
      %v1302 = vrot.slane %v1300, 1
      %v1303 = vor.u32 %v1298, %v1302
      %v1305 = vshll.u32 %v1226, 16
      %v1307 = vrot.slane %v1305, 1
      %v1308 = vsel %vm468, %v1303, %v1307
      %v1310 = vshrl.u32 %v1147, 16
      %v1312 = vshll.u32 %v1147, 16
      %v1314 = vrot.slane %v1312, 1
      %v1315 = vor.u32 %v1310, %v1314
      %v1317 = vshll.u32 %v1227, 16
      %v1319 = vrot.slane %v1317, 1
      %v1320 = vsel %vm468, %v1315, %v1319
      %v1322 = vshrl.u32 %v1148, 16
      %v1324 = vshll.u32 %v1148, 16
      %v1326 = vrot.slane %v1324, 1
      %v1327 = vor.u32 %v1322, %v1326
      %v1329 = vshll.u32 %v1228, 16
      %v1331 = vrot.slane %v1329, 1
      %v1332 = vsel %vm468, %v1327, %v1331
      %v1334 = vshrl.u32 %v1149, 16
      %v1336 = vshll.u32 %v1149, 16
      %v1338 = vrot.slane %v1336, 1
      %v1339 = vor.u32 %v1334, %v1338
      %v1341 = vshll.u32 %v1229, 16
      %v1343 = vrot.slane %v1341, 1
      %v1344 = vsel %vm468, %v1339, %v1343
      %v1346 = vshrl.u32 %v1150, 16
      %v1348 = vshll.u32 %v1150, 16
      %v1350 = vrot.slane %v1348, 1
      %v1351 = vor.u32 %v1346, %v1350
      %v1353 = vshll.u32 %v1230, 16
      %v1355 = vrot.slane %v1353, 1
      %v1356 = vsel %vm468, %v1351, %v1355
      %v1358 = vshrl.u32 %v1151, 16
      %v1360 = vshll.u32 %v1151, 16
      %v1362 = vrot.slane %v1360, 1
      %v1363 = vor.u32 %v1358, %v1362
      %v1365 = vshll.u32 %v1231, 16
      %v1367 = vrot.slane %v1365, 1
      %v1368 = vsel %vm468, %v1363, %v1367
      %v1370 = vshrl.u32 %v1152, 16
      %v1372 = vshll.u32 %v1152, 16
      %v1374 = vrot.slane %v1372, 1
      %v1375 = vor.u32 %v1370, %v1374
      %v1377 = vshll.u32 %v1232, 16
      %v1379 = vrot.slane %v1377, 1
      %v1380 = vsel %vm468, %v1375, %v1379
      %v1382 = vshrl.u32 %v1153, 16
      %v1384 = vshll.u32 %v1153, 16
      %v1386 = vrot.slane %v1384, 1
      %v1387 = vor.u32 %v1382, %v1386
      %v1389 = vshll.u32 %v1233, 16
      %v1391 = vrot.slane %v1389, 1
      %v1392 = vsel %vm468, %v1387, %v1391
      %v1394 = vshrl.u32 %v1154, 16
      %v1396 = vshll.u32 %v1154, 16
      %v1398 = vrot.slane %v1396, 1
      %v1399 = vor.u32 %v1394, %v1398
      %v1401 = vshll.u32 %v1234, 16
      %v1403 = vrot.slane %v1401, 1
      %v1404 = vsel %vm468, %v1399, %v1403
      %v1406 = vshrl.u32 %v1155, 16
      %v1408 = vshll.u32 %v1155, 16
      %v1410 = vrot.slane %v1408, 1
      %v1411 = vor.u32 %v1406, %v1410
      %v1413 = vshll.u32 %v1235, 16
      %v1415 = vrot.slane %v1413, 1
      %v1416 = vsel %vm468, %v1411, %v1415
      %v1418 = vshrl.u32 %v1156, 16
      %v1420 = vshll.u32 %v1156, 16
      %v1422 = vrot.slane %v1420, 1
      %v1423 = vor.u32 %v1418, %v1422
      %v1425 = vshll.u32 %v1236, 16
      %v1427 = vrot.slane %v1425, 1
      %v1428 = vsel %vm468, %v1423, %v1427
      %1429 = vrot.lane.b32.xlu0 %v1248, 30
      %v1430 = vpop.permute.xlu0 %1429
      %1431 = vrot.lane.b32.xlu0 %v1260, 30
      %v1432 = vpop.permute.xlu0 %1431
      %1433 = vrot.lane.b32.xlu0 %v1272, 30
      %v1434 = vpop.permute.xlu0 %1433
      %1435 = vrot.lane.b32.xlu0 %v1284, 30
      %v1436 = vpop.permute.xlu0 %1435
      %1437 = vrot.lane.b32.xlu0 %v1296, 30
      %v1438 = vpop.permute.xlu0 %1437
      %1439 = vrot.lane.b32.xlu0 %v1308, 30
      %v1440 = vpop.permute.xlu0 %1439
      %1441 = vrot.lane.b32.xlu0 %v1320, 30
      %v1442 = vpop.permute.xlu0 %1441
      %1443 = vrot.lane.b32.xlu0 %v1332, 30
      %v1444 = vpop.permute.xlu0 %1443
      %1445 = vrot.lane.b32.xlu0 %v1344, 30
      %v1446 = vpop.permute.xlu0 %1445
      %1447 = vrot.lane.b32.xlu0 %v1356, 30
      %v1448 = vpop.permute.xlu0 %1447
      %1449 = vrot.lane.b32.xlu0 %v1368, 30
      %v1450 = vpop.permute.xlu0 %1449
      %1451 = vrot.lane.b32.xlu0 %v1380, 30
      %v1452 = vpop.permute.xlu0 %1451
      %1453 = vrot.lane.b32.xlu0 %v1392, 30
      %v1454 = vpop.permute.xlu0 %1453
      %1455 = vrot.lane.b32.xlu0 %v1404, 30
      %v1456 = vpop.permute.xlu0 %1455
      %1457 = vrot.lane.b32.xlu0 %v1416, 30
      %v1458 = vpop.permute.xlu0 %1457
      %1459 = vrot.lane.b32.xlu0 %v1428, 30
      %v1460 = vpop.permute.xlu0 %1459
      %v1493 = vunpack.c.l.b16 %v292
      %v1494 = vunpack.c.l.b16 %v293
      %v1495 = vunpack.c.l.b16 %v294
      %v1496 = vunpack.c.l.b16 %v295
      %v1497 = vunpack.c.l.b16 %v296
      %v1498 = vunpack.c.l.b16 %v297
      %v1499 = vunpack.c.l.b16 %v298
      %v1500 = vunpack.c.l.b16 %v299
      %v1501 = vunpack.c.l.b16 %v300
      %v1502 = vunpack.c.l.b16 %v301
      %v1503 = vunpack.c.l.b16 %v302
      %v1504 = vunpack.c.l.b16 %v303
      %v1505 = vunpack.c.l.b16 %v304
      %v1506 = vunpack.c.l.b16 %v305
      %v1507 = vunpack.c.l.b16 %v306
      %v1508 = vunpack.c.l.b16 %v307
      %v1509 = vunpack.c.l.b16 %v308
      %v1510 = vunpack.c.l.b16 %v309
      %v1511 = vunpack.c.l.b16 %v310
      %v1512 = vunpack.c.l.b16 %v311
      %v1513 = vunpack.c.l.b16 %v312
      %v1514 = vunpack.c.l.b16 %v313
      %v1515 = vunpack.c.l.b16 %v314
      %v1516 = vunpack.c.l.b16 %v315
      %v1517 = vunpack.c.l.b16 %v316
      %v1518 = vunpack.c.l.b16 %v317
      %v1519 = vunpack.c.l.b16 %v318
      %v1520 = vunpack.c.l.b16 %v319
      %v1521 = vunpack.c.l.b16 %v320
      %v1522 = vunpack.c.l.b16 %v321
      %v1523 = vunpack.c.l.b16 %v322
      %v1524 = vunpack.c.l.b16 %v323
      %v1525 = vpack.c.b16 %v1494, %v1493
      %v1526 = vpack.c.b16 %v1496, %v1495
      %v1527 = vpack.c.b16 %v1498, %v1497
      %v1528 = vpack.c.b16 %v1500, %v1499
      %v1529 = vpack.c.b16 %v1502, %v1501
      %v1530 = vpack.c.b16 %v1504, %v1503
      %v1531 = vpack.c.b16 %v1506, %v1505
      %v1532 = vpack.c.b16 %v1508, %v1507
      %v1533 = vpack.c.b16 %v1510, %v1509
      %v1534 = vpack.c.b16 %v1512, %v1511
      %v1535 = vpack.c.b16 %v1514, %v1513
      %v1536 = vpack.c.b16 %v1516, %v1515
      %v1537 = vpack.c.b16 %v1518, %v1517
      %v1538 = vpack.c.b16 %v1520, %v1519
      %v1539 = vpack.c.b16 %v1522, %v1521
      %v1540 = vpack.c.b16 %v1524, %v1523
      %1541 = vrot.lane.b32.xlu0 %v1525, 36
      %v1542 = vpop.permute.xlu0 %1541
      %1543 = vrot.lane.b32.xlu0 %v1526, 36
      %v1544 = vpop.permute.xlu0 %1543
      %1545 = vrot.lane.b32.xlu0 %v1527, 36
      %v1546 = vpop.permute.xlu0 %1545
      %1547 = vrot.lane.b32.xlu0 %v1528, 36
      %v1548 = vpop.permute.xlu0 %1547
      %1549 = vrot.lane.b32.xlu0 %v1529, 36
      %v1550 = vpop.permute.xlu0 %1549
      %1551 = vrot.lane.b32.xlu0 %v1530, 36
      %v1552 = vpop.permute.xlu0 %1551
      %1553 = vrot.lane.b32.xlu0 %v1531, 36
      %v1554 = vpop.permute.xlu0 %1553
      %1555 = vrot.lane.b32.xlu0 %v1532, 36
      %v1556 = vpop.permute.xlu0 %1555
      %1557 = vrot.lane.b32.xlu0 %v1533, 36
      %v1558 = vpop.permute.xlu0 %1557
      %1559 = vrot.lane.b32.xlu0 %v1534, 36
      %v1560 = vpop.permute.xlu0 %1559
      %1561 = vrot.lane.b32.xlu0 %v1535, 36
      %v1562 = vpop.permute.xlu0 %1561
      %1563 = vrot.lane.b32.xlu0 %v1536, 36
      %v1564 = vpop.permute.xlu0 %1563
      %1565 = vrot.lane.b32.xlu0 %v1537, 36
      %v1566 = vpop.permute.xlu0 %1565
      %1567 = vrot.lane.b32.xlu0 %v1538, 36
      %v1568 = vpop.permute.xlu0 %1567
      %1569 = vrot.lane.b32.xlu0 %v1539, 36
      %v1570 = vpop.permute.xlu0 %1569
      %1571 = vrot.lane.b32.xlu0 %v1540, 36
      %v1572 = vpop.permute.xlu0 %1571
      %v1589 = vunpack.c.l.b16 %v324
      %v1590 = vunpack.c.l.b16 %v325
      %v1591 = vunpack.c.l.b16 %v326
      %v1592 = vunpack.c.l.b16 %v327
      %v1593 = vunpack.c.l.b16 %v328
      %v1594 = vunpack.c.l.b16 %v329
      %v1595 = vunpack.c.l.b16 %v330
      %v1596 = vunpack.c.l.b16 %v331
      %v1597 = vunpack.c.l.b16 %v332
      %v1598 = vunpack.c.l.b16 %v333
      %v1599 = vunpack.c.l.b16 %v334
      %v1600 = vunpack.c.l.b16 %v335
      %v1601 = vunpack.c.l.b16 %v336
      %v1602 = vunpack.c.l.b16 %v337
      %v1603 = vunpack.c.l.b16 %v338
      %v1604 = vunpack.c.l.b16 %v339
      %v1605 = vpack.c.b16 %v1589, %v1589
      %v1606 = vpack.c.b16 %v1590, %v1590
      %v1607 = vpack.c.b16 %v1591, %v1591
      %v1608 = vpack.c.b16 %v1592, %v1592
      %v1609 = vpack.c.b16 %v1593, %v1593
      %v1610 = vpack.c.b16 %v1594, %v1594
      %v1611 = vpack.c.b16 %v1595, %v1595
      %v1612 = vpack.c.b16 %v1596, %v1596
      %v1613 = vpack.c.b16 %v1597, %v1597
      %v1614 = vpack.c.b16 %v1598, %v1598
      %v1615 = vpack.c.b16 %v1599, %v1599
      %v1616 = vpack.c.b16 %v1600, %v1600
      %v1617 = vpack.c.b16 %v1601, %v1601
      %v1618 = vpack.c.b16 %v1602, %v1602
      %v1619 = vpack.c.b16 %v1603, %v1603
      %v1620 = vpack.c.b16 %v1604, %v1604
      %v1622 = vshrl.u32 %v1525, 16
      %v1624 = vshll.u32 %v1525, 16
      %v1626 = vrot.slane %v1624, 1
      %v1627 = vor.u32 %v1622, %v1626
      %v1629 = vshll.u32 %v1605, 16
      %v1631 = vrot.slane %v1629, 1
      %v1632 = vsel %vm468, %v1627, %v1631
      %v1634 = vshrl.u32 %v1526, 16
      %v1636 = vshll.u32 %v1526, 16
      %v1638 = vrot.slane %v1636, 1
      %v1639 = vor.u32 %v1634, %v1638
      %v1641 = vshll.u32 %v1606, 16
      %v1643 = vrot.slane %v1641, 1
      %v1644 = vsel %vm468, %v1639, %v1643
      %v1646 = vshrl.u32 %v1527, 16
      %v1648 = vshll.u32 %v1527, 16
      %v1650 = vrot.slane %v1648, 1
      %v1651 = vor.u32 %v1646, %v1650
      %v1653 = vshll.u32 %v1607, 16
      %v1655 = vrot.slane %v1653, 1
      %v1656 = vsel %vm468, %v1651, %v1655
      %v1658 = vshrl.u32 %v1528, 16
      %v1660 = vshll.u32 %v1528, 16
      %v1662 = vrot.slane %v1660, 1
      %v1663 = vor.u32 %v1658, %v1662
      %v1665 = vshll.u32 %v1608, 16
      %v1667 = vrot.slane %v1665, 1
      %v1668 = vsel %vm468, %v1663, %v1667
      %v1670 = vshrl.u32 %v1529, 16
      %v1672 = vshll.u32 %v1529, 16
      %v1674 = vrot.slane %v1672, 1
      %v1675 = vor.u32 %v1670, %v1674
      %v1677 = vshll.u32 %v1609, 16
      %v1679 = vrot.slane %v1677, 1
      %v1680 = vsel %vm468, %v1675, %v1679
      %v1682 = vshrl.u32 %v1530, 16
      %v1684 = vshll.u32 %v1530, 16
      %v1686 = vrot.slane %v1684, 1
      %v1687 = vor.u32 %v1682, %v1686
      %v1689 = vshll.u32 %v1610, 16
      %v1691 = vrot.slane %v1689, 1
      %v1692 = vsel %vm468, %v1687, %v1691
      %v1694 = vshrl.u32 %v1531, 16
      %v1696 = vshll.u32 %v1531, 16
      %v1698 = vrot.slane %v1696, 1
      %v1699 = vor.u32 %v1694, %v1698
      %v1701 = vshll.u32 %v1611, 16
      %v1703 = vrot.slane %v1701, 1
      %v1704 = vsel %vm468, %v1699, %v1703
      %v1706 = vshrl.u32 %v1532, 16
      %v1708 = vshll.u32 %v1532, 16
      %v1710 = vrot.slane %v1708, 1
      %v1711 = vor.u32 %v1706, %v1710
      %v1713 = vshll.u32 %v1612, 16
      %v1715 = vrot.slane %v1713, 1
      %v1716 = vsel %vm468, %v1711, %v1715
      %v1718 = vshrl.u32 %v1533, 16
      %v1720 = vshll.u32 %v1533, 16
      %v1722 = vrot.slane %v1720, 1
      %v1723 = vor.u32 %v1718, %v1722
      %v1725 = vshll.u32 %v1613, 16
      %v1727 = vrot.slane %v1725, 1
      %v1728 = vsel %vm468, %v1723, %v1727
      %v1730 = vshrl.u32 %v1534, 16
      %v1732 = vshll.u32 %v1534, 16
      %v1734 = vrot.slane %v1732, 1
      %v1735 = vor.u32 %v1730, %v1734
      %v1737 = vshll.u32 %v1614, 16
      %v1739 = vrot.slane %v1737, 1
      %v1740 = vsel %vm468, %v1735, %v1739
      %v1742 = vshrl.u32 %v1535, 16
      %v1744 = vshll.u32 %v1535, 16
      %v1746 = vrot.slane %v1744, 1
      %v1747 = vor.u32 %v1742, %v1746
      %v1749 = vshll.u32 %v1615, 16
      %v1751 = vrot.slane %v1749, 1
      %v1752 = vsel %vm468, %v1747, %v1751
      %v1754 = vshrl.u32 %v1536, 16
      %v1756 = vshll.u32 %v1536, 16
      %v1758 = vrot.slane %v1756, 1
      %v1759 = vor.u32 %v1754, %v1758
      %v1761 = vshll.u32 %v1616, 16
      %v1763 = vrot.slane %v1761, 1
      %v1764 = vsel %vm468, %v1759, %v1763
      %v1766 = vshrl.u32 %v1537, 16
      %v1768 = vshll.u32 %v1537, 16
      %v1770 = vrot.slane %v1768, 1
      %v1771 = vor.u32 %v1766, %v1770
      %v1773 = vshll.u32 %v1617, 16
      %v1775 = vrot.slane %v1773, 1
      %v1776 = vsel %vm468, %v1771, %v1775
      %v1778 = vshrl.u32 %v1538, 16
      %v1780 = vshll.u32 %v1538, 16
      %v1782 = vrot.slane %v1780, 1
      %v1783 = vor.u32 %v1778, %v1782
      %v1785 = vshll.u32 %v1618, 16
      %v1787 = vrot.slane %v1785, 1
      %v1788 = vsel %vm468, %v1783, %v1787
      %v1790 = vshrl.u32 %v1539, 16
      %v1792 = vshll.u32 %v1539, 16
      %v1794 = vrot.slane %v1792, 1
      %v1795 = vor.u32 %v1790, %v1794
      %v1797 = vshll.u32 %v1619, 16
      %v1799 = vrot.slane %v1797, 1
      %v1800 = vsel %vm468, %v1795, %v1799
      %v1802 = vshrl.u32 %v1540, 16
      %v1804 = vshll.u32 %v1540, 16
      %v1806 = vrot.slane %v1804, 1
      %v1807 = vor.u32 %v1802, %v1806
      %v1809 = vshll.u32 %v1620, 16
      %v1811 = vrot.slane %v1809, 1
      %v1812 = vsel %vm468, %v1807, %v1811
      %1813 = vrot.lane.b32.xlu0 %v1632, 42
      %v1814 = vpop.permute.xlu0 %1813
      %1815 = vrot.lane.b32.xlu0 %v1644, 42
      %v1816 = vpop.permute.xlu0 %1815
      %1817 = vrot.lane.b32.xlu0 %v1656, 42
      %v1818 = vpop.permute.xlu0 %1817
      %1819 = vrot.lane.b32.xlu0 %v1668, 42
      %v1820 = vpop.permute.xlu0 %1819
      %1821 = vrot.lane.b32.xlu0 %v1680, 42
      %v1822 = vpop.permute.xlu0 %1821
      %1823 = vrot.lane.b32.xlu0 %v1692, 42
      %v1824 = vpop.permute.xlu0 %1823
      %1825 = vrot.lane.b32.xlu0 %v1704, 42
      %v1826 = vpop.permute.xlu0 %1825
      %1827 = vrot.lane.b32.xlu0 %v1716, 42
      %v1828 = vpop.permute.xlu0 %1827
      %1829 = vrot.lane.b32.xlu0 %v1728, 42
      %v1830 = vpop.permute.xlu0 %1829
      %1831 = vrot.lane.b32.xlu0 %v1740, 42
      %v1832 = vpop.permute.xlu0 %1831
      %1833 = vrot.lane.b32.xlu0 %v1752, 42
      %v1834 = vpop.permute.xlu0 %1833
      %1835 = vrot.lane.b32.xlu0 %v1764, 42
      %v1836 = vpop.permute.xlu0 %1835
      %1837 = vrot.lane.b32.xlu0 %v1776, 42
      %v1838 = vpop.permute.xlu0 %1837
      %1839 = vrot.lane.b32.xlu0 %v1788, 42
      %v1840 = vpop.permute.xlu0 %1839
      %1841 = vrot.lane.b32.xlu0 %v1800, 42
      %v1842 = vpop.permute.xlu0 %1841
      %1843 = vrot.lane.b32.xlu0 %v1812, 42
      %v1844 = vpop.permute.xlu0 %1843
      %vm1845 = vcmask 48128
      %v1847 = vsel %vm1845, %v404, %v662
      %v1849 = vsel %vm1845, %v405, %v664
      %v1851 = vsel %vm1845, %v406, %v666
      %v1853 = vsel %vm1845, %v407, %v668
      %v1855 = vsel %vm1845, %v408, %v670
      %v1857 = vsel %vm1845, %v409, %v672
      %v1859 = vsel %vm1845, %v410, %v674
      %v1861 = vsel %vm1845, %v411, %v676
      %v1863 = vsel %vm1845, %v412, %v678
      %v1865 = vsel %vm1845, %v413, %v680
      %v1867 = vsel %vm1845, %v414, %v682
      %v1869 = vsel %vm1845, %v415, %v684
      %v1871 = vsel %vm1845, %v416, %v686
      %v1873 = vsel %vm1845, %v417, %v688
      %v1875 = vsel %vm1845, %v418, %v690
      %v1877 = vsel %vm1845, %v419, %v692
      %vm1878 = vcmask 97280
      %v1880 = vsel %vm1878, %v1847, %v774
      %v1882 = vsel %vm1878, %v1849, %v776
      %v1884 = vsel %vm1878, %v1851, %v778
      %v1886 = vsel %vm1878, %v1853, %v780
      %v1888 = vsel %vm1878, %v1855, %v782
      %v1890 = vsel %vm1878, %v1857, %v784
      %v1892 = vsel %vm1878, %v1859, %v786
      %v1894 = vsel %vm1878, %v1861, %v788
      %v1896 = vsel %vm1878, %v1863, %v790
      %v1898 = vsel %vm1878, %v1865, %v792
      %v1900 = vsel %vm1878, %v1867, %v794
      %v1902 = vsel %vm1878, %v1869, %v796
      %v1904 = vsel %vm1878, %v1871, %v798
      %v1906 = vsel %vm1878, %v1873, %v800
      %v1908 = vsel %vm1878, %v1875, %v802
      %v1910 = vsel %vm1878, %v1877, %v804
      %vm1911 = vcmask 146432
      %v1913 = vsel %vm1911, %v1880, %v1046
      %v1915 = vsel %vm1911, %v1882, %v1048
      %v1917 = vsel %vm1911, %v1884, %v1050
      %v1919 = vsel %vm1911, %v1886, %v1052
      %v1921 = vsel %vm1911, %v1888, %v1054
      %v1923 = vsel %vm1911, %v1890, %v1056
      %v1925 = vsel %vm1911, %v1892, %v1058
      %v1927 = vsel %vm1911, %v1894, %v1060
      %v1929 = vsel %vm1911, %v1896, %v1062
      %v1931 = vsel %vm1911, %v1898, %v1064
      %v1933 = vsel %vm1911, %v1900, %v1066
      %v1935 = vsel %vm1911, %v1902, %v1068
      %v1937 = vsel %vm1911, %v1904, %v1070
      %v1939 = vsel %vm1911, %v1906, %v1072
      %v1941 = vsel %vm1911, %v1908, %v1074
      %v1943 = vsel %vm1911, %v1910, %v1076
      %vm1944 = vcmask 195584
      %v1946 = vsel %vm1944, %v1913, %v1158
      %v1948 = vsel %vm1944, %v1915, %v1160
      %v1950 = vsel %vm1944, %v1917, %v1162
      %v1952 = vsel %vm1944, %v1919, %v1164
      %v1954 = vsel %vm1944, %v1921, %v1166
      %v1956 = vsel %vm1944, %v1923, %v1168
      %v1958 = vsel %vm1944, %v1925, %v1170
      %v1960 = vsel %vm1944, %v1927, %v1172
      %v1962 = vsel %vm1944, %v1929, %v1174
      %v1964 = vsel %vm1944, %v1931, %v1176
      %v1966 = vsel %vm1944, %v1933, %v1178
      %v1968 = vsel %vm1944, %v1935, %v1180
      %v1970 = vsel %vm1944, %v1937, %v1182
      %v1972 = vsel %vm1944, %v1939, %v1184
      %v1974 = vsel %vm1944, %v1941, %v1186
      %v1976 = vsel %vm1944, %v1943, %v1188
      %vm1977 = vcmask 244736
      %v1979 = vsel %vm1977, %v1946, %v1430
      %v1981 = vsel %vm1977, %v1948, %v1432
      %v1983 = vsel %vm1977, %v1950, %v1434
      %v1985 = vsel %vm1977, %v1952, %v1436
      %v1987 = vsel %vm1977, %v1954, %v1438
      %v1989 = vsel %vm1977, %v1956, %v1440
      %v1991 = vsel %vm1977, %v1958, %v1442
      %v1993 = vsel %vm1977, %v1960, %v1444
      %v1995 = vsel %vm1977, %v1962, %v1446
      %v1997 = vsel %vm1977, %v1964, %v1448
      %v1999 = vsel %vm1977, %v1966, %v1450
      %v2001 = vsel %vm1977, %v1968, %v1452
      %v2003 = vsel %vm1977, %v1970, %v1454
      %v2005 = vsel %vm1977, %v1972, %v1456
      %v2007 = vsel %vm1977, %v1974, %v1458
      %v2009 = vsel %vm1977, %v1976, %v1460
      %vm2010 = vcmask 293888
      %v2012 = vsel %vm2010, %v1979, %v1542
      %v2014 = vsel %vm2010, %v1981, %v1544
      %v2016 = vsel %vm2010, %v1983, %v1546
      %v2018 = vsel %vm2010, %v1985, %v1548
      %v2020 = vsel %vm2010, %v1987, %v1550
      %v2022 = vsel %vm2010, %v1989, %v1552
      %v2024 = vsel %vm2010, %v1991, %v1554
      %v2026 = vsel %vm2010, %v1993, %v1556
      %v2028 = vsel %vm2010, %v1995, %v1558
      %v2030 = vsel %vm2010, %v1997, %v1560
      %v2032 = vsel %vm2010, %v1999, %v1562
      %v2034 = vsel %vm2010, %v2001, %v1564
      %v2036 = vsel %vm2010, %v2003, %v1566
      %v2038 = vsel %vm2010, %v2005, %v1568
      %v2040 = vsel %vm2010, %v2007, %v1570
      %v2042 = vsel %vm2010, %v2009, %v1572
      %vm2043 = vcmask 343040
      %v2045 = vsel %vm2043, %v2012, %v1814
      %v2047 = vsel %vm2043, %v2014, %v1816
      %v2049 = vsel %vm2043, %v2016, %v1818
      %v2051 = vsel %vm2043, %v2018, %v1820
      %v2053 = vsel %vm2043, %v2020, %v1822
      %v2055 = vsel %vm2043, %v2022, %v1824
      %v2057 = vsel %vm2043, %v2024, %v1826
      %v2059 = vsel %vm2043, %v2026, %v1828
      %v2061 = vsel %vm2043, %v2028, %v1830
      %v2063 = vsel %vm2043, %v2030, %v1832
      %v2065 = vsel %vm2043, %v2032, %v1834
      %v2067 = vsel %vm2043, %v2034, %v1836
      %v2069 = vsel %vm2043, %v2036, %v1838
      %v2071 = vsel %vm2043, %v2038, %v1840
      %v2073 = vsel %vm2043, %v2040, %v1842
      %v2075 = vsel %vm2043, %v2042, %v1844
      %v2076 = vld [vmem:[%s1] sm:$0xf]
      %v2077 = vld [vmem:[%s1 + $0x4] sm:$0xf]
      %v2078 = vld [vmem:[%s1 + $0x8] sm:$0xf]
      %v2079 = vld [vmem:[%s1 + $0xc] sm:$0xf]
      %v2080 = vld [vmem:[%s1 + $0x10] sm:$0xf]
      %v2081 = vld [vmem:[%s1 + $0x14] sm:$0xf]
      %v2088 = vunpack.c.l.b16 %v2076
      %v2089 = vunpack.c.l.b16 %v2077
      %v2090 = vunpack.c.l.b16 %v2078
      %v2091 = vunpack.c.l.b16 %v2079
      %v2092 = vunpack.c.l.b16 %v2080
      %v2093 = vunpack.c.l.b16 %v2081
      %v2094 = vpack.c.b16 %v2089, %v2088
      %v2095 = vpack.c.b16 %v2091, %v2090
      %v2096 = vpack.c.b16 %v2093, %v2092
      %vm2100 = vcmask 392192
      %v2101 = vsel %vm2100, %v2045, 0
      %v2103 = vsel %vm2100, %v2047, 0
      %v2105 = vsel %vm2100, %v2049, 0
      %v2107 = vsel %vm2100, %v2051, 0
      %v2109 = vsel %vm2100, %v2053, 0
      %v2111 = vsel %vm2100, %v2055, 0
      %v2113 = vsel %vm2100, %v2057, 0
      %v2115 = vsel %vm2100, %v2059, 0
      %v2117 = vsel %vm2100, %v2061, 0
      %v2119 = vsel %vm2100, %v2063, 0
      %v2121 = vsel %vm2100, %v2065, 0
      %v2123 = vsel %vm2100, %v2067, 0
      %v2125 = vsel %vm2100, %v2069, 0
      %v2127 = vsel %vm2100, %v2071, 0
      %v2129 = vsel %vm2100, %v2073, 0
      %v2131 = vsel %vm2100, %v2075, 0
      %2133 = vmatprep.subr.bf16.mxu0 0
      %2134 = vmatpush1.bf16.msra.mxu0 %v2094
      %2135 = vmatprep.subr.bf16.mxu0 0
      %2136 = vmatpush1.bf16.msra.mxu0 %v2095
      %2137 = vmatprep.subr.bf16.mxu0 0
      %2138 = vmatpush1.bf16.msra.mxu0 %v2096
      %2139 = vmatprep.subr.bf16.mxu0 0
      %2140 = vmatpush1.bf16.msra.mxu0 0
      %2141 = vmatprep.subr.bf16.mxu0 0
      %2142 = vmatpush1.bf16.msra.mxu0 0
      %2143 = vmatprep.subr.bf16.mxu0 0
      %2144 = vmatpush1.bf16.msra.mxu0 0
      %2145 = vmatprep.subr.bf16.mxu0 0
      %2146 = vmatpush1.bf16.msra.mxu0 0
      %2147 = vmatprep.subr.bf16.mxu0 0
      %2148 = vmatpush1.bf16.msra.mxu0 0
      %2149 = vmatprep.subr.bf16.mxu0 0
      %2150 = vmatpush1.bf16.msra.mxu0 0
      %2151 = vmatprep.subr.bf16.mxu0 0
      %2152 = vmatpush1.bf16.msra.mxu0 0
      %2153 = vmatprep.subr.bf16.mxu0 0
      %2154 = vmatpush1.bf16.msra.mxu0 0
      %2155 = vmatprep.subr.bf16.mxu0 0
      %2156 = vmatpush1.bf16.msra.mxu0 0
      %2157 = vmatprep.subr.bf16.mxu0 0
      %2158 = vmatpush1.bf16.msra.mxu0 0
      %2159 = vmatprep.subr.bf16.mxu0 0
      %2160 = vmatpush1.bf16.msra.mxu0 0
      %2161 = vmatprep.subr.bf16.mxu0 0
      %2162 = vmatpush1.bf16.msra.mxu0 0
      %2163 = vmatprep.subr.bf16.mxu0 0
      %2164 = vmatpush1.bf16.msra.mxu0 0
      %2165 = vmatprep.mubr.bf16.mxu0 0
      %2166 = vmatmul.mubr.bf16.gmra.mrb[0].mxu0 %v2101
      %v2167 = vpop.f32.mrb[0].mxu0
      %v2168 = vadd.f32 0.0, %v2167
      %v2169 = vpop.f32.mrb[0].mxu0
      %v2170 = vpop.f32.mrb[0].mxu0
      %v2171 = vadd.f32 0.0, %v2170
      %v2172 = vpop.f32.mrb[0].mxu0
      %2173 = vmatprep.mubr.bf16.mxu0 0
      %2174 = vmatmul.mubr.bf16.gmra.mrb[0].mxu0 %v2103
      %v2175 = vpop.f32.mrb[0].mxu0
      %v2176 = vadd.f32 0.0, %v2175
      %v2177 = vpop.f32.mrb[0].mxu0
      %v2178 = vpop.f32.mrb[0].mxu0
      %v2179 = vadd.f32 0.0, %v2178
      %v2180 = vpop.f32.mrb[0].mxu0
      %2181 = vmatprep.mubr.bf16.mxu0 0
      %2182 = vmatmul.mubr.bf16.gmra.mrb[0].mxu0 %v2105
      %v2183 = vpop.f32.mrb[0].mxu0
      %v2184 = vadd.f32 0.0, %v2183
      %v2185 = vpop.f32.mrb[0].mxu0
      %v2186 = vpop.f32.mrb[0].mxu0
      %v2187 = vadd.f32 0.0, %v2186
      %v2188 = vpop.f32.mrb[0].mxu0
      %2189 = vmatprep.mubr.bf16.mxu0 0
      %2190 = vmatmul.mubr.bf16.gmra.mrb[0].mxu0 %v2107
      %v2191 = vpop.f32.mrb[0].mxu0
      %v2192 = vadd.f32 0.0, %v2191
      %v2193 = vpop.f32.mrb[0].mxu0
      %v2194 = vpop.f32.mrb[0].mxu0
      %v2195 = vadd.f32 0.0, %v2194
      %v2196 = vpop.f32.mrb[0].mxu0
      %2197 = vmatprep.mubr.bf16.mxu0 0
      %2198 = vmatmul.mubr.bf16.gmra.mrb[0].mxu0 %v2109
      %v2199 = vpop.f32.mrb[0].mxu0
      %v2200 = vadd.f32 0.0, %v2199
      %v2201 = vpop.f32.mrb[0].mxu0
      %v2202 = vpop.f32.mrb[0].mxu0
      %v2203 = vadd.f32 0.0, %v2202
      %v2204 = vpop.f32.mrb[0].mxu0
      %2205 = vmatprep.mubr.bf16.mxu0 0
      %2206 = vmatmul.mubr.bf16.gmra.mrb[0].mxu0 %v2111
      %v2207 = vpop.f32.mrb[0].mxu0
      %v2208 = vadd.f32 0.0, %v2207
      %v2209 = vpop.f32.mrb[0].mxu0
      %v2210 = vpop.f32.mrb[0].mxu0
      %v2211 = vadd.f32 0.0, %v2210
      %v2212 = vpop.f32.mrb[0].mxu0
      %2213 = vmatprep.mubr.bf16.mxu0 0
      %2214 = vmatmul.mubr.bf16.gmra.mrb[0].mxu0 %v2113
      %v2215 = vpop.f32.mrb[0].mxu0
      %v2216 = vadd.f32 0.0, %v2215
      %v2217 = vpop.f32.mrb[0].mxu0
      %v2218 = vpop.f32.mrb[0].mxu0
      %v2219 = vadd.f32 0.0, %v2218
      %v2220 = vpop.f32.mrb[0].mxu0
      %2221 = vmatprep.mubr.bf16.mxu0 0
      %2222 = vmatmul.mubr.bf16.gmra.mrb[0].mxu0 %v2115
      %v2223 = vpop.f32.mrb[0].mxu0
      %v2224 = vadd.f32 0.0, %v2223
      %v2225 = vpop.f32.mrb[0].mxu0
      %v2226 = vpop.f32.mrb[0].mxu0
      %v2227 = vadd.f32 0.0, %v2226
      %v2228 = vpop.f32.mrb[0].mxu0
      %2229 = vmatprep.mubr.bf16.mxu0 0
      %2230 = vmatmul.mubr.bf16.gmra.mrb[0].mxu0 %v2117
      %v2231 = vpop.f32.mrb[0].mxu0
      %v2232 = vadd.f32 0.0, %v2231
      %v2233 = vpop.f32.mrb[0].mxu0
      %v2234 = vpop.f32.mrb[0].mxu0
      %v2235 = vadd.f32 0.0, %v2234
      %v2236 = vpop.f32.mrb[0].mxu0
      %2237 = vmatprep.mubr.bf16.mxu0 0
      %2238 = vmatmul.mubr.bf16.gmra.mrb[0].mxu0 %v2119
      %v2239 = vpop.f32.mrb[0].mxu0
      %v2240 = vadd.f32 0.0, %v2239
      %v2241 = vpop.f32.mrb[0].mxu0
      %v2242 = vpop.f32.mrb[0].mxu0
      %v2243 = vadd.f32 0.0, %v2242
      %v2244 = vpop.f32.mrb[0].mxu0
      %2245 = vmatprep.mubr.bf16.mxu0 0
      %2246 = vmatmul.mubr.bf16.gmra.mrb[0].mxu0 %v2121
      %v2247 = vpop.f32.mrb[0].mxu0
      %v2248 = vadd.f32 0.0, %v2247
      %v2249 = vpop.f32.mrb[0].mxu0
      %v2250 = vpop.f32.mrb[0].mxu0
      %v2251 = vadd.f32 0.0, %v2250
      %v2252 = vpop.f32.mrb[0].mxu0
      %2253 = vmatprep.mubr.bf16.mxu0 0
      %2254 = vmatmul.mubr.bf16.gmra.mrb[0].mxu0 %v2123
      %v2255 = vpop.f32.mrb[0].mxu0
      %v2256 = vadd.f32 0.0, %v2255
      %v2257 = vpop.f32.mrb[0].mxu0
      %v2258 = vpop.f32.mrb[0].mxu0
      %v2259 = vadd.f32 0.0, %v2258
      %v2260 = vpop.f32.mrb[0].mxu0
      %2261 = vmatprep.mubr.bf16.mxu0 0
      %2262 = vmatmul.mubr.bf16.gmra.mrb[0].mxu0 %v2125
      %v2263 = vpop.f32.mrb[0].mxu0
      %v2264 = vadd.f32 0.0, %v2263
      %v2265 = vpop.f32.mrb[0].mxu0
      %v2266 = vpop.f32.mrb[0].mxu0
      %v2267 = vadd.f32 0.0, %v2266
      %v2268 = vpop.f32.mrb[0].mxu0
      %2269 = vmatprep.mubr.bf16.mxu0 0
      %2270 = vmatmul.mubr.bf16.gmra.mrb[0].mxu0 %v2127
      %v2271 = vpop.f32.mrb[0].mxu0
      %v2272 = vadd.f32 0.0, %v2271
      %v2273 = vpop.f32.mrb[0].mxu0
      %v2274 = vpop.f32.mrb[0].mxu0
      %v2275 = vadd.f32 0.0, %v2274
      %v2276 = vpop.f32.mrb[0].mxu0
      %2277 = vmatprep.mubr.bf16.mxu0 0
      %2278 = vmatmul.mubr.bf16.gmra.mrb[0].mxu0 %v2129
      %v2279 = vpop.f32.mrb[0].mxu0
      %v2280 = vadd.f32 0.0, %v2279
      %v2281 = vpop.f32.mrb[0].mxu0
      %v2282 = vpop.f32.mrb[0].mxu0
      %v2283 = vadd.f32 0.0, %v2282
      %v2284 = vpop.f32.mrb[0].mxu0
      %2285 = vmatprep.mubr.bf16.mxu0 0
      %2286 = vmatmul.mubr.bf16.gmra.mrb[0].mxu0 %v2131
      %v2287 = vpop.f32.mrb[0].mxu0
      %v2288 = vadd.f32 0.0, %v2287
      %v2289 = vpop.f32.mrb[0].mxu0
      %v2290 = vpop.f32.mrb[0].mxu0
      %v2291 = vadd.f32 0.0, %v2290
      %v2292 = vpop.f32.mrb[0].mxu0
      %2293 = vdwg.mxu0
      %vm2294 = vcmp.ge.f32.partialorder %v2168, 0.0
      %vm2295 = vcmp.ge.f32.partialorder %v2171, 0.0
      %vm2296 = vcmp.ge.f32.partialorder %v2176, 0.0
      %vm2297 = vcmp.ge.f32.partialorder %v2179, 0.0
      %vm2298 = vcmp.ge.f32.partialorder %v2184, 0.0
      %vm2299 = vcmp.ge.f32.partialorder %v2187, 0.0
      %vm2300 = vcmp.ge.f32.partialorder %v2192, 0.0
      %vm2301 = vcmp.ge.f32.partialorder %v2195, 0.0
      %vm2302 = vcmp.ge.f32.partialorder %v2200, 0.0
      %vm2303 = vcmp.ge.f32.partialorder %v2203, 0.0
      %vm2304 = vcmp.ge.f32.partialorder %v2208, 0.0
      %vm2305 = vcmp.ge.f32.partialorder %v2211, 0.0
      %vm2306 = vcmp.ge.f32.partialorder %v2216, 0.0
      %vm2307 = vcmp.ge.f32.partialorder %v2219, 0.0
      %vm2308 = vcmp.ge.f32.partialorder %v2224, 0.0
      %vm2309 = vcmp.ge.f32.partialorder %v2227, 0.0
      %vm2310 = vcmp.ge.f32.partialorder %v2232, 0.0
      %vm2311 = vcmp.ge.f32.partialorder %v2235, 0.0
      %vm2312 = vcmp.ge.f32.partialorder %v2240, 0.0
      %vm2313 = vcmp.ge.f32.partialorder %v2243, 0.0
      %vm2314 = vcmp.ge.f32.partialorder %v2248, 0.0
      %vm2315 = vcmp.ge.f32.partialorder %v2251, 0.0
      %vm2316 = vcmp.ge.f32.partialorder %v2256, 0.0
      %vm2317 = vcmp.ge.f32.partialorder %v2259, 0.0
      %vm2318 = vcmp.ge.f32.partialorder %v2264, 0.0
      %vm2319 = vcmp.ge.f32.partialorder %v2267, 0.0
      %vm2320 = vcmp.ge.f32.partialorder %v2272, 0.0
      %vm2321 = vcmp.ge.f32.partialorder %v2275, 0.0
      %vm2322 = vcmp.ge.f32.partialorder %v2280, 0.0
      %vm2323 = vcmp.ge.f32.partialorder %v2283, 0.0
      %vm2324 = vcmp.ge.f32.partialorder %v2288, 0.0
      %vm2325 = vcmp.ge.f32.partialorder %v2291, 0.0
      %v2326 = vmul.f32 %v2168, 0.2
      %v2327 = vmul.f32 %v2171, 0.2
      %v2328 = vmul.f32 %v2176, 0.2
      %v2329 = vmul.f32 %v2179, 0.2
      %v2330 = vmul.f32 %v2184, 0.2
      %v2331 = vmul.f32 %v2187, 0.2
      %v2332 = vmul.f32 %v2192, 0.2
      %v2333 = vmul.f32 %v2195, 0.2
      %v2334 = vmul.f32 %v2200, 0.2
      %v2335 = vmul.f32 %v2203, 0.2
      %v2336 = vmul.f32 %v2208, 0.2
      %v2337 = vmul.f32 %v2211, 0.2
      %v2338 = vmul.f32 %v2216, 0.2
      %v2339 = vmul.f32 %v2219, 0.2
      %v2340 = vmul.f32 %v2224, 0.2
      %v2341 = vmul.f32 %v2227, 0.2
      %v2342 = vmul.f32 %v2232, 0.2
      %v2343 = vmul.f32 %v2235, 0.2
      %v2344 = vmul.f32 %v2240, 0.2
      %v2345 = vmul.f32 %v2243, 0.2
      %v2346 = vmul.f32 %v2248, 0.2
      %v2347 = vmul.f32 %v2251, 0.2
      %v2348 = vmul.f32 %v2256, 0.2
      %v2349 = vmul.f32 %v2259, 0.2
      %v2350 = vmul.f32 %v2264, 0.2
      %v2351 = vmul.f32 %v2267, 0.2
      %v2352 = vmul.f32 %v2272, 0.2
      %v2353 = vmul.f32 %v2275, 0.2
      %v2354 = vmul.f32 %v2280, 0.2
      %v2355 = vmul.f32 %v2283, 0.2
      %v2356 = vmul.f32 %v2288, 0.2
      %v2357 = vmul.f32 %v2291, 0.2
      %v2358 = vsel %vm2294, %v2168, %v2326
      %v2359 = vsel %vm2295, %v2171, %v2327
      %v2360 = vsel %vm2296, %v2176, %v2328
      %v2361 = vsel %vm2297, %v2179, %v2329
      %v2362 = vsel %vm2298, %v2184, %v2330
      %v2363 = vsel %vm2299, %v2187, %v2331
      %v2364 = vsel %vm2300, %v2192, %v2332
      %v2365 = vsel %vm2301, %v2195, %v2333
      %v2366 = vsel %vm2302, %v2200, %v2334
      %v2367 = vsel %vm2303, %v2203, %v2335
      %v2368 = vsel %vm2304, %v2208, %v2336
      %v2369 = vsel %vm2305, %v2211, %v2337
      %v2370 = vsel %vm2306, %v2216, %v2338
      %v2371 = vsel %vm2307, %v2219, %v2339
      %v2372 = vsel %vm2308, %v2224, %v2340
      %v2373 = vsel %vm2309, %v2227, %v2341
      %v2374 = vsel %vm2310, %v2232, %v2342
      %v2375 = vsel %vm2311, %v2235, %v2343
      %v2376 = vsel %vm2312, %v2240, %v2344
      %v2377 = vsel %vm2313, %v2243, %v2345
      %v2378 = vsel %vm2314, %v2248, %v2346
      %v2379 = vsel %vm2315, %v2251, %v2347
      %v2380 = vsel %vm2316, %v2256, %v2348
      %v2381 = vsel %vm2317, %v2259, %v2349
      %v2382 = vsel %vm2318, %v2264, %v2350
      %v2383 = vsel %vm2319, %v2267, %v2351
      %v2384 = vsel %vm2320, %v2272, %v2352
      %v2385 = vsel %vm2321, %v2275, %v2353
      %v2386 = vsel %vm2322, %v2280, %v2354
      %v2387 = vsel %vm2323, %v2283, %v2355
      %v2388 = vsel %vm2324, %v2288, %v2356
      %v2389 = vsel %vm2325, %v2291, %v2357
      %v2390 = vpack.c.bf16 %v2359, %v2358
      %v2391 = vpack.c.bf16 %v2361, %v2360
      %v2392 = vpack.c.bf16 %v2363, %v2362
      %v2393 = vpack.c.bf16 %v2365, %v2364
      %v2394 = vpack.c.bf16 %v2367, %v2366
      %v2395 = vpack.c.bf16 %v2369, %v2368
      %v2396 = vpack.c.bf16 %v2371, %v2370
      %v2397 = vpack.c.bf16 %v2373, %v2372
      %v2398 = vpack.c.bf16 %v2375, %v2374
      %v2399 = vpack.c.bf16 %v2377, %v2376
      %v2400 = vpack.c.bf16 %v2379, %v2378
      %v2401 = vpack.c.bf16 %v2381, %v2380
      %v2402 = vpack.c.bf16 %v2383, %v2382
      %v2403 = vpack.c.bf16 %v2385, %v2384
      %v2404 = vpack.c.bf16 %v2387, %v2386
      %v2405 = vpack.c.bf16 %v2389, %v2388
      %vm2406 = vcmask 60416
      %2407 = vst.msk [vmem:[%s143] sm:$0xf] %vm2406, 0
      %2408 = vst.msk [vmem:[%s143 + $0x4] sm:$0xf] %vm2406, 0
      %vm2409 = vcmask 57344
      %2410 = vst.msk [vmem:[%s143 + $0x8] sm:$0x1] %vm2409, 0
      %2411 = vst.msk [vmem:[%s143 + $0xc] sm:$0xf] %vm2406, 0
      %2412 = vst.msk [vmem:[%s143 + $0x10] sm:$0xf] %vm2406, 0
      %2413 = vst.msk [vmem:[%s143 + $0x14] sm:$0x1] %vm2409, 0
      %2414 = vst.msk [vmem:[%s143 + $0x18] sm:$0xf] %vm2406, 0
      %2415 = vst.msk [vmem:[%s143 + $0x1c] sm:$0xf] %vm2406, 0
      %2416 = vst.msk [vmem:[%s143 + $0x20] sm:$0x1] %vm2409, 0
      %2417 = vst.msk [vmem:[%s143 + $0x24] sm:$0xf] %vm2406, 0
      %2418 = vst.msk [vmem:[%s143 + $0x28] sm:$0xf] %vm2406, 0
      %2419 = vst.msk [vmem:[%s143 + $0x2c] sm:$0x1] %vm2409, 0
      %2420 = vst.msk [vmem:[%s143 + $0x30] sm:$0xf] %vm2406, 0
      %2421 = vst.msk [vmem:[%s143 + $0x34] sm:$0xf] %vm2406, 0
      %2422 = vst.msk [vmem:[%s143 + $0x38] sm:$0x1] %vm2409, 0
      %2423 = vst.msk [vmem:[%s143 + $0x3c] sm:$0xf] %vm2406, 0
      %2424 = vst.msk [vmem:[%s143 + $0x40] sm:$0xf] %vm2406, 0
      %2425 = vst.msk [vmem:[%s143 + $0x44] sm:$0x1] %vm2409, 0
      %2426 = vst.msk [vmem:[%s143 + $0x48] sm:$0xf] %vm2406, 0
      %2427 = vst.msk [vmem:[%s143 + $0x4c] sm:$0xf] %vm2406, 0
      %2428 = vst.msk [vmem:[%s143 + $0x50] sm:$0x1] %vm2409, 0
      %2429 = vst.msk [vmem:[%s143 + $0x54] sm:$0xf] %vm2406, 0
      %2430 = vst.msk [vmem:[%s143 + $0x58] sm:$0xf] %vm2406, 0
      %2431 = vst.msk [vmem:[%s143 + $0x5c] sm:$0x1] %vm2409, 0
      %2432 = vst.msk [vmem:[%s143 + $0x60] sm:$0xf] %vm2406, 0
      %2433 = vst.msk [vmem:[%s143 + $0x64] sm:$0xf] %vm2406, 0
      %2434 = vst.msk [vmem:[%s143 + $0x68] sm:$0x1] %vm2409, 0
      %2435 = vst.msk [vmem:[%s143 + $0x6c] sm:$0xf] %vm2406, 0
      %2436 = vst.msk [vmem:[%s143 + $0x70] sm:$0xf] %vm2406, 0
      %2437 = vst.msk [vmem:[%s143 + $0x74] sm:$0x1] %vm2409, 0
      %2438 = vst.msk [vmem:[%s143 + $0x78] sm:$0xf] %vm2406, 0
      %2439 = vst.msk [vmem:[%s143 + $0x7c] sm:$0xf] %vm2406, 0
      %2440 = vst.msk [vmem:[%s143 + $0x80] sm:$0x1] %vm2409, 0
      %2441 = vst.msk [vmem:[%s143 + $0x84] sm:$0xf] %vm2406, 0
      %2442 = vst.msk [vmem:[%s143 + $0x88] sm:$0xf] %vm2406, 0
      %2443 = vst.msk [vmem:[%s143 + $0x8c] sm:$0x1] %vm2409, 0
      %2444 = vst.msk [vmem:[%s143 + $0x90] sm:$0xf] %vm2406, 0
      %2445 = vst.msk [vmem:[%s143 + $0x94] sm:$0xf] %vm2406, 0
      %2446 = vst.msk [vmem:[%s143 + $0x98] sm:$0x1] %vm2409, 0
      %2447 = vst.msk [vmem:[%s143 + $0x9c] sm:$0xf] %vm2406, 0
      %2448 = vst.msk [vmem:[%s143 + $0xa0] sm:$0xf] %vm2406, 0
      %2449 = vst.msk [vmem:[%s143 + $0xa4] sm:$0x1] %vm2409, 0
      %2450 = vst.msk [vmem:[%s143 + $0xa8] sm:$0xf] %vm2406, 0
      %2451 = vst.msk [vmem:[%s143 + $0xac] sm:$0xf] %vm2406, 0
      %2452 = vst.msk [vmem:[%s143 + $0xb0] sm:$0x1] %vm2409, 0
      %2453 = vst.msk [vmem:[%s143 + $0xb4] sm:$0xf] %vm2406, 0
      %2454 = vst.msk [vmem:[%s143 + $0xb8] sm:$0xf] %vm2406, 0
      %2455 = vst.msk [vmem:[%s143 + $0xbc] sm:$0x1] %vm2409, 0
      %2456 = vst.msk [vmem:[%s143 + $0xc0] sm:$0xf] %vm2406, 0
      %2457 = vst.msk [vmem:[%s143 + $0xc4] sm:$0xf] %vm2406, 0
      %2458 = vst.msk [vmem:[%s143 + $0xc8] sm:$0x1] %vm2409, 0
      %2459 = vst.msk [vmem:[%s143 + $0xcc] sm:$0xf] %vm2406, 0
      %2460 = vst.msk [vmem:[%s143 + $0xd0] sm:$0xf] %vm2406, 0
      %2461 = vst.msk [vmem:[%s143 + $0xd4] sm:$0x1] %vm2409, 0
      %v2478 = vunpack.c.l.b16 %v2390
      %v2479 = vunpack.c.h.b16 %v2390
      %v2480 = vunpack.c.l.b16 %v2391
      %v2481 = vunpack.c.h.b16 %v2391
      %v2482 = vunpack.c.l.b16 %v2392
      %v2483 = vunpack.c.h.b16 %v2392
      %v2484 = vunpack.c.l.b16 %v2393
      %v2485 = vunpack.c.h.b16 %v2393
      %v2486 = vunpack.c.l.b16 %v2394
      %v2487 = vunpack.c.h.b16 %v2394
      %v2488 = vunpack.c.l.b16 %v2395
      %v2489 = vunpack.c.h.b16 %v2395
      %v2490 = vunpack.c.l.b16 %v2396
      %v2491 = vunpack.c.h.b16 %v2396
      %v2492 = vunpack.c.l.b16 %v2397
      %v2493 = vunpack.c.h.b16 %v2397
      %v2494 = vunpack.c.l.b16 %v2398
      %v2495 = vunpack.c.h.b16 %v2398
      %v2496 = vunpack.c.l.b16 %v2399
      %v2497 = vunpack.c.h.b16 %v2399
      %v2498 = vunpack.c.l.b16 %v2400
      %v2499 = vunpack.c.h.b16 %v2400
      %v2500 = vunpack.c.l.b16 %v2401
      %v2501 = vunpack.c.h.b16 %v2401
      %v2502 = vunpack.c.l.b16 %v2402
      %v2503 = vunpack.c.h.b16 %v2402
      %v2504 = vunpack.c.l.b16 %v2403
      %v2505 = vunpack.c.h.b16 %v2403
      %v2506 = vunpack.c.l.b16 %v2404
      %v2507 = vunpack.c.h.b16 %v2404
      %v2508 = vunpack.c.l.b16 %v2405
      %v2509 = vunpack.c.h.b16 %v2405
      %v2510 = vpack.c.b16 %v2478, %v2478
      %v2511 = vpack.c.b16 %v2479, %v2479
      %v2512 = vpack.c.b16 %v2480, %v2480
      %v2513 = vpack.c.b16 %v2481, %v2481
      %v2514 = vpack.c.b16 %v2482, %v2482
      %v2515 = vpack.c.b16 %v2483, %v2483
      %v2516 = vpack.c.b16 %v2484, %v2484
      %v2517 = vpack.c.b16 %v2485, %v2485
      %v2518 = vpack.c.b16 %v2486, %v2486
      %v2519 = vpack.c.b16 %v2487, %v2487
      %v2520 = vpack.c.b16 %v2488, %v2488
      %v2521 = vpack.c.b16 %v2489, %v2489
      %v2522 = vpack.c.b16 %v2490, %v2490
      %v2523 = vpack.c.b16 %v2491, %v2491
      %v2524 = vpack.c.b16 %v2492, %v2492
      %v2525 = vpack.c.b16 %v2493, %v2493
      %v2526 = vpack.c.b16 %v2494, %v2494
      %v2527 = vpack.c.b16 %v2495, %v2495
      %v2528 = vpack.c.b16 %v2496, %v2496
      %v2529 = vpack.c.b16 %v2497, %v2497
      %v2530 = vpack.c.b16 %v2498, %v2498
      %v2531 = vpack.c.b16 %v2499, %v2499
      %v2532 = vpack.c.b16 %v2500, %v2500
      %v2533 = vpack.c.b16 %v2501, %v2501
      %v2534 = vpack.c.b16 %v2502, %v2502
      %v2535 = vpack.c.b16 %v2503, %v2503
      %v2536 = vpack.c.b16 %v2504, %v2504
      %v2537 = vpack.c.b16 %v2505, %v2505
      %v2538 = vpack.c.b16 %v2506, %v2506
      %v2539 = vpack.c.b16 %v2507, %v2507
      %v2540 = vpack.c.b16 %v2508, %v2508
      %v2541 = vpack.c.b16 %v2509, %v2509
      %vm2542 = vsmask.f32 256
      %vm2543 = vsmask.f32 4368
      %vm2544 = vmor %vm2542, %vm2543
      %v2546 = vshrl.u32 %v2510, 16
      %v2548 = vrot.slane %v2546, 7
      %v2549 = vshll.u32 %v2510, 16
      %v2551 = vor.u32 %v2548, %v2549
      %v2552 = vrot.slane %v2548, 4
      %v2554 = vshrl.u32 %v2511, 16
      %v2556 = vrot.slane %v2554, 7
      %v2557 = vshll.u32 %v2511, 16
      %v2559 = vor.u32 %v2556, %v2557
      %v2560 = vsel %vm2544, %v2552, %v2559
      %v2561 = vrot.slane %v2556, 4
      %v2563 = vshrl.u32 %v2512, 16
      %v2565 = vrot.slane %v2563, 7
      %v2566 = vshll.u32 %v2512, 16
      %v2568 = vor.u32 %v2565, %v2566
      %v2569 = vrot.slane %v2565, 4
      %v2571 = vshrl.u32 %v2513, 16
      %v2573 = vrot.slane %v2571, 7
      %v2574 = vshll.u32 %v2513, 16
      %v2576 = vor.u32 %v2573, %v2574
      %v2577 = vsel %vm2544, %v2569, %v2576
      %v2578 = vrot.slane %v2573, 4
      %v2580 = vshrl.u32 %v2514, 16
      %v2582 = vrot.slane %v2580, 7
      %v2583 = vshll.u32 %v2514, 16
      %v2585 = vor.u32 %v2582, %v2583
      %v2586 = vrot.slane %v2582, 4
      %v2588 = vshrl.u32 %v2515, 16
      %v2590 = vrot.slane %v2588, 7
      %v2591 = vshll.u32 %v2515, 16
      %v2593 = vor.u32 %v2590, %v2591
      %v2594 = vsel %vm2544, %v2586, %v2593
      %v2595 = vrot.slane %v2590, 4
      %v2597 = vshrl.u32 %v2516, 16
      %v2599 = vrot.slane %v2597, 7
      %v2600 = vshll.u32 %v2516, 16
      %v2602 = vor.u32 %v2599, %v2600
      %v2603 = vrot.slane %v2599, 4
      %v2605 = vshrl.u32 %v2517, 16
      %v2607 = vrot.slane %v2605, 7
      %v2608 = vshll.u32 %v2517, 16
      %v2610 = vor.u32 %v2607, %v2608
      %v2611 = vsel %vm2544, %v2603, %v2610
      %v2612 = vrot.slane %v2607, 4
      %v2614 = vshrl.u32 %v2518, 16
      %v2616 = vrot.slane %v2614, 7
      %v2617 = vshll.u32 %v2518, 16
      %v2619 = vor.u32 %v2616, %v2617
      %v2620 = vrot.slane %v2616, 4
      %v2622 = vshrl.u32 %v2519, 16
      %v2624 = vrot.slane %v2622, 7
      %v2625 = vshll.u32 %v2519, 16
      %v2627 = vor.u32 %v2624, %v2625
      %v2628 = vsel %vm2544, %v2620, %v2627
      %v2629 = vrot.slane %v2624, 4
      %v2631 = vshrl.u32 %v2520, 16
      %v2633 = vrot.slane %v2631, 7
      %v2634 = vshll.u32 %v2520, 16
      %v2636 = vor.u32 %v2633, %v2634
      %v2637 = vrot.slane %v2633, 4
      %v2639 = vshrl.u32 %v2521, 16
      %v2641 = vrot.slane %v2639, 7
      %v2642 = vshll.u32 %v2521, 16
      %v2644 = vor.u32 %v2641, %v2642
      %v2645 = vsel %vm2544, %v2637, %v2644
      %v2646 = vrot.slane %v2641, 4
      %v2648 = vshrl.u32 %v2522, 16
      %v2650 = vrot.slane %v2648, 7
      %v2651 = vshll.u32 %v2522, 16
      %v2653 = vor.u32 %v2650, %v2651
      %v2654 = vrot.slane %v2650, 4
      %v2656 = vshrl.u32 %v2523, 16
      %v2658 = vrot.slane %v2656, 7
      %v2659 = vshll.u32 %v2523, 16
      %v2661 = vor.u32 %v2658, %v2659
      %v2662 = vsel %vm2544, %v2654, %v2661
      %v2663 = vrot.slane %v2658, 4
      %v2665 = vshrl.u32 %v2524, 16
      %v2667 = vrot.slane %v2665, 7
      %v2668 = vshll.u32 %v2524, 16
      %v2670 = vor.u32 %v2667, %v2668
      %v2671 = vrot.slane %v2667, 4
      %v2673 = vshrl.u32 %v2525, 16
      %v2675 = vrot.slane %v2673, 7
      %v2676 = vshll.u32 %v2525, 16
      %v2678 = vor.u32 %v2675, %v2676
      %v2679 = vsel %vm2544, %v2671, %v2678
      %v2680 = vrot.slane %v2675, 4
      %v2682 = vshrl.u32 %v2526, 16
      %v2684 = vrot.slane %v2682, 7
      %v2685 = vshll.u32 %v2526, 16
      %v2687 = vor.u32 %v2684, %v2685
      %v2688 = vrot.slane %v2684, 4
      %v2690 = vshrl.u32 %v2527, 16
      %v2692 = vrot.slane %v2690, 7
      %v2693 = vshll.u32 %v2527, 16
      %v2695 = vor.u32 %v2692, %v2693
      %v2696 = vsel %vm2544, %v2688, %v2695
      %v2697 = vrot.slane %v2692, 4
      %v2699 = vshrl.u32 %v2528, 16
      %v2701 = vrot.slane %v2699, 7
      %v2702 = vshll.u32 %v2528, 16
      %v2704 = vor.u32 %v2701, %v2702
      %v2705 = vrot.slane %v2701, 4
      %v2707 = vshrl.u32 %v2529, 16
      %v2709 = vrot.slane %v2707, 7
      %v2710 = vshll.u32 %v2529, 16
      %v2712 = vor.u32 %v2709, %v2710
      %v2713 = vsel %vm2544, %v2705, %v2712
      %v2714 = vrot.slane %v2709, 4
      %v2716 = vshrl.u32 %v2530, 16
      %v2718 = vrot.slane %v2716, 7
      %v2719 = vshll.u32 %v2530, 16
      %v2721 = vor.u32 %v2718, %v2719
      %v2722 = vrot.slane %v2718, 4
      %v2724 = vshrl.u32 %v2531, 16
      %v2726 = vrot.slane %v2724, 7
      %v2727 = vshll.u32 %v2531, 16
      %v2729 = vor.u32 %v2726, %v2727
      %v2730 = vsel %vm2544, %v2722, %v2729
      %v2731 = vrot.slane %v2726, 4
      %v2733 = vshrl.u32 %v2532, 16
      %v2735 = vrot.slane %v2733, 7
      %v2736 = vshll.u32 %v2532, 16
      %v2738 = vor.u32 %v2735, %v2736
      %v2739 = vrot.slane %v2735, 4
      %v2741 = vshrl.u32 %v2533, 16
      %v2743 = vrot.slane %v2741, 7
      %v2744 = vshll.u32 %v2533, 16
      %v2746 = vor.u32 %v2743, %v2744
      %v2747 = vsel %vm2544, %v2739, %v2746
      %v2748 = vrot.slane %v2743, 4
      %v2750 = vshrl.u32 %v2534, 16
      %v2752 = vrot.slane %v2750, 7
      %v2753 = vshll.u32 %v2534, 16
      %v2755 = vor.u32 %v2752, %v2753
      %v2756 = vrot.slane %v2752, 4
      %v2758 = vshrl.u32 %v2535, 16
      %v2760 = vrot.slane %v2758, 7
      %v2761 = vshll.u32 %v2535, 16
      %v2763 = vor.u32 %v2760, %v2761
      %v2764 = vsel %vm2544, %v2756, %v2763
      %v2765 = vrot.slane %v2760, 4
      %v2767 = vshrl.u32 %v2536, 16
      %v2769 = vrot.slane %v2767, 7
      %v2770 = vshll.u32 %v2536, 16
      %v2772 = vor.u32 %v2769, %v2770
      %v2773 = vrot.slane %v2769, 4
      %v2775 = vshrl.u32 %v2537, 16
      %v2777 = vrot.slane %v2775, 7
      %v2778 = vshll.u32 %v2537, 16
      %v2780 = vor.u32 %v2777, %v2778
      %v2781 = vsel %vm2544, %v2773, %v2780
      %v2782 = vrot.slane %v2777, 4
      %v2784 = vshrl.u32 %v2538, 16
      %v2786 = vrot.slane %v2784, 7
      %v2787 = vshll.u32 %v2538, 16
      %v2789 = vor.u32 %v2786, %v2787
      %v2790 = vrot.slane %v2786, 4
      %v2792 = vshrl.u32 %v2539, 16
      %v2794 = vrot.slane %v2792, 7
      %v2795 = vshll.u32 %v2539, 16
      %v2797 = vor.u32 %v2794, %v2795
      %v2798 = vsel %vm2544, %v2790, %v2797
      %v2799 = vrot.slane %v2794, 4
      %v2801 = vshrl.u32 %v2540, 16
      %v2803 = vrot.slane %v2801, 7
      %v2804 = vshll.u32 %v2540, 16
      %v2806 = vor.u32 %v2803, %v2804
      %v2807 = vrot.slane %v2803, 4
      %v2809 = vshrl.u32 %v2541, 16
      %v2811 = vrot.slane %v2809, 7
      %v2812 = vshll.u32 %v2541, 16
      %v2814 = vor.u32 %v2811, %v2812
      %v2815 = vsel %vm2544, %v2807, %v2814
      %v2816 = vrot.slane %v2811, 4
      %s2865 = scalar_lea.vmem %s143, 12
      %vm2866 = vcmask 60416
      %vm2867 = vsmask.f32 7938
      %vm2868 = vmand %vm2866, %vm2867
      %v2869 = vld [vmem:[%s2865] sm:$0xf]
      %v2870 = vsel %vm2868, %v2551, %v2869
      %2871 = vst [vmem:[%s2865] sm:$0xf] %v2870
      %2872 = vst.msk [vmem:[%s2865 + $0x4] sm:$0xf] %vm2406, %v2560
      %vm2873 = vcmask 57344
      %vm2874 = vmand %vm2873, %vm2542
      %v2875 = vld [vmem:[%s2865 + $0x8] sm:$0x1]
      %v2876 = vsel %vm2874, %v2561, %v2875
      %2877 = vst [vmem:[%s2865 + $0x8] sm:$0x1] %v2876
      %v2878 = vld [vmem:[%s2865 + $0xc] sm:$0xf]
      %v2879 = vsel %vm2868, %v2568, %v2878
      %2880 = vst [vmem:[%s2865 + $0xc] sm:$0xf] %v2879
      %2881 = vst.msk [vmem:[%s2865 + $0x10] sm:$0xf] %vm2406, %v2577
      %v2882 = vld [vmem:[%s2865 + $0x14] sm:$0x1]
      %v2883 = vsel %vm2874, %v2578, %v2882
      %2884 = vst [vmem:[%s2865 + $0x14] sm:$0x1] %v2883
      %v2885 = vld [vmem:[%s2865 + $0x18] sm:$0xf]
      %v2886 = vsel %vm2868, %v2585, %v2885
      %2887 = vst [vmem:[%s2865 + $0x18] sm:$0xf] %v2886
      %2888 = vst.msk [vmem:[%s2865 + $0x1c] sm:$0xf] %vm2406, %v2594
      %v2889 = vld [vmem:[%s2865 + $0x20] sm:$0x1]
      %v2890 = vsel %vm2874, %v2595, %v2889
      %2891 = vst [vmem:[%s2865 + $0x20] sm:$0x1] %v2890
      %v2892 = vld [vmem:[%s2865 + $0x24] sm:$0xf]
      %v2893 = vsel %vm2868, %v2602, %v2892
      %2894 = vst [vmem:[%s2865 + $0x24] sm:$0xf] %v2893
      %2895 = vst.msk [vmem:[%s2865 + $0x28] sm:$0xf] %vm2406, %v2611
      %v2896 = vld [vmem:[%s2865 + $0x2c] sm:$0x1]
      %v2897 = vsel %vm2874, %v2612, %v2896
      %2898 = vst [vmem:[%s2865 + $0x2c] sm:$0x1] %v2897
      %v2899 = vld [vmem:[%s2865 + $0x30] sm:$0xf]
      %v2900 = vsel %vm2868, %v2619, %v2899
      %2901 = vst [vmem:[%s2865 + $0x30] sm:$0xf] %v2900
      %2902 = vst.msk [vmem:[%s2865 + $0x34] sm:$0xf] %vm2406, %v2628
      %v2903 = vld [vmem:[%s2865 + $0x38] sm:$0x1]
      %v2904 = vsel %vm2874, %v2629, %v2903
      %2905 = vst [vmem:[%s2865 + $0x38] sm:$0x1] %v2904
      %v2906 = vld [vmem:[%s2865 + $0x3c] sm:$0xf]
      %v2907 = vsel %vm2868, %v2636, %v2906
      %2908 = vst [vmem:[%s2865 + $0x3c] sm:$0xf] %v2907
      %2909 = vst.msk [vmem:[%s2865 + $0x40] sm:$0xf] %vm2406, %v2645
      %v2910 = vld [vmem:[%s2865 + $0x44] sm:$0x1]
      %v2911 = vsel %vm2874, %v2646, %v2910
      %2912 = vst [vmem:[%s2865 + $0x44] sm:$0x1] %v2911
      %v2913 = vld [vmem:[%s2865 + $0x48] sm:$0xf]
      %v2914 = vsel %vm2868, %v2653, %v2913
      %2915 = vst [vmem:[%s2865 + $0x48] sm:$0xf] %v2914
      %2916 = vst.msk [vmem:[%s2865 + $0x4c] sm:$0xf] %vm2406, %v2662
      %v2917 = vld [vmem:[%s2865 + $0x50] sm:$0x1]
      %v2918 = vsel %vm2874, %v2663, %v2917
      %2919 = vst [vmem:[%s2865 + $0x50] sm:$0x1] %v2918
      %v2920 = vld [vmem:[%s2865 + $0x54] sm:$0xf]
      %v2921 = vsel %vm2868, %v2670, %v2920
      %2922 = vst [vmem:[%s2865 + $0x54] sm:$0xf] %v2921
      %2923 = vst.msk [vmem:[%s2865 + $0x58] sm:$0xf] %vm2406, %v2679
      %v2924 = vld [vmem:[%s2865 + $0x5c] sm:$0x1]
      %v2925 = vsel %vm2874, %v2680, %v2924
      %2926 = vst [vmem:[%s2865 + $0x5c] sm:$0x1] %v2925
      %v2927 = vld [vmem:[%s2865 + $0x60] sm:$0xf]
      %v2928 = vsel %vm2868, %v2687, %v2927
      %2929 = vst [vmem:[%s2865 + $0x60] sm:$0xf] %v2928
      %2930 = vst.msk [vmem:[%s2865 + $0x64] sm:$0xf] %vm2406, %v2696
      %v2931 = vld [vmem:[%s2865 + $0x68] sm:$0x1]
      %v2932 = vsel %vm2874, %v2697, %v2931
      %2933 = vst [vmem:[%s2865 + $0x68] sm:$0x1] %v2932
      %v2934 = vld [vmem:[%s2865 + $0x6c] sm:$0xf]
      %v2935 = vsel %vm2868, %v2704, %v2934
      %2936 = vst [vmem:[%s2865 + $0x6c] sm:$0xf] %v2935
      %2937 = vst.msk [vmem:[%s2865 + $0x70] sm:$0xf] %vm2406, %v2713
      %v2938 = vld [vmem:[%s2865 + $0x74] sm:$0x1]
      %v2939 = vsel %vm2874, %v2714, %v2938
      %2940 = vst [vmem:[%s2865 + $0x74] sm:$0x1] %v2939
      %v2941 = vld [vmem:[%s2865 + $0x78] sm:$0xf]
      %v2942 = vsel %vm2868, %v2721, %v2941
      %2943 = vst [vmem:[%s2865 + $0x78] sm:$0xf] %v2942
      %2944 = vst.msk [vmem:[%s2865 + $0x7c] sm:$0xf] %vm2406, %v2730
      %v2945 = vld [vmem:[%s2865 + $0x80] sm:$0x1]
      %v2946 = vsel %vm2874, %v2731, %v2945
      %2947 = vst [vmem:[%s2865 + $0x80] sm:$0x1] %v2946
      %v2948 = vld [vmem:[%s2865 + $0x84] sm:$0xf]
      %v2949 = vsel %vm2868, %v2738, %v2948
      %2950 = vst [vmem:[%s2865 + $0x84] sm:$0xf] %v2949
      %2951 = vst.msk [vmem:[%s2865 + $0x88] sm:$0xf] %vm2406, %v2747
      %v2952 = vld [vmem:[%s2865 + $0x8c] sm:$0x1]
      %v2953 = vsel %vm2874, %v2748, %v2952
      %2954 = vst [vmem:[%s2865 + $0x8c] sm:$0x1] %v2953
      %v2955 = vld [vmem:[%s2865 + $0x90] sm:$0xf]
      %v2956 = vsel %vm2868, %v2755, %v2955
      %2957 = vst [vmem:[%s2865 + $0x90] sm:$0xf] %v2956
      %2958 = vst.msk [vmem:[%s2865 + $0x94] sm:$0xf] %vm2406, %v2764
      %v2959 = vld [vmem:[%s2865 + $0x98] sm:$0x1]
      %v2960 = vsel %vm2874, %v2765, %v2959
      %2961 = vst [vmem:[%s2865 + $0x98] sm:$0x1] %v2960
      %v2962 = vld [vmem:[%s2865 + $0x9c] sm:$0xf]
      %v2963 = vsel %vm2868, %v2772, %v2962
      %2964 = vst [vmem:[%s2865 + $0x9c] sm:$0xf] %v2963
      %2965 = vst.msk [vmem:[%s2865 + $0xa0] sm:$0xf] %vm2406, %v2781
      %v2966 = vld [vmem:[%s2865 + $0xa4] sm:$0x1]
      %v2967 = vsel %vm2874, %v2782, %v2966
      %2968 = vst [vmem:[%s2865 + $0xa4] sm:$0x1] %v2967
      %v2969 = vld [vmem:[%s2865 + $0xa8] sm:$0xf]
      %v2970 = vsel %vm2868, %v2789, %v2969
      %2971 = vst [vmem:[%s2865 + $0xa8] sm:$0xf] %v2970
      %2972 = vst.msk [vmem:[%s2865 + $0xac] sm:$0xf] %vm2406, %v2798
      %v2973 = vld [vmem:[%s2865 + $0xb0] sm:$0x1]
      %v2974 = vsel %vm2874, %v2799, %v2973
      %2975 = vst [vmem:[%s2865 + $0xb0] sm:$0x1] %v2974
      %v2976 = vld [vmem:[%s2865 + $0xb4] sm:$0xf]
      %v2977 = vsel %vm2868, %v2806, %v2976
      %2978 = vst [vmem:[%s2865 + $0xb4] sm:$0xf] %v2977
      %2979 = vst.msk [vmem:[%s2865 + $0xb8] sm:$0xf] %vm2406, %v2815
      %v2980 = vld [vmem:[%s2865 + $0xbc] sm:$0x1]
      %v2981 = vsel %vm2874, %v2816, %v2980
      %2982 = vst [vmem:[%s2865 + $0xbc] sm:$0x1] %v2981
      %p2983 = scmp.lt.s32.totalorder %s13, 1
      %s2984 = scalar_select %p2983, %s13, 1
      %s2985 = smul.addr %s2984, 54
      %s2986 = smul.addr %s2985, 4
      %s2987 = scalar_lea.vmem %s2, %s2986
      // Predicated region
      $region29: #{discriminator_forward.7} parent=27 // pred_check
        %p2988 = pneg %p78
      $region30: #{discriminator_forward.7} parent=27 // pred_check_branch
        %2990 = sbr.rel (%p2988) target = $region32
      $region31: #{discriminator_forward.7} parent=27 // pred_region
        _
      $region32: #{discriminator_forward.7} parent=27 // pred_fallthru
        _
    $region28: #{discriminator_forward.7} parent=5 // pred_fallthru
      _
    %p2991 = scmp.le.s32.totalorder 2, %s8
    // Predicated region
    $region33: #{discriminator_forward.7} parent=5 // pred_check
      %p2992 = pneg %p2991
    $region34: #{discriminator_forward.7} parent=5 // pred_check_branch
      %2994 = sbr.rel (%p2992) target = $region36
    $region35: #{discriminator_forward.7} parent=5 // pred_region
      %s2995 = ssub.s32 %s8, 2
      // Predicated region
      $region37: #{discriminator_forward.7} parent=35 // pred_check
        %p2996 = pneg %p84
      $region38: #{discriminator_forward.7} parent=35 // pred_check_branch
        %2998 = sbr.rel (%p2996) target = $region40
      $region39: #{discriminator_forward.7} parent=35 // pred_region
        %p2999 = scmp.lt.s32.totalorder %s14, 1
        %s3000 = scalar_select %p2999, %s14, 1
        %s3001 = smul.addr %s3000, 54
        %s3002 = smul.addr %s3001, 4
        %s3003 = scalar_lea.vmem %s2, %s3002
      $region40: #{discriminator_forward.7} parent=35 // pred_fallthru
        _
    $region36: #{discriminator_forward.7} parent=5 // pred_fallthru
      _
  $region6: #{discriminator_forward.7} parent=0 // loop_footer
    %s12 = sadd.s32 1, %s8
  $region7: #{discriminator_forward.7} parent=0 // loop_footer_branch
    %7 = sbr.rel target = $region3
  $region8: #{discriminator_forward.7} parent=0 // loop_exit
    _

// kernel: discriminator_forward.8
$region0: #{discriminator_forward.8}
  #allocation0 [shape = 'u32[]', space=smem, size = 0x4, offset = 0x4, fixed_abs, tag = 'smem constant byte address 0x4 - core index']
  #allocation1 [shape = 'u32[144,128]{1,0:T(1,128)}', space=vmem, size = 0x12000, scoped, tag = 'internal scratch']
  %s0 = inlined_call_operand.vmem [shape: bf16[2,9,2,9,16], index: 0, kind: input, shape index: {}]
  %s1 = inlined_call_operand.vmem [shape: bf16[128,16], index: 1, kind: input, shape index: {}]
  %s2 = inlined_call_operand.vmem [shape: bf16[2,8,8,16], index: 2, kind: output, shape index: {0}]
  %s3 = inlined_call_operand.vmem [shape: f32[1,2,16], index: 3, kind: output, shape index: {1}]
  %4 = xla_tuple %s2, %s3
  %s5 = sld [smem:[#allocation0]]
  $region26: #{discriminator_forward.8} parent=0
    _
  %s7 = ssub.s32 1, %s5
  %s8 = scalar_select 0, %s7, %s5
  // Predicated region
  $region2: #{discriminator_forward.8} parent=0 // pred_check
    _
  $region3: #{discriminator_forward.8} parent=0 // pred_check_branch
    %10 = sbr.rel (0) target = $region5
  $region4: #{discriminator_forward.8} parent=0 // pred_region
    _
  $region5: #{discriminator_forward.8} parent=0 // pred_fallthru
    _
  // Predicated region
  $region6: #{discriminator_forward.8} parent=0 // pred_check
    _
  $region7: #{discriminator_forward.8} parent=0 // pred_check_branch
    %12 = sbr.rel (0) target = $region9
  $region8: #{discriminator_forward.8} parent=0 // pred_region
    _
  $region9: #{discriminator_forward.8} parent=0 // pred_fallthru
    _
  %v14 = vld [vmem:[%s0] sm:$0xf]
  %v15 = vld [vmem:[%s0 + $0x10] sm:$0xf]
  %v16 = vld [vmem:[%s0 + $0x20] sm:$0xf]
  %v17 = vld [vmem:[%s0 + $0x30] sm:$0xf]
  %v18 = vld [vmem:[%s0 + $0x40] sm:$0xf]
  %v19 = vld [vmem:[%s0 + $0x50] sm:$0xf]
  %v20 = vld [vmem:[%s0 + $0x60] sm:$0xf]
  %v21 = vld [vmem:[%s0 + $0x70] sm:$0xf]
  %v22 = vld [vmem:[%s0 + $0x90] sm:$0xf]
  %v23 = vld [vmem:[%s0 + $0xa0] sm:$0xf]
  %v24 = vld [vmem:[%s0 + $0xb0] sm:$0xf]
  %v25 = vld [vmem:[%s0 + $0xc0] sm:$0xf]
  %v26 = vld [vmem:[%s0 + $0xd0] sm:$0xf]
  %v27 = vld [vmem:[%s0 + $0xe0] sm:$0xf]
  %v28 = vld [vmem:[%s0 + $0xf0] sm:$0xf]
  %v29 = vld [vmem:[%s0 + $0x100] sm:$0xf]
  %v30 = vld [vmem:[%s0 + $0x4] sm:$0x1]
  %v31 = vld [vmem:[%s0 + $0x14] sm:$0x1]
  %v32 = vld [vmem:[%s0 + $0x24] sm:$0x1]
  %v33 = vld [vmem:[%s0 + $0x34] sm:$0x1]
  %v34 = vld [vmem:[%s0 + $0x44] sm:$0x1]
  %v35 = vld [vmem:[%s0 + $0x54] sm:$0x1]
  %v36 = vld [vmem:[%s0 + $0x64] sm:$0x1]
  %v37 = vld [vmem:[%s0 + $0x74] sm:$0x1]
  %v38 = vld [vmem:[%s0 + $0x94] sm:$0x1]
  %v39 = vld [vmem:[%s0 + $0xa4] sm:$0x1]
  %v40 = vld [vmem:[%s0 + $0xb4] sm:$0x1]
  %v41 = vld [vmem:[%s0 + $0xc4] sm:$0x1]
  %v42 = vld [vmem:[%s0 + $0xd4] sm:$0x1]
  %v43 = vld [vmem:[%s0 + $0xe4] sm:$0x1]
  %v44 = vld [vmem:[%s0 + $0xf4] sm:$0x1]
  %v45 = vld [vmem:[%s0 + $0x104] sm:$0x1]
  %s46 = scalar_lea.vmem %s0, 8
  %v47 = vld [vmem:[%s46] sm:$0xf]
  %v48 = vld [vmem:[%s46 + $0x10] sm:$0xf]
  %v49 = vld [vmem:[%s46 + $0x20] sm:$0xf]
  %v50 = vld [vmem:[%s46 + $0x30] sm:$0xf]
  %v51 = vld [vmem:[%s46 + $0x40] sm:$0xf]
  %v52 = vld [vmem:[%s46 + $0x50] sm:$0xf]
  %v53 = vld [vmem:[%s46 + $0x60] sm:$0xf]
  %v54 = vld [vmem:[%s46 + $0x70] sm:$0xf]
  %v55 = vld [vmem:[%s46 + $0x90] sm:$0xf]
  %v56 = vld [vmem:[%s46 + $0xa0] sm:$0xf]
  %v57 = vld [vmem:[%s46 + $0xb0] sm:$0xf]
  %v58 = vld [vmem:[%s46 + $0xc0] sm:$0xf]
  %v59 = vld [vmem:[%s46 + $0xd0] sm:$0xf]
  %v60 = vld [vmem:[%s46 + $0xe0] sm:$0xf]
  %v61 = vld [vmem:[%s46 + $0xf0] sm:$0xf]
  %v62 = vld [vmem:[%s46 + $0x100] sm:$0xf]
  %v63 = vld [vmem:[%s46 + $0x4] sm:$0x1]
  %v64 = vld [vmem:[%s46 + $0x14] sm:$0x1]
  %v65 = vld [vmem:[%s46 + $0x24] sm:$0x1]
  %v66 = vld [vmem:[%s46 + $0x34] sm:$0x1]
  %v67 = vld [vmem:[%s46 + $0x44] sm:$0x1]
  %v68 = vld [vmem:[%s46 + $0x54] sm:$0x1]
  %v69 = vld [vmem:[%s46 + $0x64] sm:$0x1]
  %v70 = vld [vmem:[%s46 + $0x74] sm:$0x1]
  %v71 = vld [vmem:[%s46 + $0x94] sm:$0x1]
  %v72 = vld [vmem:[%s46 + $0xa4] sm:$0x1]
  %v73 = vld [vmem:[%s46 + $0xb4] sm:$0x1]
  %v74 = vld [vmem:[%s46 + $0xc4] sm:$0x1]
  %v75 = vld [vmem:[%s46 + $0xd4] sm:$0x1]
  %v76 = vld [vmem:[%s46 + $0xe4] sm:$0x1]
  %v77 = vld [vmem:[%s46 + $0xf4] sm:$0x1]
  %v78 = vld [vmem:[%s46 + $0x104] sm:$0x1]
  %s79 = scalar_lea.vmem %s0, 16
  %v80 = vld [vmem:[%s79] sm:$0xf]
  %v81 = vld [vmem:[%s79 + $0x10] sm:$0xf]
  %v82 = vld [vmem:[%s79 + $0x20] sm:$0xf]
  %v83 = vld [vmem:[%s79 + $0x30] sm:$0xf]
  %v84 = vld [vmem:[%s79 + $0x40] sm:$0xf]
  %v85 = vld [vmem:[%s79 + $0x50] sm:$0xf]
  %v86 = vld [vmem:[%s79 + $0x60] sm:$0xf]
  %v87 = vld [vmem:[%s79 + $0x70] sm:$0xf]
  %v88 = vld [vmem:[%s79 + $0x90] sm:$0xf]
  %v89 = vld [vmem:[%s79 + $0xa0] sm:$0xf]
  %v90 = vld [vmem:[%s79 + $0xb0] sm:$0xf]
  %v91 = vld [vmem:[%s79 + $0xc0] sm:$0xf]
  %v92 = vld [vmem:[%s79 + $0xd0] sm:$0xf]
  %v93 = vld [vmem:[%s79 + $0xe0] sm:$0xf]
  %v94 = vld [vmem:[%s79 + $0xf0] sm:$0xf]
  %v95 = vld [vmem:[%s79 + $0x100] sm:$0xf]
  %v96 = vld [vmem:[%s79 + $0x4] sm:$0x1]
  %v97 = vld [vmem:[%s79 + $0x14] sm:$0x1]
  %v98 = vld [vmem:[%s79 + $0x24] sm:$0x1]
  %v99 = vld [vmem:[%s79 + $0x34] sm:$0x1]
  %v100 = vld [vmem:[%s79 + $0x44] sm:$0x1]
  %v101 = vld [vmem:[%s79 + $0x54] sm:$0x1]
  %v102 = vld [vmem:[%s79 + $0x64] sm:$0x1]
  %v103 = vld [vmem:[%s79 + $0x74] sm:$0x1]
  %v104 = vld [vmem:[%s79 + $0x94] sm:$0x1]
  %v105 = vld [vmem:[%s79 + $0xa4] sm:$0x1]
  %v106 = vld [vmem:[%s79 + $0xb4] sm:$0x1]
  %v107 = vld [vmem:[%s79 + $0xc4] sm:$0x1]
  %v108 = vld [vmem:[%s79 + $0xd4] sm:$0x1]
  %v109 = vld [vmem:[%s79 + $0xe4] sm:$0x1]
  %v110 = vld [vmem:[%s79 + $0xf4] sm:$0x1]
  %v111 = vld [vmem:[%s79 + $0x104] sm:$0x1]
  %s112 = scalar_lea.vmem %s0, 24
  %v113 = vld [vmem:[%s112] sm:$0xf]
  %v114 = vld [vmem:[%s112 + $0x10] sm:$0xf]
  %v115 = vld [vmem:[%s112 + $0x20] sm:$0xf]
  %v116 = vld [vmem:[%s112 + $0x30] sm:$0xf]
  %v117 = vld [vmem:[%s112 + $0x40] sm:$0xf]
  %v118 = vld [vmem:[%s112 + $0x50] sm:$0xf]
  %v119 = vld [vmem:[%s112 + $0x60] sm:$0xf]
  %v120 = vld [vmem:[%s112 + $0x70] sm:$0xf]
  %v121 = vld [vmem:[%s112 + $0x90] sm:$0xf]
  %v122 = vld [vmem:[%s112 + $0xa0] sm:$0xf]
  %v123 = vld [vmem:[%s112 + $0xb0] sm:$0xf]
  %v124 = vld [vmem:[%s112 + $0xc0] sm:$0xf]
  %v125 = vld [vmem:[%s112 + $0xd0] sm:$0xf]
  %v126 = vld [vmem:[%s112 + $0xe0] sm:$0xf]
  %v127 = vld [vmem:[%s112 + $0xf0] sm:$0xf]
  %v128 = vld [vmem:[%s112 + $0x100] sm:$0xf]
  %v129 = vld [vmem:[%s112 + $0x4] sm:$0x1]
  %v130 = vld [vmem:[%s112 + $0x14] sm:$0x1]
  %v131 = vld [vmem:[%s112 + $0x24] sm:$0x1]
  %v132 = vld [vmem:[%s112 + $0x34] sm:$0x1]
  %v133 = vld [vmem:[%s112 + $0x44] sm:$0x1]
  %v134 = vld [vmem:[%s112 + $0x54] sm:$0x1]
  %v135 = vld [vmem:[%s112 + $0x64] sm:$0x1]
  %v136 = vld [vmem:[%s112 + $0x74] sm:$0x1]
  %v137 = vld [vmem:[%s112 + $0x94] sm:$0x1]
  %v138 = vld [vmem:[%s112 + $0xa4] sm:$0x1]
  %v139 = vld [vmem:[%s112 + $0xb4] sm:$0x1]
  %v140 = vld [vmem:[%s112 + $0xc4] sm:$0x1]
  %v141 = vld [vmem:[%s112 + $0xd4] sm:$0x1]
  %v142 = vld [vmem:[%s112 + $0xe4] sm:$0x1]
  %v143 = vld [vmem:[%s112 + $0xf4] sm:$0x1]
  %v144 = vld [vmem:[%s112 + $0x104] sm:$0x1]
  %v177 = vunpack.c.l.b16 %v14
  %v178 = vunpack.c.l.b16 %v30
  %v179 = vunpack.c.l.b16 %v15
  %v180 = vunpack.c.l.b16 %v31
  %v181 = vunpack.c.l.b16 %v16
  %v182 = vunpack.c.l.b16 %v32
  %v183 = vunpack.c.l.b16 %v17
  %v184 = vunpack.c.l.b16 %v33
  %v185 = vunpack.c.l.b16 %v18
  %v186 = vunpack.c.l.b16 %v34
  %v187 = vunpack.c.l.b16 %v19
  %v188 = vunpack.c.l.b16 %v35
  %v189 = vunpack.c.l.b16 %v20
  %v190 = vunpack.c.l.b16 %v36
  %v191 = vunpack.c.l.b16 %v21
  %v192 = vunpack.c.l.b16 %v37
  %v193 = vunpack.c.l.b16 %v22
  %v194 = vunpack.c.l.b16 %v38
  %v195 = vunpack.c.l.b16 %v23
  %v196 = vunpack.c.l.b16 %v39
  %v197 = vunpack.c.l.b16 %v24
  %v198 = vunpack.c.l.b16 %v40
  %v199 = vunpack.c.l.b16 %v25
  %v200 = vunpack.c.l.b16 %v41
  %v201 = vunpack.c.l.b16 %v26
  %v202 = vunpack.c.l.b16 %v42
  %v203 = vunpack.c.l.b16 %v27
  %v204 = vunpack.c.l.b16 %v43
  %v205 = vunpack.c.l.b16 %v28
  %v206 = vunpack.c.l.b16 %v44
  %v207 = vunpack.c.l.b16 %v29
  %v208 = vunpack.c.l.b16 %v45
  %v209 = vpack.c.b16 %v178, %v177
  %v210 = vpack.c.b16 %v180, %v179
  %v211 = vpack.c.b16 %v182, %v181
  %v212 = vpack.c.b16 %v184, %v183
  %v213 = vpack.c.b16 %v186, %v185
  %v214 = vpack.c.b16 %v188, %v187
  %v215 = vpack.c.b16 %v190, %v189
  %v216 = vpack.c.b16 %v192, %v191
  %v217 = vpack.c.b16 %v194, %v193
  %v218 = vpack.c.b16 %v196, %v195
  %v219 = vpack.c.b16 %v198, %v197
  %v220 = vpack.c.b16 %v200, %v199
  %v221 = vpack.c.b16 %v202, %v201
  %v222 = vpack.c.b16 %v204, %v203
  %v223 = vpack.c.b16 %v206, %v205
  %v224 = vpack.c.b16 %v208, %v207
  %v226 = vshrl.u32 %v209, 16
  %v228 = vshll.u32 %v209, 16
  %v230 = vrot.slane %v228, 1
  %v231 = vor.u32 %v226, %v230
  %v233 = vshrl.u32 %v210, 16
  %v235 = vshll.u32 %v210, 16
  %v237 = vrot.slane %v235, 1
  %v238 = vor.u32 %v233, %v237
  %v240 = vshrl.u32 %v211, 16
  %v242 = vshll.u32 %v211, 16
  %v244 = vrot.slane %v242, 1
  %v245 = vor.u32 %v240, %v244
  %v247 = vshrl.u32 %v212, 16
  %v249 = vshll.u32 %v212, 16
  %v251 = vrot.slane %v249, 1
  %v252 = vor.u32 %v247, %v251
  %v254 = vshrl.u32 %v213, 16
  %v256 = vshll.u32 %v213, 16
  %v258 = vrot.slane %v256, 1
  %v259 = vor.u32 %v254, %v258
  %v261 = vshrl.u32 %v214, 16
  %v263 = vshll.u32 %v214, 16
  %v265 = vrot.slane %v263, 1
  %v266 = vor.u32 %v261, %v265
  %v268 = vshrl.u32 %v215, 16
  %v270 = vshll.u32 %v215, 16
  %v272 = vrot.slane %v270, 1
  %v273 = vor.u32 %v268, %v272
  %v275 = vshrl.u32 %v216, 16
  %v277 = vshll.u32 %v216, 16
  %v279 = vrot.slane %v277, 1
  %v280 = vor.u32 %v275, %v279
  %v282 = vshrl.u32 %v217, 16
  %v284 = vshll.u32 %v217, 16
  %v286 = vrot.slane %v284, 1
  %v287 = vor.u32 %v282, %v286
  %v289 = vshrl.u32 %v218, 16
  %v291 = vshll.u32 %v218, 16
  %v293 = vrot.slane %v291, 1
  %v294 = vor.u32 %v289, %v293
  %v296 = vshrl.u32 %v219, 16
  %v298 = vshll.u32 %v219, 16
  %v300 = vrot.slane %v298, 1
  %v301 = vor.u32 %v296, %v300
  %v303 = vshrl.u32 %v220, 16
  %v305 = vshll.u32 %v220, 16
  %v307 = vrot.slane %v305, 1
  %v308 = vor.u32 %v303, %v307
  %v310 = vshrl.u32 %v221, 16
  %v312 = vshll.u32 %v221, 16
  %v314 = vrot.slane %v312, 1
  %v315 = vor.u32 %v310, %v314
  %v317 = vshrl.u32 %v222, 16
  %v319 = vshll.u32 %v222, 16
  %v321 = vrot.slane %v319, 1
  %v322 = vor.u32 %v317, %v321
  %v324 = vshrl.u32 %v223, 16
  %v326 = vshll.u32 %v223, 16
  %v328 = vrot.slane %v326, 1
  %v329 = vor.u32 %v324, %v328
  %v331 = vshrl.u32 %v224, 16
  %v333 = vshll.u32 %v224, 16
  %v335 = vrot.slane %v333, 1
  %v336 = vor.u32 %v331, %v335
  %337 = vrot.lane.b32.xlu0 %v231, 16
  %v338 = vpop.permute.xlu0 %337
  %339 = vrot.lane.b32.xlu0 %v238, 16
  %v340 = vpop.permute.xlu0 %339
  %341 = vrot.lane.b32.xlu0 %v245, 16
  %v342 = vpop.permute.xlu0 %341
  %343 = vrot.lane.b32.xlu0 %v252, 16
  %v344 = vpop.permute.xlu0 %343
  %345 = vrot.lane.b32.xlu0 %v259, 16
  %v346 = vpop.permute.xlu0 %345
  %347 = vrot.lane.b32.xlu0 %v266, 16
  %v348 = vpop.permute.xlu0 %347
  %349 = vrot.lane.b32.xlu0 %v273, 16
  %v350 = vpop.permute.xlu0 %349
  %351 = vrot.lane.b32.xlu0 %v280, 16
  %v352 = vpop.permute.xlu0 %351
  %353 = vrot.lane.b32.xlu0 %v287, 16
  %v354 = vpop.permute.xlu0 %353
  %355 = vrot.lane.b32.xlu0 %v294, 16
  %v356 = vpop.permute.xlu0 %355
  %357 = vrot.lane.b32.xlu0 %v301, 16
  %v358 = vpop.permute.xlu0 %357
  %359 = vrot.lane.b32.xlu0 %v308, 16
  %v360 = vpop.permute.xlu0 %359
  %361 = vrot.lane.b32.xlu0 %v315, 16
  %v362 = vpop.permute.xlu0 %361
  %363 = vrot.lane.b32.xlu0 %v322, 16
  %v364 = vpop.permute.xlu0 %363
  %365 = vrot.lane.b32.xlu0 %v329, 16
  %v366 = vpop.permute.xlu0 %365
  %367 = vrot.lane.b32.xlu0 %v336, 16
  %v368 = vpop.permute.xlu0 %367
  %v385 = vunpack.c.l.b16 %v47
  %v386 = vunpack.c.l.b16 %v48
  %v387 = vunpack.c.l.b16 %v49
  %v388 = vunpack.c.l.b16 %v50
  %v389 = vunpack.c.l.b16 %v51
  %v390 = vunpack.c.l.b16 %v52
  %v391 = vunpack.c.l.b16 %v53
  %v392 = vunpack.c.l.b16 %v54
  %v393 = vunpack.c.l.b16 %v55
  %v394 = vunpack.c.l.b16 %v56
  %v395 = vunpack.c.l.b16 %v57
  %v396 = vunpack.c.l.b16 %v58
  %v397 = vunpack.c.l.b16 %v59
  %v398 = vunpack.c.l.b16 %v60
  %v399 = vunpack.c.l.b16 %v61
  %v400 = vunpack.c.l.b16 %v62
  %v401 = vpack.c.b16 %v385, %v385
  %v402 = vpack.c.b16 %v386, %v386
  %v403 = vpack.c.b16 %v387, %v387
  %v404 = vpack.c.b16 %v388, %v388
  %v405 = vpack.c.b16 %v389, %v389
  %v406 = vpack.c.b16 %v390, %v390
  %v407 = vpack.c.b16 %v391, %v391
  %v408 = vpack.c.b16 %v392, %v392
  %v409 = vpack.c.b16 %v393, %v393
  %v410 = vpack.c.b16 %v394, %v394
  %v411 = vpack.c.b16 %v395, %v395
  %v412 = vpack.c.b16 %v396, %v396
  %v413 = vpack.c.b16 %v397, %v397
  %v414 = vpack.c.b16 %v398, %v398
  %v415 = vpack.c.b16 %v399, %v399
  %v416 = vpack.c.b16 %v400, %v400
  %417 = vrot.lane.b32.xlu0 %v401, 32
  %v418 = vpop.permute.xlu0 %417
  %419 = vrot.lane.b32.xlu0 %v402, 32
  %v420 = vpop.permute.xlu0 %419
  %421 = vrot.lane.b32.xlu0 %v403, 32
  %v422 = vpop.permute.xlu0 %421
  %423 = vrot.lane.b32.xlu0 %v404, 32
  %v424 = vpop.permute.xlu0 %423
  %425 = vrot.lane.b32.xlu0 %v405, 32
  %v426 = vpop.permute.xlu0 %425
  %427 = vrot.lane.b32.xlu0 %v406, 32
  %v428 = vpop.permute.xlu0 %427
  %429 = vrot.lane.b32.xlu0 %v407, 32
  %v430 = vpop.permute.xlu0 %429
  %431 = vrot.lane.b32.xlu0 %v408, 32
  %v432 = vpop.permute.xlu0 %431
  %433 = vrot.lane.b32.xlu0 %v409, 32
  %v434 = vpop.permute.xlu0 %433
  %435 = vrot.lane.b32.xlu0 %v410, 32
  %v436 = vpop.permute.xlu0 %435
  %437 = vrot.lane.b32.xlu0 %v411, 32
  %v438 = vpop.permute.xlu0 %437
  %439 = vrot.lane.b32.xlu0 %v412, 32
  %v440 = vpop.permute.xlu0 %439
  %441 = vrot.lane.b32.xlu0 %v413, 32
  %v442 = vpop.permute.xlu0 %441
  %443 = vrot.lane.b32.xlu0 %v414, 32
  %v444 = vpop.permute.xlu0 %443
  %445 = vrot.lane.b32.xlu0 %v415, 32
  %v446 = vpop.permute.xlu0 %445
  %447 = vrot.lane.b32.xlu0 %v416, 32
  %v448 = vpop.permute.xlu0 %447
  %v465 = vunpack.c.l.b16 %v63
  %v466 = vunpack.c.l.b16 %v64
  %v467 = vunpack.c.l.b16 %v65
  %v468 = vunpack.c.l.b16 %v66
  %v469 = vunpack.c.l.b16 %v67
  %v470 = vunpack.c.l.b16 %v68
  %v471 = vunpack.c.l.b16 %v69
  %v472 = vunpack.c.l.b16 %v70
  %v473 = vunpack.c.l.b16 %v71
  %v474 = vunpack.c.l.b16 %v72
  %v475 = vunpack.c.l.b16 %v73
  %v476 = vunpack.c.l.b16 %v74
  %v477 = vunpack.c.l.b16 %v75
  %v478 = vunpack.c.l.b16 %v76
  %v479 = vunpack.c.l.b16 %v77
  %v480 = vunpack.c.l.b16 %v78
  %v481 = vpack.c.b16 %v465, %v385
  %v482 = vpack.c.b16 %v466, %v386
  %v483 = vpack.c.b16 %v467, %v387
  %v484 = vpack.c.b16 %v468, %v388
  %v485 = vpack.c.b16 %v469, %v389
  %v486 = vpack.c.b16 %v470, %v390
  %v487 = vpack.c.b16 %v471, %v391
  %v488 = vpack.c.b16 %v472, %v392
  %v489 = vpack.c.b16 %v473, %v393
  %v490 = vpack.c.b16 %v474, %v394
  %v491 = vpack.c.b16 %v475, %v395
  %v492 = vpack.c.b16 %v476, %v396
  %v493 = vpack.c.b16 %v477, %v397
  %v494 = vpack.c.b16 %v478, %v398
  %v495 = vpack.c.b16 %v479, %v399
  %v496 = vpack.c.b16 %v480, %v400
  %v498 = vshrl.u32 %v481, 16
  %v500 = vshll.u32 %v481, 16
  %v502 = vrot.slane %v500, 1
  %v503 = vor.u32 %v498, %v502
  %v505 = vshrl.u32 %v482, 16
  %v507 = vshll.u32 %v482, 16
  %v509 = vrot.slane %v507, 1
  %v510 = vor.u32 %v505, %v509
  %v512 = vshrl.u32 %v483, 16
  %v514 = vshll.u32 %v483, 16
  %v516 = vrot.slane %v514, 1
  %v517 = vor.u32 %v512, %v516
  %v519 = vshrl.u32 %v484, 16
  %v521 = vshll.u32 %v484, 16
  %v523 = vrot.slane %v521, 1
  %v524 = vor.u32 %v519, %v523
  %v526 = vshrl.u32 %v485, 16
  %v528 = vshll.u32 %v485, 16
  %v530 = vrot.slane %v528, 1
  %v531 = vor.u32 %v526, %v530
  %v533 = vshrl.u32 %v486, 16
  %v535 = vshll.u32 %v486, 16
  %v537 = vrot.slane %v535, 1
  %v538 = vor.u32 %v533, %v537
  %v540 = vshrl.u32 %v487, 16
  %v542 = vshll.u32 %v487, 16
  %v544 = vrot.slane %v542, 1
  %v545 = vor.u32 %v540, %v544
  %v547 = vshrl.u32 %v488, 16
  %v549 = vshll.u32 %v488, 16
  %v551 = vrot.slane %v549, 1
  %v552 = vor.u32 %v547, %v551
  %v554 = vshrl.u32 %v489, 16
  %v556 = vshll.u32 %v489, 16
  %v558 = vrot.slane %v556, 1
  %v559 = vor.u32 %v554, %v558
  %v561 = vshrl.u32 %v490, 16
  %v563 = vshll.u32 %v490, 16
  %v565 = vrot.slane %v563, 1
  %v566 = vor.u32 %v561, %v565
  %v568 = vshrl.u32 %v491, 16
  %v570 = vshll.u32 %v491, 16
  %v572 = vrot.slane %v570, 1
  %v573 = vor.u32 %v568, %v572
  %v575 = vshrl.u32 %v492, 16
  %v577 = vshll.u32 %v492, 16
  %v579 = vrot.slane %v577, 1
  %v580 = vor.u32 %v575, %v579
  %v582 = vshrl.u32 %v493, 16
  %v584 = vshll.u32 %v493, 16
  %v586 = vrot.slane %v584, 1
  %v587 = vor.u32 %v582, %v586
  %v589 = vshrl.u32 %v494, 16
  %v591 = vshll.u32 %v494, 16
  %v593 = vrot.slane %v591, 1
  %v594 = vor.u32 %v589, %v593
  %v596 = vshrl.u32 %v495, 16
  %v598 = vshll.u32 %v495, 16
  %v600 = vrot.slane %v598, 1
  %v601 = vor.u32 %v596, %v600
  %v603 = vshrl.u32 %v496, 16
  %v605 = vshll.u32 %v496, 16
  %v607 = vrot.slane %v605, 1
  %v608 = vor.u32 %v603, %v607
  %609 = vrot.lane.b32.xlu0 %v503, 48
  %v610 = vpop.permute.xlu0 %609
  %611 = vrot.lane.b32.xlu0 %v510, 48
  %v612 = vpop.permute.xlu0 %611
  %613 = vrot.lane.b32.xlu0 %v517, 48
  %v614 = vpop.permute.xlu0 %613
  %615 = vrot.lane.b32.xlu0 %v524, 48
  %v616 = vpop.permute.xlu0 %615
  %617 = vrot.lane.b32.xlu0 %v531, 48
  %v618 = vpop.permute.xlu0 %617
  %619 = vrot.lane.b32.xlu0 %v538, 48
  %v620 = vpop.permute.xlu0 %619
  %621 = vrot.lane.b32.xlu0 %v545, 48
  %v622 = vpop.permute.xlu0 %621
  %623 = vrot.lane.b32.xlu0 %v552, 48
  %v624 = vpop.permute.xlu0 %623
  %625 = vrot.lane.b32.xlu0 %v559, 48
  %v626 = vpop.permute.xlu0 %625
  %627 = vrot.lane.b32.xlu0 %v566, 48
  %v628 = vpop.permute.xlu0 %627
  %629 = vrot.lane.b32.xlu0 %v573, 48
  %v630 = vpop.permute.xlu0 %629
  %631 = vrot.lane.b32.xlu0 %v580, 48
  %v632 = vpop.permute.xlu0 %631
  %633 = vrot.lane.b32.xlu0 %v587, 48
  %v634 = vpop.permute.xlu0 %633
  %635 = vrot.lane.b32.xlu0 %v594, 48
  %v636 = vpop.permute.xlu0 %635
  %637 = vrot.lane.b32.xlu0 %v601, 48
  %v638 = vpop.permute.xlu0 %637
  %639 = vrot.lane.b32.xlu0 %v608, 48
  %v640 = vpop.permute.xlu0 %639
  %v657 = vunpack.c.l.b16 %v80
  %v658 = vunpack.c.l.b16 %v81
  %v659 = vunpack.c.l.b16 %v82
  %v660 = vunpack.c.l.b16 %v83
  %v661 = vunpack.c.l.b16 %v84
  %v662 = vunpack.c.l.b16 %v85
  %v663 = vunpack.c.l.b16 %v86
  %v664 = vunpack.c.l.b16 %v87
  %v665 = vunpack.c.l.b16 %v88
  %v666 = vunpack.c.l.b16 %v89
  %v667 = vunpack.c.l.b16 %v90
  %v668 = vunpack.c.l.b16 %v91
  %v669 = vunpack.c.l.b16 %v92
  %v670 = vunpack.c.l.b16 %v93
  %v671 = vunpack.c.l.b16 %v94
  %v672 = vunpack.c.l.b16 %v95
  %v673 = vpack.c.b16 %v657, %v657
  %v674 = vpack.c.b16 %v658, %v658
  %v675 = vpack.c.b16 %v659, %v659
  %v676 = vpack.c.b16 %v660, %v660
  %v677 = vpack.c.b16 %v661, %v661
  %v678 = vpack.c.b16 %v662, %v662
  %v679 = vpack.c.b16 %v663, %v663
  %v680 = vpack.c.b16 %v664, %v664
  %v681 = vpack.c.b16 %v665, %v665
  %v682 = vpack.c.b16 %v666, %v666
  %v683 = vpack.c.b16 %v667, %v667
  %v684 = vpack.c.b16 %v668, %v668
  %v685 = vpack.c.b16 %v669, %v669
  %v686 = vpack.c.b16 %v670, %v670
  %v687 = vpack.c.b16 %v671, %v671
  %v688 = vpack.c.b16 %v672, %v672
  %689 = vrot.lane.b32.xlu0 %v673, 64
  %v690 = vpop.permute.xlu0 %689
  %691 = vrot.lane.b32.xlu0 %v674, 64
  %v692 = vpop.permute.xlu0 %691
  %693 = vrot.lane.b32.xlu0 %v675, 64
  %v694 = vpop.permute.xlu0 %693
  %695 = vrot.lane.b32.xlu0 %v676, 64
  %v696 = vpop.permute.xlu0 %695
  %697 = vrot.lane.b32.xlu0 %v677, 64
  %v698 = vpop.permute.xlu0 %697
  %699 = vrot.lane.b32.xlu0 %v678, 64
  %v700 = vpop.permute.xlu0 %699
  %701 = vrot.lane.b32.xlu0 %v679, 64
  %v702 = vpop.permute.xlu0 %701
  %703 = vrot.lane.b32.xlu0 %v680, 64
  %v704 = vpop.permute.xlu0 %703
  %705 = vrot.lane.b32.xlu0 %v681, 64
  %v706 = vpop.permute.xlu0 %705
  %707 = vrot.lane.b32.xlu0 %v682, 64
  %v708 = vpop.permute.xlu0 %707
  %709 = vrot.lane.b32.xlu0 %v683, 64
  %v710 = vpop.permute.xlu0 %709
  %711 = vrot.lane.b32.xlu0 %v684, 64
  %v712 = vpop.permute.xlu0 %711
  %713 = vrot.lane.b32.xlu0 %v685, 64
  %v714 = vpop.permute.xlu0 %713
  %715 = vrot.lane.b32.xlu0 %v686, 64
  %v716 = vpop.permute.xlu0 %715
  %717 = vrot.lane.b32.xlu0 %v687, 64
  %v718 = vpop.permute.xlu0 %717
  %719 = vrot.lane.b32.xlu0 %v688, 64
  %v720 = vpop.permute.xlu0 %719
  %v737 = vunpack.c.l.b16 %v96
  %v738 = vunpack.c.l.b16 %v97
  %v739 = vunpack.c.l.b16 %v98
  %v740 = vunpack.c.l.b16 %v99
  %v741 = vunpack.c.l.b16 %v100
  %v742 = vunpack.c.l.b16 %v101
  %v743 = vunpack.c.l.b16 %v102
  %v744 = vunpack.c.l.b16 %v103
  %v745 = vunpack.c.l.b16 %v104
  %v746 = vunpack.c.l.b16 %v105
  %v747 = vunpack.c.l.b16 %v106
  %v748 = vunpack.c.l.b16 %v107
  %v749 = vunpack.c.l.b16 %v108
  %v750 = vunpack.c.l.b16 %v109
  %v751 = vunpack.c.l.b16 %v110
  %v752 = vunpack.c.l.b16 %v111
  %v753 = vpack.c.b16 %v737, %v657
  %v754 = vpack.c.b16 %v738, %v658
  %v755 = vpack.c.b16 %v739, %v659
  %v756 = vpack.c.b16 %v740, %v660
  %v757 = vpack.c.b16 %v741, %v661
  %v758 = vpack.c.b16 %v742, %v662
  %v759 = vpack.c.b16 %v743, %v663
  %v760 = vpack.c.b16 %v744, %v664
  %v761 = vpack.c.b16 %v745, %v665
  %v762 = vpack.c.b16 %v746, %v666
  %v763 = vpack.c.b16 %v747, %v667
  %v764 = vpack.c.b16 %v748, %v668
  %v765 = vpack.c.b16 %v749, %v669
  %v766 = vpack.c.b16 %v750, %v670
  %v767 = vpack.c.b16 %v751, %v671
  %v768 = vpack.c.b16 %v752, %v672
  %v770 = vshrl.u32 %v753, 16
  %v772 = vshll.u32 %v753, 16
  %v774 = vrot.slane %v772, 1
  %v775 = vor.u32 %v770, %v774
  %v777 = vshrl.u32 %v754, 16
  %v779 = vshll.u32 %v754, 16
  %v781 = vrot.slane %v779, 1
  %v782 = vor.u32 %v777, %v781
  %v784 = vshrl.u32 %v755, 16
  %v786 = vshll.u32 %v755, 16
  %v788 = vrot.slane %v786, 1
  %v789 = vor.u32 %v784, %v788
  %v791 = vshrl.u32 %v756, 16
  %v793 = vshll.u32 %v756, 16
  %v795 = vrot.slane %v793, 1
  %v796 = vor.u32 %v791, %v795
  %v798 = vshrl.u32 %v757, 16
  %v800 = vshll.u32 %v757, 16
  %v802 = vrot.slane %v800, 1
  %v803 = vor.u32 %v798, %v802
  %v805 = vshrl.u32 %v758, 16
  %v807 = vshll.u32 %v758, 16
  %v809 = vrot.slane %v807, 1
  %v810 = vor.u32 %v805, %v809
  %v812 = vshrl.u32 %v759, 16
  %v814 = vshll.u32 %v759, 16
  %v816 = vrot.slane %v814, 1
  %v817 = vor.u32 %v812, %v816
  %v819 = vshrl.u32 %v760, 16
  %v821 = vshll.u32 %v760, 16
  %v823 = vrot.slane %v821, 1
  %v824 = vor.u32 %v819, %v823
  %v826 = vshrl.u32 %v761, 16
  %v828 = vshll.u32 %v761, 16
  %v830 = vrot.slane %v828, 1
  %v831 = vor.u32 %v826, %v830
  %v833 = vshrl.u32 %v762, 16
  %v835 = vshll.u32 %v762, 16
  %v837 = vrot.slane %v835, 1
  %v838 = vor.u32 %v833, %v837
  %v840 = vshrl.u32 %v763, 16
  %v842 = vshll.u32 %v763, 16
  %v844 = vrot.slane %v842, 1
  %v845 = vor.u32 %v840, %v844
  %v847 = vshrl.u32 %v764, 16
  %v849 = vshll.u32 %v764, 16
  %v851 = vrot.slane %v849, 1
  %v852 = vor.u32 %v847, %v851
  %v854 = vshrl.u32 %v765, 16
  %v856 = vshll.u32 %v765, 16
  %v858 = vrot.slane %v856, 1
  %v859 = vor.u32 %v854, %v858
  %v861 = vshrl.u32 %v766, 16
  %v863 = vshll.u32 %v766, 16
  %v865 = vrot.slane %v863, 1
  %v866 = vor.u32 %v861, %v865
  %v868 = vshrl.u32 %v767, 16
  %v870 = vshll.u32 %v767, 16
  %v872 = vrot.slane %v870, 1
  %v873 = vor.u32 %v868, %v872
  %v875 = vshrl.u32 %v768, 16
  %v877 = vshll.u32 %v768, 16
  %v879 = vrot.slane %v877, 1
  %v880 = vor.u32 %v875, %v879
  %881 = vrot.lane.b32.xlu0 %v775, 80
  %v882 = vpop.permute.xlu0 %881
  %883 = vrot.lane.b32.xlu0 %v782, 80
  %v884 = vpop.permute.xlu0 %883
  %885 = vrot.lane.b32.xlu0 %v789, 80
  %v886 = vpop.permute.xlu0 %885
  %887 = vrot.lane.b32.xlu0 %v796, 80
  %v888 = vpop.permute.xlu0 %887
  %889 = vrot.lane.b32.xlu0 %v803, 80
  %v890 = vpop.permute.xlu0 %889
  %891 = vrot.lane.b32.xlu0 %v810, 80
  %v892 = vpop.permute.xlu0 %891
  %893 = vrot.lane.b32.xlu0 %v817, 80
  %v894 = vpop.permute.xlu0 %893
  %895 = vrot.lane.b32.xlu0 %v824, 80
  %v896 = vpop.permute.xlu0 %895
  %897 = vrot.lane.b32.xlu0 %v831, 80
  %v898 = vpop.permute.xlu0 %897
  %899 = vrot.lane.b32.xlu0 %v838, 80
  %v900 = vpop.permute.xlu0 %899
  %901 = vrot.lane.b32.xlu0 %v845, 80
  %v902 = vpop.permute.xlu0 %901
  %903 = vrot.lane.b32.xlu0 %v852, 80
  %v904 = vpop.permute.xlu0 %903
  %905 = vrot.lane.b32.xlu0 %v859, 80
  %v906 = vpop.permute.xlu0 %905
  %907 = vrot.lane.b32.xlu0 %v866, 80
  %v908 = vpop.permute.xlu0 %907
  %909 = vrot.lane.b32.xlu0 %v873, 80
  %v910 = vpop.permute.xlu0 %909
  %911 = vrot.lane.b32.xlu0 %v880, 80
  %v912 = vpop.permute.xlu0 %911
  %v929 = vunpack.c.l.b16 %v113
  %v930 = vunpack.c.l.b16 %v114
  %v931 = vunpack.c.l.b16 %v115
  %v932 = vunpack.c.l.b16 %v116
  %v933 = vunpack.c.l.b16 %v117
  %v934 = vunpack.c.l.b16 %v118
  %v935 = vunpack.c.l.b16 %v119
  %v936 = vunpack.c.l.b16 %v120
  %v937 = vunpack.c.l.b16 %v121
  %v938 = vunpack.c.l.b16 %v122
  %v939 = vunpack.c.l.b16 %v123
  %v940 = vunpack.c.l.b16 %v124
  %v941 = vunpack.c.l.b16 %v125
  %v942 = vunpack.c.l.b16 %v126
  %v943 = vunpack.c.l.b16 %v127
  %v944 = vunpack.c.l.b16 %v128
  %v945 = vpack.c.b16 %v929, %v929
  %v946 = vpack.c.b16 %v930, %v930
  %v947 = vpack.c.b16 %v931, %v931
  %v948 = vpack.c.b16 %v932, %v932
  %v949 = vpack.c.b16 %v933, %v933
  %v950 = vpack.c.b16 %v934, %v934
  %v951 = vpack.c.b16 %v935, %v935
  %v952 = vpack.c.b16 %v936, %v936
  %v953 = vpack.c.b16 %v937, %v937
  %v954 = vpack.c.b16 %v938, %v938
  %v955 = vpack.c.b16 %v939, %v939
  %v956 = vpack.c.b16 %v940, %v940
  %v957 = vpack.c.b16 %v941, %v941
  %v958 = vpack.c.b16 %v942, %v942
  %v959 = vpack.c.b16 %v943, %v943
  %v960 = vpack.c.b16 %v944, %v944
  %961 = vrot.lane.b32.xlu0 %v945, 96
  %v962 = vpop.permute.xlu0 %961
  %963 = vrot.lane.b32.xlu0 %v946, 96
  %v964 = vpop.permute.xlu0 %963
  %965 = vrot.lane.b32.xlu0 %v947, 96
  %v966 = vpop.permute.xlu0 %965
  %967 = vrot.lane.b32.xlu0 %v948, 96
  %v968 = vpop.permute.xlu0 %967
  %969 = vrot.lane.b32.xlu0 %v949, 96
  %v970 = vpop.permute.xlu0 %969
  %971 = vrot.lane.b32.xlu0 %v950, 96
  %v972 = vpop.permute.xlu0 %971
  %973 = vrot.lane.b32.xlu0 %v951, 96
  %v974 = vpop.permute.xlu0 %973
  %975 = vrot.lane.b32.xlu0 %v952, 96
  %v976 = vpop.permute.xlu0 %975
  %977 = vrot.lane.b32.xlu0 %v953, 96
  %v978 = vpop.permute.xlu0 %977
  %979 = vrot.lane.b32.xlu0 %v954, 96
  %v980 = vpop.permute.xlu0 %979
  %981 = vrot.lane.b32.xlu0 %v955, 96
  %v982 = vpop.permute.xlu0 %981
  %983 = vrot.lane.b32.xlu0 %v956, 96
  %v984 = vpop.permute.xlu0 %983
  %985 = vrot.lane.b32.xlu0 %v957, 96
  %v986 = vpop.permute.xlu0 %985
  %987 = vrot.lane.b32.xlu0 %v958, 96
  %v988 = vpop.permute.xlu0 %987
  %989 = vrot.lane.b32.xlu0 %v959, 96
  %v990 = vpop.permute.xlu0 %989
  %991 = vrot.lane.b32.xlu0 %v960, 96
  %v992 = vpop.permute.xlu0 %991
  %v1009 = vunpack.c.l.b16 %v129
  %v1010 = vunpack.c.l.b16 %v130
  %v1011 = vunpack.c.l.b16 %v131
  %v1012 = vunpack.c.l.b16 %v132
  %v1013 = vunpack.c.l.b16 %v133
  %v1014 = vunpack.c.l.b16 %v134
  %v1015 = vunpack.c.l.b16 %v135
  %v1016 = vunpack.c.l.b16 %v136
  %v1017 = vunpack.c.l.b16 %v137
  %v1018 = vunpack.c.l.b16 %v138
  %v1019 = vunpack.c.l.b16 %v139
  %v1020 = vunpack.c.l.b16 %v140
  %v1021 = vunpack.c.l.b16 %v141
  %v1022 = vunpack.c.l.b16 %v142
  %v1023 = vunpack.c.l.b16 %v143
  %v1024 = vunpack.c.l.b16 %v144
  %v1025 = vpack.c.b16 %v1009, %v929
  %v1026 = vpack.c.b16 %v1010, %v930
  %v1027 = vpack.c.b16 %v1011, %v931
  %v1028 = vpack.c.b16 %v1012, %v932
  %v1029 = vpack.c.b16 %v1013, %v933
  %v1030 = vpack.c.b16 %v1014, %v934
  %v1031 = vpack.c.b16 %v1015, %v935
  %v1032 = vpack.c.b16 %v1016, %v936
  %v1033 = vpack.c.b16 %v1017, %v937
  %v1034 = vpack.c.b16 %v1018, %v938
  %v1035 = vpack.c.b16 %v1019, %v939
  %v1036 = vpack.c.b16 %v1020, %v940
  %v1037 = vpack.c.b16 %v1021, %v941
  %v1038 = vpack.c.b16 %v1022, %v942
  %v1039 = vpack.c.b16 %v1023, %v943
  %v1040 = vpack.c.b16 %v1024, %v944
  %v1042 = vshrl.u32 %v1025, 16
  %v1044 = vshll.u32 %v1025, 16
  %v1046 = vrot.slane %v1044, 1
  %v1047 = vor.u32 %v1042, %v1046
  %v1049 = vshrl.u32 %v1026, 16
  %v1051 = vshll.u32 %v1026, 16
  %v1053 = vrot.slane %v1051, 1
  %v1054 = vor.u32 %v1049, %v1053
  %v1056 = vshrl.u32 %v1027, 16
  %v1058 = vshll.u32 %v1027, 16
  %v1060 = vrot.slane %v1058, 1
  %v1061 = vor.u32 %v1056, %v1060
  %v1063 = vshrl.u32 %v1028, 16
  %v1065 = vshll.u32 %v1028, 16
  %v1067 = vrot.slane %v1065, 1
  %v1068 = vor.u32 %v1063, %v1067
  %v1070 = vshrl.u32 %v1029, 16
  %v1072 = vshll.u32 %v1029, 16
  %v1074 = vrot.slane %v1072, 1
  %v1075 = vor.u32 %v1070, %v1074
  %v1077 = vshrl.u32 %v1030, 16
  %v1079 = vshll.u32 %v1030, 16
  %v1081 = vrot.slane %v1079, 1
  %v1082 = vor.u32 %v1077, %v1081
  %v1084 = vshrl.u32 %v1031, 16
  %v1086 = vshll.u32 %v1031, 16
  %v1088 = vrot.slane %v1086, 1
  %v1089 = vor.u32 %v1084, %v1088
  %v1091 = vshrl.u32 %v1032, 16
  %v1093 = vshll.u32 %v1032, 16
  %v1095 = vrot.slane %v1093, 1
  %v1096 = vor.u32 %v1091, %v1095
  %v1098 = vshrl.u32 %v1033, 16
  %v1100 = vshll.u32 %v1033, 16
  %v1102 = vrot.slane %v1100, 1
  %v1103 = vor.u32 %v1098, %v1102
  %v1105 = vshrl.u32 %v1034, 16
  %v1107 = vshll.u32 %v1034, 16
  %v1109 = vrot.slane %v1107, 1
  %v1110 = vor.u32 %v1105, %v1109
  %v1112 = vshrl.u32 %v1035, 16
  %v1114 = vshll.u32 %v1035, 16
  %v1116 = vrot.slane %v1114, 1
  %v1117 = vor.u32 %v1112, %v1116
  %v1119 = vshrl.u32 %v1036, 16
  %v1121 = vshll.u32 %v1036, 16
  %v1123 = vrot.slane %v1121, 1
  %v1124 = vor.u32 %v1119, %v1123
  %v1126 = vshrl.u32 %v1037, 16
  %v1128 = vshll.u32 %v1037, 16
  %v1130 = vrot.slane %v1128, 1
  %v1131 = vor.u32 %v1126, %v1130
  %v1133 = vshrl.u32 %v1038, 16
  %v1135 = vshll.u32 %v1038, 16
  %v1137 = vrot.slane %v1135, 1
  %v1138 = vor.u32 %v1133, %v1137
  %v1140 = vshrl.u32 %v1039, 16
  %v1142 = vshll.u32 %v1039, 16
  %v1144 = vrot.slane %v1142, 1
  %v1145 = vor.u32 %v1140, %v1144
  %v1147 = vshrl.u32 %v1040, 16
  %v1149 = vshll.u32 %v1040, 16
  %v1151 = vrot.slane %v1149, 1
  %v1152 = vor.u32 %v1147, %v1151
  %1153 = vrot.lane.b32.xlu0 %v1047, 112
  %v1154 = vpop.permute.xlu0 %1153
  %1155 = vrot.lane.b32.xlu0 %v1054, 112
  %v1156 = vpop.permute.xlu0 %1155
  %1157 = vrot.lane.b32.xlu0 %v1061, 112
  %v1158 = vpop.permute.xlu0 %1157
  %1159 = vrot.lane.b32.xlu0 %v1068, 112
  %v1160 = vpop.permute.xlu0 %1159
  %1161 = vrot.lane.b32.xlu0 %v1075, 112
  %v1162 = vpop.permute.xlu0 %1161
  %1163 = vrot.lane.b32.xlu0 %v1082, 112
  %v1164 = vpop.permute.xlu0 %1163
  %1165 = vrot.lane.b32.xlu0 %v1089, 112
  %v1166 = vpop.permute.xlu0 %1165
  %1167 = vrot.lane.b32.xlu0 %v1096, 112
  %v1168 = vpop.permute.xlu0 %1167
  %1169 = vrot.lane.b32.xlu0 %v1103, 112
  %v1170 = vpop.permute.xlu0 %1169
  %1171 = vrot.lane.b32.xlu0 %v1110, 112
  %v1172 = vpop.permute.xlu0 %1171
  %1173 = vrot.lane.b32.xlu0 %v1117, 112
  %v1174 = vpop.permute.xlu0 %1173
  %1175 = vrot.lane.b32.xlu0 %v1124, 112
  %v1176 = vpop.permute.xlu0 %1175
  %1177 = vrot.lane.b32.xlu0 %v1131, 112
  %v1178 = vpop.permute.xlu0 %1177
  %1179 = vrot.lane.b32.xlu0 %v1138, 112
  %v1180 = vpop.permute.xlu0 %1179
  %1181 = vrot.lane.b32.xlu0 %v1145, 112
  %v1182 = vpop.permute.xlu0 %1181
  %1183 = vrot.lane.b32.xlu0 %v1152, 112
  %v1184 = vpop.permute.xlu0 %1183
  %vm1185 = vcmask 130048
  %v1188 = vsel %vm1185, %v14, %v338
  %v1191 = vsel %vm1185, %v15, %v340
  %v1194 = vsel %vm1185, %v16, %v342
  %v1197 = vsel %vm1185, %v17, %v344
  %v1200 = vsel %vm1185, %v18, %v346
  %v1203 = vsel %vm1185, %v19, %v348
  %v1206 = vsel %vm1185, %v20, %v350
  %v1209 = vsel %vm1185, %v21, %v352
  %v1212 = vsel %vm1185, %v22, %v354
  %v1215 = vsel %vm1185, %v23, %v356
  %v1218 = vsel %vm1185, %v24, %v358
  %v1221 = vsel %vm1185, %v25, %v360
  %v1224 = vsel %vm1185, %v26, %v362
  %v1227 = vsel %vm1185, %v27, %v364
  %v1230 = vsel %vm1185, %v28, %v366
  %v1233 = vsel %vm1185, %v29, %v368
  %vm1234 = vcmask 261120
  %v1236 = vsel %vm1234, %v1188, %v418
  %v1238 = vsel %vm1234, %v1191, %v420
  %v1240 = vsel %vm1234, %v1194, %v422
  %v1242 = vsel %vm1234, %v1197, %v424
  %v1244 = vsel %vm1234, %v1200, %v426
  %v1246 = vsel %vm1234, %v1203, %v428
  %v1248 = vsel %vm1234, %v1206, %v430
  %v1250 = vsel %vm1234, %v1209, %v432
  %v1252 = vsel %vm1234, %v1212, %v434
  %v1254 = vsel %vm1234, %v1215, %v436
  %v1256 = vsel %vm1234, %v1218, %v438
  %v1258 = vsel %vm1234, %v1221, %v440
  %v1260 = vsel %vm1234, %v1224, %v442
  %v1262 = vsel %vm1234, %v1227, %v444
  %v1264 = vsel %vm1234, %v1230, %v446
  %v1266 = vsel %vm1234, %v1233, %v448
  %vm1267 = vcmask 392192
  %v1269 = vsel %vm1267, %v1236, %v610
  %v1271 = vsel %vm1267, %v1238, %v612
  %v1273 = vsel %vm1267, %v1240, %v614
  %v1275 = vsel %vm1267, %v1242, %v616
  %v1277 = vsel %vm1267, %v1244, %v618
  %v1279 = vsel %vm1267, %v1246, %v620
  %v1281 = vsel %vm1267, %v1248, %v622
  %v1283 = vsel %vm1267, %v1250, %v624
  %v1285 = vsel %vm1267, %v1252, %v626
  %v1287 = vsel %vm1267, %v1254, %v628
  %v1289 = vsel %vm1267, %v1256, %v630
  %v1291 = vsel %vm1267, %v1258, %v632
  %v1293 = vsel %vm1267, %v1260, %v634
  %v1295 = vsel %vm1267, %v1262, %v636
  %v1297 = vsel %vm1267, %v1264, %v638
  %v1299 = vsel %vm1267, %v1266, %v640
  %vm1300 = vcmask 523264
  %v1302 = vsel %vm1300, %v1269, %v690
  %v1304 = vsel %vm1300, %v1271, %v692
  %v1306 = vsel %vm1300, %v1273, %v694
  %v1308 = vsel %vm1300, %v1275, %v696
  %v1310 = vsel %vm1300, %v1277, %v698
  %v1312 = vsel %vm1300, %v1279, %v700
  %v1314 = vsel %vm1300, %v1281, %v702
  %v1316 = vsel %vm1300, %v1283, %v704
  %v1318 = vsel %vm1300, %v1285, %v706
  %v1320 = vsel %vm1300, %v1287, %v708
  %v1322 = vsel %vm1300, %v1289, %v710
  %v1324 = vsel %vm1300, %v1291, %v712
  %v1326 = vsel %vm1300, %v1293, %v714
  %v1328 = vsel %vm1300, %v1295, %v716
  %v1330 = vsel %vm1300, %v1297, %v718
  %v1332 = vsel %vm1300, %v1299, %v720
  %vm1333 = vcmask 654336
  %v1335 = vsel %vm1333, %v1302, %v882
  %v1337 = vsel %vm1333, %v1304, %v884
  %v1339 = vsel %vm1333, %v1306, %v886
  %v1341 = vsel %vm1333, %v1308, %v888
  %v1343 = vsel %vm1333, %v1310, %v890
  %v1345 = vsel %vm1333, %v1312, %v892
  %v1347 = vsel %vm1333, %v1314, %v894
  %v1349 = vsel %vm1333, %v1316, %v896
  %v1351 = vsel %vm1333, %v1318, %v898
  %v1353 = vsel %vm1333, %v1320, %v900
  %v1355 = vsel %vm1333, %v1322, %v902
  %v1357 = vsel %vm1333, %v1324, %v904
  %v1359 = vsel %vm1333, %v1326, %v906
  %v1361 = vsel %vm1333, %v1328, %v908
  %v1363 = vsel %vm1333, %v1330, %v910
  %v1365 = vsel %vm1333, %v1332, %v912
  %vm1366 = vcmask 785408
  %v1368 = vsel %vm1366, %v1335, %v962
  %v1370 = vsel %vm1366, %v1337, %v964
  %v1372 = vsel %vm1366, %v1339, %v966
  %v1374 = vsel %vm1366, %v1341, %v968
  %v1376 = vsel %vm1366, %v1343, %v970
  %v1378 = vsel %vm1366, %v1345, %v972
  %v1380 = vsel %vm1366, %v1347, %v974
  %v1382 = vsel %vm1366, %v1349, %v976
  %v1384 = vsel %vm1366, %v1351, %v978
  %v1386 = vsel %vm1366, %v1353, %v980
  %v1388 = vsel %vm1366, %v1355, %v982
  %v1390 = vsel %vm1366, %v1357, %v984
  %v1392 = vsel %vm1366, %v1359, %v986
  %v1394 = vsel %vm1366, %v1361, %v988
  %v1396 = vsel %vm1366, %v1363, %v990
  %v1398 = vsel %vm1366, %v1365, %v992
  %vm1399 = vcmask 916480
  %v1401 = vsel %vm1399, %v1368, %v1154
  %v1403 = vsel %vm1399, %v1370, %v1156
  %v1405 = vsel %vm1399, %v1372, %v1158
  %v1407 = vsel %vm1399, %v1374, %v1160
  %v1409 = vsel %vm1399, %v1376, %v1162
  %v1411 = vsel %vm1399, %v1378, %v1164
  %v1413 = vsel %vm1399, %v1380, %v1166
  %v1415 = vsel %vm1399, %v1382, %v1168
  %v1417 = vsel %vm1399, %v1384, %v1170
  %v1419 = vsel %vm1399, %v1386, %v1172
  %v1421 = vsel %vm1399, %v1388, %v1174
  %v1423 = vsel %vm1399, %v1390, %v1176
  %v1425 = vsel %vm1399, %v1392, %v1178
  %v1427 = vsel %vm1399, %v1394, %v1180
  %v1429 = vsel %vm1399, %v1396, %v1182
  %v1431 = vsel %vm1399, %v1398, %v1184
  %v1432 = vld [vmem:[%s1] sm:$0xf]
  %v1433 = vld [vmem:[%s1 + $0x4] sm:$0xf]
  %v1434 = vld [vmem:[%s1 + $0x8] sm:$0xf]
  %v1435 = vld [vmem:[%s1 + $0xc] sm:$0xf]
  %v1436 = vld [vmem:[%s1 + $0x10] sm:$0xf]
  %v1437 = vld [vmem:[%s1 + $0x14] sm:$0xf]
  %v1438 = vld [vmem:[%s1 + $0x18] sm:$0xf]
  %v1439 = vld [vmem:[%s1 + $0x1c] sm:$0xf]
  %v1440 = vld [vmem:[%s1 + $0x20] sm:$0xf]
  %v1441 = vld [vmem:[%s1 + $0x24] sm:$0xf]
  %v1442 = vld [vmem:[%s1 + $0x28] sm:$0xf]
  %v1443 = vld [vmem:[%s1 + $0x2c] sm:$0xf]
  %v1444 = vld [vmem:[%s1 + $0x30] sm:$0xf]
  %v1445 = vld [vmem:[%s1 + $0x34] sm:$0xf]
  %v1446 = vld [vmem:[%s1 + $0x38] sm:$0xf]
  %v1447 = vld [vmem:[%s1 + $0x3c] sm:$0xf]
  %v1464 = vunpack.c.l.b16 %v1401
  %v1465 = vunpack.c.l.b16 %v1403
  %v1466 = vunpack.c.l.b16 %v1405
  %v1467 = vunpack.c.l.b16 %v1407
  %v1468 = vunpack.c.l.b16 %v1409
  %v1469 = vunpack.c.l.b16 %v1411
  %v1470 = vunpack.c.l.b16 %v1413
  %v1471 = vunpack.c.l.b16 %v1415
  %v1472 = vunpack.c.l.b16 %v1417
  %v1473 = vunpack.c.l.b16 %v1419
  %v1474 = vunpack.c.l.b16 %v1421
  %v1475 = vunpack.c.l.b16 %v1423
  %v1476 = vunpack.c.l.b16 %v1425
  %v1477 = vunpack.c.l.b16 %v1427
  %v1478 = vunpack.c.l.b16 %v1429
  %v1479 = vunpack.c.l.b16 %v1431
  %v1480 = vpack.c.b16 %v1465, %v1464
  %v1481 = vpack.c.b16 %v1467, %v1466
  %v1482 = vpack.c.b16 %v1469, %v1468
  %v1483 = vpack.c.b16 %v1471, %v1470
  %v1484 = vpack.c.b16 %v1473, %v1472
  %v1485 = vpack.c.b16 %v1475, %v1474
  %v1486 = vpack.c.b16 %v1477, %v1476
  %v1487 = vpack.c.b16 %v1479, %v1478
  %v1512 = vunpack.c.l.b16 %v1432
  %v1513 = vunpack.c.l.b16 %v1433
  %v1514 = vunpack.c.l.b16 %v1434
  %v1515 = vunpack.c.l.b16 %v1435
  %v1516 = vunpack.c.l.b16 %v1436
  %v1517 = vunpack.c.l.b16 %v1437
  %v1518 = vunpack.c.l.b16 %v1438
  %v1519 = vunpack.c.l.b16 %v1439
  %v1520 = vunpack.c.l.b16 %v1440
  %v1521 = vunpack.c.l.b16 %v1441
  %v1522 = vunpack.c.l.b16 %v1442
  %v1523 = vunpack.c.l.b16 %v1443
  %v1524 = vunpack.c.l.b16 %v1444
  %v1525 = vunpack.c.l.b16 %v1445
  %v1526 = vunpack.c.l.b16 %v1446
  %v1527 = vunpack.c.l.b16 %v1447
  %v1528 = vpack.c.b16 %v1513, %v1512
  %v1529 = vpack.c.b16 %v1515, %v1514
  %v1530 = vpack.c.b16 %v1517, %v1516
  %v1531 = vpack.c.b16 %v1519, %v1518
  %v1532 = vpack.c.b16 %v1521, %v1520
  %v1533 = vpack.c.b16 %v1523, %v1522
  %v1534 = vpack.c.b16 %v1525, %v1524
  %v1535 = vpack.c.b16 %v1527, %v1526
  %1544 = vmatprep.subr.bf16.mxu0 0
  %1545 = vmatpush1.bf16.msra.mxu0 %v1528
  %1546 = vmatprep.subr.bf16.mxu0 0
  %1547 = vmatpush1.bf16.msra.mxu0 %v1529
  %1548 = vmatprep.subr.bf16.mxu0 0
  %1549 = vmatpush1.bf16.msra.mxu0 %v1530
  %1550 = vmatprep.subr.bf16.mxu0 0
  %1551 = vmatpush1.bf16.msra.mxu0 %v1531
  %1552 = vmatprep.subr.bf16.mxu0 0
  %1553 = vmatpush1.bf16.msra.mxu0 %v1532
  %1554 = vmatprep.subr.bf16.mxu0 0
  %1555 = vmatpush1.bf16.msra.mxu0 %v1533
  %1556 = vmatprep.subr.bf16.mxu0 0
  %1557 = vmatpush1.bf16.msra.mxu0 %v1534
  %1558 = vmatprep.subr.bf16.mxu0 0
  %1559 = vmatpush1.bf16.msra.mxu0 %v1535
  %1560 = vmatprep.subr.bf16.mxu0 0
  %1561 = vmatpush1.bf16.msra.mxu0 0
  %1562 = vmatprep.subr.bf16.mxu0 0
  %1563 = vmatpush1.bf16.msra.mxu0 0
  %1564 = vmatprep.subr.bf16.mxu0 0
  %1565 = vmatpush1.bf16.msra.mxu0 0
  %1566 = vmatprep.subr.bf16.mxu0 0
  %1567 = vmatpush1.bf16.msra.mxu0 0
  %1568 = vmatprep.subr.bf16.mxu0 0
  %1569 = vmatpush1.bf16.msra.mxu0 0
  %1570 = vmatprep.subr.bf16.mxu0 0
  %1571 = vmatpush1.bf16.msra.mxu0 0
  %1572 = vmatprep.subr.bf16.mxu0 0
  %1573 = vmatpush1.bf16.msra.mxu0 0
  %1574 = vmatprep.subr.bf16.mxu0 0
  %1575 = vmatpush1.bf16.msra.mxu0 0
  %1576 = vmatprep.mubr.bf16.mxu0 0
  %1577 = vmatmul.mubr.bf16.gmra.mrb[0].mxu0 %v1480
  %v1578 = vpop.f32.mrb[0].mxu0
  %v1579 = vadd.f32 0.0, %v1578
  %v1580 = vpop.f32.mrb[0].mxu0
  %v1581 = vpop.f32.mrb[0].mxu0
  %v1582 = vadd.f32 0.0, %v1581
  %v1583 = vpop.f32.mrb[0].mxu0
  %1584 = vmatprep.mubr.bf16.mxu0 0
  %1585 = vmatmul.mubr.bf16.gmra.mrb[0].mxu0 %v1481
  %v1586 = vpop.f32.mrb[0].mxu0
  %v1587 = vadd.f32 0.0, %v1586
  %v1588 = vpop.f32.mrb[0].mxu0
  %v1589 = vpop.f32.mrb[0].mxu0
  %v1590 = vadd.f32 0.0, %v1589
  %v1591 = vpop.f32.mrb[0].mxu0
  %1592 = vmatprep.mubr.bf16.mxu0 0
  %1593 = vmatmul.mubr.bf16.gmra.mrb[0].mxu0 %v1482
  %v1594 = vpop.f32.mrb[0].mxu0
  %v1595 = vadd.f32 0.0, %v1594
  %v1596 = vpop.f32.mrb[0].mxu0
  %v1597 = vpop.f32.mrb[0].mxu0
  %v1598 = vadd.f32 0.0, %v1597
  %v1599 = vpop.f32.mrb[0].mxu0
  %1600 = vmatprep.mubr.bf16.mxu0 0
  %1601 = vmatmul.mubr.bf16.gmra.mrb[0].mxu0 %v1483
  %v1602 = vpop.f32.mrb[0].mxu0
  %v1603 = vadd.f32 0.0, %v1602
  %v1604 = vpop.f32.mrb[0].mxu0
  %v1605 = vpop.f32.mrb[0].mxu0
  %v1606 = vadd.f32 0.0, %v1605
  %v1607 = vpop.f32.mrb[0].mxu0
  %1608 = vmatprep.mubr.bf16.mxu0 0
  %1609 = vmatmul.mubr.bf16.gmra.mrb[0].mxu0 %v1484
  %v1610 = vpop.f32.mrb[0].mxu0
  %v1611 = vadd.f32 0.0, %v1610
  %v1612 = vpop.f32.mrb[0].mxu0
  %v1613 = vpop.f32.mrb[0].mxu0
  %v1614 = vadd.f32 0.0, %v1613
  %v1615 = vpop.f32.mrb[0].mxu0
  %1616 = vmatprep.mubr.bf16.mxu0 0
  %1617 = vmatmul.mubr.bf16.gmra.mrb[0].mxu0 %v1485
  %v1618 = vpop.f32.mrb[0].mxu0
  %v1619 = vadd.f32 0.0, %v1618
  %v1620 = vpop.f32.mrb[0].mxu0
  %v1621 = vpop.f32.mrb[0].mxu0
  %v1622 = vadd.f32 0.0, %v1621
  %v1623 = vpop.f32.mrb[0].mxu0
  %1624 = vmatprep.mubr.bf16.mxu0 0
  %1625 = vmatmul.mubr.bf16.gmra.mrb[0].mxu0 %v1486
  %v1626 = vpop.f32.mrb[0].mxu0
  %v1627 = vadd.f32 0.0, %v1626
  %v1628 = vpop.f32.mrb[0].mxu0
  %v1629 = vpop.f32.mrb[0].mxu0
  %v1630 = vadd.f32 0.0, %v1629
  %v1631 = vpop.f32.mrb[0].mxu0
  %1632 = vmatprep.mubr.bf16.mxu0 0
  %1633 = vmatmul.mubr.bf16.gmra.mrb[0].mxu0 %v1487
  %v1634 = vpop.f32.mrb[0].mxu0
  %v1635 = vadd.f32 0.0, %v1634
  %v1636 = vpop.f32.mrb[0].mxu0
  %v1637 = vpop.f32.mrb[0].mxu0
  %v1638 = vadd.f32 0.0, %v1637
  %v1639 = vpop.f32.mrb[0].mxu0
  %1640 = vdwg.mxu0
  %v1641 = vsel %vm1185, %v1579, 0.0
  %v1642 = vsel %vm1185, %v1582, 0.0
  %v1643 = vadd.f32 %v1641, %v1642
  %v1644 = vsel %vm1185, %v1587, 0.0
  %v1645 = vadd.f32 %v1643, %v1644
  %v1646 = vsel %vm1185, %v1590, 0.0
  %v1647 = vadd.f32 %v1645, %v1646
  %v1648 = vsel %vm1185, %v1595, 0.0
  %v1649 = vadd.f32 %v1647, %v1648
  %v1650 = vsel %vm1185, %v1598, 0.0
  %v1651 = vadd.f32 %v1649, %v1650
  %v1652 = vsel %vm1185, %v1603, 0.0
  %v1653 = vadd.f32 %v1651, %v1652
  %v1654 = vsel %vm1185, %v1606, 0.0
  %v1655 = vadd.f32 %v1653, %v1654
  %v1656 = vsel %vm1185, %v1611, 0.0
  %v1657 = vadd.f32 %v1655, %v1656
  %v1658 = vsel %vm1185, %v1614, 0.0
  %v1659 = vadd.f32 %v1657, %v1658
  %v1660 = vsel %vm1185, %v1619, 0.0
  %v1661 = vadd.f32 %v1659, %v1660
  %v1662 = vsel %vm1185, %v1622, 0.0
  %v1663 = vadd.f32 %v1661, %v1662
  %v1664 = vsel %vm1185, %v1627, 0.0
  %v1665 = vadd.f32 %v1663, %v1664
  %v1666 = vsel %vm1185, %v1630, 0.0
  %v1667 = vadd.f32 %v1665, %v1666
  %v1668 = vsel %vm1185, %v1635, 0.0
  %v1669 = vadd.f32 %v1667, %v1668
  %v1670 = vsel %vm1185, %v1638, 0.0
  %v1671 = vadd.f32 %v1669, %v1670
  %v1672 = vrot.slane %v1671, 4
  %v1673 = vadd.f32 %v1671, %v1672
  %v1674 = vrot.slane %v1673, 2
  %v1675 = vadd.f32 %v1673, %v1674
  %v1676 = vrot.slane %v1675, 1
  %v1677 = vadd.f32 %v1675, %v1676
  %v1678 = vmul.f32 %v1579, %v1579
  %v1679 = vmul.f32 %v1582, %v1582
  %v1680 = vmul.f32 %v1587, %v1587
  %v1681 = vmul.f32 %v1590, %v1590
  %v1682 = vmul.f32 %v1595, %v1595
  %v1683 = vmul.f32 %v1598, %v1598
  %v1684 = vmul.f32 %v1603, %v1603
  %v1685 = vmul.f32 %v1606, %v1606
  %v1686 = vmul.f32 %v1611, %v1611
  %v1687 = vmul.f32 %v1614, %v1614
  %v1688 = vmul.f32 %v1619, %v1619
  %v1689 = vmul.f32 %v1622, %v1622
  %v1690 = vmul.f32 %v1627, %v1627
  %v1691 = vmul.f32 %v1630, %v1630
  %v1692 = vmul.f32 %v1635, %v1635
  %v1693 = vmul.f32 %v1638, %v1638
  %v1694 = vsel %vm1185, %v1678, 0.0
  %v1695 = vsel %vm1185, %v1679, 0.0
  %v1696 = vadd.f32 %v1694, %v1695
  %v1697 = vsel %vm1185, %v1680, 0.0
  %v1698 = vadd.f32 %v1696, %v1697
  %v1699 = vsel %vm1185, %v1681, 0.0
  %v1700 = vadd.f32 %v1698, %v1699
  %v1701 = vsel %vm1185, %v1682, 0.0
  %v1702 = vadd.f32 %v1700, %v1701
  %v1703 = vsel %vm1185, %v1683, 0.0
  %v1704 = vadd.f32 %v1702, %v1703
  %v1705 = vsel %vm1185, %v1684, 0.0
  %v1706 = vadd.f32 %v1704, %v1705
  %v1707 = vsel %vm1185, %v1685, 0.0
  %v1708 = vadd.f32 %v1706, %v1707
  %v1709 = vsel %vm1185, %v1686, 0.0
  %v1710 = vadd.f32 %v1708, %v1709
  %v1711 = vsel %vm1185, %v1687, 0.0
  %v1712 = vadd.f32 %v1710, %v1711
  %v1713 = vsel %vm1185, %v1688, 0.0
  %v1714 = vadd.f32 %v1712, %v1713
  %v1715 = vsel %vm1185, %v1689, 0.0
  %v1716 = vadd.f32 %v1714, %v1715
  %v1717 = vsel %vm1185, %v1690, 0.0
  %v1718 = vadd.f32 %v1716, %v1717
  %v1719 = vsel %vm1185, %v1691, 0.0
  %v1720 = vadd.f32 %v1718, %v1719
  %v1721 = vsel %vm1185, %v1692, 0.0
  %v1722 = vadd.f32 %v1720, %v1721
  %v1723 = vsel %vm1185, %v1693, 0.0
  %v1724 = vadd.f32 %v1722, %v1723
  %v1725 = vrot.slane %v1724, 4
  %v1726 = vadd.f32 %v1724, %v1725
  %v1727 = vrot.slane %v1726, 2
  %v1728 = vadd.f32 %v1726, %v1727
  %v1729 = vrot.slane %v1728, 1
  %v1730 = vadd.f32 %v1728, %v1729
  %vm1731 = vcmask 1040384
  %v1732 = vsel %vm1731, %v1677, %v1730
  %vm1733 = vcmask 123904
  %1734 = vst.msk [vmem:[%s3] sm:$0x3] %vm1733, %v1732
  %v1735 = vpack.c.bf16 %v1579, %v1579
  %v1736 = vpack.c.bf16 %v1582, %v1582
  %v1737 = vpack.c.bf16 %v1587, %v1587
  %v1738 = vpack.c.bf16 %v1590, %v1590
  %v1739 = vpack.c.bf16 %v1595, %v1595
  %v1740 = vpack.c.bf16 %v1598, %v1598
  %v1741 = vpack.c.bf16 %v1603, %v1603
  %v1742 = vpack.c.bf16 %v1606, %v1606
  %v1743 = vpack.c.bf16 %v1611, %v1611
  %v1744 = vpack.c.bf16 %v1614, %v1614
  %v1745 = vpack.c.bf16 %v1619, %v1619
  %v1746 = vpack.c.bf16 %v1622, %v1622
  %v1747 = vpack.c.bf16 %v1627, %v1627
  %v1748 = vpack.c.bf16 %v1630, %v1630
  %v1749 = vpack.c.bf16 %v1635, %v1635
  %v1750 = vpack.c.bf16 %v1638, %v1638
  %vm1751 = vcmask 125952
  %1752 = vst.msk [vmem:[%s2] sm:$0xf] %vm1751, %v1735
  %1753 = vst.msk [vmem:[%s2 + $0x4] sm:$0xf] %vm1751, %v1736
  %1754 = vst.msk [vmem:[%s2 + $0x8] sm:$0xf] %vm1751, %v1737
  %1755 = vst.msk [vmem:[%s2 + $0xc] sm:$0xf] %vm1751, %v1738
  %1756 = vst.msk [vmem:[%s2 + $0x10] sm:$0xf] %vm1751, %v1739
  %1757 = vst.msk [vmem:[%s2 + $0x14] sm:$0xf] %vm1751, %v1740
  %1758 = vst.msk [vmem:[%s2 + $0x18] sm:$0xf] %vm1751, %v1741
  %1759 = vst.msk [vmem:[%s2 + $0x1c] sm:$0xf] %vm1751, %v1742
  %1760 = vst.msk [vmem:[%s2 + $0x20] sm:$0xf] %vm1751, %v1743
  %1761 = vst.msk [vmem:[%s2 + $0x24] sm:$0xf] %vm1751, %v1744
  %1762 = vst.msk [vmem:[%s2 + $0x28] sm:$0xf] %vm1751, %v1745
  %1763 = vst.msk [vmem:[%s2 + $0x2c] sm:$0xf] %vm1751, %v1746
  %1764 = vst.msk [vmem:[%s2 + $0x30] sm:$0xf] %vm1751, %v1747
  %1765 = vst.msk [vmem:[%s2 + $0x34] sm:$0xf] %vm1751, %v1748
  %1766 = vst.msk [vmem:[%s2 + $0x38] sm:$0xf] %vm1751, %v1749
  %1767 = vst.msk [vmem:[%s2 + $0x3c] sm:$0xf] %vm1751, %v1750
  // Predicated region
  $region10: #{discriminator_forward.8} parent=0 // pred_check
    _
  $region11: #{discriminator_forward.8} parent=0 // pred_check_branch
    %1769 = sbr.rel (0) target = $region13
  $region12: #{discriminator_forward.8} parent=0 // pred_region
    _
  $region13: #{discriminator_forward.8} parent=0 // pred_fallthru
    _
  // Predicated region
  $region14: #{discriminator_forward.8} parent=0 // pred_check
    _
  $region15: #{discriminator_forward.8} parent=0 // pred_check_branch
    %1771 = sbr.rel (0) target = $region17
  $region16: #{discriminator_forward.8} parent=0 // pred_region
    _
  $region17: #{discriminator_forward.8} parent=0 // pred_fallthru
    _
  // Predicated region
  $region18: #{discriminator_forward.8} parent=0 // pred_check
    _
  $region19: #{discriminator_forward.8} parent=0 // pred_check_branch
    %1773 = sbr.rel (0) target = $region21
  $region20: #{discriminator_forward.8} parent=0 // pred_region
    _
  $region21: #{discriminator_forward.8} parent=0 // pred_fallthru
    _
  // Predicated region
  $region22: #{discriminator_forward.8} parent=0 // pred_check
    _
  $region23: #{discriminator_forward.8} parent=0 // pred_check_branch
    %1775 = sbr.rel (0) target = $region25
  $region24: #{discriminator_forward.8} parent=0 // pred_region
    _
  $region25: #{discriminator_forward.8} parent=0 // pred_fallthru
    _

// kernel: discriminator_forward.9
$region0: #{discriminator_forward.9}
  #allocation0 [shape = 'u32[]', space=smem, size = 0x4, offset = 0x4, fixed_abs, tag = 'smem constant byte address 0x4 - core index']
  #allocation1 [shape = 'u32[144,128]{1,0:T(1,128)}', space=vmem, size = 0x12000, scoped, tag = 'internal scratch']
  %s0 = inlined_call_operand.vmem [shape: bf16[2,8,8,16], index: 0, kind: input, shape index: {}]
  %s1 = inlined_call_operand.vmem [shape: f32[1,16], index: 1, kind: input, shape index: {}]
  %s2 = inlined_call_operand.vmem [shape: f32[1,16], index: 2, kind: input, shape index: {}]
  %s3 = inlined_call_operand.vmem [shape: bf16[2,10,10,16], index: 3, kind: output, shape index: {}]
  %s4 = sld [smem:[#allocation0]]
  $region22: #{discriminator_forward.9} parent=0
    _
  %s6 = ssub.s32 1, %s4
  %s7 = scalar_select 0, %s6, %s4
  // Predicated region
  $region2: #{discriminator_forward.9} parent=0 // pred_check
    _
  $region3: #{discriminator_forward.9} parent=0 // pred_check_branch
    %9 = sbr.rel (0) target = $region5
  $region4: #{discriminator_forward.9} parent=0 // pred_region
    _
  $region5: #{discriminator_forward.9} parent=0 // pred_fallthru
    _
  // Predicated region
  $region6: #{discriminator_forward.9} parent=0 // pred_check
    _
  $region7: #{discriminator_forward.9} parent=0 // pred_check_branch
    %11 = sbr.rel (0) target = $region9
  $region8: #{discriminator_forward.9} parent=0 // pred_region
    _
  $region9: #{discriminator_forward.9} parent=0 // pred_fallthru
    _
  // Predicated region
  $region10: #{discriminator_forward.9} parent=0 // pred_check
    _
  $region11: #{discriminator_forward.9} parent=0 // pred_check_branch
    %13 = sbr.rel (0) target = $region13
  $region12: #{discriminator_forward.9} parent=0 // pred_region
    _
  $region13: #{discriminator_forward.9} parent=0 // pred_fallthru
    _
  %v15 = vld [vmem:[%s0] sm:$0xf]
  %v16 = vld [vmem:[%s0 + $0x4] sm:$0xf]
  %v17 = vld [vmem:[%s0 + $0x8] sm:$0xf]
  %v18 = vld [vmem:[%s0 + $0xc] sm:$0xf]
  %v19 = vld [vmem:[%s0 + $0x10] sm:$0xf]
  %v20 = vld [vmem:[%s0 + $0x14] sm:$0xf]
  %v21 = vld [vmem:[%s0 + $0x18] sm:$0xf]
  %v22 = vld [vmem:[%s0 + $0x1c] sm:$0xf]
  %v23 = vld [vmem:[%s0 + $0x20] sm:$0xf]
  %v24 = vld [vmem:[%s0 + $0x24] sm:$0xf]
  %v25 = vld [vmem:[%s0 + $0x28] sm:$0xf]
  %v26 = vld [vmem:[%s0 + $0x2c] sm:$0xf]
  %v27 = vld [vmem:[%s0 + $0x30] sm:$0xf]
  %v28 = vld [vmem:[%s0 + $0x34] sm:$0xf]
  %v29 = vld [vmem:[%s0 + $0x38] sm:$0xf]
  %v30 = vld [vmem:[%s0 + $0x3c] sm:$0xf]
  %v31 = vunpack.c.l.bf16 %v15
  %v32 = vunpack.c.l.bf16 %v16
  %v33 = vunpack.c.l.bf16 %v17
  %v34 = vunpack.c.l.bf16 %v18
  %v35 = vunpack.c.l.bf16 %v19
  %v36 = vunpack.c.l.bf16 %v20
  %v37 = vunpack.c.l.bf16 %v21
  %v38 = vunpack.c.l.bf16 %v22
  %v39 = vunpack.c.l.bf16 %v23
  %v40 = vunpack.c.l.bf16 %v24
  %v41 = vunpack.c.l.bf16 %v25
  %v42 = vunpack.c.l.bf16 %v26
  %v43 = vunpack.c.l.bf16 %v27
  %v44 = vunpack.c.l.bf16 %v28
  %v45 = vunpack.c.l.bf16 %v29
  %v46 = vunpack.c.l.bf16 %v30
  %v47 = vld [vmem:[%s1] sm:$0x1]
  %v49 = vlaneseq
  %v50 = vshrl.u32 %v49, 7
  %v51 = vsub.s32 0, %v50
  %v52 = vrot.slane %v47, %v51
  %v54 = vmul.f32 %v31, %v52
  %v55 = vmul.f32 %v32, %v52
  %v56 = vmul.f32 %v33, %v52
  %v57 = vmul.f32 %v34, %v52
  %v58 = vmul.f32 %v35, %v52
  %v59 = vmul.f32 %v36, %v52
  %v60 = vmul.f32 %v37, %v52
  %v61 = vmul.f32 %v38, %v52
  %v62 = vmul.f32 %v39, %v52
  %v63 = vmul.f32 %v40, %v52
  %v64 = vmul.f32 %v41, %v52
  %v65 = vmul.f32 %v42, %v52
  %v66 = vmul.f32 %v43, %v52
  %v67 = vmul.f32 %v44, %v52
  %v68 = vmul.f32 %v45, %v52
  %v69 = vmul.f32 %v46, %v52
  %v70 = vld [vmem:[%s2] sm:$0x1]
  %v72 = vlaneseq
  %v73 = vshrl.u32 %v72, 7
  %v74 = vsub.s32 0, %v73
  %v75 = vrot.slane %v70, %v74
  %v77 = vadd.f32 %v54, %v75
  %v78 = vadd.f32 %v55, %v75
  %v79 = vadd.f32 %v56, %v75
  %v80 = vadd.f32 %v57, %v75
  %v81 = vadd.f32 %v58, %v75
  %v82 = vadd.f32 %v59, %v75
  %v83 = vadd.f32 %v60, %v75
  %v84 = vadd.f32 %v61, %v75
  %v85 = vadd.f32 %v62, %v75
  %v86 = vadd.f32 %v63, %v75
  %v87 = vadd.f32 %v64, %v75
  %v88 = vadd.f32 %v65, %v75
  %v89 = vadd.f32 %v66, %v75
  %v90 = vadd.f32 %v67, %v75
  %v91 = vadd.f32 %v68, %v75
  %v92 = vadd.f32 %v69, %v75
  %vm93 = vcmp.ge.f32.partialorder %v77, 0.0
  %vm94 = vcmp.ge.f32.partialorder %v78, 0.0
  %vm95 = vcmp.ge.f32.partialorder %v79, 0.0
  %vm96 = vcmp.ge.f32.partialorder %v80, 0.0
  %vm97 = vcmp.ge.f32.partialorder %v81, 0.0
  %vm98 = vcmp.ge.f32.partialorder %v82, 0.0
  %vm99 = vcmp.ge.f32.partialorder %v83, 0.0
  %vm100 = vcmp.ge.f32.partialorder %v84, 0.0
  %vm101 = vcmp.ge.f32.partialorder %v85, 0.0
  %vm102 = vcmp.ge.f32.partialorder %v86, 0.0
  %vm103 = vcmp.ge.f32.partialorder %v87, 0.0
  %vm104 = vcmp.ge.f32.partialorder %v88, 0.0
  %vm105 = vcmp.ge.f32.partialorder %v89, 0.0
  %vm106 = vcmp.ge.f32.partialorder %v90, 0.0
  %vm107 = vcmp.ge.f32.partialorder %v91, 0.0
  %vm108 = vcmp.ge.f32.partialorder %v92, 0.0
  %v109 = vmul.f32 %v77, 0.2
  %v110 = vmul.f32 %v78, 0.2
  %v111 = vmul.f32 %v79, 0.2
  %v112 = vmul.f32 %v80, 0.2
  %v113 = vmul.f32 %v81, 0.2
  %v114 = vmul.f32 %v82, 0.2
  %v115 = vmul.f32 %v83, 0.2
  %v116 = vmul.f32 %v84, 0.2
  %v117 = vmul.f32 %v85, 0.2
  %v118 = vmul.f32 %v86, 0.2
  %v119 = vmul.f32 %v87, 0.2
  %v120 = vmul.f32 %v88, 0.2
  %v121 = vmul.f32 %v89, 0.2
  %v122 = vmul.f32 %v90, 0.2
  %v123 = vmul.f32 %v91, 0.2
  %v124 = vmul.f32 %v92, 0.2
  %v125 = vsel %vm93, %v77, %v109
  %v126 = vsel %vm94, %v78, %v110
  %v127 = vsel %vm95, %v79, %v111
  %v128 = vsel %vm96, %v80, %v112
  %v129 = vsel %vm97, %v81, %v113
  %v130 = vsel %vm98, %v82, %v114
  %v131 = vsel %vm99, %v83, %v115
  %v132 = vsel %vm100, %v84, %v116
  %v133 = vsel %vm101, %v85, %v117
  %v134 = vsel %vm102, %v86, %v118
  %v135 = vsel %vm103, %v87, %v119
  %v136 = vsel %vm104, %v88, %v120
  %v137 = vsel %vm105, %v89, %v121
  %v138 = vsel %vm106, %v90, %v122
  %v139 = vsel %vm107, %v91, %v123
  %v140 = vsel %vm108, %v92, %v124
  %v141 = vpack.c.bf16 %v125, %v125
  %v142 = vpack.c.bf16 %v126, %v126
  %v143 = vpack.c.bf16 %v127, %v127
  %v144 = vpack.c.bf16 %v128, %v128
  %v145 = vpack.c.bf16 %v129, %v129
  %v146 = vpack.c.bf16 %v130, %v130
  %v147 = vpack.c.bf16 %v131, %v131
  %v148 = vpack.c.bf16 %v132, %v132
  %v149 = vpack.c.bf16 %v133, %v133
  %v150 = vpack.c.bf16 %v134, %v134
  %v151 = vpack.c.bf16 %v135, %v135
  %v152 = vpack.c.bf16 %v136, %v136
  %v153 = vpack.c.bf16 %v137, %v137
  %v154 = vpack.c.bf16 %v138, %v138
  %v155 = vpack.c.bf16 %v139, %v139
  %v156 = vpack.c.bf16 %v140, %v140
  %vm157 = vcmask 125952
  %158 = vst.msk [vmem:[%s3] sm:$0xf] %vm157, 0
  %vm159 = vcmask 122880
  %160 = vst.msk [vmem:[%s3 + $0x4] sm:$0x1] %vm159, 0
  %161 = vst.msk [vmem:[%s3 + $0x8] sm:$0xf] %vm157, 0
  %162 = vst.msk [vmem:[%s3 + $0xc] sm:$0x1] %vm159, 0
  %163 = vst.msk [vmem:[%s3 + $0x10] sm:$0xf] %vm157, 0
  %164 = vst.msk [vmem:[%s3 + $0x14] sm:$0x1] %vm159, 0
  %165 = vst.msk [vmem:[%s3 + $0x18] sm:$0xf] %vm157, 0
  %166 = vst.msk [vmem:[%s3 + $0x1c] sm:$0x1] %vm159, 0
  %167 = vst.msk [vmem:[%s3 + $0x20] sm:$0xf] %vm157, 0
  %168 = vst.msk [vmem:[%s3 + $0x24] sm:$0x1] %vm159, 0
  %169 = vst.msk [vmem:[%s3 + $0x28] sm:$0xf] %vm157, 0
  %170 = vst.msk [vmem:[%s3 + $0x2c] sm:$0x1] %vm159, 0
  %171 = vst.msk [vmem:[%s3 + $0x30] sm:$0xf] %vm157, 0
  %172 = vst.msk [vmem:[%s3 + $0x34] sm:$0x1] %vm159, 0
  %173 = vst.msk [vmem:[%s3 + $0x38] sm:$0xf] %vm157, 0
  %174 = vst.msk [vmem:[%s3 + $0x3c] sm:$0x1] %vm159, 0
  %175 = vst.msk [vmem:[%s3 + $0x40] sm:$0xf] %vm157, 0
  %176 = vst.msk [vmem:[%s3 + $0x44] sm:$0x1] %vm159, 0
  %177 = vst.msk [vmem:[%s3 + $0x48] sm:$0xf] %vm157, 0
  %178 = vst.msk [vmem:[%s3 + $0x4c] sm:$0x1] %vm159, 0
  %179 = vst.msk [vmem:[%s3 + $0x50] sm:$0xf] %vm157, 0
  %180 = vst.msk [vmem:[%s3 + $0x54] sm:$0x1] %vm159, 0
  %181 = vst.msk [vmem:[%s3 + $0x58] sm:$0xf] %vm157, 0
  %182 = vst.msk [vmem:[%s3 + $0x5c] sm:$0x1] %vm159, 0
  %183 = vst.msk [vmem:[%s3 + $0x60] sm:$0xf] %vm157, 0
  %184 = vst.msk [vmem:[%s3 + $0x64] sm:$0x1] %vm159, 0
  %185 = vst.msk [vmem:[%s3 + $0x68] sm:$0xf] %vm157, 0
  %186 = vst.msk [vmem:[%s3 + $0x6c] sm:$0x1] %vm159, 0
  %187 = vst.msk [vmem:[%s3 + $0x70] sm:$0xf] %vm157, 0
  %188 = vst.msk [vmem:[%s3 + $0x74] sm:$0x1] %vm159, 0
  %189 = vst.msk [vmem:[%s3 + $0x78] sm:$0xf] %vm157, 0
  %190 = vst.msk [vmem:[%s3 + $0x7c] sm:$0x1] %vm159, 0
  %191 = vst.msk [vmem:[%s3 + $0x80] sm:$0xf] %vm157, 0
  %192 = vst.msk [vmem:[%s3 + $0x84] sm:$0x1] %vm159, 0
  %193 = vst.msk [vmem:[%s3 + $0x88] sm:$0xf] %vm157, 0
  %194 = vst.msk [vmem:[%s3 + $0x8c] sm:$0x1] %vm159, 0
  %195 = vst.msk [vmem:[%s3 + $0x90] sm:$0xf] %vm157, 0
  %196 = vst.msk [vmem:[%s3 + $0x94] sm:$0x1] %vm159, 0
  %197 = vst.msk [vmem:[%s3 + $0x98] sm:$0xf] %vm157, 0
  %198 = vst.msk [vmem:[%s3 + $0x9c] sm:$0x1] %vm159, 0
  %v215 = vunpack.c.l.b16 %v141
  %v216 = vunpack.c.l.b16 %v142
  %v217 = vunpack.c.l.b16 %v143
  %v218 = vunpack.c.l.b16 %v144
  %v219 = vunpack.c.l.b16 %v145
  %v220 = vunpack.c.l.b16 %v146
  %v221 = vunpack.c.l.b16 %v147
  %v222 = vunpack.c.l.b16 %v148
  %v223 = vunpack.c.l.b16 %v149
  %v224 = vunpack.c.l.b16 %v150
  %v225 = vunpack.c.l.b16 %v151
  %v226 = vunpack.c.l.b16 %v152
  %v227 = vunpack.c.l.b16 %v153
  %v228 = vunpack.c.l.b16 %v154
  %v229 = vunpack.c.l.b16 %v155
  %v230 = vunpack.c.l.b16 %v156
  %v231 = vpack.c.b16 %v215, %v215
  %v232 = vpack.c.b16 %v216, %v216
  %v233 = vpack.c.b16 %v217, %v217
  %v234 = vpack.c.b16 %v218, %v218
  %v235 = vpack.c.b16 %v219, %v219
  %v236 = vpack.c.b16 %v220, %v220
  %v237 = vpack.c.b16 %v221, %v221
  %v238 = vpack.c.b16 %v222, %v222
  %v239 = vpack.c.b16 %v223, %v223
  %v240 = vpack.c.b16 %v224, %v224
  %v241 = vpack.c.b16 %v225, %v225
  %v242 = vpack.c.b16 %v226, %v226
  %v243 = vpack.c.b16 %v227, %v227
  %v244 = vpack.c.b16 %v228, %v228
  %v245 = vpack.c.b16 %v229, %v229
  %v246 = vpack.c.b16 %v230, %v230
  %v248 = vshrl.u32 %v231, 16
  %v250 = vrot.slane %v248, 7
  %v251 = vshll.u32 %v231, 16
  %v253 = vor.u32 %v250, %v251
  %v254 = vrot.slane %v250, 4
  %v256 = vshrl.u32 %v232, 16
  %v258 = vrot.slane %v256, 7
  %v259 = vshll.u32 %v232, 16
  %v261 = vor.u32 %v258, %v259
  %v262 = vrot.slane %v258, 4
  %v264 = vshrl.u32 %v233, 16
  %v266 = vrot.slane %v264, 7
  %v267 = vshll.u32 %v233, 16
  %v269 = vor.u32 %v266, %v267
  %v270 = vrot.slane %v266, 4
  %v272 = vshrl.u32 %v234, 16
  %v274 = vrot.slane %v272, 7
  %v275 = vshll.u32 %v234, 16
  %v277 = vor.u32 %v274, %v275
  %v278 = vrot.slane %v274, 4
  %v280 = vshrl.u32 %v235, 16
  %v282 = vrot.slane %v280, 7
  %v283 = vshll.u32 %v235, 16
  %v285 = vor.u32 %v282, %v283
  %v286 = vrot.slane %v282, 4
  %v288 = vshrl.u32 %v236, 16
  %v290 = vrot.slane %v288, 7
  %v291 = vshll.u32 %v236, 16
  %v293 = vor.u32 %v290, %v291
  %v294 = vrot.slane %v290, 4
  %v296 = vshrl.u32 %v237, 16
  %v298 = vrot.slane %v296, 7
  %v299 = vshll.u32 %v237, 16
  %v301 = vor.u32 %v298, %v299
  %v302 = vrot.slane %v298, 4
  %v304 = vshrl.u32 %v238, 16
  %v306 = vrot.slane %v304, 7
  %v307 = vshll.u32 %v238, 16
  %v309 = vor.u32 %v306, %v307
  %v310 = vrot.slane %v306, 4
  %v312 = vshrl.u32 %v239, 16
  %v314 = vrot.slane %v312, 7
  %v315 = vshll.u32 %v239, 16
  %v317 = vor.u32 %v314, %v315
  %v318 = vrot.slane %v314, 4
  %v320 = vshrl.u32 %v240, 16
  %v322 = vrot.slane %v320, 7
  %v323 = vshll.u32 %v240, 16
  %v325 = vor.u32 %v322, %v323
  %v326 = vrot.slane %v322, 4
  %v328 = vshrl.u32 %v241, 16
  %v330 = vrot.slane %v328, 7
  %v331 = vshll.u32 %v241, 16
  %v333 = vor.u32 %v330, %v331
  %v334 = vrot.slane %v330, 4
  %v336 = vshrl.u32 %v242, 16
  %v338 = vrot.slane %v336, 7
  %v339 = vshll.u32 %v242, 16
  %v341 = vor.u32 %v338, %v339
  %v342 = vrot.slane %v338, 4
  %v344 = vshrl.u32 %v243, 16
  %v346 = vrot.slane %v344, 7
  %v347 = vshll.u32 %v243, 16
  %v349 = vor.u32 %v346, %v347
  %v350 = vrot.slane %v346, 4
  %v352 = vshrl.u32 %v244, 16
  %v354 = vrot.slane %v352, 7
  %v355 = vshll.u32 %v244, 16
  %v357 = vor.u32 %v354, %v355
  %v358 = vrot.slane %v354, 4
  %v360 = vshrl.u32 %v245, 16
  %v362 = vrot.slane %v360, 7
  %v363 = vshll.u32 %v245, 16
  %v365 = vor.u32 %v362, %v363
  %v366 = vrot.slane %v362, 4
  %v368 = vshrl.u32 %v246, 16
  %v370 = vrot.slane %v368, 7
  %v371 = vshll.u32 %v246, 16
  %v373 = vor.u32 %v370, %v371
  %v374 = vrot.slane %v370, 4
  %s407 = scalar_lea.vmem %s3, 8
  %vm408 = vcmask 125952
  %vm409 = vsmask.f32 7938
  %vm410 = vmand %vm408, %vm409
  %v411 = vld [vmem:[%s407] sm:$0xf]
  %v412 = vsel %vm410, %v253, %v411
  %413 = vst [vmem:[%s407] sm:$0xf] %v412
  %vm414 = vcmask 122880
  %vm415 = vsmask.f32 256
  %vm416 = vmand %vm414, %vm415
  %v417 = vld [vmem:[%s407 + $0x4] sm:$0x1]
  %v418 = vsel %vm416, %v254, %v417
  %419 = vst [vmem:[%s407 + $0x4] sm:$0x1] %v418
  %v420 = vld [vmem:[%s407 + $0x8] sm:$0xf]
  %v421 = vsel %vm410, %v261, %v420
  %422 = vst [vmem:[%s407 + $0x8] sm:$0xf] %v421
  %v423 = vld [vmem:[%s407 + $0xc] sm:$0x1]
  %v424 = vsel %vm416, %v262, %v423
  %425 = vst [vmem:[%s407 + $0xc] sm:$0x1] %v424
  %v426 = vld [vmem:[%s407 + $0x10] sm:$0xf]
  %v427 = vsel %vm410, %v269, %v426
  %428 = vst [vmem:[%s407 + $0x10] sm:$0xf] %v427
  %v429 = vld [vmem:[%s407 + $0x14] sm:$0x1]
  %v430 = vsel %vm416, %v270, %v429
  %431 = vst [vmem:[%s407 + $0x14] sm:$0x1] %v430
  %v432 = vld [vmem:[%s407 + $0x18] sm:$0xf]
  %v433 = vsel %vm410, %v277, %v432
  %434 = vst [vmem:[%s407 + $0x18] sm:$0xf] %v433
  %v435 = vld [vmem:[%s407 + $0x1c] sm:$0x1]
  %v436 = vsel %vm416, %v278, %v435
  %437 = vst [vmem:[%s407 + $0x1c] sm:$0x1] %v436
  %v438 = vld [vmem:[%s407 + $0x20] sm:$0xf]
  %v439 = vsel %vm410, %v285, %v438
  %440 = vst [vmem:[%s407 + $0x20] sm:$0xf] %v439
  %v441 = vld [vmem:[%s407 + $0x24] sm:$0x1]
  %v442 = vsel %vm416, %v286, %v441
  %443 = vst [vmem:[%s407 + $0x24] sm:$0x1] %v442
  %v444 = vld [vmem:[%s407 + $0x28] sm:$0xf]
  %v445 = vsel %vm410, %v293, %v444
  %446 = vst [vmem:[%s407 + $0x28] sm:$0xf] %v445
  %v447 = vld [vmem:[%s407 + $0x2c] sm:$0x1]
  %v448 = vsel %vm416, %v294, %v447
  %449 = vst [vmem:[%s407 + $0x2c] sm:$0x1] %v448
  %v450 = vld [vmem:[%s407 + $0x30] sm:$0xf]
  %v451 = vsel %vm410, %v301, %v450
  %452 = vst [vmem:[%s407 + $0x30] sm:$0xf] %v451
  %v453 = vld [vmem:[%s407 + $0x34] sm:$0x1]
  %v454 = vsel %vm416, %v302, %v453
  %455 = vst [vmem:[%s407 + $0x34] sm:$0x1] %v454
  %v456 = vld [vmem:[%s407 + $0x38] sm:$0xf]
  %v457 = vsel %vm410, %v309, %v456
  %458 = vst [vmem:[%s407 + $0x38] sm:$0xf] %v457
  %v459 = vld [vmem:[%s407 + $0x3c] sm:$0x1]
  %v460 = vsel %vm416, %v310, %v459
  %461 = vst [vmem:[%s407 + $0x3c] sm:$0x1] %v460
  %v462 = vld [vmem:[%s407 + $0x50] sm:$0xf]
  %v463 = vsel %vm410, %v317, %v462
  %464 = vst [vmem:[%s407 + $0x50] sm:$0xf] %v463
  %v465 = vld [vmem:[%s407 + $0x54] sm:$0x1]
  %v466 = vsel %vm416, %v318, %v465
  %467 = vst [vmem:[%s407 + $0x54] sm:$0x1] %v466
  %v468 = vld [vmem:[%s407 + $0x58] sm:$0xf]
  %v469 = vsel %vm410, %v325, %v468
  %470 = vst [vmem:[%s407 + $0x58] sm:$0xf] %v469
  %v471 = vld [vmem:[%s407 + $0x5c] sm:$0x1]
  %v472 = vsel %vm416, %v326, %v471
  %473 = vst [vmem:[%s407 + $0x5c] sm:$0x1] %v472
  %v474 = vld [vmem:[%s407 + $0x60] sm:$0xf]
  %v475 = vsel %vm410, %v333, %v474
  %476 = vst [vmem:[%s407 + $0x60] sm:$0xf] %v475
  %v477 = vld [vmem:[%s407 + $0x64] sm:$0x1]
  %v478 = vsel %vm416, %v334, %v477
  %479 = vst [vmem:[%s407 + $0x64] sm:$0x1] %v478
  %v480 = vld [vmem:[%s407 + $0x68] sm:$0xf]
  %v481 = vsel %vm410, %v341, %v480
  %482 = vst [vmem:[%s407 + $0x68] sm:$0xf] %v481
  %v483 = vld [vmem:[%s407 + $0x6c] sm:$0x1]
  %v484 = vsel %vm416, %v342, %v483
  %485 = vst [vmem:[%s407 + $0x6c] sm:$0x1] %v484
  %v486 = vld [vmem:[%s407 + $0x70] sm:$0xf]
  %v487 = vsel %vm410, %v349, %v486
  %488 = vst [vmem:[%s407 + $0x70] sm:$0xf] %v487
  %v489 = vld [vmem:[%s407 + $0x74] sm:$0x1]
  %v490 = vsel %vm416, %v350, %v489
  %491 = vst [vmem:[%s407 + $0x74] sm:$0x1] %v490
  %v492 = vld [vmem:[%s407 + $0x78] sm:$0xf]
  %v493 = vsel %vm410, %v357, %v492
  %494 = vst [vmem:[%s407 + $0x78] sm:$0xf] %v493
  %v495 = vld [vmem:[%s407 + $0x7c] sm:$0x1]
  %v496 = vsel %vm416, %v358, %v495
  %497 = vst [vmem:[%s407 + $0x7c] sm:$0x1] %v496
  %v498 = vld [vmem:[%s407 + $0x80] sm:$0xf]
  %v499 = vsel %vm410, %v365, %v498
  %500 = vst [vmem:[%s407 + $0x80] sm:$0xf] %v499
  %v501 = vld [vmem:[%s407 + $0x84] sm:$0x1]
  %v502 = vsel %vm416, %v366, %v501
  %503 = vst [vmem:[%s407 + $0x84] sm:$0x1] %v502
  %v504 = vld [vmem:[%s407 + $0x88] sm:$0xf]
  %v505 = vsel %vm410, %v373, %v504
  %506 = vst [vmem:[%s407 + $0x88] sm:$0xf] %v505
  %v507 = vld [vmem:[%s407 + $0x8c] sm:$0x1]
  %v508 = vsel %vm416, %v374, %v507
  %509 = vst [vmem:[%s407 + $0x8c] sm:$0x1] %v508
  // Predicated region
  $region14: #{discriminator_forward.9} parent=0 // pred_check
    _
  $region15: #{discriminator_forward.9} parent=0 // pred_check_branch
    %511 = sbr.rel (0) target = $region17
  $region16: #{discriminator_forward.9} parent=0 // pred_region
    _
  $region17: #{discriminator_forward.9} parent=0 // pred_fallthru
    _
  // Predicated region
  $region18: #{discriminator_forward.9} parent=0 // pred_check
    _
  $region19: #{discriminator_forward.9} parent=0 // pred_check_branch
    %513 = sbr.rel (0) target = $region21
  $region20: #{discriminator_forward.9} parent=0 // pred_region
    _
  $region21: #{discriminator_forward.9} parent=0 // pred_fallthru
    _

// kernel: discriminator_forward.11
$region0: #{discriminator_forward.11}
  #allocation0 [shape = 'u32[]', space=smem, size = 0x4, offset = 0x4, fixed_abs, tag = 'smem constant byte address 0x4 - core index']
  #allocation1 [shape = 'u32[144,128]{1,0:T(1,128)}', space=vmem, size = 0x12000, scoped, tag = 'internal scratch']
  %s0 = inlined_call_operand.vmem [shape: bf16[2,4,4,32], index: 0, kind: input, shape index: {}]
  %s1 = inlined_call_operand.vmem [shape: f32[1,32], index: 1, kind: input, shape index: {}]
  %s2 = inlined_call_operand.vmem [shape: f32[1,32], index: 2, kind: input, shape index: {}]
  %s3 = inlined_call_operand.vmem [shape: bf16[2,6,6,32], index: 3, kind: output, shape index: {}]
  %s4 = sld [smem:[#allocation0]]
  $region22: #{discriminator_forward.11} parent=0
    _
  %s6 = ssub.s32 1, %s4
  %s7 = scalar_select 0, %s6, %s4
  // Predicated region
  $region2: #{discriminator_forward.11} parent=0 // pred_check
    _
  $region3: #{discriminator_forward.11} parent=0 // pred_check_branch
    %9 = sbr.rel (0) target = $region5
  $region4: #{discriminator_forward.11} parent=0 // pred_region
    _
  $region5: #{discriminator_forward.11} parent=0 // pred_fallthru
    _
  // Predicated region
  $region6: #{discriminator_forward.11} parent=0 // pred_check
    _
  $region7: #{discriminator_forward.11} parent=0 // pred_check_branch
    %11 = sbr.rel (0) target = $region9
  $region8: #{discriminator_forward.11} parent=0 // pred_region
    _
  $region9: #{discriminator_forward.11} parent=0 // pred_fallthru
    _
  // Predicated region
  $region10: #{discriminator_forward.11} parent=0 // pred_check
    _
  $region11: #{discriminator_forward.11} parent=0 // pred_check_branch
    %13 = sbr.rel (0) target = $region13
  $region12: #{discriminator_forward.11} parent=0 // pred_region
    _
  $region13: #{discriminator_forward.11} parent=0 // pred_fallthru
    _
  %v15 = vld [vmem:[%s0] sm:$0x3]
  %v16 = vld [vmem:[%s0 + $0x2] sm:$0x3]
  %v17 = vld [vmem:[%s0 + $0x4] sm:$0x3]
  %v18 = vld [vmem:[%s0 + $0x6] sm:$0x3]
  %v19 = vld [vmem:[%s0 + $0x8] sm:$0x3]
  %v20 = vld [vmem:[%s0 + $0xa] sm:$0x3]
  %v21 = vld [vmem:[%s0 + $0xc] sm:$0x3]
  %v22 = vld [vmem:[%s0 + $0xe] sm:$0x3]
  %v23 = vunpack.c.l.bf16 %v15
  %v24 = vunpack.c.l.bf16 %v16
  %v25 = vunpack.c.l.bf16 %v17
  %v26 = vunpack.c.l.bf16 %v18
  %v27 = vunpack.c.l.bf16 %v19
  %v28 = vunpack.c.l.bf16 %v20
  %v29 = vunpack.c.l.bf16 %v21
  %v30 = vunpack.c.l.bf16 %v22
  %v31 = vld [vmem:[%s1] sm:$0x1]
  %v33 = vlaneseq
  %v34 = vshrl.u32 %v33, 7
  %v35 = vsub.s32 0, %v34
  %v36 = vrot.slane %v31, %v35
  %v38 = vmul.f32 %v23, %v36
  %v39 = vmul.f32 %v24, %v36
  %v40 = vmul.f32 %v25, %v36
  %v41 = vmul.f32 %v26, %v36
  %v42 = vmul.f32 %v27, %v36
  %v43 = vmul.f32 %v28, %v36
  %v44 = vmul.f32 %v29, %v36
  %v45 = vmul.f32 %v30, %v36
  %v46 = vld [vmem:[%s2] sm:$0x1]
  %v48 = vlaneseq
  %v49 = vshrl.u32 %v48, 7
  %v50 = vsub.s32 0, %v49
  %v51 = vrot.slane %v46, %v50
  %v53 = vadd.f32 %v38, %v51
  %v54 = vadd.f32 %v39, %v51
  %v55 = vadd.f32 %v40, %v51
  %v56 = vadd.f32 %v41, %v51
  %v57 = vadd.f32 %v42, %v51
  %v58 = vadd.f32 %v43, %v51
  %v59 = vadd.f32 %v44, %v51
  %v60 = vadd.f32 %v45, %v51
  %vm61 = vcmp.ge.f32.partialorder %v53, 0.0
  %vm62 = vcmp.ge.f32.partialorder %v54, 0.0
  %vm63 = vcmp.ge.f32.partialorder %v55, 0.0
  %vm64 = vcmp.ge.f32.partialorder %v56, 0.0
  %vm65 = vcmp.ge.f32.partialorder %v57, 0.0
  %vm66 = vcmp.ge.f32.partialorder %v58, 0.0
  %vm67 = vcmp.ge.f32.partialorder %v59, 0.0
  %vm68 = vcmp.ge.f32.partialorder %v60, 0.0
  %v69 = vmul.f32 %v53, 0.2
  %v70 = vmul.f32 %v54, 0.2
  %v71 = vmul.f32 %v55, 0.2
  %v72 = vmul.f32 %v56, 0.2
  %v73 = vmul.f32 %v57, 0.2
  %v74 = vmul.f32 %v58, 0.2
  %v75 = vmul.f32 %v59, 0.2
  %v76 = vmul.f32 %v60, 0.2
  %v77 = vsel %vm61, %v53, %v69
  %v78 = vsel %vm62, %v54, %v70
  %v79 = vsel %vm63, %v55, %v71
  %v80 = vsel %vm64, %v56, %v72
  %v81 = vsel %vm65, %v57, %v73
  %v82 = vsel %vm66, %v58, %v74
  %v83 = vsel %vm67, %v59, %v75
  %v84 = vsel %vm68, %v60, %v76
  %v85 = vpack.c.bf16 %v77, %v77
  %v86 = vpack.c.bf16 %v78, %v78
  %v87 = vpack.c.bf16 %v79, %v79
  %v88 = vpack.c.bf16 %v80, %v80
  %v89 = vpack.c.bf16 %v81, %v81
  %v90 = vpack.c.bf16 %v82, %v82
  %v91 = vpack.c.bf16 %v83, %v83
  %v92 = vpack.c.bf16 %v84, %v84
  %vm93 = vcmask 256000
  %94 = vst.msk [vmem:[%s3] sm:$0x7] %vm93, 0
  %95 = vst.msk [vmem:[%s3 + $0x4] sm:$0x7] %vm93, 0
  %96 = vst.msk [vmem:[%s3 + $0x8] sm:$0x7] %vm93, 0
  %97 = vst.msk [vmem:[%s3 + $0xc] sm:$0x7] %vm93, 0
  %98 = vst.msk [vmem:[%s3 + $0x10] sm:$0x7] %vm93, 0
  %99 = vst.msk [vmem:[%s3 + $0x14] sm:$0x7] %vm93, 0
  %100 = vst.msk [vmem:[%s3 + $0x18] sm:$0x7] %vm93, 0
  %101 = vst.msk [vmem:[%s3 + $0x1c] sm:$0x7] %vm93, 0
  %102 = vst.msk [vmem:[%s3 + $0x20] sm:$0x7] %vm93, 0
  %103 = vst.msk [vmem:[%s3 + $0x24] sm:$0x7] %vm93, 0
  %104 = vst.msk [vmem:[%s3 + $0x28] sm:$0x7] %vm93, 0
  %105 = vst.msk [vmem:[%s3 + $0x2c] sm:$0x7] %vm93, 0
  %v114 = vunpack.c.l.b16 %v85
  %v115 = vunpack.c.l.b16 %v86
  %v116 = vunpack.c.l.b16 %v87
  %v117 = vunpack.c.l.b16 %v88
  %v118 = vunpack.c.l.b16 %v89
  %v119 = vunpack.c.l.b16 %v90
  %v120 = vunpack.c.l.b16 %v91
  %v121 = vunpack.c.l.b16 %v92
  %v122 = vpack.c.b16 %v114, %v114
  %v123 = vpack.c.b16 %v115, %v115
  %v124 = vpack.c.b16 %v116, %v116
  %v125 = vpack.c.b16 %v117, %v117
  %v126 = vpack.c.b16 %v118, %v118
  %v127 = vpack.c.b16 %v119, %v119
  %v128 = vpack.c.b16 %v120, %v120
  %v129 = vpack.c.b16 %v121, %v121
  %v131 = vshrl.u32 %v122, 16
  %v133 = vrot.slane %v131, 7
  %v134 = vshll.u32 %v122, 16
  %v136 = vor.u32 %v133, %v134
  %v138 = vshrl.u32 %v123, 16
  %v140 = vrot.slane %v138, 7
  %v141 = vshll.u32 %v123, 16
  %v143 = vor.u32 %v140, %v141
  %v145 = vshrl.u32 %v124, 16
  %v147 = vrot.slane %v145, 7
  %v148 = vshll.u32 %v124, 16
  %v150 = vor.u32 %v147, %v148
  %v152 = vshrl.u32 %v125, 16
  %v154 = vrot.slane %v152, 7
  %v155 = vshll.u32 %v125, 16
  %v157 = vor.u32 %v154, %v155
  %v159 = vshrl.u32 %v126, 16
  %v161 = vrot.slane %v159, 7
  %v162 = vshll.u32 %v126, 16
  %v164 = vor.u32 %v161, %v162
  %v166 = vshrl.u32 %v127, 16
  %v168 = vrot.slane %v166, 7
  %v169 = vshll.u32 %v127, 16
  %v171 = vor.u32 %v168, %v169
  %v173 = vshrl.u32 %v128, 16
  %v175 = vrot.slane %v173, 7
  %v176 = vshll.u32 %v128, 16
  %v178 = vor.u32 %v175, %v176
  %v180 = vshrl.u32 %v129, 16
  %v182 = vrot.slane %v180, 7
  %v183 = vshll.u32 %v129, 16
  %v185 = vor.u32 %v182, %v183
  %s194 = scalar_lea.vmem %s3, 4
  %vm195 = vcmask 256000
  %vm196 = vsmask.f32 2306
  %vm197 = vmand %vm195, %vm196
  %v198 = vld [vmem:[%s194] sm:$0x7]
  %v199 = vsel %vm197, %v136, %v198
  %200 = vst [vmem:[%s194] sm:$0x7] %v199
  %v201 = vld [vmem:[%s194 + $0x4] sm:$0x7]
  %v202 = vsel %vm197, %v143, %v201
  %203 = vst [vmem:[%s194 + $0x4] sm:$0x7] %v202
  %v204 = vld [vmem:[%s194 + $0x8] sm:$0x7]
  %v205 = vsel %vm197, %v150, %v204
  %206 = vst [vmem:[%s194 + $0x8] sm:$0x7] %v205
  %v207 = vld [vmem:[%s194 + $0xc] sm:$0x7]
  %v208 = vsel %vm197, %v157, %v207
  %209 = vst [vmem:[%s194 + $0xc] sm:$0x7] %v208
  %v210 = vld [vmem:[%s194 + $0x18] sm:$0x7]
  %v211 = vsel %vm197, %v164, %v210
  %212 = vst [vmem:[%s194 + $0x18] sm:$0x7] %v211
  %v213 = vld [vmem:[%s194 + $0x1c] sm:$0x7]
  %v214 = vsel %vm197, %v171, %v213
  %215 = vst [vmem:[%s194 + $0x1c] sm:$0x7] %v214
  %v216 = vld [vmem:[%s194 + $0x20] sm:$0x7]
  %v217 = vsel %vm197, %v178, %v216
  %218 = vst [vmem:[%s194 + $0x20] sm:$0x7] %v217
  %v219 = vld [vmem:[%s194 + $0x24] sm:$0x7]
  %v220 = vsel %vm197, %v185, %v219
  %221 = vst [vmem:[%s194 + $0x24] sm:$0x7] %v220
  // Predicated region
  $region14: #{discriminator_forward.11} parent=0 // pred_check
    _
  $region15: #{discriminator_forward.11} parent=0 // pred_check_branch
    %223 = sbr.rel (0) target = $region17
  $region16: #{discriminator_forward.11} parent=0 // pred_region
    _
  $region17: #{discriminator_forward.11} parent=0 // pred_fallthru
    _
  // Predicated region
  $region18: #{discriminator_forward.11} parent=0 // pred_check
    _
  $region19: #{discriminator_forward.11} parent=0 // pred_check_branch
    %225 = sbr.rel (0) target = $region21
  $region20: #{discriminator_forward.11} parent=0 // pred_region
    _
  $region21: #{discriminator_forward.11} parent=0 // pred_fallthru
    _

// kernel: discriminator_forward.10
$region0: #{discriminator_forward.10}
  #allocation0 [shape = 'u32[]', space=smem, size = 0x4, offset = 0x4, fixed_abs, tag = 'smem constant byte address 0x4 - core index']
  #allocation1 [shape = 'u32[144,128]{1,0:T(1,128)}', space=vmem, size = 0x12000, scoped, tag = 'internal scratch']
  %s0 = inlined_call_operand.vmem [shape: bf16[2,5,2,5,32], index: 0, kind: input, shape index: {}]
  %s1 = inlined_call_operand.vmem [shape: bf16[256,32], index: 1, kind: input, shape index: {}]
  %s2 = inlined_call_operand.vmem [shape: bf16[2,4,4,32], index: 2, kind: output, shape index: {0}]
  %s3 = inlined_call_operand.vmem [shape: f32[1,2,32], index: 3, kind: output, shape index: {1}]
  %4 = xla_tuple %s2, %s3
  %s5 = sld [smem:[#allocation0]]
  $region26: #{discriminator_forward.10} parent=0
    _
  %s7 = ssub.s32 1, %s5
  %s8 = scalar_select 0, %s7, %s5
  // Predicated region
  $region2: #{discriminator_forward.10} parent=0 // pred_check
    _
  $region3: #{discriminator_forward.10} parent=0 // pred_check_branch
    %10 = sbr.rel (0) target = $region5
  $region4: #{discriminator_forward.10} parent=0 // pred_region
    _
  $region5: #{discriminator_forward.10} parent=0 // pred_fallthru
    _
  // Predicated region
  $region6: #{discriminator_forward.10} parent=0 // pred_check
    _
  $region7: #{discriminator_forward.10} parent=0 // pred_check_branch
    %12 = sbr.rel (0) target = $region9
  $region8: #{discriminator_forward.10} parent=0 // pred_region
    _
  $region9: #{discriminator_forward.10} parent=0 // pred_fallthru
    _
  %v14 = vld [vmem:[%s0] sm:$0x3]
  %v15 = vld [vmem:[%s0 + $0x8] sm:$0x3]
  %v16 = vld [vmem:[%s0 + $0x10] sm:$0x3]
  %v17 = vld [vmem:[%s0 + $0x18] sm:$0x3]
  %v18 = vld [vmem:[%s0 + $0x28] sm:$0x3]
  %v19 = vld [vmem:[%s0 + $0x30] sm:$0x3]
  %v20 = vld [vmem:[%s0 + $0x38] sm:$0x3]
  %v21 = vld [vmem:[%s0 + $0x40] sm:$0x3]
  %v22 = vld [vmem:[%s0] sm:$0x7]
  %v23 = vld [vmem:[%s0 + $0x8] sm:$0x7]
  %v24 = vld [vmem:[%s0 + $0x10] sm:$0x7]
  %v25 = vld [vmem:[%s0 + $0x18] sm:$0x7]
  %v26 = vld [vmem:[%s0 + $0x28] sm:$0x7]
  %v27 = vld [vmem:[%s0 + $0x30] sm:$0x7]
  %v28 = vld [vmem:[%s0 + $0x38] sm:$0x7]
  %v29 = vld [vmem:[%s0 + $0x40] sm:$0x7]
  %s30 = scalar_lea.vmem %s0, 4
  %v31 = vld [vmem:[%s30] sm:$0x3]
  %v32 = vld [vmem:[%s30 + $0x8] sm:$0x3]
  %v33 = vld [vmem:[%s30 + $0x10] sm:$0x3]
  %v34 = vld [vmem:[%s30 + $0x18] sm:$0x3]
  %v35 = vld [vmem:[%s30 + $0x28] sm:$0x3]
  %v36 = vld [vmem:[%s30 + $0x30] sm:$0x3]
  %v37 = vld [vmem:[%s30 + $0x38] sm:$0x3]
  %v38 = vld [vmem:[%s30 + $0x40] sm:$0x3]
  %v39 = vld [vmem:[%s30] sm:$0x7]
  %v40 = vld [vmem:[%s30 + $0x8] sm:$0x7]
  %v41 = vld [vmem:[%s30 + $0x10] sm:$0x7]
  %v42 = vld [vmem:[%s30 + $0x18] sm:$0x7]
  %v43 = vld [vmem:[%s30 + $0x28] sm:$0x7]
  %v44 = vld [vmem:[%s30 + $0x30] sm:$0x7]
  %v45 = vld [vmem:[%s30 + $0x38] sm:$0x7]
  %v46 = vld [vmem:[%s30 + $0x40] sm:$0x7]
  %s47 = scalar_lea.vmem %s0, 8
  %v48 = vld [vmem:[%s47] sm:$0x3]
  %v49 = vld [vmem:[%s47 + $0x8] sm:$0x3]
  %v50 = vld [vmem:[%s47 + $0x10] sm:$0x3]
  %v51 = vld [vmem:[%s47 + $0x18] sm:$0x3]
  %v52 = vld [vmem:[%s47 + $0x28] sm:$0x3]
  %v53 = vld [vmem:[%s47 + $0x30] sm:$0x3]
  %v54 = vld [vmem:[%s47 + $0x38] sm:$0x3]
  %v55 = vld [vmem:[%s47 + $0x40] sm:$0x3]
  %v56 = vld [vmem:[%s47] sm:$0x7]
  %v57 = vld [vmem:[%s47 + $0x8] sm:$0x7]
  %v58 = vld [vmem:[%s47 + $0x10] sm:$0x7]
  %v59 = vld [vmem:[%s47 + $0x18] sm:$0x7]
  %v60 = vld [vmem:[%s47 + $0x28] sm:$0x7]
  %v61 = vld [vmem:[%s47 + $0x30] sm:$0x7]
  %v62 = vld [vmem:[%s47 + $0x38] sm:$0x7]
  %v63 = vld [vmem:[%s47 + $0x40] sm:$0x7]
  %s64 = scalar_lea.vmem %s0, 12
  %v65 = vld [vmem:[%s64] sm:$0x3]
  %v66 = vld [vmem:[%s64 + $0x8] sm:$0x3]
  %v67 = vld [vmem:[%s64 + $0x10] sm:$0x3]
  %v68 = vld [vmem:[%s64 + $0x18] sm:$0x3]
  %v69 = vld [vmem:[%s64 + $0x28] sm:$0x3]
  %v70 = vld [vmem:[%s64 + $0x30] sm:$0x3]
  %v71 = vld [vmem:[%s64 + $0x38] sm:$0x3]
  %v72 = vld [vmem:[%s64 + $0x40] sm:$0x3]
  %v73 = vld [vmem:[%s64] sm:$0x7]
  %v74 = vld [vmem:[%s64 + $0x8] sm:$0x7]
  %v75 = vld [vmem:[%s64 + $0x10] sm:$0x7]
  %v76 = vld [vmem:[%s64 + $0x18] sm:$0x7]
  %v77 = vld [vmem:[%s64 + $0x28] sm:$0x7]
  %v78 = vld [vmem:[%s64 + $0x30] sm:$0x7]
  %v79 = vld [vmem:[%s64 + $0x38] sm:$0x7]
  %v80 = vld [vmem:[%s64 + $0x40] sm:$0x7]
  %v89 = vunpack.c.l.b16 %v22
  %v90 = vunpack.c.l.b16 %v23
  %v91 = vunpack.c.l.b16 %v24
  %v92 = vunpack.c.l.b16 %v25
  %v93 = vunpack.c.l.b16 %v26
  %v94 = vunpack.c.l.b16 %v27
  %v95 = vunpack.c.l.b16 %v28
  %v96 = vunpack.c.l.b16 %v29
  %v97 = vpack.c.b16 %v89, %v89
  %v98 = vpack.c.b16 %v90, %v90
  %v99 = vpack.c.b16 %v91, %v91
  %v100 = vpack.c.b16 %v92, %v92
  %v101 = vpack.c.b16 %v93, %v93
  %v102 = vpack.c.b16 %v94, %v94
  %v103 = vpack.c.b16 %v95, %v95
  %v104 = vpack.c.b16 %v96, %v96
  %v106 = vshrl.u32 %v97, 16
  %v108 = vshll.u32 %v97, 16
  %v110 = vrot.slane %v108, 1
  %v111 = vor.u32 %v106, %v110
  %v113 = vshrl.u32 %v98, 16
  %v115 = vshll.u32 %v98, 16
  %v117 = vrot.slane %v115, 1
  %v118 = vor.u32 %v113, %v117
  %v120 = vshrl.u32 %v99, 16
  %v122 = vshll.u32 %v99, 16
  %v124 = vrot.slane %v122, 1
  %v125 = vor.u32 %v120, %v124
  %v127 = vshrl.u32 %v100, 16
  %v129 = vshll.u32 %v100, 16
  %v131 = vrot.slane %v129, 1
  %v132 = vor.u32 %v127, %v131
  %v134 = vshrl.u32 %v101, 16
  %v136 = vshll.u32 %v101, 16
  %v138 = vrot.slane %v136, 1
  %v139 = vor.u32 %v134, %v138
  %v141 = vshrl.u32 %v102, 16
  %v143 = vshll.u32 %v102, 16
  %v145 = vrot.slane %v143, 1
  %v146 = vor.u32 %v141, %v145
  %v148 = vshrl.u32 %v103, 16
  %v150 = vshll.u32 %v103, 16
  %v152 = vrot.slane %v150, 1
  %v153 = vor.u32 %v148, %v152
  %v155 = vshrl.u32 %v104, 16
  %v157 = vshll.u32 %v104, 16
  %v159 = vrot.slane %v157, 1
  %v160 = vor.u32 %v155, %v159
  %161 = vrot.lane.b32.xlu0 %v111, 32
  %v162 = vpop.permute.xlu0 %161
  %163 = vrot.lane.b32.xlu0 %v118, 32
  %v164 = vpop.permute.xlu0 %163
  %165 = vrot.lane.b32.xlu0 %v125, 32
  %v166 = vpop.permute.xlu0 %165
  %167 = vrot.lane.b32.xlu0 %v132, 32
  %v168 = vpop.permute.xlu0 %167
  %169 = vrot.lane.b32.xlu0 %v139, 32
  %v170 = vpop.permute.xlu0 %169
  %171 = vrot.lane.b32.xlu0 %v146, 32
  %v172 = vpop.permute.xlu0 %171
  %173 = vrot.lane.b32.xlu0 %v153, 32
  %v174 = vpop.permute.xlu0 %173
  %175 = vrot.lane.b32.xlu0 %v160, 32
  %v176 = vpop.permute.xlu0 %175
  %v185 = vunpack.c.l.b16 %v31
  %v186 = vunpack.c.l.b16 %v32
  %v187 = vunpack.c.l.b16 %v33
  %v188 = vunpack.c.l.b16 %v34
  %v189 = vunpack.c.l.b16 %v35
  %v190 = vunpack.c.l.b16 %v36
  %v191 = vunpack.c.l.b16 %v37
  %v192 = vunpack.c.l.b16 %v38
  %v193 = vpack.c.b16 %v185, %v185
  %v194 = vpack.c.b16 %v186, %v186
  %v195 = vpack.c.b16 %v187, %v187
  %v196 = vpack.c.b16 %v188, %v188
  %v197 = vpack.c.b16 %v189, %v189
  %v198 = vpack.c.b16 %v190, %v190
  %v199 = vpack.c.b16 %v191, %v191
  %v200 = vpack.c.b16 %v192, %v192
  %201 = vrot.lane.b32.xlu0 %v193, 64
  %v202 = vpop.permute.xlu0 %201
  %203 = vrot.lane.b32.xlu0 %v194, 64
  %v204 = vpop.permute.xlu0 %203
  %205 = vrot.lane.b32.xlu0 %v195, 64
  %v206 = vpop.permute.xlu0 %205
  %207 = vrot.lane.b32.xlu0 %v196, 64
  %v208 = vpop.permute.xlu0 %207
  %209 = vrot.lane.b32.xlu0 %v197, 64
  %v210 = vpop.permute.xlu0 %209
  %211 = vrot.lane.b32.xlu0 %v198, 64
  %v212 = vpop.permute.xlu0 %211
  %213 = vrot.lane.b32.xlu0 %v199, 64
  %v214 = vpop.permute.xlu0 %213
  %215 = vrot.lane.b32.xlu0 %v200, 64
  %v216 = vpop.permute.xlu0 %215
  %v225 = vunpack.c.l.b16 %v39
  %v226 = vunpack.c.l.b16 %v40
  %v227 = vunpack.c.l.b16 %v41
  %v228 = vunpack.c.l.b16 %v42
  %v229 = vunpack.c.l.b16 %v43
  %v230 = vunpack.c.l.b16 %v44
  %v231 = vunpack.c.l.b16 %v45
  %v232 = vunpack.c.l.b16 %v46
  %v233 = vpack.c.b16 %v225, %v225
  %v234 = vpack.c.b16 %v226, %v226
  %v235 = vpack.c.b16 %v227, %v227
  %v236 = vpack.c.b16 %v228, %v228
  %v237 = vpack.c.b16 %v229, %v229
  %v238 = vpack.c.b16 %v230, %v230
  %v239 = vpack.c.b16 %v231, %v231
  %v240 = vpack.c.b16 %v232, %v232
  %v242 = vshrl.u32 %v233, 16
  %v244 = vshll.u32 %v233, 16
  %v246 = vrot.slane %v244, 1
  %v247 = vor.u32 %v242, %v246
  %v249 = vshrl.u32 %v234, 16
  %v251 = vshll.u32 %v234, 16
  %v253 = vrot.slane %v251, 1
  %v254 = vor.u32 %v249, %v253
  %v256 = vshrl.u32 %v235, 16
  %v258 = vshll.u32 %v235, 16
  %v260 = vrot.slane %v258, 1
  %v261 = vor.u32 %v256, %v260
  %v263 = vshrl.u32 %v236, 16
  %v265 = vshll.u32 %v236, 16
  %v267 = vrot.slane %v265, 1
  %v268 = vor.u32 %v263, %v267
  %v270 = vshrl.u32 %v237, 16
  %v272 = vshll.u32 %v237, 16
  %v274 = vrot.slane %v272, 1
  %v275 = vor.u32 %v270, %v274
  %v277 = vshrl.u32 %v238, 16
  %v279 = vshll.u32 %v238, 16
  %v281 = vrot.slane %v279, 1
  %v282 = vor.u32 %v277, %v281
  %v284 = vshrl.u32 %v239, 16
  %v286 = vshll.u32 %v239, 16
  %v288 = vrot.slane %v286, 1
  %v289 = vor.u32 %v284, %v288
  %v291 = vshrl.u32 %v240, 16
  %v293 = vshll.u32 %v240, 16
  %v295 = vrot.slane %v293, 1
  %v296 = vor.u32 %v291, %v295
  %297 = vrot.lane.b32.xlu0 %v247, 96
  %v298 = vpop.permute.xlu0 %297
  %299 = vrot.lane.b32.xlu0 %v254, 96
  %v300 = vpop.permute.xlu0 %299
  %301 = vrot.lane.b32.xlu0 %v261, 96
  %v302 = vpop.permute.xlu0 %301
  %303 = vrot.lane.b32.xlu0 %v268, 96
  %v304 = vpop.permute.xlu0 %303
  %305 = vrot.lane.b32.xlu0 %v275, 96
  %v306 = vpop.permute.xlu0 %305
  %307 = vrot.lane.b32.xlu0 %v282, 96
  %v308 = vpop.permute.xlu0 %307
  %309 = vrot.lane.b32.xlu0 %v289, 96
  %v310 = vpop.permute.xlu0 %309
  %311 = vrot.lane.b32.xlu0 %v296, 96
  %v312 = vpop.permute.xlu0 %311
  %v321 = vunpack.c.l.b16 %v56
  %v322 = vunpack.c.l.b16 %v57
  %v323 = vunpack.c.l.b16 %v58
  %v324 = vunpack.c.l.b16 %v59
  %v325 = vunpack.c.l.b16 %v60
  %v326 = vunpack.c.l.b16 %v61
  %v327 = vunpack.c.l.b16 %v62
  %v328 = vunpack.c.l.b16 %v63
  %v329 = vpack.c.b16 %v321, %v321
  %v330 = vpack.c.b16 %v322, %v322
  %v331 = vpack.c.b16 %v323, %v323
  %v332 = vpack.c.b16 %v324, %v324
  %v333 = vpack.c.b16 %v325, %v325
  %v334 = vpack.c.b16 %v326, %v326
  %v335 = vpack.c.b16 %v327, %v327
  %v336 = vpack.c.b16 %v328, %v328
  %v338 = vshrl.u32 %v329, 16
  %v340 = vshll.u32 %v329, 16
  %v342 = vrot.slane %v340, 1
  %v343 = vor.u32 %v338, %v342
  %v345 = vshrl.u32 %v330, 16
  %v347 = vshll.u32 %v330, 16
  %v349 = vrot.slane %v347, 1
  %v350 = vor.u32 %v345, %v349
  %v352 = vshrl.u32 %v331, 16
  %v354 = vshll.u32 %v331, 16
  %v356 = vrot.slane %v354, 1
  %v357 = vor.u32 %v352, %v356
  %v359 = vshrl.u32 %v332, 16
  %v361 = vshll.u32 %v332, 16
  %v363 = vrot.slane %v361, 1
  %v364 = vor.u32 %v359, %v363
  %v366 = vshrl.u32 %v333, 16
  %v368 = vshll.u32 %v333, 16
  %v370 = vrot.slane %v368, 1
  %v371 = vor.u32 %v366, %v370
  %v373 = vshrl.u32 %v334, 16
  %v375 = vshll.u32 %v334, 16
  %v377 = vrot.slane %v375, 1
  %v378 = vor.u32 %v373, %v377
  %v380 = vshrl.u32 %v335, 16
  %v382 = vshll.u32 %v335, 16
  %v384 = vrot.slane %v382, 1
  %v385 = vor.u32 %v380, %v384
  %v387 = vshrl.u32 %v336, 16
  %v389 = vshll.u32 %v336, 16
  %v391 = vrot.slane %v389, 1
  %v392 = vor.u32 %v387, %v391
  %393 = vrot.lane.b32.xlu0 %v343, 32
  %v394 = vpop.permute.xlu0 %393
  %395 = vrot.lane.b32.xlu0 %v350, 32
  %v396 = vpop.permute.xlu0 %395
  %397 = vrot.lane.b32.xlu0 %v357, 32
  %v398 = vpop.permute.xlu0 %397
  %399 = vrot.lane.b32.xlu0 %v364, 32
  %v400 = vpop.permute.xlu0 %399
  %401 = vrot.lane.b32.xlu0 %v371, 32
  %v402 = vpop.permute.xlu0 %401
  %403 = vrot.lane.b32.xlu0 %v378, 32
  %v404 = vpop.permute.xlu0 %403
  %405 = vrot.lane.b32.xlu0 %v385, 32
  %v406 = vpop.permute.xlu0 %405
  %407 = vrot.lane.b32.xlu0 %v392, 32
  %v408 = vpop.permute.xlu0 %407
  %v417 = vunpack.c.l.b16 %v65
  %v418 = vunpack.c.l.b16 %v66
  %v419 = vunpack.c.l.b16 %v67
  %v420 = vunpack.c.l.b16 %v68
  %v421 = vunpack.c.l.b16 %v69
  %v422 = vunpack.c.l.b16 %v70
  %v423 = vunpack.c.l.b16 %v71
  %v424 = vunpack.c.l.b16 %v72
  %v425 = vpack.c.b16 %v417, %v417
  %v426 = vpack.c.b16 %v418, %v418
  %v427 = vpack.c.b16 %v419, %v419
  %v428 = vpack.c.b16 %v420, %v420
  %v429 = vpack.c.b16 %v421, %v421
  %v430 = vpack.c.b16 %v422, %v422
  %v431 = vpack.c.b16 %v423, %v423
  %v432 = vpack.c.b16 %v424, %v424
  %433 = vrot.lane.b32.xlu0 %v425, 64
  %v434 = vpop.permute.xlu0 %433
  %435 = vrot.lane.b32.xlu0 %v426, 64
  %v436 = vpop.permute.xlu0 %435
  %437 = vrot.lane.b32.xlu0 %v427, 64
  %v438 = vpop.permute.xlu0 %437
  %439 = vrot.lane.b32.xlu0 %v428, 64
  %v440 = vpop.permute.xlu0 %439
  %441 = vrot.lane.b32.xlu0 %v429, 64
  %v442 = vpop.permute.xlu0 %441
  %443 = vrot.lane.b32.xlu0 %v430, 64
  %v444 = vpop.permute.xlu0 %443
  %445 = vrot.lane.b32.xlu0 %v431, 64
  %v446 = vpop.permute.xlu0 %445
  %447 = vrot.lane.b32.xlu0 %v432, 64
  %v448 = vpop.permute.xlu0 %447
  %v457 = vunpack.c.l.b16 %v73
  %v458 = vunpack.c.l.b16 %v74
  %v459 = vunpack.c.l.b16 %v75
  %v460 = vunpack.c.l.b16 %v76
  %v461 = vunpack.c.l.b16 %v77
  %v462 = vunpack.c.l.b16 %v78
  %v463 = vunpack.c.l.b16 %v79
  %v464 = vunpack.c.l.b16 %v80
  %v465 = vpack.c.b16 %v457, %v457
  %v466 = vpack.c.b16 %v458, %v458
  %v467 = vpack.c.b16 %v459, %v459
  %v468 = vpack.c.b16 %v460, %v460
  %v469 = vpack.c.b16 %v461, %v461
  %v470 = vpack.c.b16 %v462, %v462
  %v471 = vpack.c.b16 %v463, %v463
  %v472 = vpack.c.b16 %v464, %v464
  %v474 = vshrl.u32 %v465, 16
  %v476 = vshll.u32 %v465, 16
  %v478 = vrot.slane %v476, 1
  %v479 = vor.u32 %v474, %v478
  %v481 = vshrl.u32 %v466, 16
  %v483 = vshll.u32 %v466, 16
  %v485 = vrot.slane %v483, 1
  %v486 = vor.u32 %v481, %v485
  %v488 = vshrl.u32 %v467, 16
  %v490 = vshll.u32 %v467, 16
  %v492 = vrot.slane %v490, 1
  %v493 = vor.u32 %v488, %v492
  %v495 = vshrl.u32 %v468, 16
  %v497 = vshll.u32 %v468, 16
  %v499 = vrot.slane %v497, 1
  %v500 = vor.u32 %v495, %v499
  %v502 = vshrl.u32 %v469, 16
  %v504 = vshll.u32 %v469, 16
  %v506 = vrot.slane %v504, 1
  %v507 = vor.u32 %v502, %v506
  %v509 = vshrl.u32 %v470, 16
  %v511 = vshll.u32 %v470, 16
  %v513 = vrot.slane %v511, 1
  %v514 = vor.u32 %v509, %v513
  %v516 = vshrl.u32 %v471, 16
  %v518 = vshll.u32 %v471, 16
  %v520 = vrot.slane %v518, 1
  %v521 = vor.u32 %v516, %v520
  %v523 = vshrl.u32 %v472, 16
  %v525 = vshll.u32 %v472, 16
  %v527 = vrot.slane %v525, 1
  %v528 = vor.u32 %v523, %v527
  %529 = vrot.lane.b32.xlu0 %v479, 96
  %v530 = vpop.permute.xlu0 %529
  %531 = vrot.lane.b32.xlu0 %v486, 96
  %v532 = vpop.permute.xlu0 %531
  %533 = vrot.lane.b32.xlu0 %v493, 96
  %v534 = vpop.permute.xlu0 %533
  %535 = vrot.lane.b32.xlu0 %v500, 96
  %v536 = vpop.permute.xlu0 %535
  %537 = vrot.lane.b32.xlu0 %v507, 96
  %v538 = vpop.permute.xlu0 %537
  %539 = vrot.lane.b32.xlu0 %v514, 96
  %v540 = vpop.permute.xlu0 %539
  %541 = vrot.lane.b32.xlu0 %v521, 96
  %v542 = vpop.permute.xlu0 %541
  %543 = vrot.lane.b32.xlu0 %v528, 96
  %v544 = vpop.permute.xlu0 %543
  %vm545 = vcmask 261120
  %v548 = vsel %vm545, %v14, %v162
  %v551 = vsel %vm545, %v15, %v164
  %v554 = vsel %vm545, %v16, %v166
  %v557 = vsel %vm545, %v17, %v168
  %v560 = vsel %vm545, %v18, %v170
  %v563 = vsel %vm545, %v19, %v172
  %v566 = vsel %vm545, %v20, %v174
  %v569 = vsel %vm545, %v21, %v176
  %vm570 = vcmask 523264
  %v572 = vsel %vm570, %v548, %v202
  %v574 = vsel %vm570, %v551, %v204
  %v576 = vsel %vm570, %v554, %v206
  %v578 = vsel %vm570, %v557, %v208
  %v580 = vsel %vm570, %v560, %v210
  %v582 = vsel %vm570, %v563, %v212
  %v584 = vsel %vm570, %v566, %v214
  %v586 = vsel %vm570, %v569, %v216
  %vm587 = vcmask 785408
  %v589 = vsel %vm587, %v572, %v298
  %v591 = vsel %vm587, %v574, %v300
  %v593 = vsel %vm587, %v576, %v302
  %v595 = vsel %vm587, %v578, %v304
  %v597 = vsel %vm587, %v580, %v306
  %v599 = vsel %vm587, %v582, %v308
  %v601 = vsel %vm587, %v584, %v310
  %v603 = vsel %vm587, %v586, %v312
  %v606 = vsel %vm545, %v48, %v394
  %v609 = vsel %vm545, %v49, %v396
  %v612 = vsel %vm545, %v50, %v398
  %v615 = vsel %vm545, %v51, %v400
  %v618 = vsel %vm545, %v52, %v402
  %v621 = vsel %vm545, %v53, %v404
  %v624 = vsel %vm545, %v54, %v406
  %v627 = vsel %vm545, %v55, %v408
  %v629 = vsel %vm570, %v606, %v434
  %v631 = vsel %vm570, %v609, %v436
  %v633 = vsel %vm570, %v612, %v438
  %v635 = vsel %vm570, %v615, %v440
  %v637 = vsel %vm570, %v618, %v442
  %v639 = vsel %vm570, %v621, %v444
  %v641 = vsel %vm570, %v624, %v446
  %v643 = vsel %vm570, %v627, %v448
  %v645 = vsel %vm587, %v629, %v530
  %v647 = vsel %vm587, %v631, %v532
  %v649 = vsel %vm587, %v633, %v534
  %v651 = vsel %vm587, %v635, %v536
  %v653 = vsel %vm587, %v637, %v538
  %v655 = vsel %vm587, %v639, %v540
  %v657 = vsel %vm587, %v641, %v542
  %v659 = vsel %vm587, %v643, %v544
  %v676 = vcombine.low %v589, %v645
  %v678 = vunpack.c.l.s4 1983009808
  %v679 = vunpack.c.0.s8 %v678
  %v680 = vlaneseq
  %v681 = vshrl.u32 %v680, 7
  %v682 = vsub.s32 %v679, %v681
  %v683 = vrot.slane %v676, %v682
  %v684 = vcombine.low %v591, %v647
  %v686 = vunpack.c.l.s4 1983009808
  %v687 = vunpack.c.0.s8 %v686
  %v688 = vlaneseq
  %v689 = vshrl.u32 %v688, 7
  %v690 = vsub.s32 %v687, %v689
  %v691 = vrot.slane %v684, %v690
  %v692 = vcombine.low %v593, %v649
  %v694 = vunpack.c.l.s4 1983009808
  %v695 = vunpack.c.0.s8 %v694
  %v696 = vlaneseq
  %v697 = vshrl.u32 %v696, 7
  %v698 = vsub.s32 %v695, %v697
  %v699 = vrot.slane %v692, %v698
  %v700 = vcombine.low %v595, %v651
  %v702 = vunpack.c.l.s4 1983009808
  %v703 = vunpack.c.0.s8 %v702
  %v704 = vlaneseq
  %v705 = vshrl.u32 %v704, 7
  %v706 = vsub.s32 %v703, %v705
  %v707 = vrot.slane %v700, %v706
  %v708 = vcombine.low %v597, %v653
  %v710 = vunpack.c.l.s4 1983009808
  %v711 = vunpack.c.0.s8 %v710
  %v712 = vlaneseq
  %v713 = vshrl.u32 %v712, 7
  %v714 = vsub.s32 %v711, %v713
  %v715 = vrot.slane %v708, %v714
  %v716 = vcombine.low %v599, %v655
  %v718 = vunpack.c.l.s4 1983009808
  %v719 = vunpack.c.0.s8 %v718
  %v720 = vlaneseq
  %v721 = vshrl.u32 %v720, 7
  %v722 = vsub.s32 %v719, %v721
  %v723 = vrot.slane %v716, %v722
  %v724 = vcombine.low %v601, %v657
  %v726 = vunpack.c.l.s4 1983009808
  %v727 = vunpack.c.0.s8 %v726
  %v728 = vlaneseq
  %v729 = vshrl.u32 %v728, 7
  %v730 = vsub.s32 %v727, %v729
  %v731 = vrot.slane %v724, %v730
  %v732 = vcombine.low %v603, %v659
  %v734 = vunpack.c.l.s4 1983009808
  %v735 = vunpack.c.0.s8 %v734
  %v736 = vlaneseq
  %v737 = vshrl.u32 %v736, 7
  %v738 = vsub.s32 %v735, %v737
  %v739 = vrot.slane %v732, %v738
  %v740 = vld [vmem:[%s1] sm:$0xf]
  %v741 = vld [vmem:[%s1 + $0x4] sm:$0xf]
  %v742 = vld [vmem:[%s1 + $0x8] sm:$0xf]
  %v743 = vld [vmem:[%s1 + $0xc] sm:$0xf]
  %v744 = vld [vmem:[%s1 + $0x10] sm:$0xf]
  %v745 = vld [vmem:[%s1 + $0x14] sm:$0xf]
  %v746 = vld [vmem:[%s1 + $0x18] sm:$0xf]
  %v747 = vld [vmem:[%s1 + $0x1c] sm:$0xf]
  %v748 = vld [vmem:[%s1 + $0x20] sm:$0xf]
  %v749 = vld [vmem:[%s1 + $0x24] sm:$0xf]
  %v750 = vld [vmem:[%s1 + $0x28] sm:$0xf]
  %v751 = vld [vmem:[%s1 + $0x2c] sm:$0xf]
  %v752 = vld [vmem:[%s1 + $0x30] sm:$0xf]
  %v753 = vld [vmem:[%s1 + $0x34] sm:$0xf]
  %v754 = vld [vmem:[%s1 + $0x38] sm:$0xf]
  %v755 = vld [vmem:[%s1 + $0x3c] sm:$0xf]
  %v756 = vld [vmem:[%s1 + $0x40] sm:$0xf]
  %v757 = vld [vmem:[%s1 + $0x44] sm:$0xf]
  %v758 = vld [vmem:[%s1 + $0x48] sm:$0xf]
  %v759 = vld [vmem:[%s1 + $0x4c] sm:$0xf]
  %v760 = vld [vmem:[%s1 + $0x50] sm:$0xf]
  %v761 = vld [vmem:[%s1 + $0x54] sm:$0xf]
  %v762 = vld [vmem:[%s1 + $0x58] sm:$0xf]
  %v763 = vld [vmem:[%s1 + $0x5c] sm:$0xf]
  %v764 = vld [vmem:[%s1 + $0x60] sm:$0xf]
  %v765 = vld [vmem:[%s1 + $0x64] sm:$0xf]
  %v766 = vld [vmem:[%s1 + $0x68] sm:$0xf]
  %v767 = vld [vmem:[%s1 + $0x6c] sm:$0xf]
  %v768 = vld [vmem:[%s1 + $0x70] sm:$0xf]
  %v769 = vld [vmem:[%s1 + $0x74] sm:$0xf]
  %v770 = vld [vmem:[%s1 + $0x78] sm:$0xf]
  %v771 = vld [vmem:[%s1 + $0x7c] sm:$0xf]
  %v772 = vcombine.low %v683, %v691
  %v773 = vcombine.low %v699, %v707
  %v775 = vunpack.c.l.s4 1983009808
  %v776 = vunpack.c.0.s8 %v775
  %v777 = vlaneseq
  %v778 = vshrl.u32 %v777, 7
  %v779 = vsub.s32 %v776, %v778
  %v780 = vrot.slane %v772, %v779
  %v782 = vunpack.c.l.s4 1983009808
  %v783 = vunpack.c.0.s8 %v782
  %v784 = vlaneseq
  %v785 = vshrl.u32 %v784, 7
  %v786 = vsub.s32 %v783, %v785
  %v787 = vrot.slane %v773, %v786
  %v788 = vcombine.low %v780, %v787
  %v789 = vcombine.high %v780, %v787
  %v790 = vcombine.low %v715, %v723
  %v791 = vcombine.low %v731, %v739
  %v793 = vunpack.c.l.s4 1983009808
  %v794 = vunpack.c.0.s8 %v793
  %v795 = vlaneseq
  %v796 = vshrl.u32 %v795, 7
  %v797 = vsub.s32 %v794, %v796
  %v798 = vrot.slane %v790, %v797
  %v800 = vunpack.c.l.s4 1983009808
  %v801 = vunpack.c.0.s8 %v800
  %v802 = vlaneseq
  %v803 = vshrl.u32 %v802, 7
  %v804 = vsub.s32 %v801, %v803
  %v805 = vrot.slane %v791, %v804
  %v806 = vcombine.low %v798, %v805
  %v807 = vcombine.high %v798, %v805
  %v844 = vunpack.c.l.b16 %v740
  %v845 = vunpack.c.l.b16 %v741
  %v846 = vunpack.c.l.b16 %v742
  %v847 = vunpack.c.l.b16 %v743
  %v848 = vunpack.c.l.b16 %v744
  %v849 = vunpack.c.l.b16 %v745
  %v850 = vunpack.c.l.b16 %v746
  %v851 = vunpack.c.l.b16 %v747
  %v852 = vunpack.c.l.b16 %v748
  %v853 = vunpack.c.l.b16 %v749
  %v854 = vunpack.c.l.b16 %v750
  %v855 = vunpack.c.l.b16 %v751
  %v856 = vunpack.c.l.b16 %v752
  %v857 = vunpack.c.l.b16 %v753
  %v858 = vunpack.c.l.b16 %v754
  %v859 = vunpack.c.l.b16 %v755
  %v860 = vunpack.c.l.b16 %v756
  %v861 = vunpack.c.l.b16 %v757
  %v862 = vunpack.c.l.b16 %v758
  %v863 = vunpack.c.l.b16 %v759
  %v864 = vunpack.c.l.b16 %v760
  %v865 = vunpack.c.l.b16 %v761
  %v866 = vunpack.c.l.b16 %v762
  %v867 = vunpack.c.l.b16 %v763
  %v868 = vunpack.c.l.b16 %v764
  %v869 = vunpack.c.l.b16 %v765
  %v870 = vunpack.c.l.b16 %v766
  %v871 = vunpack.c.l.b16 %v767
  %v872 = vunpack.c.l.b16 %v768
  %v873 = vunpack.c.l.b16 %v769
  %v874 = vunpack.c.l.b16 %v770
  %v875 = vunpack.c.l.b16 %v771
  %v876 = vpack.c.b16 %v845, %v844
  %v877 = vpack.c.b16 %v847, %v846
  %v878 = vpack.c.b16 %v849, %v848
  %v879 = vpack.c.b16 %v851, %v850
  %v880 = vpack.c.b16 %v853, %v852
  %v881 = vpack.c.b16 %v855, %v854
  %v882 = vpack.c.b16 %v857, %v856
  %v883 = vpack.c.b16 %v859, %v858
  %v884 = vpack.c.b16 %v861, %v860
  %v885 = vpack.c.b16 %v863, %v862
  %v886 = vpack.c.b16 %v865, %v864
  %v887 = vpack.c.b16 %v867, %v866
  %v888 = vpack.c.b16 %v869, %v868
  %v889 = vpack.c.b16 %v871, %v870
  %v890 = vpack.c.b16 %v873, %v872
  %v891 = vpack.c.b16 %v875, %v874
  %908 = vmatprep.subr.bf16.mxu0 0
  %909 = vmatpush1.bf16.msra.mxu0 %v876
  %910 = vmatprep.subr.bf16.mxu0 0
  %911 = vmatpush1.bf16.msra.mxu0 %v877
  %912 = vmatprep.subr.bf16.mxu0 0
  %913 = vmatpush1.bf16.msra.mxu0 %v878
  %914 = vmatprep.subr.bf16.mxu0 0
  %915 = vmatpush1.bf16.msra.mxu0 %v879
  %916 = vmatprep.subr.bf16.mxu0 0
  %917 = vmatpush1.bf16.msra.mxu0 %v880
  %918 = vmatprep.subr.bf16.mxu0 0
  %919 = vmatpush1.bf16.msra.mxu0 %v881
  %920 = vmatprep.subr.bf16.mxu0 0
  %921 = vmatpush1.bf16.msra.mxu0 %v882
  %922 = vmatprep.subr.bf16.mxu0 0
  %923 = vmatpush1.bf16.msra.mxu0 %v883
  %924 = vmatprep.subr.bf16.mxu0 0
  %925 = vmatpush1.bf16.msra.mxu0 %v884
  %926 = vmatprep.subr.bf16.mxu0 0
  %927 = vmatpush1.bf16.msra.mxu0 %v885
  %928 = vmatprep.subr.bf16.mxu0 0
  %929 = vmatpush1.bf16.msra.mxu0 %v886
  %930 = vmatprep.subr.bf16.mxu0 0
  %931 = vmatpush1.bf16.msra.mxu0 %v887
  %932 = vmatprep.subr.bf16.mxu0 0
  %933 = vmatpush1.bf16.msra.mxu0 %v888
  %934 = vmatprep.subr.bf16.mxu0 0
  %935 = vmatpush1.bf16.msra.mxu0 %v889
  %936 = vmatprep.subr.bf16.mxu0 0
  %937 = vmatpush1.bf16.msra.mxu0 %v890
  %938 = vmatprep.subr.bf16.mxu0 0
  %939 = vmatpush1.bf16.msra.mxu0 %v891
  %940 = vmatprep.mubr.bf16.mxu0 %v789
  %941 = vmatmul.mubr.bf16.gmra.mrb[0].mxu0 %v788
  %v942 = vpop.f32.mrb[0].mxu0
  %v943 = vadd.f32 0.0, %v942
  %v944 = vpop.f32.mrb[0].mxu0
  %v945 = vpop.f32.mrb[0].mxu0
  %v946 = vadd.f32 0.0, %v945
  %v947 = vpop.f32.mrb[0].mxu0
  %948 = vmatprep.mubr.bf16.mxu0 %v807
  %949 = vmatmul.mubr.bf16.gmra.mrb[0].mxu0 %v806
  %v950 = vpop.f32.mrb[0].mxu0
  %v951 = vadd.f32 0.0, %v950
  %v952 = vpop.f32.mrb[0].mxu0
  %v953 = vpop.f32.mrb[0].mxu0
  %v954 = vadd.f32 0.0, %v953
  %v955 = vpop.f32.mrb[0].mxu0
  %956 = vdwg.mxu0
  %v957 = vsel %vm545, %v943, 0.0
  %v958 = vsel %vm545, %v946, 0.0
  %v959 = vadd.f32 %v957, %v958
  %v960 = vsel %vm545, %v951, 0.0
  %v961 = vadd.f32 %v959, %v960
  %v962 = vsel %vm545, %v954, 0.0
  %v963 = vadd.f32 %v961, %v962
  %v964 = vrot.slane %v963, 4
  %v965 = vadd.f32 %v963, %v964
  %v966 = vrot.slane %v965, 2
  %v967 = vadd.f32 %v965, %v966
  %v968 = vrot.slane %v967, 1
  %v969 = vadd.f32 %v967, %v968
  %v970 = vmul.f32 %v943, %v943
  %v971 = vmul.f32 %v946, %v946
  %v972 = vmul.f32 %v951, %v951
  %v973 = vmul.f32 %v954, %v954
  %v974 = vsel %vm545, %v970, 0.0
  %v975 = vsel %vm545, %v971, 0.0
  %v976 = vadd.f32 %v974, %v975
  %v977 = vsel %vm545, %v972, 0.0
  %v978 = vadd.f32 %v976, %v977
  %v979 = vsel %vm545, %v973, 0.0
  %v980 = vadd.f32 %v978, %v979
  %v981 = vrot.slane %v980, 4
  %v982 = vadd.f32 %v980, %v981
  %v983 = vrot.slane %v982, 2
  %v984 = vadd.f32 %v982, %v983
  %v985 = vrot.slane %v984, 1
  %v986 = vadd.f32 %v984, %v985
  %vm987 = vcmask 1040384
  %v988 = vsel %vm987, %v969, %v986
  %vm989 = vcmask 254976
  %990 = vst.msk [vmem:[%s3] sm:$0x3] %vm989, %v988
  %v995 = vcombine.high %v943, %v943
  %v996 = vcombine.high %v946, %v946
  %v997 = vcombine.high %v951, %v951
  %v998 = vcombine.high %v954, %v954
  %v1003 = vpack.c.bf16 %v943, %v943
  %v1004 = vpack.c.bf16 %v995, %v995
  %v1005 = vpack.c.bf16 %v946, %v946
  %v1006 = vpack.c.bf16 %v996, %v996
  %v1007 = vpack.c.bf16 %v951, %v951
  %v1008 = vpack.c.bf16 %v997, %v997
  %v1009 = vpack.c.bf16 %v954, %v954
  %v1010 = vpack.c.bf16 %v998, %v998
  %1011 = vst.msk [vmem:[%s2] sm:$0x3] %vm989, %v1003
  %1012 = vst.msk [vmem:[%s2 + $0x2] sm:$0x3] %vm989, %v1004
  %1013 = vst.msk [vmem:[%s2 + $0x4] sm:$0x3] %vm989, %v1005
  %1014 = vst.msk [vmem:[%s2 + $0x6] sm:$0x3] %vm989, %v1006
  %1015 = vst.msk [vmem:[%s2 + $0x8] sm:$0x3] %vm989, %v1007
  %1016 = vst.msk [vmem:[%s2 + $0xa] sm:$0x3] %vm989, %v1008
  %1017 = vst.msk [vmem:[%s2 + $0xc] sm:$0x3] %vm989, %v1009
  %1018 = vst.msk [vmem:[%s2 + $0xe] sm:$0x3] %vm989, %v1010
  // Predicated region
  $region10: #{discriminator_forward.10} parent=0 // pred_check
    _
  $region11: #{discriminator_forward.10} parent=0 // pred_check_branch
    %1020 = sbr.rel (0) target = $region13
  $region12: #{discriminator_forward.10} parent=0 // pred_region
    _
  $region13: #{discriminator_forward.10} parent=0 // pred_fallthru
    _
  // Predicated region
  $region14: #{discriminator_forward.10} parent=0 // pred_check
    _
  $region15: #{discriminator_forward.10} parent=0 // pred_check_branch
    %1022 = sbr.rel (0) target = $region17
  $region16: #{discriminator_forward.10} parent=0 // pred_region
    _
  $region17: #{discriminator_forward.10} parent=0 // pred_fallthru
    _
  // Predicated region
  $region18: #{discriminator_forward.10} parent=0 // pred_check
    _
  $region19: #{discriminator_forward.10} parent=0 // pred_check_branch
    %1024 = sbr.rel (0) target = $region21
  $region20: #{discriminator_forward.10} parent=0 // pred_region
    _
  $region21: #{discriminator_forward.10} parent=0 // pred_fallthru
    _
  // Predicated region
  $region22: #{discriminator_forward.10} parent=0 // pred_check
    _
  $region23: #{discriminator_forward.10} parent=0 // pred_check_branch
    %1026 = sbr.rel (0) target = $region25
  $region24: #{discriminator_forward.10} parent=0 // pred_region
    _
  $region25: #{discriminator_forward.10} parent=0 // pred_fallthru
    _

// kernel: discriminator_forward.13
$region0: #{discriminator_forward.13}
  #allocation0 [shape = 'u32[]', space=smem, size = 0x4, offset = 0x4, fixed_abs, tag = 'smem constant byte address 0x4 - core index']
  #allocation1 [shape = 'u32[144,128]{1,0:T(1,128)}', space=vmem, size = 0x12000, scoped, tag = 'internal scratch']
  #allocation2 [shape = 'f32[1]{0:T(128)S(6)}', space=smem, size = 0x200, scoped, tag = 'scoped memory for discriminator_forward.13']
  %s0 = inlined_call_operand.vmem [shape: bf16[2,1,2,1,128], index: 0, kind: input, shape index: {}]
  %s1 = inlined_call_operand.vmem [shape: f32[1,64], index: 1, kind: input, shape index: {}]
  %s2 = inlined_call_operand.vmem [shape: f32[1,64], index: 2, kind: input, shape index: {}]
  %s3 = inlined_call_operand.vmem [shape: f32[1,1,64], index: 3, kind: input, shape index: {}]
  %s4 = inlined_call_operand.<no memory space> [shape: f32[1], index: 4, kind: input, shape index: {}]
  %s5 = inlined_call_operand.vmem [shape: f32[2,1], index: 5, kind: output, shape index: {}]
  %s6 = sld [smem:[#allocation0]]
  $region30: #{discriminator_forward.13} parent=0
    _
  %s8 = ssub.s32 1, %s6
  %s9 = scalar_select 0, %s8, %s6
  %10 = sst [smem:[#allocation2]] %s4
  // Predicated region
  $region2: #{discriminator_forward.13} parent=0 // pred_check
    _
  $region3: #{discriminator_forward.13} parent=0 // pred_check_branch
    %12 = sbr.rel (0) target = $region5
  $region4: #{discriminator_forward.13} parent=0 // pred_region
    _
  $region5: #{discriminator_forward.13} parent=0 // pred_fallthru
    _
  // Predicated region
  $region6: #{discriminator_forward.13} parent=0 // pred_check
    _
  $region7: #{discriminator_forward.13} parent=0 // pred_check_branch
    %14 = sbr.rel (0) target = $region9
  $region8: #{discriminator_forward.13} parent=0 // pred_region
    _
  $region9: #{discriminator_forward.13} parent=0 // pred_fallthru
    _
  // Predicated region
  $region10: #{discriminator_forward.13} parent=0 // pred_check
    _
  $region11: #{discriminator_forward.13} parent=0 // pred_check_branch
    %16 = sbr.rel (0) target = $region13
  $region12: #{discriminator_forward.13} parent=0 // pred_region
    _
  $region13: #{discriminator_forward.13} parent=0 // pred_fallthru
    _
  // Predicated region
  $region14: #{discriminator_forward.13} parent=0 // pred_check
    _
  $region15: #{discriminator_forward.13} parent=0 // pred_check_branch
    %18 = sbr.rel (0) target = $region17
  $region16: #{discriminator_forward.13} parent=0 // pred_region
    _
  $region17: #{discriminator_forward.13} parent=0 // pred_fallthru
    _
  // Predicated region
  $region18: #{discriminator_forward.13} parent=0 // pred_check
    _
  $region19: #{discriminator_forward.13} parent=0 // pred_check_branch
    %20 = sbr.rel (0) target = $region21
  $region20: #{discriminator_forward.13} parent=0 // pred_region
    _
  $region21: #{discriminator_forward.13} parent=0 // pred_fallthru
    _
  %v21 = vld [vmem:[%s1] sm:$0x1]
  %v22 = vld [vmem:[%s2] sm:$0x1]
  %v23 = vld [vmem:[%s0] sm:$0x1]
  %v24 = vld [vmem:[%s0 + $0x2] sm:$0x1]
  %v25 = vunpack.c.l.bf16 %v23
  %v26 = vunpack.c.l.bf16 %v24
  %v27 = vmul.f32 %v25, %v21
  %v28 = vmul.f32 %v26, %v21
  %v29 = vadd.f32 %v27, %v22
  %v30 = vadd.f32 %v28, %v22
  %vm31 = vcmp.ge.f32.partialorder %v29, 0.0
  %vm32 = vcmp.ge.f32.partialorder %v30, 0.0
  %v33 = vmul.f32 %v29, 0.2
  %v34 = vmul.f32 %v30, 0.2
  %v35 = vsel %vm31, %v29, %v33
  %v36 = vsel %vm32, %v30, %v34
  %v39 = vunpack.c.l.s4 857870592
  %v40 = vunpack.c.0.s8 %v39
  %v41 = vlaneseq
  %v42 = vshrl.u32 %v41, 7
  %v43 = vsub.s32 %v40, %v42
  %v44 = vrot.slane %v21, %v43
  %45 = vrot.lane.b32.xlu0 %v44, 64
  %v46 = vpop.permute.xlu0 %45
  %v48 = vmul.f32 %v25, %v46
  %v49 = vmul.f32 %v26, %v46
  %v52 = vunpack.c.l.s4 857870592
  %v53 = vunpack.c.0.s8 %v52
  %v54 = vlaneseq
  %v55 = vshrl.u32 %v54, 7
  %v56 = vsub.s32 %v53, %v55
  %v57 = vrot.slane %v22, %v56
  %58 = vrot.lane.b32.xlu0 %v57, 64
  %v59 = vpop.permute.xlu0 %58
  %v61 = vadd.f32 %v48, %v59
  %v62 = vadd.f32 %v49, %v59
  %vm63 = vcmp.ge.f32.partialorder %v61, 0.0
  %vm64 = vcmp.ge.f32.partialorder %v62, 0.0
  %v65 = vmul.f32 %v61, 0.2
  %v66 = vmul.f32 %v62, 0.2
  %v67 = vsel %vm63, %v61, %v65
  %v68 = vsel %vm64, %v62, %v66
  %71 = vrot.lane.b32.xlu0 %v67, 64
  %v72 = vpop.permute.xlu0 %71
  %73 = vrot.lane.b32.xlu0 %v68, 64
  %v74 = vpop.permute.xlu0 %73
  %v77 = vmax.f32 %v35, %v72
  %v78 = vmax.f32 %v36, %v74
  %s79 = scalar_lea.vmem %s0, 1
  %v80 = vld [vmem:[%s79] sm:$0x1]
  %v81 = vld [vmem:[%s79 + $0x2] sm:$0x1]
  %v82 = vunpack.c.l.bf16 %v80
  %v83 = vunpack.c.l.bf16 %v81
  %v84 = vmul.f32 %v82, %v21
  %v85 = vmul.f32 %v83, %v21
  %v86 = vadd.f32 %v84, %v22
  %v87 = vadd.f32 %v85, %v22
  %vm88 = vcmp.ge.f32.partialorder %v86, 0.0
  %vm89 = vcmp.ge.f32.partialorder %v87, 0.0
  %v90 = vmul.f32 %v86, 0.2
  %v91 = vmul.f32 %v87, 0.2
  %v92 = vsel %vm88, %v86, %v90
  %v93 = vsel %vm89, %v87, %v91
  %v94 = vmax.f32 %v77, %v92
  %v95 = vmax.f32 %v78, %v93
  %v96 = vmul.f32 %v82, %v46
  %v97 = vmul.f32 %v83, %v46
  %v98 = vadd.f32 %v96, %v59
  %v99 = vadd.f32 %v97, %v59
  %vm100 = vcmp.ge.f32.partialorder %v98, 0.0
  %vm101 = vcmp.ge.f32.partialorder %v99, 0.0
  %v102 = vmul.f32 %v98, 0.2
  %v103 = vmul.f32 %v99, 0.2
  %v104 = vsel %vm100, %v98, %v102
  %v105 = vsel %vm101, %v99, %v103
  %108 = vrot.lane.b32.xlu0 %v104, 64
  %v109 = vpop.permute.xlu0 %108
  %110 = vrot.lane.b32.xlu0 %v105, 64
  %v111 = vpop.permute.xlu0 %110
  %v114 = vmax.f32 %v94, %v109
  %v115 = vmax.f32 %v95, %v111
  %v116 = vld [vmem:[%s3] sm:$0x1]
  %v117 = vmul.f32 %v114, %v116
  %v118 = vmul.f32 %v115, %v116
  %v119 = vadd.f32 %v117, 0.0
  %v120 = vadd.f32 %v118, 0.0
  %v123 = vlaneseq
  %v124 = vshrl.u32 %v123, 7
  %v125 = vsub.s32 0, %v124
  %v126 = vrot.slane %v119, %v125
  %v127 = vlaneseq
  %v128 = vshrl.u32 %v127, 7
  %v129 = vsub.s32 0, %v128
  %v130 = vrot.slane %v120, %v129
  %vm131 = vcmask 1041409
  %v132 = vsel %vm131, %v130, %v126
  %vm134 = vcmask 517120
  %v135 = vsel %vm134, %v132, 0.0
  %136 = vadd.xlane.f32.xlu0 %v135
  %v137 = vpop.xlane.xlu0 %136
  %s138 = sld [smem:[#allocation2]]
  %v139 = vstv %s138
  %v140 = vadd.f32 %v137, %v139
  %v141 = vxor.u32 %v140, 2147483648
  %v142 = vmul.f32 %v141, 1.442695
  %v143 = vpow.pop %v142
  %v144 = vadd.f32 %v143, 1.0
  %v145 = vrcp.pop %v144
  %v146 = vmul.f32 1.0, %v145
  %vm147 = vcmask 1024
  %148 = vst.msk [vmem:[%s5] sm:$0x3] %vm147, %v146
  // Predicated region
  $region22: #{discriminator_forward.13} parent=0 // pred_check
    _
  $region23: #{discriminator_forward.13} parent=0 // pred_check_branch
    %150 = sbr.rel (0) target = $region25
  $region24: #{discriminator_forward.13} parent=0 // pred_region
    _
  $region25: #{discriminator_forward.13} parent=0 // pred_fallthru
    _
  // Predicated region
  $region26: #{discriminator_forward.13} parent=0 // pred_check
    _
  $region27: #{discriminator_forward.13} parent=0 // pred_check_branch
    %152 = sbr.rel (0) target = $region29
  $region28: #{discriminator_forward.13} parent=0 // pred_region
    _
  $region29: #{discriminator_forward.13} parent=0 // pred_fallthru
    _

// kernel: discriminator_forward.12
$region0: #{discriminator_forward.12}
  #allocation0 [shape = 'u32[]', space=smem, size = 0x4, offset = 0x4, fixed_abs, tag = 'smem constant byte address 0x4 - core index']
  #allocation1 [shape = 'u32[144,128]{1,0:T(1,128)}', space=vmem, size = 0x12000, scoped, tag = 'internal scratch']
  %s0 = inlined_call_operand.vmem [shape: bf16[2,3,2,3,64], index: 0, kind: input, shape index: {}]
  %s1 = inlined_call_operand.vmem [shape: bf16[512,64], index: 1, kind: input, shape index: {}]
  %s2 = inlined_call_operand.vmem [shape: bf16[2,2,2,64], index: 2, kind: output, shape index: {0}]
  %s3 = inlined_call_operand.vmem [shape: f32[1,2,64], index: 3, kind: output, shape index: {1}]
  %4 = xla_tuple %s2, %s3
  %s5 = sld [smem:[#allocation0]]
  $region26: #{discriminator_forward.12} parent=0
    _
  %s7 = ssub.s32 1, %s5
  %s8 = scalar_select 0, %s7, %s5
  // Predicated region
  $region2: #{discriminator_forward.12} parent=0 // pred_check
    _
  $region3: #{discriminator_forward.12} parent=0 // pred_check_branch
    %10 = sbr.rel (0) target = $region5
  $region4: #{discriminator_forward.12} parent=0 // pred_region
    _
  $region5: #{discriminator_forward.12} parent=0 // pred_fallthru
    _
  // Predicated region
  $region6: #{discriminator_forward.12} parent=0 // pred_check
    _
  $region7: #{discriminator_forward.12} parent=0 // pred_check_branch
    %12 = sbr.rel (0) target = $region9
  $region8: #{discriminator_forward.12} parent=0 // pred_region
    _
  $region9: #{discriminator_forward.12} parent=0 // pred_fallthru
    _
  %v14 = vld [vmem:[%s0] sm:$0x1]
  %v15 = vld [vmem:[%s0 + $0x4] sm:$0x1]
  %v16 = vld [vmem:[%s0 + $0xc] sm:$0x1]
  %v17 = vld [vmem:[%s0 + $0x10] sm:$0x1]
  %v18 = vld [vmem:[%s0] sm:$0x3]
  %v19 = vld [vmem:[%s0 + $0x4] sm:$0x3]
  %v20 = vld [vmem:[%s0 + $0xc] sm:$0x3]
  %v21 = vld [vmem:[%s0 + $0x10] sm:$0x3]
  %s22 = scalar_lea.vmem %s0, 2
  %v23 = vld [vmem:[%s22] sm:$0x1]
  %v24 = vld [vmem:[%s22 + $0x4] sm:$0x1]
  %v25 = vld [vmem:[%s22 + $0xc] sm:$0x1]
  %v26 = vld [vmem:[%s22 + $0x10] sm:$0x1]
  %v27 = vld [vmem:[%s22] sm:$0x3]
  %v28 = vld [vmem:[%s22 + $0x4] sm:$0x3]
  %v29 = vld [vmem:[%s22 + $0xc] sm:$0x3]
  %v30 = vld [vmem:[%s22 + $0x10] sm:$0x3]
  %s31 = scalar_lea.vmem %s0, 4
  %v32 = vld [vmem:[%s31] sm:$0x1]
  %v33 = vld [vmem:[%s31 + $0x4] sm:$0x1]
  %v34 = vld [vmem:[%s31 + $0xc] sm:$0x1]
  %v35 = vld [vmem:[%s31 + $0x10] sm:$0x1]
  %v36 = vld [vmem:[%s31] sm:$0x3]
  %v37 = vld [vmem:[%s31 + $0x4] sm:$0x3]
  %v38 = vld [vmem:[%s31 + $0xc] sm:$0x3]
  %v39 = vld [vmem:[%s31 + $0x10] sm:$0x3]
  %s40 = scalar_lea.vmem %s0, 6
  %v41 = vld [vmem:[%s40] sm:$0x1]
  %v42 = vld [vmem:[%s40 + $0x4] sm:$0x1]
  %v43 = vld [vmem:[%s40 + $0xc] sm:$0x1]
  %v44 = vld [vmem:[%s40 + $0x10] sm:$0x1]
  %v45 = vld [vmem:[%s40] sm:$0x3]
  %v46 = vld [vmem:[%s40 + $0x4] sm:$0x3]
  %v47 = vld [vmem:[%s40 + $0xc] sm:$0x3]
  %v48 = vld [vmem:[%s40 + $0x10] sm:$0x3]
  %v54 = vunpack.c.l.s4 1983009808
  %v55 = vunpack.c.0.s8 %v54
  %v56 = vlaneseq
  %v57 = vshrl.u32 %v56, 7
  %v58 = vsub.s32 %v55, %v57
  %v59 = vrot.slane %v18, %v58
  %v61 = vunpack.c.l.s4 1983009808
  %v62 = vunpack.c.0.s8 %v61
  %v63 = vlaneseq
  %v64 = vshrl.u32 %v63, 7
  %v65 = vsub.s32 %v62, %v64
  %v66 = vrot.slane %v19, %v65
  %v68 = vunpack.c.l.s4 1983009808
  %v69 = vunpack.c.0.s8 %v68
  %v70 = vlaneseq
  %v71 = vshrl.u32 %v70, 7
  %v72 = vsub.s32 %v69, %v71
  %v73 = vrot.slane %v20, %v72
  %v75 = vunpack.c.l.s4 1983009808
  %v76 = vunpack.c.0.s8 %v75
  %v77 = vlaneseq
  %v78 = vshrl.u32 %v77, 7
  %v79 = vsub.s32 %v76, %v78
  %v80 = vrot.slane %v21, %v79
  %v82 = vshrl.u32 %v59, 16
  %v84 = vshll.u32 %v59, 16
  %v86 = vrot.slane %v84, 1
  %v87 = vor.u32 %v82, %v86
  %v89 = vshrl.u32 %v66, 16
  %v91 = vshll.u32 %v66, 16
  %v93 = vrot.slane %v91, 1
  %v94 = vor.u32 %v89, %v93
  %v96 = vshrl.u32 %v73, 16
  %v98 = vshll.u32 %v73, 16
  %v100 = vrot.slane %v98, 1
  %v101 = vor.u32 %v96, %v100
  %v103 = vshrl.u32 %v80, 16
  %v105 = vshll.u32 %v80, 16
  %v107 = vrot.slane %v105, 1
  %v108 = vor.u32 %v103, %v107
  %109 = vrot.lane.b32.xlu0 %v87, 64
  %v110 = vpop.permute.xlu0 %109
  %111 = vrot.lane.b32.xlu0 %v94, 64
  %v112 = vpop.permute.xlu0 %111
  %113 = vrot.lane.b32.xlu0 %v101, 64
  %v114 = vpop.permute.xlu0 %113
  %115 = vrot.lane.b32.xlu0 %v108, 64
  %v116 = vpop.permute.xlu0 %115
  %v122 = vunpack.c.l.s4 1983009808
  %v123 = vunpack.c.0.s8 %v122
  %v124 = vlaneseq
  %v125 = vshrl.u32 %v124, 7
  %v126 = vsub.s32 %v123, %v125
  %v127 = vrot.slane %v27, %v126
  %v129 = vunpack.c.l.s4 1983009808
  %v130 = vunpack.c.0.s8 %v129
  %v131 = vlaneseq
  %v132 = vshrl.u32 %v131, 7
  %v133 = vsub.s32 %v130, %v132
  %v134 = vrot.slane %v28, %v133
  %v136 = vunpack.c.l.s4 1983009808
  %v137 = vunpack.c.0.s8 %v136
  %v138 = vlaneseq
  %v139 = vshrl.u32 %v138, 7
  %v140 = vsub.s32 %v137, %v139
  %v141 = vrot.slane %v29, %v140
  %v143 = vunpack.c.l.s4 1983009808
  %v144 = vunpack.c.0.s8 %v143
  %v145 = vlaneseq
  %v146 = vshrl.u32 %v145, 7
  %v147 = vsub.s32 %v144, %v146
  %v148 = vrot.slane %v30, %v147
  %v150 = vshrl.u32 %v127, 16
  %v152 = vshll.u32 %v127, 16
  %v154 = vrot.slane %v152, 1
  %v155 = vor.u32 %v150, %v154
  %v157 = vshrl.u32 %v134, 16
  %v159 = vshll.u32 %v134, 16
  %v161 = vrot.slane %v159, 1
  %v162 = vor.u32 %v157, %v161
  %v164 = vshrl.u32 %v141, 16
  %v166 = vshll.u32 %v141, 16
  %v168 = vrot.slane %v166, 1
  %v169 = vor.u32 %v164, %v168
  %v171 = vshrl.u32 %v148, 16
  %v173 = vshll.u32 %v148, 16
  %v175 = vrot.slane %v173, 1
  %v176 = vor.u32 %v171, %v175
  %177 = vrot.lane.b32.xlu0 %v155, 64
  %v178 = vpop.permute.xlu0 %177
  %179 = vrot.lane.b32.xlu0 %v162, 64
  %v180 = vpop.permute.xlu0 %179
  %181 = vrot.lane.b32.xlu0 %v169, 64
  %v182 = vpop.permute.xlu0 %181
  %183 = vrot.lane.b32.xlu0 %v176, 64
  %v184 = vpop.permute.xlu0 %183
  %v190 = vunpack.c.l.s4 1983009808
  %v191 = vunpack.c.0.s8 %v190
  %v192 = vlaneseq
  %v193 = vshrl.u32 %v192, 7
  %v194 = vsub.s32 %v191, %v193
  %v195 = vrot.slane %v36, %v194
  %v197 = vunpack.c.l.s4 1983009808
  %v198 = vunpack.c.0.s8 %v197
  %v199 = vlaneseq
  %v200 = vshrl.u32 %v199, 7
  %v201 = vsub.s32 %v198, %v200
  %v202 = vrot.slane %v37, %v201
  %v204 = vunpack.c.l.s4 1983009808
  %v205 = vunpack.c.0.s8 %v204
  %v206 = vlaneseq
  %v207 = vshrl.u32 %v206, 7
  %v208 = vsub.s32 %v205, %v207
  %v209 = vrot.slane %v38, %v208
  %v211 = vunpack.c.l.s4 1983009808
  %v212 = vunpack.c.0.s8 %v211
  %v213 = vlaneseq
  %v214 = vshrl.u32 %v213, 7
  %v215 = vsub.s32 %v212, %v214
  %v216 = vrot.slane %v39, %v215
  %v218 = vshrl.u32 %v195, 16
  %v220 = vshll.u32 %v195, 16
  %v222 = vrot.slane %v220, 1
  %v223 = vor.u32 %v218, %v222
  %v225 = vshrl.u32 %v202, 16
  %v227 = vshll.u32 %v202, 16
  %v229 = vrot.slane %v227, 1
  %v230 = vor.u32 %v225, %v229
  %v232 = vshrl.u32 %v209, 16
  %v234 = vshll.u32 %v209, 16
  %v236 = vrot.slane %v234, 1
  %v237 = vor.u32 %v232, %v236
  %v239 = vshrl.u32 %v216, 16
  %v241 = vshll.u32 %v216, 16
  %v243 = vrot.slane %v241, 1
  %v244 = vor.u32 %v239, %v243
  %245 = vrot.lane.b32.xlu0 %v223, 64
  %v246 = vpop.permute.xlu0 %245
  %247 = vrot.lane.b32.xlu0 %v230, 64
  %v248 = vpop.permute.xlu0 %247
  %249 = vrot.lane.b32.xlu0 %v237, 64
  %v250 = vpop.permute.xlu0 %249
  %251 = vrot.lane.b32.xlu0 %v244, 64
  %v252 = vpop.permute.xlu0 %251
  %v258 = vunpack.c.l.s4 1983009808
  %v259 = vunpack.c.0.s8 %v258
  %v260 = vlaneseq
  %v261 = vshrl.u32 %v260, 7
  %v262 = vsub.s32 %v259, %v261
  %v263 = vrot.slane %v45, %v262
  %v265 = vunpack.c.l.s4 1983009808
  %v266 = vunpack.c.0.s8 %v265
  %v267 = vlaneseq
  %v268 = vshrl.u32 %v267, 7
  %v269 = vsub.s32 %v266, %v268
  %v270 = vrot.slane %v46, %v269
  %v272 = vunpack.c.l.s4 1983009808
  %v273 = vunpack.c.0.s8 %v272
  %v274 = vlaneseq
  %v275 = vshrl.u32 %v274, 7
  %v276 = vsub.s32 %v273, %v275
  %v277 = vrot.slane %v47, %v276
  %v279 = vunpack.c.l.s4 1983009808
  %v280 = vunpack.c.0.s8 %v279
  %v281 = vlaneseq
  %v282 = vshrl.u32 %v281, 7
  %v283 = vsub.s32 %v280, %v282
  %v284 = vrot.slane %v48, %v283
  %v286 = vshrl.u32 %v263, 16
  %v288 = vshll.u32 %v263, 16
  %v290 = vrot.slane %v288, 1
  %v291 = vor.u32 %v286, %v290
  %v293 = vshrl.u32 %v270, 16
  %v295 = vshll.u32 %v270, 16
  %v297 = vrot.slane %v295, 1
  %v298 = vor.u32 %v293, %v297
  %v300 = vshrl.u32 %v277, 16
  %v302 = vshll.u32 %v277, 16
  %v304 = vrot.slane %v302, 1
  %v305 = vor.u32 %v300, %v304
  %v307 = vshrl.u32 %v284, 16
  %v309 = vshll.u32 %v284, 16
  %v311 = vrot.slane %v309, 1
  %v312 = vor.u32 %v307, %v311
  %313 = vrot.lane.b32.xlu0 %v291, 64
  %v314 = vpop.permute.xlu0 %313
  %315 = vrot.lane.b32.xlu0 %v298, 64
  %v316 = vpop.permute.xlu0 %315
  %317 = vrot.lane.b32.xlu0 %v305, 64
  %v318 = vpop.permute.xlu0 %317
  %319 = vrot.lane.b32.xlu0 %v312, 64
  %v320 = vpop.permute.xlu0 %319
  %vm321 = vcmask 523264
  %v324 = vsel %vm321, %v14, %v110
  %v327 = vsel %vm321, %v15, %v112
  %v330 = vsel %vm321, %v16, %v114
  %v333 = vsel %vm321, %v17, %v116
  %v336 = vsel %vm321, %v23, %v178
  %v339 = vsel %vm321, %v24, %v180
  %v342 = vsel %vm321, %v25, %v182
  %v345 = vsel %vm321, %v26, %v184
  %v348 = vsel %vm321, %v32, %v246
  %v351 = vsel %vm321, %v33, %v248
  %v354 = vsel %vm321, %v34, %v250
  %v357 = vsel %vm321, %v35, %v252
  %v360 = vsel %vm321, %v41, %v314
  %v363 = vsel %vm321, %v42, %v316
  %v366 = vsel %vm321, %v43, %v318
  %v369 = vsel %vm321, %v44, %v320
  %v386 = vcombine.low %v324, %v336
  %v387 = vcombine.low %v348, %v360
  %v389 = vunpack.c.l.s4 1966171168
  %v390 = vunpack.c.0.s8 %v389
  %v391 = vlaneseq
  %v392 = vshrl.u32 %v391, 7
  %v393 = vsub.s32 %v390, %v392
  %v394 = vrot.slane %v386, %v393
  %v396 = vunpack.c.l.s4 1966171168
  %v397 = vunpack.c.0.s8 %v396
  %v398 = vlaneseq
  %v399 = vshrl.u32 %v398, 7
  %v400 = vsub.s32 %v397, %v399
  %v401 = vrot.slane %v387, %v400
  %v402 = vcombine.low %v394, %v401
  %v404 = vunpack.c.l.s4 1966171168
  %v405 = vunpack.c.0.s8 %v404
  %v406 = vlaneseq
  %v407 = vshrl.u32 %v406, 7
  %v408 = vsub.s32 %v405, %v407
  %v409 = vrot.slane %v402, %v408
  %v410 = vcombine.low %v327, %v339
  %v411 = vcombine.low %v351, %v363
  %v413 = vunpack.c.l.s4 1966171168
  %v414 = vunpack.c.0.s8 %v413
  %v415 = vlaneseq
  %v416 = vshrl.u32 %v415, 7
  %v417 = vsub.s32 %v414, %v416
  %v418 = vrot.slane %v410, %v417
  %v420 = vunpack.c.l.s4 1966171168
  %v421 = vunpack.c.0.s8 %v420
  %v422 = vlaneseq
  %v423 = vshrl.u32 %v422, 7
  %v424 = vsub.s32 %v421, %v423
  %v425 = vrot.slane %v411, %v424
  %v426 = vcombine.low %v418, %v425
  %v428 = vunpack.c.l.s4 1966171168
  %v429 = vunpack.c.0.s8 %v428
  %v430 = vlaneseq
  %v431 = vshrl.u32 %v430, 7
  %v432 = vsub.s32 %v429, %v431
  %v433 = vrot.slane %v426, %v432
  %v434 = vcombine.low %v330, %v342
  %v435 = vcombine.low %v354, %v366
  %v437 = vunpack.c.l.s4 1966171168
  %v438 = vunpack.c.0.s8 %v437
  %v439 = vlaneseq
  %v440 = vshrl.u32 %v439, 7
  %v441 = vsub.s32 %v438, %v440
  %v442 = vrot.slane %v434, %v441
  %v444 = vunpack.c.l.s4 1966171168
  %v445 = vunpack.c.0.s8 %v444
  %v446 = vlaneseq
  %v447 = vshrl.u32 %v446, 7
  %v448 = vsub.s32 %v445, %v447
  %v449 = vrot.slane %v435, %v448
  %v450 = vcombine.low %v442, %v449
  %v452 = vunpack.c.l.s4 1966171168
  %v453 = vunpack.c.0.s8 %v452
  %v454 = vlaneseq
  %v455 = vshrl.u32 %v454, 7
  %v456 = vsub.s32 %v453, %v455
  %v457 = vrot.slane %v450, %v456
  %v458 = vcombine.low %v333, %v345
  %v459 = vcombine.low %v357, %v369
  %v461 = vunpack.c.l.s4 1966171168
  %v462 = vunpack.c.0.s8 %v461
  %v463 = vlaneseq
  %v464 = vshrl.u32 %v463, 7
  %v465 = vsub.s32 %v462, %v464
  %v466 = vrot.slane %v458, %v465
  %v468 = vunpack.c.l.s4 1966171168
  %v469 = vunpack.c.0.s8 %v468
  %v470 = vlaneseq
  %v471 = vshrl.u32 %v470, 7
  %v472 = vsub.s32 %v469, %v471
  %v473 = vrot.slane %v459, %v472
  %v474 = vcombine.low %v466, %v473
  %v476 = vunpack.c.l.s4 1966171168
  %v477 = vunpack.c.0.s8 %v476
  %v478 = vlaneseq
  %v479 = vshrl.u32 %v478, 7
  %v480 = vsub.s32 %v477, %v479
  %v481 = vrot.slane %v474, %v480
  %v482 = vld [vmem:[%s1] sm:$0xf]
  %v483 = vld [vmem:[%s1 + $0x4] sm:$0xf]
  %v484 = vld [vmem:[%s1 + $0x8] sm:$0xf]
  %v485 = vld [vmem:[%s1 + $0xc] sm:$0xf]
  %v486 = vld [vmem:[%s1 + $0x10] sm:$0xf]
  %v487 = vld [vmem:[%s1 + $0x14] sm:$0xf]
  %v488 = vld [vmem:[%s1 + $0x18] sm:$0xf]
  %v489 = vld [vmem:[%s1 + $0x1c] sm:$0xf]
  %v490 = vld [vmem:[%s1 + $0x20] sm:$0xf]
  %v491 = vld [vmem:[%s1 + $0x24] sm:$0xf]
  %v492 = vld [vmem:[%s1 + $0x28] sm:$0xf]
  %v493 = vld [vmem:[%s1 + $0x2c] sm:$0xf]
  %v494 = vld [vmem:[%s1 + $0x30] sm:$0xf]
  %v495 = vld [vmem:[%s1 + $0x34] sm:$0xf]
  %v496 = vld [vmem:[%s1 + $0x38] sm:$0xf]
  %v497 = vld [vmem:[%s1 + $0x3c] sm:$0xf]
  %v498 = vld [vmem:[%s1 + $0x40] sm:$0xf]
  %v499 = vld [vmem:[%s1 + $0x44] sm:$0xf]
  %v500 = vld [vmem:[%s1 + $0x48] sm:$0xf]
  %v501 = vld [vmem:[%s1 + $0x4c] sm:$0xf]
  %v502 = vld [vmem:[%s1 + $0x50] sm:$0xf]
  %v503 = vld [vmem:[%s1 + $0x54] sm:$0xf]
  %v504 = vld [vmem:[%s1 + $0x58] sm:$0xf]
  %v505 = vld [vmem:[%s1 + $0x5c] sm:$0xf]
  %v506 = vld [vmem:[%s1 + $0x60] sm:$0xf]
  %v507 = vld [vmem:[%s1 + $0x64] sm:$0xf]
  %v508 = vld [vmem:[%s1 + $0x68] sm:$0xf]
  %v509 = vld [vmem:[%s1 + $0x6c] sm:$0xf]
  %v510 = vld [vmem:[%s1 + $0x70] sm:$0xf]
  %v511 = vld [vmem:[%s1 + $0x74] sm:$0xf]
  %v512 = vld [vmem:[%s1 + $0x78] sm:$0xf]
  %v513 = vld [vmem:[%s1 + $0x7c] sm:$0xf]
  %v514 = vld [vmem:[%s1 + $0x80] sm:$0xf]
  %v515 = vld [vmem:[%s1 + $0x84] sm:$0xf]
  %v516 = vld [vmem:[%s1 + $0x88] sm:$0xf]
  %v517 = vld [vmem:[%s1 + $0x8c] sm:$0xf]
  %v518 = vld [vmem:[%s1 + $0x90] sm:$0xf]
  %v519 = vld [vmem:[%s1 + $0x94] sm:$0xf]
  %v520 = vld [vmem:[%s1 + $0x98] sm:$0xf]
  %v521 = vld [vmem:[%s1 + $0x9c] sm:$0xf]
  %v522 = vld [vmem:[%s1 + $0xa0] sm:$0xf]
  %v523 = vld [vmem:[%s1 + $0xa4] sm:$0xf]
  %v524 = vld [vmem:[%s1 + $0xa8] sm:$0xf]
  %v525 = vld [vmem:[%s1 + $0xac] sm:$0xf]
  %v526 = vld [vmem:[%s1 + $0xb0] sm:$0xf]
  %v527 = vld [vmem:[%s1 + $0xb4] sm:$0xf]
  %v528 = vld [vmem:[%s1 + $0xb8] sm:$0xf]
  %v529 = vld [vmem:[%s1 + $0xbc] sm:$0xf]
  %v530 = vld [vmem:[%s1 + $0xc0] sm:$0xf]
  %v531 = vld [vmem:[%s1 + $0xc4] sm:$0xf]
  %v532 = vld [vmem:[%s1 + $0xc8] sm:$0xf]
  %v533 = vld [vmem:[%s1 + $0xcc] sm:$0xf]
  %v534 = vld [vmem:[%s1 + $0xd0] sm:$0xf]
  %v535 = vld [vmem:[%s1 + $0xd4] sm:$0xf]
  %v536 = vld [vmem:[%s1 + $0xd8] sm:$0xf]
  %v537 = vld [vmem:[%s1 + $0xdc] sm:$0xf]
  %v538 = vld [vmem:[%s1 + $0xe0] sm:$0xf]
  %v539 = vld [vmem:[%s1 + $0xe4] sm:$0xf]
  %v540 = vld [vmem:[%s1 + $0xe8] sm:$0xf]
  %v541 = vld [vmem:[%s1 + $0xec] sm:$0xf]
  %v542 = vld [vmem:[%s1 + $0xf0] sm:$0xf]
  %v543 = vld [vmem:[%s1 + $0xf4] sm:$0xf]
  %v544 = vld [vmem:[%s1 + $0xf8] sm:$0xf]
  %v545 = vld [vmem:[%s1 + $0xfc] sm:$0xf]
  %v546 = vcombine.low %v409, %v433
  %v547 = vcombine.low %v457, %v481
  %v549 = vunpack.c.l.s4 1966171168
  %v550 = vunpack.c.0.s8 %v549
  %v551 = vlaneseq
  %v552 = vshrl.u32 %v551, 7
  %v553 = vsub.s32 %v550, %v552
  %v554 = vrot.slane %v546, %v553
  %v556 = vunpack.c.l.s4 1966171168
  %v557 = vunpack.c.0.s8 %v556
  %v558 = vlaneseq
  %v559 = vshrl.u32 %v558, 7
  %v560 = vsub.s32 %v557, %v559
  %v561 = vrot.slane %v547, %v560
  %v562 = vcombine.low %v554, %v561
  %v563 = vcombine.high %v554, %v561
  %v565 = vunpack.c.l.s4 1966171168
  %v566 = vunpack.c.0.s8 %v565
  %v567 = vlaneseq
  %v568 = vshrl.u32 %v567, 7
  %v569 = vsub.s32 %v566, %v568
  %v570 = vrot.slane %v562, %v569
  %v572 = vunpack.c.l.s4 1966171168
  %v573 = vunpack.c.0.s8 %v572
  %v574 = vlaneseq
  %v575 = vshrl.u32 %v574, 7
  %v576 = vsub.s32 %v573, %v575
  %v577 = vrot.slane %v563, %v576
  %v578 = vcombine.high %v570, %v570
  %v579 = vcombine.high %v577, %v577
  %v648 = vunpack.c.l.b16 %v482
  %v649 = vunpack.c.l.b16 %v483
  %v650 = vunpack.c.l.b16 %v484
  %v651 = vunpack.c.l.b16 %v485
  %v652 = vunpack.c.l.b16 %v486
  %v653 = vunpack.c.l.b16 %v487
  %v654 = vunpack.c.l.b16 %v488
  %v655 = vunpack.c.l.b16 %v489
  %v656 = vunpack.c.l.b16 %v490
  %v657 = vunpack.c.l.b16 %v491
  %v658 = vunpack.c.l.b16 %v492
  %v659 = vunpack.c.l.b16 %v493
  %v660 = vunpack.c.l.b16 %v494
  %v661 = vunpack.c.l.b16 %v495
  %v662 = vunpack.c.l.b16 %v496
  %v663 = vunpack.c.l.b16 %v497
  %v664 = vunpack.c.l.b16 %v498
  %v665 = vunpack.c.l.b16 %v499
  %v666 = vunpack.c.l.b16 %v500
  %v667 = vunpack.c.l.b16 %v501
  %v668 = vunpack.c.l.b16 %v502
  %v669 = vunpack.c.l.b16 %v503
  %v670 = vunpack.c.l.b16 %v504
  %v671 = vunpack.c.l.b16 %v505
  %v672 = vunpack.c.l.b16 %v506
  %v673 = vunpack.c.l.b16 %v507
  %v674 = vunpack.c.l.b16 %v508
  %v675 = vunpack.c.l.b16 %v509
  %v676 = vunpack.c.l.b16 %v510
  %v677 = vunpack.c.l.b16 %v511
  %v678 = vunpack.c.l.b16 %v512
  %v679 = vunpack.c.l.b16 %v513
  %v680 = vunpack.c.l.b16 %v514
  %v681 = vunpack.c.l.b16 %v515
  %v682 = vunpack.c.l.b16 %v516
  %v683 = vunpack.c.l.b16 %v517
  %v684 = vunpack.c.l.b16 %v518
  %v685 = vunpack.c.l.b16 %v519
  %v686 = vunpack.c.l.b16 %v520
  %v687 = vunpack.c.l.b16 %v521
  %v688 = vunpack.c.l.b16 %v522
  %v689 = vunpack.c.l.b16 %v523
  %v690 = vunpack.c.l.b16 %v524
  %v691 = vunpack.c.l.b16 %v525
  %v692 = vunpack.c.l.b16 %v526
  %v693 = vunpack.c.l.b16 %v527
  %v694 = vunpack.c.l.b16 %v528
  %v695 = vunpack.c.l.b16 %v529
  %v696 = vunpack.c.l.b16 %v530
  %v697 = vunpack.c.l.b16 %v531
  %v698 = vunpack.c.l.b16 %v532
  %v699 = vunpack.c.l.b16 %v533
  %v700 = vunpack.c.l.b16 %v534
  %v701 = vunpack.c.l.b16 %v535
  %v702 = vunpack.c.l.b16 %v536
  %v703 = vunpack.c.l.b16 %v537
  %v704 = vunpack.c.l.b16 %v538
  %v705 = vunpack.c.l.b16 %v539
  %v706 = vunpack.c.l.b16 %v540
  %v707 = vunpack.c.l.b16 %v541
  %v708 = vunpack.c.l.b16 %v542
  %v709 = vunpack.c.l.b16 %v543
  %v710 = vunpack.c.l.b16 %v544
  %v711 = vunpack.c.l.b16 %v545
  %v712 = vpack.c.b16 %v649, %v648
  %v713 = vpack.c.b16 %v651, %v650
  %v714 = vpack.c.b16 %v653, %v652
  %v715 = vpack.c.b16 %v655, %v654
  %v716 = vpack.c.b16 %v657, %v656
  %v717 = vpack.c.b16 %v659, %v658
  %v718 = vpack.c.b16 %v661, %v660
  %v719 = vpack.c.b16 %v663, %v662
  %v720 = vpack.c.b16 %v665, %v664
  %v721 = vpack.c.b16 %v667, %v666
  %v722 = vpack.c.b16 %v669, %v668
  %v723 = vpack.c.b16 %v671, %v670
  %v724 = vpack.c.b16 %v673, %v672
  %v725 = vpack.c.b16 %v675, %v674
  %v726 = vpack.c.b16 %v677, %v676
  %v727 = vpack.c.b16 %v679, %v678
  %v728 = vpack.c.b16 %v681, %v680
  %v729 = vpack.c.b16 %v683, %v682
  %v730 = vpack.c.b16 %v685, %v684
  %v731 = vpack.c.b16 %v687, %v686
  %v732 = vpack.c.b16 %v689, %v688
  %v733 = vpack.c.b16 %v691, %v690
  %v734 = vpack.c.b16 %v693, %v692
  %v735 = vpack.c.b16 %v695, %v694
  %v736 = vpack.c.b16 %v697, %v696
  %v737 = vpack.c.b16 %v699, %v698
  %v738 = vpack.c.b16 %v701, %v700
  %v739 = vpack.c.b16 %v703, %v702
  %v740 = vpack.c.b16 %v705, %v704
  %v741 = vpack.c.b16 %v707, %v706
  %v742 = vpack.c.b16 %v709, %v708
  %v743 = vpack.c.b16 %v711, %v710
  %776 = vmatprep.subr.bf16.mxu0 0
  %777 = vmatpush1.bf16.msra.mxu0 %v712
  %778 = vmatprep.subr.bf16.mxu0 0
  %779 = vmatpush1.bf16.msra.mxu0 %v713
  %780 = vmatprep.subr.bf16.mxu0 0
  %781 = vmatpush1.bf16.msra.mxu0 %v714
  %782 = vmatprep.subr.bf16.mxu0 0
  %783 = vmatpush1.bf16.msra.mxu0 %v715
  %784 = vmatprep.subr.bf16.mxu0 0
  %785 = vmatpush1.bf16.msra.mxu0 %v716
  %786 = vmatprep.subr.bf16.mxu0 0
  %787 = vmatpush1.bf16.msra.mxu0 %v717
  %788 = vmatprep.subr.bf16.mxu0 0
  %789 = vmatpush1.bf16.msra.mxu0 %v718
  %790 = vmatprep.subr.bf16.mxu0 0
  %791 = vmatpush1.bf16.msra.mxu0 %v719
  %792 = vmatprep.subr.bf16.mxu0 0
  %793 = vmatpush1.bf16.msra.mxu0 %v720
  %794 = vmatprep.subr.bf16.mxu0 0
  %795 = vmatpush1.bf16.msra.mxu0 %v721
  %796 = vmatprep.subr.bf16.mxu0 0
  %797 = vmatpush1.bf16.msra.mxu0 %v722
  %798 = vmatprep.subr.bf16.mxu0 0
  %799 = vmatpush1.bf16.msra.mxu0 %v723
  %800 = vmatprep.subr.bf16.mxu0 0
  %801 = vmatpush1.bf16.msra.mxu0 %v724
  %802 = vmatprep.subr.bf16.mxu0 0
  %803 = vmatpush1.bf16.msra.mxu0 %v725
  %804 = vmatprep.subr.bf16.mxu0 0
  %805 = vmatpush1.bf16.msra.mxu0 %v726
  %806 = vmatprep.subr.bf16.mxu0 0
  %807 = vmatpush1.bf16.msra.mxu0 %v727
  %808 = vmatprep.mubr.bf16.mxu0 %v577
  %809 = vmatmul.mubr.bf16.gmra.mrb[0].mxu0 %v570
  %v810 = vpop.f32.mrb[0].mxu0
  %v811 = vadd.f32 0.0, %v810
  %v812 = vpop.f32.mrb[0].mxu0
  %v813 = vpop.f32.mrb[0].mxu0
  %v814 = vpop.f32.mrb[0].mxu0
  %815 = vdwg.mxu0
  %816 = vmatprep.subr.bf16.mxu0 0
  %817 = vmatpush1.bf16.msra.mxu0 %v728
  %818 = vmatprep.subr.bf16.mxu0 0
  %819 = vmatpush1.bf16.msra.mxu0 %v729
  %820 = vmatprep.subr.bf16.mxu0 0
  %821 = vmatpush1.bf16.msra.mxu0 %v730
  %822 = vmatprep.subr.bf16.mxu0 0
  %823 = vmatpush1.bf16.msra.mxu0 %v731
  %824 = vmatprep.subr.bf16.mxu0 0
  %825 = vmatpush1.bf16.msra.mxu0 %v732
  %826 = vmatprep.subr.bf16.mxu0 0
  %827 = vmatpush1.bf16.msra.mxu0 %v733
  %828 = vmatprep.subr.bf16.mxu0 0
  %829 = vmatpush1.bf16.msra.mxu0 %v734
  %830 = vmatprep.subr.bf16.mxu0 0
  %831 = vmatpush1.bf16.msra.mxu0 %v735
  %832 = vmatprep.subr.bf16.mxu0 0
  %833 = vmatpush1.bf16.msra.mxu0 %v736
  %834 = vmatprep.subr.bf16.mxu0 0
  %835 = vmatpush1.bf16.msra.mxu0 %v737
  %836 = vmatprep.subr.bf16.mxu0 0
  %837 = vmatpush1.bf16.msra.mxu0 %v738
  %838 = vmatprep.subr.bf16.mxu0 0
  %839 = vmatpush1.bf16.msra.mxu0 %v739
  %840 = vmatprep.subr.bf16.mxu0 0
  %841 = vmatpush1.bf16.msra.mxu0 %v740
  %842 = vmatprep.subr.bf16.mxu0 0
  %843 = vmatpush1.bf16.msra.mxu0 %v741
  %844 = vmatprep.subr.bf16.mxu0 0
  %845 = vmatpush1.bf16.msra.mxu0 %v742
  %846 = vmatprep.subr.bf16.mxu0 0
  %847 = vmatpush1.bf16.msra.mxu0 %v743
  %848 = vmatprep.mubr.bf16.mxu0 %v579
  %849 = vmatmul.mubr.bf16.gmra.mrb[0].mxu0 %v578
  %v850 = vpop.f32.mrb[0].mxu0
  %v851 = vadd.f32 %v811, %v850
  %v852 = vpop.f32.mrb[0].mxu0
  %v853 = vpop.f32.mrb[0].mxu0
  %v854 = vpop.f32.mrb[0].mxu0
  %855 = vdwg.mxu0
  %v856 = vsel %vm321, %v851, 0.0
  %v857 = vrot.slane %v856, 4
  %v858 = vadd.f32 %v856, %v857
  %v859 = vrot.slane %v858, 2
  %v860 = vadd.f32 %v858, %v859
  %v861 = vrot.slane %v860, 1
  %v862 = vadd.f32 %v860, %v861
  %v863 = vmul.f32 %v851, %v851
  %v864 = vsel %vm321, %v863, 0.0
  %v865 = vrot.slane %v864, 4
  %v866 = vadd.f32 %v864, %v865
  %v867 = vrot.slane %v866, 2
  %v868 = vadd.f32 %v866, %v867
  %v869 = vrot.slane %v868, 1
  %v870 = vadd.f32 %v868, %v869
  %vm871 = vcmask 1040384
  %v872 = vsel %vm871, %v862, %v870
  %vm873 = vcmask 517120
  %874 = vst.msk [vmem:[%s3] sm:$0x3] %vm873, %v872
  %v876 = vcombine.high %v851, %v851
  %v878 = vunpack.c.l.s4 1983009808
  %v879 = vunpack.c.0.s8 %v878
  %v880 = vlaneseq
  %v881 = vshrl.u32 %v880, 7
  %v882 = vsub.s32 %v879, %v881
  %v883 = vrot.slane %v851, %v882
  %v885 = vunpack.c.l.s4 1983009808
  %v886 = vunpack.c.0.s8 %v885
  %v887 = vlaneseq
  %v888 = vshrl.u32 %v887, 7
  %v889 = vsub.s32 %v886, %v888
  %v890 = vrot.slane %v876, %v889
  %v891 = vcombine.high %v883, %v883
  %v892 = vcombine.high %v890, %v890
  %v897 = vpack.c.bf16 %v883, %v883
  %v898 = vpack.c.bf16 %v891, %v891
  %v899 = vpack.c.bf16 %v890, %v890
  %v900 = vpack.c.bf16 %v892, %v892
  %vm901 = vcmask 516096
  %902 = vst.msk [vmem:[%s2] sm:$0x1] %vm901, %v897
  %903 = vst.msk [vmem:[%s2 + $0x1] sm:$0x1] %vm901, %v898
  %904 = vst.msk [vmem:[%s2 + $0x2] sm:$0x1] %vm901, %v899
  %905 = vst.msk [vmem:[%s2 + $0x3] sm:$0x1] %vm901, %v900
  // Predicated region
  $region10: #{discriminator_forward.12} parent=0 // pred_check
    _
  $region11: #{discriminator_forward.12} parent=0 // pred_check_branch
    %907 = sbr.rel (0) target = $region13
  $region12: #{discriminator_forward.12} parent=0 // pred_region
    _
  $region13: #{discriminator_forward.12} parent=0 // pred_fallthru
    _
  // Predicated region
  $region14: #{discriminator_forward.12} parent=0 // pred_check
    _
  $region15: #{discriminator_forward.12} parent=0 // pred_check_branch
    %909 = sbr.rel (0) target = $region17
  $region16: #{discriminator_forward.12} parent=0 // pred_region
    _
  $region17: #{discriminator_forward.12} parent=0 // pred_fallthru
    _
  // Predicated region
  $region18: #{discriminator_forward.12} parent=0 // pred_check
    _
  $region19: #{discriminator_forward.12} parent=0 // pred_check_branch
    %911 = sbr.rel (0) target = $region21
  $region20: #{discriminator_forward.12} parent=0 // pred_region
    _
  $region21: #{discriminator_forward.12} parent=0 // pred_fallthru
    _
  // Predicated region
  $region22: #{discriminator_forward.12} parent=0 // pred_check
    _
  $region23: #{discriminator_forward.12} parent=0 // pred_check_branch
    %913 = sbr.rel (0) target = $region25
  $region24: #{discriminator_forward.12} parent=0 // pred_region
    _
  $region25: #{discriminator_forward.12} parent=0 // pred_fallthru
    _

</llo_original>
